<compile_context>
chip_gen: v7x
topology: tpu7x:2x2x1
jax: 0.10.0
libtpu: 0.0.40
codegen_flags: <defaults>
</compile_context>

<pallas_src>
import jax
import jax.numpy as jnp
from jax.experimental import pallas as pl
from jax.experimental.pallas import tpu as pltpu


def _lfa_cell_kernel(x_ref, h_ref, c_ref, f_ref, xx_ref,
                     w_conv_ref, b_conv_ref,
                     w_hq_ref, b_hq_ref,
                     w_kv_ref, b_kv_ref,
                     w_hf_ref, b_hf_ref,
                     h_next_ref, c_next_ref, f_next_ref,
                     pad1_ref, col1_ref, pad2_ref, col2_ref):
    """Whole LFA-ConvLSTM cell for one batch element (grid axis = batch)."""
    _, H, W, Cx = x_ref.shape
    Ch = h_ref.shape[-1]
    Hp, Wp, Cin1 = pad1_ref.shape
    Cin2 = pad2_ref.shape[-1]
    KH, KW = Hp - H + 1, Wp - W + 1
    ph, pw = KH // 2, KW // 2
    HW = H * W

    # ---- stage 1: conv([x, h]) -> i, f, o, g gates ------------------------
    # Zero-padded [x | h] plane built in VMEM (replaces XLA concat + pad).
    pad1_ref[...] = jnp.zeros_like(pad1_ref)
    pad1_ref[ph:ph + H, pw:pw + W, :Cx] = x_ref[0]
    pad1_ref[ph:ph + H, pw:pw + W, Cx:] = h_ref[0]

    # im2col slab (HW, KH*KW*Cin1); column order matches
    # w_conv.reshape(KH*KW*Cin1, 4*Ch): tap-major, channel-minor.  Static 3x3
    # Python loop -> fully unrolled, visible to the LLO scheduler.
    for dy in range(KH):
        for dx in range(KW):
            t = dy * KW + dx
            col1_ref[:, t * Cin1:(t + 1) * Cin1] = (
                pad1_ref[dy:dy + H, dx:dx + W, :].reshape(HW, Cin1))

    # one K = KH*KW*Cin1 MXU matmul with f32 accumulation.
    acc1 = jnp.dot(col1_ref[...], w_conv_ref[...],
                   preferred_element_type=jnp.float32) + b_conv_ref[...]

    # one full-width (4*Ch = 128-lane = 1 vreg) sigmoid pass keeps EUP lanes
    # dense; only the g gate needs a separate tanh on its 32-lane slice.
    sig1 = jax.nn.sigmoid(acc1)
    g_g = jnp.tanh(acc1[:, 3 * Ch:])
    c_next = sig1[:, Ch:2 * Ch] * c_ref[0] + sig1[:, :Ch] * g_g
    h = sig1[:, 2 * Ch:3 * Ch] * jnp.tanh(c_next)

    # ---- LFA2 attention: per-pixel channel dot-product gate ---------------
    xx = xx_ref[0]
    q = jnp.dot(h, w_hq_ref[...],
                preferred_element_type=jnp.float32) + b_hq_ref[...]
    kv = jnp.dot(xx, w_kv_ref[...],
                 preferred_element_type=jnp.float32) + b_kv_ref[...]
    k, v = kv[:, :Ch], kv[:, Ch:]
    alpha = jax.nn.sigmoid(jnp.sum(q * k, axis=-1, keepdims=True))
    zf = jnp.tanh(v * alpha)

    # ---- stage 2: convhf([zf, h]) -> ii, gg, oo ----------------------------
    pad2_ref[...] = jnp.zeros_like(pad2_ref)
    pad2_ref[ph:ph + H, pw:pw + W, :Ch] = zf.reshape(H, W, Ch)
    pad2_ref[ph:ph + H, pw:pw + W, Ch:] = h.reshape(H, W, Ch)
    for dy in range(KH):
        for dx in range(KW):
            t = dy * KW + dx
            col2_ref[:, t * Cin2:(t + 1) * Cin2] = (
                pad2_ref[dy:dy + H, dx:dx + W, :].reshape(HW, Cin2))

    acc2 = jnp.dot(col2_ref[...], w_hf_ref[...],
                   preferred_element_type=jnp.float32) + b_hf_ref[...]
    sig2 = jax.nn.sigmoid(acc2)
    ii = sig2[:, :Ch]
    gg = jnp.tanh(acc2[:, Ch:2 * Ch])
    oo = sig2[:, 2 * Ch:]

    f_next = ii * gg + (1.0 - ii) * f_ref[0]
    h_next = oo * f_next

    h_next_ref[0] = h_next
    c_next_ref[0] = c_next
    f_next_ref[0] = f_next


def lfa_convlstm_cell_out(x, h_cur, c_cur, f_cur, xx, params):
    """Pallas forward of LFAConvLSTM_Cell_Out.  I/O uses PyTorch NCHW layout."""
    B, Cx, H, W = x.shape
    Ch = h_cur.shape[1]
    KH, KW = params["w_conv"].shape[:2]
    Cin1, Cin2 = Cx + Ch, 2 * Ch
    HW = H * W

    # NCHW -> NHWC (tiny XLA transposes, ~64 KiB each).  TODO(synk): in a full
    # sequence model, carry h/c/f state in NHWC between steps so these only
    # happen at sequence boundaries.
    to_nhwc = lambda t: jnp.transpose(t, (0, 2, 3, 1)).astype(jnp.float32)
    xn = to_nhwc(x)
    hn = to_nhwc(h_cur)
    cf = to_nhwc(c_cur).reshape(B, HW, Ch)
    ff = to_nhwc(f_cur).reshape(B, HW, Ch)
    xxf = to_nhwc(xx).reshape(B, HW, Ch)

    f32 = lambda t: t.astype(jnp.float32)
    # NOTE: matmul inputs kept in f32 so the kernel stays within the 5e-3
    # accuracy bar of the f32 reference; cast to bf16 here for ~2x MXU
    # throughput on v6e/v7x if a looser tolerance is acceptable.
    w_conv_r = f32(params["w_conv"]).reshape(KH * KW * Cin1, 4 * Ch)
    w_hf_r = f32(params["w_hf"]).reshape(KH * KW * Cin2, 3 * Ch)
    w_kv = jnp.concatenate([f32(params["w_mk"]), f32(params["w_mv"])], axis=1)
    b_kv = jnp.concatenate([f32(params["b_mk"]), f32(params["b_mv"])], axis=1)

    flat = jax.ShapeDtypeStruct((B, HW, Ch), jnp.float32)

    def _full_spec(arr):
        nd = arr.ndim
        return pl.BlockSpec(arr.shape, lambda b, _nd=nd: (0,) * _nd)

    batch3 = lambda shape: pl.BlockSpec(shape, lambda b: (b, 0, 0))

    in_specs = [
        pl.BlockSpec((1, H, W, Cx), lambda b: (b, 0, 0, 0)),   # x
        pl.BlockSpec((1, H, W, Ch), lambda b: (b, 0, 0, 0)),   # h_cur
        batch3((1, HW, Ch)),                                   # c_cur
        batch3((1, HW, Ch)),                                   # f_cur
        batch3((1, HW, Ch)),                                   # xx
        _full_spec(w_conv_r), _full_spec(params["b_conv"]),
        _full_spec(params["w_hq"]), _full_spec(params["b_hq"]),
        _full_spec(w_kv), _full_spec(b_kv),
        _full_spec(w_hf_r), _full_spec(params["b_hf"]),
    ]
    out_specs = [batch3((1, HW, Ch)) for _ in range(3)]

    scratch_shapes = [
        pltpu.VMEM((H + KH - 1, W + KW - 1, Cin1), jnp.float32),  # padded [x|h]
        pltpu.VMEM((HW, KH * KW * Cin1), jnp.float32),            # im2col conv1
        pltpu.VMEM((H + KH - 1, W + KW - 1, Cin2), jnp.float32),  # padded [zf|h]
        pltpu.VMEM((HW, KH * KW * Cin2), jnp.float32),            # im2col conv2
    ]

    # Advisory cost hint so XLA schedules neighbours sensibly around the call.
    flops = int(B * (2 * HW * (KH * KW * Cin1) * 4 * Ch          # conv1
                     + 2 * HW * (KH * KW * Cin2) * 3 * Ch        # conv2
                     + 2 * HW * Ch * Ch + 2 * HW * Ch * 2 * Ch   # q, k/v proj
                     + 12 * HW * Ch))                            # elementwise
    transcendentals = int(B * HW * (4 * Ch + 2 * Ch + 3 * Ch + 2 * Ch + 1))
    bytes_accessed = int(4 * (B * HW * (Cx + 7 * Ch)             # in/out maps
                              + w_conv_r.size + w_hf_r.size
                              + 2 * Ch * Ch + w_kv.size + 12 * Ch))
    cost = pl.CostEstimate(flops=flops, transcendentals=transcendentals,
                           bytes_accessed=bytes_accessed)

    h_next_f, c_next_f, f_next_f = pl.pallas_call(
        _lfa_cell_kernel,
        out_shape=(flat, flat, flat),
        grid_spec=pltpu.PrefetchScalarGridSpec(
            num_scalar_prefetch=0,
            grid=(B,),
            in_specs=in_specs,
            out_specs=out_specs,
            scratch_shapes=scratch_shapes),
        compiler_params=pltpu.CompilerParams(
            dimension_semantics=("parallel",),
            vmem_limit_bytes=32 * 1024 * 1024),
        cost_estimate=cost,
        # c_cur -> c_next and f_cur -> f_next reuse the same HBM buffers.
        input_output_aliases={2: 1, 3: 2},
    )(xn, hn, cf, ff, xxf,
      w_conv_r, f32(params["b_conv"]),
      f32(params["w_hq"]), f32(params["b_hq"]),
      w_kv, b_kv,
      w_hf_r, f32(params["b_hf"]))

    to_nchw = lambda t: jnp.transpose(t.reshape(B, H, W, Ch), (0, 3, 1, 2))
    return to_nchw(h_next_f), to_nchw(c_next_f), to_nchw(f_next_f)


def _reference(x, h_cur, c_cur, f_cur, xx, params):
    """Pure-JAX (XLA) reference matching the PyTorch forward semantics."""
    B, Cx, H, W = x.shape
    Ch = h_cur.shape[1]
    KH, KW = params["w_conv"].shape[:2]
    ph, pw = KH // 2, KW // 2
    to_nhwc = lambda t: jnp.transpose(t, (0, 2, 3, 1)).astype(jnp.float32)
    xn, hn, cn, fn, xxn = map(to_nhwc, (x, h_cur, c_cur, f_cur, xx))

    def conv(inp, w, b):
        out = jax.lax.conv_general_dilated(
            inp, w, window_strides=(1, 1), padding=[(ph, ph), (pw, pw)],
            dimension_numbers=("NHWC", "HWIO", "NHWC"),
            precision=jax.lax.Precision.HIGHEST)
        return out + b.reshape(1, 1, 1, -1)

    cc = conv(jnp.concatenate([xn, hn], -1), params["w_conv"], params["b_conv"])
    i = jax.nn.sigmoid(cc[..., :Ch])
    f = jax.nn.sigmoid(cc[..., Ch:2 * Ch])
    o = jax.nn.sigmoid(cc[..., 2 * Ch:3 * Ch])
    g = jnp.tanh(cc[..., 3 * Ch:])
    c_next = f * cn + i * g
    h = o * jnp.tanh(c_next)

    mm = lambda a, w, b: jnp.einsum(
        "bhwc,cd->bhwd", a, w,
        precision=jax.lax.Precision.HIGHEST) + b.reshape(1, 1, 1, -1)
    q = mm(h, params["w_hq"], params["b_hq"])
    k = mm(xxn, params["w_mk"], params["b_mk"])
    v = mm(xxn, params["w_mv"], params["b_mv"])
    alpha = jax.nn.sigmoid(jnp.sum(q * k, axis=-1, keepdims=True))
    zf = jnp.tanh(v * alpha)

    cc2 = conv(jnp.concatenate([zf, h], -1), params["w_hf"], params["b_hf"])
    ii = jax.nn.sigmoid(cc2[..., :Ch])
    gg = jnp.tanh(cc2[..., Ch:2 * Ch])
    oo = jax.nn.sigmoid(cc2[..., 2 * Ch:])
    f_next = ii * gg + (1.0 - ii) * fn
    h_next = oo * f_next
    to_nchw = lambda t: jnp.transpose(t, (0, 3, 1, 2))
    return to_nchw(h_next), to_nchw(c_next), to_nchw(f_next)


if __name__ == "__main__":
    B, Cx, Ch, H, W = 2, 4, 32, 16, 16
    KH, KW = 3, 3

    key = jax.random.PRNGKey(0)
    ks = jax.random.split(key, 16)
    s = 0.05
    params = {
        "w_conv": s * jax.random.normal(ks[0], (KH, KW, Cx + Ch, 4 * Ch), jnp.float32),
        "b_conv": s * jax.random.normal(ks[1], (1, 4 * Ch), jnp.float32),
        "w_hq": s * jax.random.normal(ks[2], (Ch, Ch), jnp.float32),
        "b_hq": s * jax.random.normal(ks[3], (1, Ch), jnp.float32),
        "w_mk": s * jax.random.normal(ks[4], (Ch, Ch), jnp.float32),
        "b_mk": s * jax.random.normal(ks[5], (1, Ch), jnp.float32),
        "w_mv": s * jax.random.normal(ks[6], (Ch, Ch), jnp.float32),
        "b_mv": s * jax.random.normal(ks[7], (1, Ch), jnp.float32),
        "w_hf": s * jax.random.normal(ks[8], (KH, KW, 2 * Ch, 3 * Ch), jnp.float32),
        "b_hf": s * jax.random.normal(ks[9], (1, 3 * Ch), jnp.float32),
    }

    x = jax.random.normal(ks[10], (B, Cx, H, W), jnp.float32)
    h_cur = jax.random.normal(ks[11], (B, Ch, H, W), jnp.float32)
    c_cur = jax.random.normal(ks[12], (B, Ch, H, W), jnp.float32)
    f_cur = jax.random.normal(ks[13], (B, Ch, H, W), jnp.float32)
    xx = jax.random.normal(ks[14], (B, Ch, H, W), jnp.float32)

    out = jax.jit(lfa_convlstm_cell_out)(x, h_cur, c_cur, f_cur, xx, params)
    out = jax.block_until_ready(out)

    ref = _reference(x, h_cur, c_cur, f_cur, xx, params)
    for got, want in zip(out, ref):
        assert got.shape == want.shape and got.dtype == want.dtype
        assert float(jnp.max(jnp.abs(got - want))) < 5e-3

    print("KERNEL_OK")
</pallas_src>

<mosaic_0001>
module attributes {stable_mosaic.version = 11 : i64} {
  func.func @_lfa_cell_kernel(%arg0: i32, %arg1: memref<1x16x16x4xf32, #tpu.memory_space<vmem>>, %arg2: memref<1x16x16x32xf32, #tpu.memory_space<vmem>>, %arg3: memref<1x256x32xf32, #tpu.memory_space<vmem>>, %arg4: memref<1x256x32xf32, #tpu.memory_space<vmem>>, %arg5: memref<1x256x32xf32, #tpu.memory_space<vmem>>, %arg6: memref<324x128xf32, #tpu.memory_space<vmem>>, %arg7: memref<1x128xf32, #tpu.memory_space<vmem>>, %arg8: memref<32x32xf32, #tpu.memory_space<vmem>>, %arg9: memref<1x32xf32, #tpu.memory_space<vmem>>, %arg10: memref<32x64xf32, #tpu.memory_space<vmem>>, %arg11: memref<1x64xf32, #tpu.memory_space<vmem>>, %arg12: memref<576x96xf32, #tpu.memory_space<vmem>>, %arg13: memref<1x96xf32, #tpu.memory_space<vmem>>, %arg14: memref<1x256x32xf32, #tpu.memory_space<vmem>>, %arg15: memref<1x256x32xf32, #tpu.memory_space<vmem>>, %arg16: memref<1x256x32xf32, #tpu.memory_space<vmem>>, %arg17: memref<18x18x36xf32, #tpu.memory_space<vmem>>, %arg18: memref<256x324xf32, #tpu.memory_space<vmem>>, %arg19: memref<18x18x64xf32, #tpu.memory_space<vmem>>, %arg20: memref<256x576xf32, #tpu.memory_space<vmem>>) attributes {dimension_semantics = [#tpu.dimension_semantics<parallel>], iteration_bounds = array<i64: 2>, scalar_prefetch = 0 : i64, scratch_operands = 4 : i64, tpu.core_type = #tpu.core_type<tc>, window_params = [{transform_indices = @transform_0, window_bounds = array<i64: 1, 16, 16, 4>}, {transform_indices = @transform_1, window_bounds = array<i64: 1, 16, 16, 32>}, {transform_indices = @transform_2, window_bounds = array<i64: 1, 256, 32>}, {transform_indices = @transform_3, window_bounds = array<i64: 1, 256, 32>}, {transform_indices = @transform_4, window_bounds = array<i64: 1, 256, 32>}, {pipeline_mode = #tpu.pipeline_mode<synchronous>, transform_indices = @transform_5, window_bounds = array<i64: 324, 128>}, {pipeline_mode = #tpu.pipeline_mode<synchronous>, transform_indices = @transform_6, window_bounds = array<i64: 1, 128>}, {pipeline_mode = #tpu.pipeline_mode<synchronous>, transform_indices = @transform_7, window_bounds = array<i64: 32, 32>}, {pipeline_mode = #tpu.pipeline_mode<synchronous>, transform_indices = @transform_8, window_bounds = array<i64: 1, 32>}, {pipeline_mode = #tpu.pipeline_mode<synchronous>, transform_indices = @transform_9, window_bounds = array<i64: 32, 64>}, {pipeline_mode = #tpu.pipeline_mode<synchronous>, transform_indices = @transform_10, window_bounds = array<i64: 1, 64>}, {pipeline_mode = #tpu.pipeline_mode<synchronous>, transform_indices = @transform_11, window_bounds = array<i64: 576, 96>}, {pipeline_mode = #tpu.pipeline_mode<synchronous>, transform_indices = @transform_12, window_bounds = array<i64: 1, 96>}, {transform_indices = @transform_13, window_bounds = array<i64: 1, 256, 32>}, {transform_indices = @transform_14, window_bounds = array<i64: 1, 256, 32>}, {transform_indices = @transform_15, window_bounds = array<i64: 1, 256, 32>}]} {
    %cst = arith.constant 0.000000e+00 : f32
    %0 = vector.broadcast %cst : f32 to vector<18x18x36xf32>
    %c0 = arith.constant 0 : index
    %c0_0 = arith.constant 0 : index
    %c0_1 = arith.constant 0 : index
    %1 = vector.load %arg17[%c0, %c0_0, %c0_1] : memref<18x18x36xf32, #tpu.memory_space<vmem>>, vector<18x18x36xf32>
    tpu.vector_store %arg17[%c0, %c0_0, %c0_1], %0 {strides = array<i32>} : memref<18x18x36xf32, #tpu.memory_space<vmem>>, vector<18x18x36xf32>,
    %c0_2 = arith.constant 0 : index
    %c0_3 = arith.constant 0 : index
    %c0_4 = arith.constant 0 : index
    %c0_5 = arith.constant 0 : index
    %2 = vector.load %arg1[%c0_2, %c0_3, %c0_4, %c0_5] : memref<1x16x16x4xf32, #tpu.memory_space<vmem>>, vector<1x16x16x4xf32>
    %3 = vector.shape_cast %2 : vector<1x16x16x4xf32> to vector<16x16x4xf32>
    %c1 = arith.constant 1 : index
    %c1_6 = arith.constant 1 : index
    %c0_7 = arith.constant 0 : index
    %4 = vector.load %arg17[%c1, %c1_6, %c0_7] : memref<18x18x36xf32, #tpu.memory_space<vmem>>, vector<16x16x4xf32>
    tpu.vector_store %arg17[%c1, %c1_6, %c0_7], %3 {strides = array<i32>} : memref<18x18x36xf32, #tpu.memory_space<vmem>>, vector<16x16x4xf32>,
    %c0_8 = arith.constant 0 : index
    %c0_9 = arith.constant 0 : index
    %c0_10 = arith.constant 0 : index
    %c0_11 = arith.constant 0 : index
    %5 = vector.load %arg2[%c0_8, %c0_9, %c0_10, %c0_11] : memref<1x16x16x32xf32, #tpu.memory_space<vmem>>, vector<1x16x16x32xf32>
    %6 = vector.shape_cast %5 : vector<1x16x16x32xf32> to vector<16x16x32xf32>
    %c1_12 = arith.constant 1 : index
    %c1_13 = arith.constant 1 : index
    %c4 = arith.constant 4 : index
    %7 = vector.load %arg17[%c1_12, %c1_13, %c4] : memref<18x18x36xf32, #tpu.memory_space<vmem>>, vector<16x16x32xf32>
    tpu.vector_store %arg17[%c1_12, %c1_13, %c4], %6 {strides = array<i32>} : memref<18x18x36xf32, #tpu.memory_space<vmem>>, vector<16x16x32xf32>,
    %c0_14 = arith.constant 0 : index
    %c0_15 = arith.constant 0 : index
    %c0_16 = arith.constant 0 : index
    %8 = vector.load %arg17[%c0_14, %c0_15, %c0_16] : memref<18x18x36xf32, #tpu.memory_space<vmem>>, vector<16x16x36xf32>
    %9 = vector.shape_cast %8 : vector<16x16x36xf32> to vector<256x36xf32>
    %c0_17 = arith.constant 0 : index
    %c0_18 = arith.constant 0 : index
    %10 = vector.load %arg18[%c0_17, %c0_18] : memref<256x324xf32, #tpu.memory_space<vmem>>, vector<256x36xf32>
    tpu.vector_store %arg18[%c0_17, %c0_18], %9 {strides = array<i32>} : memref<256x324xf32, #tpu.memory_space<vmem>>, vector<256x36xf32>,
    %c0_19 = arith.constant 0 : index
    %c1_20 = arith.constant 1 : index
    %c0_21 = arith.constant 0 : index
    %11 = vector.load %arg17[%c0_19, %c1_20, %c0_21] : memref<18x18x36xf32, #tpu.memory_space<vmem>>, vector<16x16x36xf32>
    %12 = vector.shape_cast %11 : vector<16x16x36xf32> to vector<256x36xf32>
    %c0_22 = arith.constant 0 : index
    %c36 = arith.constant 36 : index
    %13 = vector.load %arg18[%c0_22, %c36] : memref<256x324xf32, #tpu.memory_space<vmem>>, vector<256x36xf32>
    tpu.vector_store %arg18[%c0_22, %c36], %12 {strides = array<i32>} : memref<256x324xf32, #tpu.memory_space<vmem>>, vector<256x36xf32>,
    %c0_23 = arith.constant 0 : index
    %c2 = arith.constant 2 : index
    %c0_24 = arith.constant 0 : index
    %14 = vector.load %arg17[%c0_23, %c2, %c0_24] : memref<18x18x36xf32, #tpu.memory_space<vmem>>, vector<16x16x36xf32>
    %15 = vector.shape_cast %14 : vector<16x16x36xf32> to vector<256x36xf32>
    %c0_25 = arith.constant 0 : index
    %c72 = arith.constant 72 : index
    %16 = vector.load %arg18[%c0_25, %c72] : memref<256x324xf32, #tpu.memory_space<vmem>>, vector<256x36xf32>
    tpu.vector_store %arg18[%c0_25, %c72], %15 {strides = array<i32>} : memref<256x324xf32, #tpu.memory_space<vmem>>, vector<256x36xf32>,
    %c1_26 = arith.constant 1 : index
    %c0_27 = arith.constant 0 : index
    %c0_28 = arith.constant 0 : index
    %17 = vector.load %arg17[%c1_26, %c0_27, %c0_28] : memref<18x18x36xf32, #tpu.memory_space<vmem>>, vector<16x16x36xf32>
    %18 = vector.shape_cast %17 : vector<16x16x36xf32> to vector<256x36xf32>
    %c0_29 = arith.constant 0 : index
    %c108 = arith.constant 108 : index
    %19 = vector.load %arg18[%c0_29, %c108] : memref<256x324xf32, #tpu.memory_space<vmem>>, vector<256x36xf32>
    tpu.vector_store %arg18[%c0_29, %c108], %18 {strides = array<i32>} : memref<256x324xf32, #tpu.memory_space<vmem>>, vector<256x36xf32>,
    %c1_30 = arith.constant 1 : index
    %c1_31 = arith.constant 1 : index
    %c0_32 = arith.constant 0 : index
    %20 = vector.load %arg17[%c1_30, %c1_31, %c0_32] : memref<18x18x36xf32, #tpu.memory_space<vmem>>, vector<16x16x36xf32>
    %21 = vector.shape_cast %20 : vector<16x16x36xf32> to vector<256x36xf32>
    %c0_33 = arith.constant 0 : index
    %c144 = arith.constant 144 : index
    %22 = vector.load %arg18[%c0_33, %c144] : memref<256x324xf32, #tpu.memory_space<vmem>>, vector<256x36xf32>
    tpu.vector_store %arg18[%c0_33, %c144], %21 {strides = array<i32>} : memref<256x324xf32, #tpu.memory_space<vmem>>, vector<256x36xf32>,
    %c1_34 = arith.constant 1 : index
    %c2_35 = arith.constant 2 : index
    %c0_36 = arith.constant 0 : index
    %23 = vector.load %arg17[%c1_34, %c2_35, %c0_36] : memref<18x18x36xf32, #tpu.memory_space<vmem>>, vector<16x16x36xf32>
    %24 = vector.shape_cast %23 : vector<16x16x36xf32> to vector<256x36xf32>
    %c0_37 = arith.constant 0 : index
    %c180 = arith.constant 180 : index
    %25 = vector.load %arg18[%c0_37, %c180] : memref<256x324xf32, #tpu.memory_space<vmem>>, vector<256x36xf32>
    tpu.vector_store %arg18[%c0_37, %c180], %24 {strides = array<i32>} : memref<256x324xf32, #tpu.memory_space<vmem>>, vector<256x36xf32>,
    %c2_38 = arith.constant 2 : index
    %c0_39 = arith.constant 0 : index
    %c0_40 = arith.constant 0 : index
    %26 = vector.load %arg17[%c2_38, %c0_39, %c0_40] : memref<18x18x36xf32, #tpu.memory_space<vmem>>, vector<16x16x36xf32>
    %27 = vector.shape_cast %26 : vector<16x16x36xf32> to vector<256x36xf32>
    %c0_41 = arith.constant 0 : index
    %c216 = arith.constant 216 : index
    %28 = vector.load %arg18[%c0_41, %c216] : memref<256x324xf32, #tpu.memory_space<vmem>>, vector<256x36xf32>
    tpu.vector_store %arg18[%c0_41, %c216], %27 {strides = array<i32>} : memref<256x324xf32, #tpu.memory_space<vmem>>, vector<256x36xf32>,
    %c2_42 = arith.constant 2 : index
    %c1_43 = arith.constant 1 : index
    %c0_44 = arith.constant 0 : index
    %29 = vector.load %arg17[%c2_42, %c1_43, %c0_44] : memref<18x18x36xf32, #tpu.memory_space<vmem>>, vector<16x16x36xf32>
    %30 = vector.shape_cast %29 : vector<16x16x36xf32> to vector<256x36xf32>
    %c0_45 = arith.constant 0 : index
    %c252 = arith.constant 252 : index
    %31 = vector.load %arg18[%c0_45, %c252] : memref<256x324xf32, #tpu.memory_space<vmem>>, vector<256x36xf32>
    tpu.vector_store %arg18[%c0_45, %c252], %30 {strides = array<i32>} : memref<256x324xf32, #tpu.memory_space<vmem>>, vector<256x36xf32>,
    %c2_46 = arith.constant 2 : index
    %c2_47 = arith.constant 2 : index
    %c0_48 = arith.constant 0 : index
    %32 = vector.load %arg17[%c2_46, %c2_47, %c0_48] : memref<18x18x36xf32, #tpu.memory_space<vmem>>, vector<16x16x36xf32>
    %33 = vector.shape_cast %32 : vector<16x16x36xf32> to vector<256x36xf32>
    %c0_49 = arith.constant 0 : index
    %c288 = arith.constant 288 : index
    %34 = vector.load %arg18[%c0_49, %c288] : memref<256x324xf32, #tpu.memory_space<vmem>>, vector<256x36xf32>
    tpu.vector_store %arg18[%c0_49, %c288], %33 {strides = array<i32>} : memref<256x324xf32, #tpu.memory_space<vmem>>, vector<256x36xf32>,
    %c0_50 = arith.constant 0 : index
    %c0_51 = arith.constant 0 : index
    %35 = vector.load %arg18[%c0_50, %c0_51] : memref<256x324xf32, #tpu.memory_space<vmem>>, vector<256x324xf32>
    %c0_52 = arith.constant 0 : index
    %c0_53 = arith.constant 0 : index
    %36 = vector.load %arg6[%c0_52, %c0_53] : memref<324x128xf32, #tpu.memory_space<vmem>>, vector<324x128xf32>
    %cst_54 = arith.constant dense<0.000000e+00> : vector<256x128xf32>
    %37 = tpu.matmul %35, %36, %cst_54 {dimension_numbers = #tpu.dot_dimension_numbers<[1], [0], [0], [1], [0, 0, 1, 1], [], []>} : vector<256x324xf32>, vector<324x128xf32>, vector<256x128xf32> -> vector<256x128xf32>
    %c0_55 = arith.constant 0 : index
    %c0_56 = arith.constant 0 : index
    %38 = vector.load %arg7[%c0_55, %c0_56] : memref<1x128xf32, #tpu.memory_space<vmem>>, vector<1x128xf32>
    %39 = vector.broadcast %38 : vector<1x128xf32> to vector<256x128xf32>
    %40 = arith.addf %37, %39 : vector<256x128xf32>
    %41 = arith.negf %40 : vector<256x128xf32>
    %42 = math.exp %41 : vector<256x128xf32>
    %cst_57 = arith.constant 1.000000e+00 : f32
    %43 = vector.broadcast %cst_57 : f32 to vector<256x128xf32>
    %44 = arith.addf %43, %42 : vector<256x128xf32>
    %45 = arith.divf %43, %44 : vector<256x128xf32>
    %46 = vector.extract_strided_slice %40 {offsets = [0, 96], sizes = [256, 32], strides = [1, 1]} : vector<256x128xf32> to vector<256x32xf32>
    %47 = math.tanh %46 : vector<256x32xf32>
    %48 = vector.extract_strided_slice %45 {offsets = [0, 32], sizes = [256, 32], strides = [1, 1]} : vector<256x128xf32> to vector<256x32xf32>
    %c0_58 = arith.constant 0 : index
    %c0_59 = arith.constant 0 : index
    %c0_60 = arith.constant 0 : index
    %49 = vector.load %arg3[%c0_58, %c0_59, %c0_60] : memref<1x256x32xf32, #tpu.memory_space<vmem>>, vector<1x256x32xf32>
    %50 = vector.shape_cast %49 : vector<1x256x32xf32> to vector<256x32xf32>
    %51 = arith.mulf %48, %50 : vector<256x32xf32>
    %52 = vector.extract_strided_slice %45 {offsets = [0, 0], sizes = [256, 32], strides = [1, 1]} : vector<256x128xf32> to vector<256x32xf32>
    %53 = arith.mulf %52, %47 : vector<256x32xf32>
    %54 = arith.addf %51, %53 : vector<256x32xf32>
    %55 = vector.extract_strided_slice %45 {offsets = [0, 64], sizes = [256, 32], strides = [1, 1]} : vector<256x128xf32> to vector<256x32xf32>
    %56 = math.tanh %54 : vector<256x32xf32>
    %57 = arith.mulf %55, %56 : vector<256x32xf32>
    %c0_61 = arith.constant 0 : index
    %c0_62 = arith.constant 0 : index
    %c0_63 = arith.constant 0 : index
    %58 = vector.load %arg5[%c0_61, %c0_62, %c0_63] : memref<1x256x32xf32, #tpu.memory_space<vmem>>, vector<1x256x32xf32>
    %59 = vector.shape_cast %58 : vector<1x256x32xf32> to vector<256x32xf32>
    %c0_64 = arith.constant 0 : index
    %c0_65 = arith.constant 0 : index
    %60 = vector.load %arg8[%c0_64, %c0_65] : memref<32x32xf32, #tpu.memory_space<vmem>>, vector<32x32xf32>
    %cst_66 = arith.constant dense<0.000000e+00> : vector<256x32xf32>
    %61 = tpu.matmul %57, %60, %cst_66 {dimension_numbers = #tpu.dot_dimension_numbers<[1], [0], [0], [1], [0, 0, 1, 1], [], []>} : vector<256x32xf32>, vector<32x32xf32>, vector<256x32xf32> -> vector<256x32xf32>
    %c0_67 = arith.constant 0 : index
    %c0_68 = arith.constant 0 : index
    %62 = vector.load %arg9[%c0_67, %c0_68] : memref<1x32xf32, #tpu.memory_space<vmem>>, vector<1x32xf32>
    %63 = vector.broadcast %62 : vector<1x32xf32> to vector<256x32xf32>
    %64 = arith.addf %61, %63 : vector<256x32xf32>
    %c0_69 = arith.constant 0 : index
    %c0_70 = arith.constant 0 : index
    %65 = vector.load %arg10[%c0_69, %c0_70] : memref<32x64xf32, #tpu.memory_space<vmem>>, vector<32x64xf32>
    %cst_71 = arith.constant dense<0.000000e+00> : vector<256x64xf32>
    %66 = tpu.matmul %59, %65, %cst_71 {dimension_numbers = #tpu.dot_dimension_numbers<[1], [0], [0], [1], [0, 0, 1, 1], [], []>} : vector<256x32xf32>, vector<32x64xf32>, vector<256x64xf32> -> vector<256x64xf32>
    %c0_72 = arith.constant 0 : index
    %c0_73 = arith.constant 0 : index
    %67 = vector.load %arg11[%c0_72, %c0_73] : memref<1x64xf32, #tpu.memory_space<vmem>>, vector<1x64xf32>
    %68 = vector.broadcast %67 : vector<1x64xf32> to vector<256x64xf32>
    %69 = arith.addf %66, %68 : vector<256x64xf32>
    %70 = vector.extract_strided_slice %69 {offsets = [0, 0], sizes = [256, 32], strides = [1, 1]} : vector<256x64xf32> to vector<256x32xf32>
    %71 = vector.extract_strided_slice %69 {offsets = [0, 32], sizes = [256, 32], strides = [1, 1]} : vector<256x64xf32> to vector<256x32xf32>
    %72 = arith.mulf %64, %70 : vector<256x32xf32>
    %cst_74 = arith.constant dense<0.000000e+00> : vector<256xf32>
    %73 = vector.multi_reduction <add>, %72, %cst_74 [1] : vector<256x32xf32> to vector<256xf32>
    %74 = vector.shape_cast %73 : vector<256xf32> to vector<256x1xf32>
    %75 = arith.negf %74 : vector<256x1xf32>
    %76 = math.exp %75 : vector<256x1xf32>
    %cst_75 = arith.constant 1.000000e+00 : f32
    %77 = vector.broadcast %cst_75 : f32 to vector<256x1xf32>
    %78 = arith.addf %77, %76 : vector<256x1xf32>
    %79 = arith.divf %77, %78 : vector<256x1xf32>
    %80 = vector.broadcast %79 : vector<256x1xf32> to vector<256x32xf32>
    %81 = arith.mulf %71, %80 : vector<256x32xf32>
    %82 = math.tanh %81 : vector<256x32xf32>
    %cst_76 = arith.constant 0.000000e+00 : f32
    %83 = vector.broadcast %cst_76 : f32 to vector<18x18x64xf32>
    %c0_77 = arith.constant 0 : index
    %c0_78 = arith.constant 0 : index
    %c0_79 = arith.constant 0 : index
    %84 = vector.load %arg19[%c0_77, %c0_78, %c0_79] : memref<18x18x64xf32, #tpu.memory_space<vmem>>, vector<18x18x64xf32>
    tpu.vector_store %arg19[%c0_77, %c0_78, %c0_79], %83 {strides = array<i32>} : memref<18x18x64xf32, #tpu.memory_space<vmem>>, vector<18x18x64xf32>,
    %85 = vector.shape_cast %82 : vector<256x32xf32> to vector<16x16x32xf32>
    %c1_80 = arith.constant 1 : index
    %c1_81 = arith.constant 1 : index
    %c0_82 = arith.constant 0 : index
    %86 = vector.load %arg19[%c1_80, %c1_81, %c0_82] : memref<18x18x64xf32, #tpu.memory_space<vmem>>, vector<16x16x32xf32>
    tpu.vector_store %arg19[%c1_80, %c1_81, %c0_82], %85 {strides = array<i32>} : memref<18x18x64xf32, #tpu.memory_space<vmem>>, vector<16x16x32xf32>,
    %87 = vector.shape_cast %57 : vector<256x32xf32> to vector<16x16x32xf32>
    %c1_83 = arith.constant 1 : index
    %c1_84 = arith.constant 1 : index
    %c32 = arith.constant 32 : index
    %88 = vector.load %arg19[%c1_83, %c1_84, %c32] : memref<18x18x64xf32, #tpu.memory_space<vmem>>, vector<16x16x32xf32>
    tpu.vector_store %arg19[%c1_83, %c1_84, %c32], %87 {strides = array<i32>} : memref<18x18x64xf32, #tpu.memory_space<vmem>>, vector<16x16x32xf32>,
    %c0_85 = arith.constant 0 : index
    %c0_86 = arith.constant 0 : index
    %c0_87 = arith.constant 0 : index
    %89 = vector.load %arg19[%c0_85, %c0_86, %c0_87] : memref<18x18x64xf32, #tpu.memory_space<vmem>>, vector<16x16x64xf32>
    %90 = vector.shape_cast %89 : vector<16x16x64xf32> to vector<256x64xf32>
    %c0_88 = arith.constant 0 : index
    %c0_89 = arith.constant 0 : index
    %91 = vector.load %arg20[%c0_88, %c0_89] : memref<256x576xf32, #tpu.memory_space<vmem>>, vector<256x64xf32>
    tpu.vector_store %arg20[%c0_88, %c0_89], %90 {strides = array<i32>} : memref<256x576xf32, #tpu.memory_space<vmem>>, vector<256x64xf32>,
    %c0_90 = arith.constant 0 : index
    %c1_91 = arith.constant 1 : index
    %c0_92 = arith.constant 0 : index
    %92 = vector.load %arg19[%c0_90, %c1_91, %c0_92] : memref<18x18x64xf32, #tpu.memory_space<vmem>>, vector<16x16x64xf32>
    %93 = vector.shape_cast %92 : vector<16x16x64xf32> to vector<256x64xf32>
    %c0_93 = arith.constant 0 : index
    %c64 = arith.constant 64 : index
    %94 = vector.load %arg20[%c0_93, %c64] : memref<256x576xf32, #tpu.memory_space<vmem>>, vector<256x64xf32>
    tpu.vector_store %arg20[%c0_93, %c64], %93 {strides = array<i32>} : memref<256x576xf32, #tpu.memory_space<vmem>>, vector<256x64xf32>,
    %c0_94 = arith.constant 0 : index
    %c2_95 = arith.constant 2 : index
    %c0_96 = arith.constant 0 : index
    %95 = vector.load %arg19[%c0_94, %c2_95, %c0_96] : memref<18x18x64xf32, #tpu.memory_space<vmem>>, vector<16x16x64xf32>
    %96 = vector.shape_cast %95 : vector<16x16x64xf32> to vector<256x64xf32>
    %c0_97 = arith.constant 0 : index
    %c128 = arith.constant 128 : index
    %97 = vector.load %arg20[%c0_97, %c128] : memref<256x576xf32, #tpu.memory_space<vmem>>, vector<256x64xf32>
    tpu.vector_store %arg20[%c0_97, %c128], %96 {strides = array<i32>} : memref<256x576xf32, #tpu.memory_space<vmem>>, vector<256x64xf32>,
    %c1_98 = arith.constant 1 : index
    %c0_99 = arith.constant 0 : index
    %c0_100 = arith.constant 0 : index
    %98 = vector.load %arg19[%c1_98, %c0_99, %c0_100] : memref<18x18x64xf32, #tpu.memory_space<vmem>>, vector<16x16x64xf32>
    %99 = vector.shape_cast %98 : vector<16x16x64xf32> to vector<256x64xf32>
    %c0_101 = arith.constant 0 : index
    %c192 = arith.constant 192 : index
    %100 = vector.load %arg20[%c0_101, %c192] : memref<256x576xf32, #tpu.memory_space<vmem>>, vector<256x64xf32>
    tpu.vector_store %arg20[%c0_101, %c192], %99 {strides = array<i32>} : memref<256x576xf32, #tpu.memory_space<vmem>>, vector<256x64xf32>,
    %c1_102 = arith.constant 1 : index
    %c1_103 = arith.constant 1 : index
    %c0_104 = arith.constant 0 : index
    %101 = vector.load %arg19[%c1_102, %c1_103, %c0_104] : memref<18x18x64xf32, #tpu.memory_space<vmem>>, vector<16x16x64xf32>
    %102 = vector.shape_cast %101 : vector<16x16x64xf32> to vector<256x64xf32>
    %c0_105 = arith.constant 0 : index
    %c256 = arith.constant 256 : index
    %103 = vector.load %arg20[%c0_105, %c256] : memref<256x576xf32, #tpu.memory_space<vmem>>, vector<256x64xf32>
    tpu.vector_store %arg20[%c0_105, %c256], %102 {strides = array<i32>} : memref<256x576xf32, #tpu.memory_space<vmem>>, vector<256x64xf32>,
    %c1_106 = arith.constant 1 : index
    %c2_107 = arith.constant 2 : index
    %c0_108 = arith.constant 0 : index
    %104 = vector.load %arg19[%c1_106, %c2_107, %c0_108] : memref<18x18x64xf32, #tpu.memory_space<vmem>>, vector<16x16x64xf32>
    %105 = vector.shape_cast %104 : vector<16x16x64xf32> to vector<256x64xf32>
    %c0_109 = arith.constant 0 : index
    %c320 = arith.constant 320 : index
    %106 = vector.load %arg20[%c0_109, %c320] : memref<256x576xf32, #tpu.memory_space<vmem>>, vector<256x64xf32>
    tpu.vector_store %arg20[%c0_109, %c320], %105 {strides = array<i32>} : memref<256x576xf32, #tpu.memory_space<vmem>>, vector<256x64xf32>,
    %c2_110 = arith.constant 2 : index
    %c0_111 = arith.constant 0 : index
    %c0_112 = arith.constant 0 : index
    %107 = vector.load %arg19[%c2_110, %c0_111, %c0_112] : memref<18x18x64xf32, #tpu.memory_space<vmem>>, vector<16x16x64xf32>
    %108 = vector.shape_cast %107 : vector<16x16x64xf32> to vector<256x64xf32>
    %c0_113 = arith.constant 0 : index
    %c384 = arith.constant 384 : index
    %109 = vector.load %arg20[%c0_113, %c384] : memref<256x576xf32, #tpu.memory_space<vmem>>, vector<256x64xf32>
    tpu.vector_store %arg20[%c0_113, %c384], %108 {strides = array<i32>} : memref<256x576xf32, #tpu.memory_space<vmem>>, vector<256x64xf32>,
    %c2_114 = arith.constant 2 : index
    %c1_115 = arith.constant 1 : index
    %c0_116 = arith.constant 0 : index
    %110 = vector.load %arg19[%c2_114, %c1_115, %c0_116] : memref<18x18x64xf32, #tpu.memory_space<vmem>>, vector<16x16x64xf32>
    %111 = vector.shape_cast %110 : vector<16x16x64xf32> to vector<256x64xf32>
    %c0_117 = arith.constant 0 : index
    %c448 = arith.constant 448 : index
    %112 = vector.load %arg20[%c0_117, %c448] : memref<256x576xf32, #tpu.memory_space<vmem>>, vector<256x64xf32>
    tpu.vector_store %arg20[%c0_117, %c448], %111 {strides = array<i32>} : memref<256x576xf32, #tpu.memory_space<vmem>>, vector<256x64xf32>,
    %c2_118 = arith.constant 2 : index
    %c2_119 = arith.constant 2 : index
    %c0_120 = arith.constant 0 : index
    %113 = vector.load %arg19[%c2_118, %c2_119, %c0_120] : memref<18x18x64xf32, #tpu.memory_space<vmem>>, vector<16x16x64xf32>
    %114 = vector.shape_cast %113 : vector<16x16x64xf32> to vector<256x64xf32>
    %c0_121 = arith.constant 0 : index
    %c512 = arith.constant 512 : index
    %115 = vector.load %arg20[%c0_121, %c512] : memref<256x576xf32, #tpu.memory_space<vmem>>, vector<256x64xf32>
    tpu.vector_store %arg20[%c0_121, %c512], %114 {strides = array<i32>} : memref<256x576xf32, #tpu.memory_space<vmem>>, vector<256x64xf32>,
    %c0_122 = arith.constant 0 : index
    %c0_123 = arith.constant 0 : index
    %116 = vector.load %arg20[%c0_122, %c0_123] : memref<256x576xf32, #tpu.memory_space<vmem>>, vector<256x576xf32>
    %c0_124 = arith.constant 0 : index
    %c0_125 = arith.constant 0 : index
    %117 = vector.load %arg12[%c0_124, %c0_125] : memref<576x96xf32, #tpu.memory_space<vmem>>, vector<576x96xf32>
    %cst_126 = arith.constant dense<0.000000e+00> : vector<256x96xf32>
    %118 = tpu.matmul %116, %117, %cst_126 {dimension_numbers = #tpu.dot_dimension_numbers<[1], [0], [0], [1], [0, 0, 1, 1], [], []>} : vector<256x576xf32>, vector<576x96xf32>, vector<256x96xf32> -> vector<256x96xf32>
    %c0_127 = arith.constant 0 : index
    %c0_128 = arith.constant 0 : index
    %119 = vector.load %arg13[%c0_127, %c0_128] : memref<1x96xf32, #tpu.memory_space<vmem>>, vector<1x96xf32>
    %120 = vector.broadcast %119 : vector<1x96xf32> to vector<256x96xf32>
    %121 = arith.addf %118, %120 : vector<256x96xf32>
    %122 = arith.negf %121 : vector<256x96xf32>
    %123 = math.exp %122 : vector<256x96xf32>
    %cst_129 = arith.constant 1.000000e+00 : f32
    %124 = vector.broadcast %cst_129 : f32 to vector<256x96xf32>
    %125 = arith.addf %124, %123 : vector<256x96xf32>
    %126 = arith.divf %124, %125 : vector<256x96xf32>
    %127 = vector.extract_strided_slice %126 {offsets = [0, 0], sizes = [256, 32], strides = [1, 1]} : vector<256x96xf32> to vector<256x32xf32>
    %128 = vector.extract_strided_slice %121 {offsets = [0, 32], sizes = [256, 32], strides = [1, 1]} : vector<256x96xf32> to vector<256x32xf32>
    %129 = math.tanh %128 : vector<256x32xf32>
    %130 = vector.extract_strided_slice %126 {offsets = [0, 64], sizes = [256, 32], strides = [1, 1]} : vector<256x96xf32> to vector<256x32xf32>
    %131 = arith.mulf %127, %129 : vector<256x32xf32>
    %cst_130 = arith.constant 1.000000e+00 : f32
    %132 = vector.broadcast %cst_130 : f32 to vector<256x32xf32>
    %133 = arith.subf %132, %127 : vector<256x32xf32>
    %c0_131 = arith.constant 0 : index
    %c0_132 = arith.constant 0 : index
    %c0_133 = arith.constant 0 : index
    %134 = vector.load %arg4[%c0_131, %c0_132, %c0_133] : memref<1x256x32xf32, #tpu.memory_space<vmem>>, vector<1x256x32xf32>
    %135 = vector.shape_cast %134 : vector<1x256x32xf32> to vector<256x32xf32>
    %136 = arith.mulf %133, %135 : vector<256x32xf32>
    %137 = arith.addf %131, %136 : vector<256x32xf32>
    %138 = arith.mulf %130, %137 : vector<256x32xf32>
    %c0_134 = arith.constant 0 : index
    %c0_135 = arith.constant 0 : index
    %c0_136 = arith.constant 0 : index
    %139 = vector.load %arg14[%c0_134, %c0_135, %c0_136] : memref<1x256x32xf32, #tpu.memory_space<vmem>>, vector<1x256x32xf32>
    %140 = vector.shape_cast %139 : vector<1x256x32xf32> to vector<256x32xf32>
    %141 = vector.shape_cast %138 : vector<256x32xf32> to vector<1x256x32xf32>
    tpu.vector_store %arg14[%c0_134, %c0_135, %c0_136], %141 {strides = array<i32>} : memref<1x256x32xf32, #tpu.memory_space<vmem>>, vector<1x256x32xf32>,
    %c0_137 = arith.constant 0 : index
    %c0_138 = arith.constant 0 : index
    %c0_139 = arith.constant 0 : index
    %142 = vector.load %arg15[%c0_137, %c0_138, %c0_139] : memref<1x256x32xf32, #tpu.memory_space<vmem>>, vector<1x256x32xf32>
    %143 = vector.shape_cast %142 : vector<1x256x32xf32> to vector<256x32xf32>
    %144 = vector.shape_cast %54 : vector<256x32xf32> to vector<1x256x32xf32>
    tpu.vector_store %arg15[%c0_137, %c0_138, %c0_139], %144 {strides = array<i32>} : memref<1x256x32xf32, #tpu.memory_space<vmem>>, vector<1x256x32xf32>,
    %c0_140 = arith.constant 0 : index
    %c0_141 = arith.constant 0 : index
    %c0_142 = arith.constant 0 : index
    %145 = vector.load %arg16[%c0_140, %c0_141, %c0_142] : memref<1x256x32xf32, #tpu.memory_space<vmem>>, vector<1x256x32xf32>
    %146 = vector.shape_cast %145 : vector<1x256x32xf32> to vector<256x32xf32>
    %147 = vector.shape_cast %137 : vector<256x32xf32> to vector<1x256x32xf32>
    tpu.vector_store %arg16[%c0_140, %c0_141, %c0_142], %147 {strides = array<i32>} : memref<1x256x32xf32, #tpu.memory_space<vmem>>, vector<1x256x32xf32>,
    return
  }
  func.func @transform_0(%arg0: i32) -> (i32, i32, i32, i32) {
    %c0_i32 = arith.constant 0 : i32
    %c0_i32_0 = arith.constant 0 : i32
    %c0_i32_1 = arith.constant 0 : i32
    %c0_i32_2 = arith.constant 0 : i32
    return %arg0, %c0_i32, %c0_i32_0, %c0_i32_1 : i32, i32, i32, i32
  }
  func.func @transform_1(%arg0: i32) -> (i32, i32, i32, i32) {
    %c0_i32 = arith.constant 0 : i32
    %c0_i32_0 = arith.constant 0 : i32
    %c0_i32_1 = arith.constant 0 : i32
    %c0_i32_2 = arith.constant 0 : i32
    return %arg0, %c0_i32, %c0_i32_0, %c0_i32_1 : i32, i32, i32, i32
  }
  func.func @transform_2(%arg0: i32) -> (i32, i32, i32) {
    %c0_i32 = arith.constant 0 : i32
    %c0_i32_0 = arith.constant 0 : i32
    %c0_i32_1 = arith.constant 0 : i32
    return %arg0, %c0_i32, %c0_i32_0 : i32, i32, i32
  }
  func.func @transform_3(%arg0: i32) -> (i32, i32, i32) {
    %c0_i32 = arith.constant 0 : i32
    %c0_i32_0 = arith.constant 0 : i32
    %c0_i32_1 = arith.constant 0 : i32
    return %arg0, %c0_i32, %c0_i32_0 : i32, i32, i32
  }
  func.func @transform_4(%arg0: i32) -> (i32, i32, i32) {
    %c0_i32 = arith.constant 0 : i32
    %c0_i32_0 = arith.constant 0 : i32
    %c0_i32_1 = arith.constant 0 : i32
    return %arg0, %c0_i32, %c0_i32_0 : i32, i32, i32
  }
  func.func @transform_5(%arg0: i32) -> (i32, i32) {
    %c0_i32 = arith.constant 0 : i32
    %c0_i32_0 = arith.constant 0 : i32
    %c0_i32_1 = arith.constant 0 : i32
    return %c0_i32, %c0_i32_0 : i32, i32
  }
  func.func @transform_6(%arg0: i32) -> (i32, i32) {
    %c0_i32 = arith.constant 0 : i32
    %c0_i32_0 = arith.constant 0 : i32
    %c0_i32_1 = arith.constant 0 : i32
    return %c0_i32, %c0_i32_0 : i32, i32
  }
  func.func @transform_7(%arg0: i32) -> (i32, i32) {
    %c0_i32 = arith.constant 0 : i32
    %c0_i32_0 = arith.constant 0 : i32
    %c0_i32_1 = arith.constant 0 : i32
    return %c0_i32, %c0_i32_0 : i32, i32
  }
  func.func @transform_8(%arg0: i32) -> (i32, i32) {
    %c0_i32 = arith.constant 0 : i32
    %c0_i32_0 = arith.constant 0 : i32
    %c0_i32_1 = arith.constant 0 : i32
    return %c0_i32, %c0_i32_0 : i32, i32
  }
  func.func @transform_9(%arg0: i32) -> (i32, i32) {
    %c0_i32 = arith.constant 0 : i32
    %c0_i32_0 = arith.constant 0 : i32
    %c0_i32_1 = arith.constant 0 : i32
    return %c0_i32, %c0_i32_0 : i32, i32
  }
  func.func @transform_10(%arg0: i32) -> (i32, i32) {
    %c0_i32 = arith.constant 0 : i32
    %c0_i32_0 = arith.constant 0 : i32
    %c0_i32_1 = arith.constant 0 : i32
    return %c0_i32, %c0_i32_0 : i32, i32
  }
  func.func @transform_11(%arg0: i32) -> (i32, i32) {
    %c0_i32 = arith.constant 0 : i32
    %c0_i32_0 = arith.constant 0 : i32
    %c0_i32_1 = arith.constant 0 : i32
    return %c0_i32, %c0_i32_0 : i32, i32
  }
  func.func @transform_12(%arg0: i32) -> (i32, i32) {
    %c0_i32 = arith.constant 0 : i32
    %c0_i32_0 = arith.constant 0 : i32
    %c0_i32_1 = arith.constant 0 : i32
    return %c0_i32, %c0_i32_0 : i32, i32
  }
  func.func @transform_13(%arg0: i32) -> (i32, i32, i32) {
    %c0_i32 = arith.constant 0 : i32
    %c0_i32_0 = arith.constant 0 : i32
    %c0_i32_1 = arith.constant 0 : i32
    return %arg0, %c0_i32, %c0_i32_0 : i32, i32, i32
  }
  func.func @transform_14(%arg0: i32) -> (i32, i32, i32) {
    %c0_i32 = arith.constant 0 : i32
    %c0_i32_0 = arith.constant 0 : i32
    %c0_i32_1 = arith.constant 0 : i32
    return %arg0, %c0_i32, %c0_i32_0 : i32, i32, i32
  }
  func.func @transform_15(%arg0: i32) -> (i32, i32, i32) {
    %c0_i32 = arith.constant 0 : i32
    %c0_i32_0 = arith.constant 0 : i32
    %c0_i32_1 = arith.constant 0 : i32
    return %arg0, %c0_i32, %c0_i32_0 : i32, i32, i32
  }
}

</mosaic_0001>

<llo_original>
// kernel: lfa_convlstm_cell_out.1
$region0: #{lfa_convlstm_cell_out.1}
  #allocation0 [shape = 'u32[]', space=smem, size = 0x4, offset = 0x4, fixed_abs, tag = 'smem constant byte address 0x4 - core index']
  #allocation1 [shape = 'u32[144,128]{1,0:T(1,128)}', space=vmem, size = 0x12000, scoped, tag = 'internal scratch']
  #allocation2 [shape = 'f32[18,18,36]{2,1,0:T(8,128)}', space=vmem, size = 0x36000, scoped, tag = 'scratch operand']
  #allocation3 [shape = 'f32[256,324]{1,0:T(8,128)}', space=vmem, size = 0x60000, scoped, tag = 'scratch operand']
  #allocation4 [shape = 'f32[18,18,64]{2,1,0:T(8,128)}', space=vmem, size = 0x36000, scoped, tag = 'scratch operand']
  #allocation5 [shape = 'f32[256,576]{1,0:T(8,128)}', space=vmem, size = 0xa0000, scoped, tag = 'scratch operand']
  %s0 = inlined_call_operand.vmem [shape: f32[2,16,16,4], index: 0, kind: input, shape index: {}]
  %s1 = inlined_call_operand.vmem [shape: f32[2,16,16,32], index: 1, kind: input, shape index: {}]
  %s2 = inlined_call_operand.vmem [shape: f32[2,256,32], index: 2, kind: input, shape index: {}, may-alias: {2,14}]
  %s3 = inlined_call_operand.vmem [shape: f32[2,256,32], index: 3, kind: input, shape index: {}, may-alias: {3,15}]
  %s4 = inlined_call_operand.vmem [shape: f32[2,256,32], index: 4, kind: input, shape index: {}]
  %s5 = inlined_call_operand.vmem [shape: f32[324,128], index: 5, kind: input, shape index: {}]
  %s6 = inlined_call_operand.vmem [shape: f32[1,128], index: 6, kind: input, shape index: {}]
  %s7 = inlined_call_operand.vmem [shape: f32[32,32], index: 7, kind: input, shape index: {}]
  %s8 = inlined_call_operand.vmem [shape: f32[1,32], index: 8, kind: input, shape index: {}]
  %s9 = inlined_call_operand.vmem [shape: f32[32,64], index: 9, kind: input, shape index: {}]
  %s10 = inlined_call_operand.vmem [shape: f32[1,64], index: 10, kind: input, shape index: {}]
  %s11 = inlined_call_operand.vmem [shape: f32[576,96], index: 11, kind: input, shape index: {}]
  %s12 = inlined_call_operand.vmem [shape: f32[1,96], index: 12, kind: input, shape index: {}]
  %s13 = inlined_call_operand.hbm [shape: f32[2,256,32], index: 13, kind: output, shape index: {0}]
  %s14 = inlined_call_operand.vmem [shape: f32[2,256,32], index: 14, kind: output, shape index: {1}, may-alias: {2,14}]
  %s15 = inlined_call_operand.vmem [shape: f32[2,256,32], index: 15, kind: output, shape index: {2}, may-alias: {3,15}]
  %16 = xla_tuple %s13, %s14, %s15
  %s17 = sld [smem:[#allocation0]]
  $region101: #{lfa_convlstm_cell_out.1} parent=0
    _
  %s19 = ssub.s32 1, %s17
  %s20 = scalar_select 0, %s19, %s17
  $region1: #{lfa_convlstm_cell_out.1} parent=0
    #allocation6 [shape = 'u8[262144]{0}', space=vmem, size = 0x40000, scoped, tag = 'output window, operand 0']
    #allocation7 [shape = 's32[2]{0}', space=sflag, size = 0x8, scoped, tag = 'scoped memory for lfa_convlstm_cell_out.1']
    %21 = vsyncpa [#allocation7], 0
    %s22 = scalar_lea.sflag [#allocation7], 1
    %23 = vsyncpa %s22, 0
    loop: start=0, step=1, limit=4
    $region2: #{lfa_convlstm_cell_out.1} parent=1 // loop_pre_header
      _
    $region3: #{lfa_convlstm_cell_out.1} parent=1 // loop_header
      %s25 = sphi 0, %s29
      %p26 = scmp.ge.s32.totalorder %s25, 4
      %s35 = sphi 0, %s37
      %s38 = sphi 0, %s35
      %s39 = sphi 0, %s38
      %s55 = sphi 0, %s39
      %s61 = sphi 0, %s63
      %s64 = sphi 0, %s61
      %s65 = sphi 0, %s64
      %s81 = sphi 0, %s65
      %s87 = sphi 0, %s89
      %s90 = sphi 0, %s87
      %s91 = sphi 0, %s90
      %s107 = sphi 0, %s91
      %s113 = sphi 0, %s115
      %s116 = sphi 0, %s113
      %s117 = sphi 0, %s116
      %s133 = sphi 0, %s117
      %s139 = sphi 0, %s141
      %s142 = sphi 0, %s139
      %s143 = sphi 0, %s142
      %s159 = sphi 0, %s143
      %s163 = sphi 0, %s163
      %s165 = sphi 0, %s163
      %s166 = sphi 0, %s165
      %s180 = sphi 0, %s166
      %s184 = sphi 0, %s184
      %s186 = sphi 0, %s184
      %s187 = sphi 0, %s186
      %s201 = sphi 0, %s187
      %s205 = sphi 0, %s205
      %s207 = sphi 0, %s205
      %s208 = sphi 0, %s207
      %s222 = sphi 0, %s208
      %s226 = sphi 0, %s226
      %s228 = sphi 0, %s226
      %s229 = sphi 0, %s228
      %s243 = sphi 0, %s229
      %s247 = sphi 0, %s247
      %s249 = sphi 0, %s247
      %s250 = sphi 0, %s249
      %s264 = sphi 0, %s250
      %s268 = sphi 0, %s268
      %s270 = sphi 0, %s268
      %s271 = sphi 0, %s270
      %s285 = sphi 0, %s271
      %s289 = sphi 0, %s289
      %s291 = sphi 0, %s289
      %s292 = sphi 0, %s291
      %s306 = sphi 0, %s292
      %s310 = sphi 0, %s310
      %s312 = sphi 0, %s310
      %s313 = sphi 0, %s312
      %s327 = sphi 0, %s313
      %s333 = sphi 0, %s335
      %s336 = sphi 0, %s333
      %s337 = sphi 0, %s336
      %s353 = sphi 0, %s337
      %s359 = sphi 0, %s361
      %s362 = sphi 0, %s359
      %s363 = sphi 0, %s362
      %s379 = sphi 0, %s363
      %s385 = sphi 0, %s387
      %s388 = sphi 0, %s385
      %s389 = sphi 0, %s388
      %s405 = sphi 0, %s389
    $region4: #{lfa_convlstm_cell_out.1} parent=1 // loop_header_branch
      %28 = sbr.rel (%p26) target = $region8
    $region5: #{lfa_convlstm_cell_out.1} parent=1 // loop_body
      %s30 = ssub.s32 %s25, 1
      %s31 = ssub.s32 %s25, 2
      %s32 = sadd.s32 %s25, 1
      %s33 = ssub.s32 %s25, %s32
      %p34 = scmp.eq.s32.totalorder %s33, 0
      %s36 = sadd.s32 %s35, 1
      %s37 = scalar_select %p34, %s35, %s36
      %p40 = pneg %p34
      %p41 = scmp.eq.s32.totalorder %s25, 1
      %p42 = por %p40, %p41
      %p43 = scmp.ne.s32.totalorder %s35, %s38
      %p44 = scmp.eq.s32.totalorder %s25, 0
      %p45 = por %p43, %p44
      %p46 = scmp.ne.s32.totalorder %s35, %s38
      %p47 = scmp.eq.s32.totalorder %s30, 1
      %p48 = por %p46, %p47
      %p49 = scmp.ne.s32.totalorder %s38, %s39
      %p50 = scmp.eq.s32.totalorder %s30, 0
      %p51 = por %p49, %p50
      %p52 = scmp.ne.s32.totalorder %s38, %s39
      %p53 = scmp.eq.s32.totalorder %s31, 1
      %p54 = por %p52, %p53
      %p56 = scmp.ne.s32.totalorder %s39, %s55
      %p57 = scmp.eq.s32.totalorder %s31, 0
      %p58 = por %p56, %p57
      %s59 = ssub.s32 %s25, %s32
      %p60 = scmp.eq.s32.totalorder %s59, 0
      %s62 = sadd.s32 %s61, 1
      %s63 = scalar_select %p60, %s61, %s62
      %p66 = pneg %p60
      %p67 = scmp.eq.s32.totalorder %s25, 1
      %p68 = por %p66, %p67
      %p69 = scmp.ne.s32.totalorder %s61, %s64
      %p70 = scmp.eq.s32.totalorder %s25, 0
      %p71 = por %p69, %p70
      %p72 = scmp.ne.s32.totalorder %s61, %s64
      %p73 = scmp.eq.s32.totalorder %s30, 1
      %p74 = por %p72, %p73
      %p75 = scmp.ne.s32.totalorder %s64, %s65
      %p76 = scmp.eq.s32.totalorder %s30, 0
      %p77 = por %p75, %p76
      %p78 = scmp.ne.s32.totalorder %s64, %s65
      %p79 = scmp.eq.s32.totalorder %s31, 1
      %p80 = por %p78, %p79
      %p82 = scmp.ne.s32.totalorder %s65, %s81
      %p83 = scmp.eq.s32.totalorder %s31, 0
      %p84 = por %p82, %p83
      %s85 = ssub.s32 %s25, %s32
      %p86 = scmp.eq.s32.totalorder %s85, 0
      %s88 = sadd.s32 %s87, 1
      %s89 = scalar_select %p86, %s87, %s88
      %p92 = pneg %p86
      %p93 = scmp.eq.s32.totalorder %s25, 1
      %p94 = por %p92, %p93
      %p95 = scmp.ne.s32.totalorder %s87, %s90
      %p96 = scmp.eq.s32.totalorder %s25, 0
      %p97 = por %p95, %p96
      %p98 = scmp.ne.s32.totalorder %s87, %s90
      %p99 = scmp.eq.s32.totalorder %s30, 1
      %p100 = por %p98, %p99
      %p101 = scmp.ne.s32.totalorder %s90, %s91
      %p102 = scmp.eq.s32.totalorder %s30, 0
      %p103 = por %p101, %p102
      %p104 = scmp.ne.s32.totalorder %s90, %s91
      %p105 = scmp.eq.s32.totalorder %s31, 1
      %p106 = por %p104, %p105
      %p108 = scmp.ne.s32.totalorder %s91, %s107
      %p109 = scmp.eq.s32.totalorder %s31, 0
      %p110 = por %p108, %p109
      %s111 = ssub.s32 %s25, %s32
      %p112 = scmp.eq.s32.totalorder %s111, 0
      %s114 = sadd.s32 %s113, 1
      %s115 = scalar_select %p112, %s113, %s114
      %p118 = pneg %p112
      %p119 = scmp.eq.s32.totalorder %s25, 1
      %p120 = por %p118, %p119
      %p121 = scmp.ne.s32.totalorder %s113, %s116
      %p122 = scmp.eq.s32.totalorder %s25, 0
      %p123 = por %p121, %p122
      %p124 = scmp.ne.s32.totalorder %s113, %s116
      %p125 = scmp.eq.s32.totalorder %s30, 1
      %p126 = por %p124, %p125
      %p127 = scmp.ne.s32.totalorder %s116, %s117
      %p128 = scmp.eq.s32.totalorder %s30, 0
      %p129 = por %p127, %p128
      %p130 = scmp.ne.s32.totalorder %s116, %s117
      %p131 = scmp.eq.s32.totalorder %s31, 1
      %p132 = por %p130, %p131
      %p134 = scmp.ne.s32.totalorder %s117, %s133
      %p135 = scmp.eq.s32.totalorder %s31, 0
      %p136 = por %p134, %p135
      %s137 = ssub.s32 %s25, %s32
      %p138 = scmp.eq.s32.totalorder %s137, 0
      %s140 = sadd.s32 %s139, 1
      %s141 = scalar_select %p138, %s139, %s140
      %p144 = pneg %p138
      %p145 = scmp.eq.s32.totalorder %s25, 1
      %p146 = por %p144, %p145
      %p147 = scmp.ne.s32.totalorder %s139, %s142
      %p148 = scmp.eq.s32.totalorder %s25, 0
      %p149 = por %p147, %p148
      %p150 = scmp.ne.s32.totalorder %s139, %s142
      %p151 = scmp.eq.s32.totalorder %s30, 1
      %p152 = por %p150, %p151
      %p153 = scmp.ne.s32.totalorder %s142, %s143
      %p154 = scmp.eq.s32.totalorder %s30, 0
      %p155 = por %p153, %p154
      %p156 = scmp.ne.s32.totalorder %s142, %s143
      %p157 = scmp.eq.s32.totalorder %s31, 1
      %p158 = por %p156, %p157
      %p160 = scmp.ne.s32.totalorder %s143, %s159
      %p161 = scmp.eq.s32.totalorder %s31, 0
      %p162 = por %p160, %p161
      %s164 = sadd.s32 %s163, 1
      %p167 = scmp.eq.s32.totalorder %s25, 1
      %p168 = scmp.ne.s32.totalorder %s163, %s165
      %p169 = scmp.eq.s32.totalorder %s25, 0
      %p170 = por %p168, %p169
      %p171 = scmp.ne.s32.totalorder %s163, %s165
      %p172 = scmp.eq.s32.totalorder %s30, 1
      %p173 = por %p171, %p172
      %p174 = scmp.ne.s32.totalorder %s165, %s166
      %p175 = scmp.eq.s32.totalorder %s30, 0
      %p176 = por %p174, %p175
      %p177 = scmp.ne.s32.totalorder %s165, %s166
      %p178 = scmp.eq.s32.totalorder %s31, 1
      %p179 = por %p177, %p178
      %p181 = scmp.ne.s32.totalorder %s166, %s180
      %p182 = scmp.eq.s32.totalorder %s31, 0
      %p183 = por %p181, %p182
      %s185 = sadd.s32 %s184, 1
      %p188 = scmp.eq.s32.totalorder %s25, 1
      %p189 = scmp.ne.s32.totalorder %s184, %s186
      %p190 = scmp.eq.s32.totalorder %s25, 0
      %p191 = por %p189, %p190
      %p192 = scmp.ne.s32.totalorder %s184, %s186
      %p193 = scmp.eq.s32.totalorder %s30, 1
      %p194 = por %p192, %p193
      %p195 = scmp.ne.s32.totalorder %s186, %s187
      %p196 = scmp.eq.s32.totalorder %s30, 0
      %p197 = por %p195, %p196
      %p198 = scmp.ne.s32.totalorder %s186, %s187
      %p199 = scmp.eq.s32.totalorder %s31, 1
      %p200 = por %p198, %p199
      %p202 = scmp.ne.s32.totalorder %s187, %s201
      %p203 = scmp.eq.s32.totalorder %s31, 0
      %p204 = por %p202, %p203
      %s206 = sadd.s32 %s205, 1
      %p209 = scmp.eq.s32.totalorder %s25, 1
      %p210 = scmp.ne.s32.totalorder %s205, %s207
      %p211 = scmp.eq.s32.totalorder %s25, 0
      %p212 = por %p210, %p211
      %p213 = scmp.ne.s32.totalorder %s205, %s207
      %p214 = scmp.eq.s32.totalorder %s30, 1
      %p215 = por %p213, %p214
      %p216 = scmp.ne.s32.totalorder %s207, %s208
      %p217 = scmp.eq.s32.totalorder %s30, 0
      %p218 = por %p216, %p217
      %p219 = scmp.ne.s32.totalorder %s207, %s208
      %p220 = scmp.eq.s32.totalorder %s31, 1
      %p221 = por %p219, %p220
      %p223 = scmp.ne.s32.totalorder %s208, %s222
      %p224 = scmp.eq.s32.totalorder %s31, 0
      %p225 = por %p223, %p224
      %s227 = sadd.s32 %s226, 1
      %p230 = scmp.eq.s32.totalorder %s25, 1
      %p231 = scmp.ne.s32.totalorder %s226, %s228
      %p232 = scmp.eq.s32.totalorder %s25, 0
      %p233 = por %p231, %p232
      %p234 = scmp.ne.s32.totalorder %s226, %s228
      %p235 = scmp.eq.s32.totalorder %s30, 1
      %p236 = por %p234, %p235
      %p237 = scmp.ne.s32.totalorder %s228, %s229
      %p238 = scmp.eq.s32.totalorder %s30, 0
      %p239 = por %p237, %p238
      %p240 = scmp.ne.s32.totalorder %s228, %s229
      %p241 = scmp.eq.s32.totalorder %s31, 1
      %p242 = por %p240, %p241
      %p244 = scmp.ne.s32.totalorder %s229, %s243
      %p245 = scmp.eq.s32.totalorder %s31, 0
      %p246 = por %p244, %p245
      %s248 = sadd.s32 %s247, 1
      %p251 = scmp.eq.s32.totalorder %s25, 1
      %p252 = scmp.ne.s32.totalorder %s247, %s249
      %p253 = scmp.eq.s32.totalorder %s25, 0
      %p254 = por %p252, %p253
      %p255 = scmp.ne.s32.totalorder %s247, %s249
      %p256 = scmp.eq.s32.totalorder %s30, 1
      %p257 = por %p255, %p256
      %p258 = scmp.ne.s32.totalorder %s249, %s250
      %p259 = scmp.eq.s32.totalorder %s30, 0
      %p260 = por %p258, %p259
      %p261 = scmp.ne.s32.totalorder %s249, %s250
      %p262 = scmp.eq.s32.totalorder %s31, 1
      %p263 = por %p261, %p262
      %p265 = scmp.ne.s32.totalorder %s250, %s264
      %p266 = scmp.eq.s32.totalorder %s31, 0
      %p267 = por %p265, %p266
      %s269 = sadd.s32 %s268, 1
      %p272 = scmp.eq.s32.totalorder %s25, 1
      %p273 = scmp.ne.s32.totalorder %s268, %s270
      %p274 = scmp.eq.s32.totalorder %s25, 0
      %p275 = por %p273, %p274
      %p276 = scmp.ne.s32.totalorder %s268, %s270
      %p277 = scmp.eq.s32.totalorder %s30, 1
      %p278 = por %p276, %p277
      %p279 = scmp.ne.s32.totalorder %s270, %s271
      %p280 = scmp.eq.s32.totalorder %s30, 0
      %p281 = por %p279, %p280
      %p282 = scmp.ne.s32.totalorder %s270, %s271
      %p283 = scmp.eq.s32.totalorder %s31, 1
      %p284 = por %p282, %p283
      %p286 = scmp.ne.s32.totalorder %s271, %s285
      %p287 = scmp.eq.s32.totalorder %s31, 0
      %p288 = por %p286, %p287
      %s290 = sadd.s32 %s289, 1
      %p293 = scmp.eq.s32.totalorder %s25, 1
      %p294 = scmp.ne.s32.totalorder %s289, %s291
      %p295 = scmp.eq.s32.totalorder %s25, 0
      %p296 = por %p294, %p295
      %p297 = scmp.ne.s32.totalorder %s289, %s291
      %p298 = scmp.eq.s32.totalorder %s30, 1
      %p299 = por %p297, %p298
      %p300 = scmp.ne.s32.totalorder %s291, %s292
      %p301 = scmp.eq.s32.totalorder %s30, 0
      %p302 = por %p300, %p301
      %p303 = scmp.ne.s32.totalorder %s291, %s292
      %p304 = scmp.eq.s32.totalorder %s31, 1
      %p305 = por %p303, %p304
      %p307 = scmp.ne.s32.totalorder %s292, %s306
      %p308 = scmp.eq.s32.totalorder %s31, 0
      %p309 = por %p307, %p308
      %s311 = sadd.s32 %s310, 1
      %p314 = scmp.eq.s32.totalorder %s25, 1
      %p315 = scmp.ne.s32.totalorder %s310, %s312
      %p316 = scmp.eq.s32.totalorder %s25, 0
      %p317 = por %p315, %p316
      %p318 = scmp.ne.s32.totalorder %s310, %s312
      %p319 = scmp.eq.s32.totalorder %s30, 1
      %p320 = por %p318, %p319
      %p321 = scmp.ne.s32.totalorder %s312, %s313
      %p322 = scmp.eq.s32.totalorder %s30, 0
      %p323 = por %p321, %p322
      %p324 = scmp.ne.s32.totalorder %s312, %s313
      %p325 = scmp.eq.s32.totalorder %s31, 1
      %p326 = por %p324, %p325
      %p328 = scmp.ne.s32.totalorder %s313, %s327
      %p329 = scmp.eq.s32.totalorder %s31, 0
      %p330 = por %p328, %p329
      %s331 = ssub.s32 %s25, %s32
      %p332 = scmp.eq.s32.totalorder %s331, 0
      %s334 = sadd.s32 %s333, 1
      %s335 = scalar_select %p332, %s333, %s334
      %p338 = pneg %p332
      %p339 = scmp.eq.s32.totalorder %s25, 1
      %p340 = por %p338, %p339
      %p341 = scmp.ne.s32.totalorder %s333, %s336
      %p342 = scmp.eq.s32.totalorder %s25, 0
      %p343 = por %p341, %p342
      %p344 = scmp.ne.s32.totalorder %s333, %s336
      %p345 = scmp.eq.s32.totalorder %s30, 1
      %p346 = por %p344, %p345
      %p347 = scmp.ne.s32.totalorder %s336, %s337
      %p348 = scmp.eq.s32.totalorder %s30, 0
      %p349 = por %p347, %p348
      %p350 = scmp.ne.s32.totalorder %s336, %s337
      %p351 = scmp.eq.s32.totalorder %s31, 1
      %p352 = por %p350, %p351
      %p354 = scmp.ne.s32.totalorder %s337, %s353
      %p355 = scmp.eq.s32.totalorder %s31, 0
      %p356 = por %p354, %p355
      %s357 = ssub.s32 %s25, %s32
      %p358 = scmp.eq.s32.totalorder %s357, 0
      %s360 = sadd.s32 %s359, 1
      %s361 = scalar_select %p358, %s359, %s360
      %p364 = pneg %p358
      %p365 = scmp.eq.s32.totalorder %s25, 1
      %p366 = por %p364, %p365
      %p367 = scmp.ne.s32.totalorder %s359, %s362
      %p368 = scmp.eq.s32.totalorder %s25, 0
      %p369 = por %p367, %p368
      %p370 = scmp.ne.s32.totalorder %s359, %s362
      %p371 = scmp.eq.s32.totalorder %s30, 1
      %p372 = por %p370, %p371
      %p373 = scmp.ne.s32.totalorder %s362, %s363
      %p374 = scmp.eq.s32.totalorder %s30, 0
      %p375 = por %p373, %p374
      %p376 = scmp.ne.s32.totalorder %s362, %s363
      %p377 = scmp.eq.s32.totalorder %s31, 1
      %p378 = por %p376, %p377
      %p380 = scmp.ne.s32.totalorder %s363, %s379
      %p381 = scmp.eq.s32.totalorder %s31, 0
      %p382 = por %p380, %p381
      %s383 = ssub.s32 %s25, %s32
      %p384 = scmp.eq.s32.totalorder %s383, 0
      %s386 = sadd.s32 %s385, 1
      %s387 = scalar_select %p384, %s385, %s386
      %p390 = pneg %p384
      %p391 = scmp.eq.s32.totalorder %s25, 1
      %p392 = por %p390, %p391
      %p393 = scmp.ne.s32.totalorder %s385, %s388
      %p394 = scmp.eq.s32.totalorder %s25, 0
      %p395 = por %p393, %p394
      %p396 = scmp.ne.s32.totalorder %s385, %s388
      %p397 = scmp.eq.s32.totalorder %s30, 1
      %p398 = por %p396, %p397
      %p399 = scmp.ne.s32.totalorder %s388, %s389
      %p400 = scmp.eq.s32.totalorder %s30, 0
      %p401 = por %p399, %p400
      %p402 = scmp.ne.s32.totalorder %s388, %s389
      %p403 = scmp.eq.s32.totalorder %s31, 1
      %p404 = por %p402, %p403
      %p406 = scmp.ne.s32.totalorder %s389, %s405
      %p407 = scmp.eq.s32.totalorder %s31, 0
      %p408 = por %p406, %p407
      %p409 = scmp.le.s32.totalorder 1, %s25
      %p410 = scmp.lt.s32.totalorder %s25, 3
      %p411 = pnand %p409, %p410
      %p412 = pneg %p411
      // Predicated region
      $region9: #{lfa_convlstm_cell_out.1} parent=5 // pred_check
        _
      $region10: #{lfa_convlstm_cell_out.1} parent=5 // pred_check_branch
        %414 = sbr.rel (%p411) target = $region12
      $region11: #{lfa_convlstm_cell_out.1} parent=5 // pred_region
        %s415 = ssub.s32 %s25, 1
        // Predicated region
        $region13: #{lfa_convlstm_cell_out.1} parent=11 // pred_check
          %p416 = pneg %p176
        $region14: #{lfa_convlstm_cell_out.1} parent=11 // pred_check_branch
          %418 = sbr.rel (%p416) target = $region16
        $region15: #{lfa_convlstm_cell_out.1} parent=11 // pred_region
          _
        $region16: #{lfa_convlstm_cell_out.1} parent=11 // pred_fallthru
          _
        // Predicated region
        $region17: #{lfa_convlstm_cell_out.1} parent=11 // pred_check
          %p419 = pneg %p197
        $region18: #{lfa_convlstm_cell_out.1} parent=11 // pred_check_branch
          %421 = sbr.rel (%p419) target = $region20
        $region19: #{lfa_convlstm_cell_out.1} parent=11 // pred_region
          _
        $region20: #{lfa_convlstm_cell_out.1} parent=11 // pred_fallthru
          _
        // Predicated region
        $region21: #{lfa_convlstm_cell_out.1} parent=11 // pred_check
          %p422 = pneg %p218
        $region22: #{lfa_convlstm_cell_out.1} parent=11 // pred_check_branch
          %424 = sbr.rel (%p422) target = $region24
        $region23: #{lfa_convlstm_cell_out.1} parent=11 // pred_region
          _
        $region24: #{lfa_convlstm_cell_out.1} parent=11 // pred_fallthru
          _
        // Predicated region
        $region25: #{lfa_convlstm_cell_out.1} parent=11 // pred_check
          %p425 = pneg %p239
        $region26: #{lfa_convlstm_cell_out.1} parent=11 // pred_check_branch
          %427 = sbr.rel (%p425) target = $region28
        $region27: #{lfa_convlstm_cell_out.1} parent=11 // pred_region
          _
        $region28: #{lfa_convlstm_cell_out.1} parent=11 // pred_fallthru
          _
        // Predicated region
        $region29: #{lfa_convlstm_cell_out.1} parent=11 // pred_check
          %p428 = pneg %p260
        $region30: #{lfa_convlstm_cell_out.1} parent=11 // pred_check_branch
          %430 = sbr.rel (%p428) target = $region32
        $region31: #{lfa_convlstm_cell_out.1} parent=11 // pred_region
          _
        $region32: #{lfa_convlstm_cell_out.1} parent=11 // pred_fallthru
          _
        // Predicated region
        $region33: #{lfa_convlstm_cell_out.1} parent=11 // pred_check
          %p431 = pneg %p281
        $region34: #{lfa_convlstm_cell_out.1} parent=11 // pred_check_branch
          %433 = sbr.rel (%p431) target = $region36
        $region35: #{lfa_convlstm_cell_out.1} parent=11 // pred_region
          _
        $region36: #{lfa_convlstm_cell_out.1} parent=11 // pred_fallthru
          _
        // Predicated region
        $region37: #{lfa_convlstm_cell_out.1} parent=11 // pred_check
          %p434 = pneg %p302
        $region38: #{lfa_convlstm_cell_out.1} parent=11 // pred_check_branch
          %436 = sbr.rel (%p434) target = $region40
        $region39: #{lfa_convlstm_cell_out.1} parent=11 // pred_region
          _
        $region40: #{lfa_convlstm_cell_out.1} parent=11 // pred_fallthru
          _
        // Predicated region
        $region41: #{lfa_convlstm_cell_out.1} parent=11 // pred_check
          %p437 = pneg %p323
        $region42: #{lfa_convlstm_cell_out.1} parent=11 // pred_check_branch
          %439 = sbr.rel (%p437) target = $region44
        $region43: #{lfa_convlstm_cell_out.1} parent=11 // pred_region
          _
        $region44: #{lfa_convlstm_cell_out.1} parent=11 // pred_fallthru
          _
      $region12: #{lfa_convlstm_cell_out.1} parent=5 // pred_fallthru
        _
      %p440 = scmp.lt.s32.totalorder %s25, 2
      // Predicated region
      $region45: #{lfa_convlstm_cell_out.1} parent=5 // pred_check
        %p441 = pneg %p440
      $region46: #{lfa_convlstm_cell_out.1} parent=5 // pred_check_branch
        %443 = sbr.rel (%p441) target = $region48
      $region47: #{lfa_convlstm_cell_out.1} parent=5 // pred_region
        // Predicated region
        $region49: #{lfa_convlstm_cell_out.1} parent=47 // pred_check
          %p444 = pneg %p45
        $region50: #{lfa_convlstm_cell_out.1} parent=47 // pred_check_branch
          %446 = sbr.rel (%p444) target = $region52
        $region51: #{lfa_convlstm_cell_out.1} parent=47 // pred_region
          %p447 = scmp.lt.s32.totalorder %s25, 1
          %s448 = scalar_select %p447, %s25, 1
          %s449 = smul.addr %s448, 32
          %s450 = smul.addr %s449, 8
          %s451 = scalar_lea.vmem %s0, %s450
        $region52: #{lfa_convlstm_cell_out.1} parent=47 // pred_fallthru
          _
        // Predicated region
        $region53: #{lfa_convlstm_cell_out.1} parent=47 // pred_check
          %p452 = pneg %p71
        $region54: #{lfa_convlstm_cell_out.1} parent=47 // pred_check_branch
          %454 = sbr.rel (%p452) target = $region56
        $region55: #{lfa_convlstm_cell_out.1} parent=47 // pred_region
          %p455 = scmp.lt.s32.totalorder %s25, 1
          %s456 = scalar_select %p455, %s25, 1
          %s457 = smul.addr %s456, 32
          %s458 = smul.addr %s457, 8
          %s459 = scalar_lea.vmem %s1, %s458
        $region56: #{lfa_convlstm_cell_out.1} parent=47 // pred_fallthru
          _
        // Predicated region
        $region57: #{lfa_convlstm_cell_out.1} parent=47 // pred_check
          %p460 = pneg %p97
        $region58: #{lfa_convlstm_cell_out.1} parent=47 // pred_check_branch
          %462 = sbr.rel (%p460) target = $region60
        $region59: #{lfa_convlstm_cell_out.1} parent=47 // pred_region
          %p463 = scmp.lt.s32.totalorder %s25, 1
          %s464 = scalar_select %p463, %s25, 1
          %s465 = smul.addr %s464, 32
          %s466 = smul.addr %s465, 8
          %s467 = scalar_lea.vmem %s2, %s466
        $region60: #{lfa_convlstm_cell_out.1} parent=47 // pred_fallthru
          _
        // Predicated region
        $region61: #{lfa_convlstm_cell_out.1} parent=47 // pred_check
          %p468 = pneg %p123
        $region62: #{lfa_convlstm_cell_out.1} parent=47 // pred_check_branch
          %470 = sbr.rel (%p468) target = $region64
        $region63: #{lfa_convlstm_cell_out.1} parent=47 // pred_region
          %p471 = scmp.lt.s32.totalorder %s25, 1
          %s472 = scalar_select %p471, %s25, 1
          %s473 = smul.addr %s472, 32
          %s474 = smul.addr %s473, 8
          %s475 = scalar_lea.vmem %s3, %s474
        $region64: #{lfa_convlstm_cell_out.1} parent=47 // pred_fallthru
          _
        // Predicated region
        $region65: #{lfa_convlstm_cell_out.1} parent=47 // pred_check
          %p476 = pneg %p149
        $region66: #{lfa_convlstm_cell_out.1} parent=47 // pred_check_branch
          %478 = sbr.rel (%p476) target = $region68
        $region67: #{lfa_convlstm_cell_out.1} parent=47 // pred_region
          %p479 = scmp.lt.s32.totalorder %s25, 1
          %s480 = scalar_select %p479, %s25, 1
          %s481 = smul.addr %s480, 32
          %s482 = smul.addr %s481, 8
          %s483 = scalar_lea.vmem %s4, %s482
        $region68: #{lfa_convlstm_cell_out.1} parent=47 // pred_fallthru
          _
      $region48: #{lfa_convlstm_cell_out.1} parent=5 // pred_fallthru
        _
      %p484 = scmp.le.s32.totalorder 1, %s25
      %p485 = scmp.lt.s32.totalorder %s25, 3
      %p486 = pnand %p484, %p485
      %p487 = pneg %p486
      // Predicated region
      $region69: #{lfa_convlstm_cell_out.1} parent=5 // pred_check
        _
      $region70: #{lfa_convlstm_cell_out.1} parent=5 // pred_check_branch
        %489 = sbr.rel (%p486) target = $region72
      $region71: #{lfa_convlstm_cell_out.1} parent=5 // pred_region
        %s490 = ssub.s32 %s25, 1
        %p491 = scmp.lt.s32.totalorder %s30, 1
        %s492 = scalar_select %p491, %s30, 1
        %s493 = smul.addr %s492, 32
        %s494 = smul.addr %s493, 8
        %s495 = scalar_lea.vmem %s0, %s494
        %p496 = pneg %p51
        %p497 = pneg %p48
        %p498 = scmp.lt.s32.totalorder %s30, 1
        %s499 = scalar_select %p498, %s30, 1
        %s500 = smul.addr %s499, 32
        %s501 = smul.addr %s500, 8
        %s502 = scalar_lea.vmem %s1, %s501
        %p503 = pneg %p77
        %p504 = pneg %p74
        %p505 = scmp.lt.s32.totalorder %s30, 1
        %s506 = scalar_select %p505, %s30, 1
        %s507 = smul.addr %s506, 32
        %s508 = smul.addr %s507, 8
        %s509 = scalar_lea.vmem %s2, %s508
        %p510 = pneg %p103
        %p511 = pneg %p100
        %p512 = scmp.lt.s32.totalorder %s30, 1
        %s513 = scalar_select %p512, %s30, 1
        %s514 = smul.addr %s513, 32
        %s515 = smul.addr %s514, 8
        %s516 = scalar_lea.vmem %s3, %s515
        %p517 = pneg %p129
        %p518 = pneg %p126
        %p519 = scmp.lt.s32.totalorder %s30, 1
        %s520 = scalar_select %p519, %s30, 1
        %s521 = smul.addr %s520, 32
        %s522 = smul.addr %s521, 8
        %s523 = scalar_lea.vmem %s4, %s522
        %p524 = pneg %p155
        %p525 = pneg %p152
        %p526 = pneg %p176
        %p527 = pneg %p173
        %p528 = pneg %p197
        %p529 = pneg %p194
        %p530 = pneg %p218
        %p531 = pneg %p215
        %p532 = pneg %p239
        %p533 = pneg %p236
        %p534 = pneg %p260
        %p535 = pneg %p257
        %p536 = pneg %p281
        %p537 = pneg %p278
        %p538 = pneg %p302
        %p539 = pneg %p299
        %p540 = pneg %p323
        %p541 = pneg %p320
        %p542 = pneg %p349
        %p543 = pneg %p346
        %s544 = sand.u32 %s336, 1
        %s545 = scalar_lea.sflag [#allocation7], %s544
        %s546 = sand.u32 %s336, 1
        %s547 = smul.addr %s546, 256
        %s548 = scalar_lea.vmem [#allocation6], %s547
        %p549 = pneg %p375
        %p550 = pneg %p372
        %p551 = scmp.lt.s32.totalorder %s30, 1
        %s552 = scalar_select %p551, %s30, 1
        %s553 = smul.addr %s552, 32
        %s554 = smul.addr %s553, 8
        %s555 = scalar_lea.vmem %s14, %s554
        %p556 = pneg %p401
        %p557 = pneg %p398
        %p558 = scmp.lt.s32.totalorder %s30, 1
        %s559 = scalar_select %p558, %s30, 1
        %s560 = smul.addr %s559, 32
        %s561 = smul.addr %s560, 8
        %s562 = scalar_lea.vmem %s15, %s561
        %p563 = scmp.lt.s32.totalorder %s30, 1
        %s564 = scalar_select %p563, %s30, 1
        %s565 = smul.addr %s564, 32
        %s566 = smul.addr %s565, 8
        %s567 = scalar_lea.vmem %s0, %s566
        %p568 = scmp.lt.s32.totalorder %s30, 1
        %s569 = scalar_select %p568, %s30, 1
        %s570 = smul.addr %s569, 32
        %s571 = smul.addr %s570, 8
        %s572 = scalar_lea.vmem %s1, %s571
        %p573 = scmp.lt.s32.totalorder %s30, 1
        %s574 = scalar_select %p573, %s30, 1
        %s575 = smul.addr %s574, 32
        %s576 = smul.addr %s575, 8
        %s577 = scalar_lea.vmem %s2, %s576
        %p578 = scmp.lt.s32.totalorder %s30, 1
        %s579 = scalar_select %p578, %s30, 1
        %s580 = smul.addr %s579, 32
        %s581 = smul.addr %s580, 8
        %s582 = scalar_lea.vmem %s3, %s581
        %p583 = scmp.lt.s32.totalorder %s30, 1
        %s584 = scalar_select %p583, %s30, 1
        %s585 = smul.addr %s584, 32
        %s586 = smul.addr %s585, 8
        %s587 = scalar_lea.vmem %s4, %s586
        %p588 = scmp.lt.s32.totalorder %s30, 1
        %s589 = scalar_select %p588, %s30, 1
        %s590 = smul.addr %s589, 32
        %s591 = smul.addr %s590, 8
        %s592 = scalar_lea.vmem %s14, %s591
        %p593 = scmp.lt.s32.totalorder %s30, 1
        %s594 = scalar_select %p593, %s30, 1
        %s595 = smul.addr %s594, 32
        %s596 = smul.addr %s595, 8
        %s597 = scalar_lea.vmem %s15, %s596
        %vm598 = vcmask 293888
        %599 = vst.msk [vmem:[#allocation2] sm:$0xff] %vm598, 0.0
        %600 = vst.msk [vmem:[#allocation2 + $0x8] sm:$0xff] %vm598, 0.0
        %vm601 = vcmask 287744
        %602 = vst.msk [vmem:[#allocation2 + $0x10] sm:$0x3] %vm601, 0.0
        %603 = vst.msk [vmem:[#allocation2 + $0x18] sm:$0xff] %vm598, 0.0
        %604 = vst.msk [vmem:[#allocation2 + $0x20] sm:$0xff] %vm598, 0.0
        %605 = vst.msk [vmem:[#allocation2 + $0x28] sm:$0x3] %vm601, 0.0
        %606 = vst.msk [vmem:[#allocation2 + $0x30] sm:$0xff] %vm598, 0.0
        %607 = vst.msk [vmem:[#allocation2 + $0x38] sm:$0xff] %vm598, 0.0
        %608 = vst.msk [vmem:[#allocation2 + $0x40] sm:$0x3] %vm601, 0.0
        %609 = vst.msk [vmem:[#allocation2 + $0x48] sm:$0xff] %vm598, 0.0
        %610 = vst.msk [vmem:[#allocation2 + $0x50] sm:$0xff] %vm598, 0.0
        %611 = vst.msk [vmem:[#allocation2 + $0x58] sm:$0x3] %vm601, 0.0
        %612 = vst.msk [vmem:[#allocation2 + $0x60] sm:$0xff] %vm598, 0.0
        %613 = vst.msk [vmem:[#allocation2 + $0x68] sm:$0xff] %vm598, 0.0
        %614 = vst.msk [vmem:[#allocation2 + $0x70] sm:$0x3] %vm601, 0.0
        %615 = vst.msk [vmem:[#allocation2 + $0x78] sm:$0xff] %vm598, 0.0
        %616 = vst.msk [vmem:[#allocation2 + $0x80] sm:$0xff] %vm598, 0.0
        %617 = vst.msk [vmem:[#allocation2 + $0x88] sm:$0x3] %vm601, 0.0
        %618 = vst.msk [vmem:[#allocation2 + $0x90] sm:$0xff] %vm598, 0.0
        %619 = vst.msk [vmem:[#allocation2 + $0x98] sm:$0xff] %vm598, 0.0
        %620 = vst.msk [vmem:[#allocation2 + $0xa0] sm:$0x3] %vm601, 0.0
        %621 = vst.msk [vmem:[#allocation2 + $0xa8] sm:$0xff] %vm598, 0.0
        %622 = vst.msk [vmem:[#allocation2 + $0xb0] sm:$0xff] %vm598, 0.0
        %623 = vst.msk [vmem:[#allocation2 + $0xb8] sm:$0x3] %vm601, 0.0
        %624 = vst.msk [vmem:[#allocation2 + $0xc0] sm:$0xff] %vm598, 0.0
        %625 = vst.msk [vmem:[#allocation2 + $0xc8] sm:$0xff] %vm598, 0.0
        %626 = vst.msk [vmem:[#allocation2 + $0xd0] sm:$0x3] %vm601, 0.0
        %627 = vst.msk [vmem:[#allocation2 + $0xd8] sm:$0xff] %vm598, 0.0
        %628 = vst.msk [vmem:[#allocation2 + $0xe0] sm:$0xff] %vm598, 0.0
        %629 = vst.msk [vmem:[#allocation2 + $0xe8] sm:$0x3] %vm601, 0.0
        %630 = vst.msk [vmem:[#allocation2 + $0xf0] sm:$0xff] %vm598, 0.0
        %631 = vst.msk [vmem:[#allocation2 + $0xf8] sm:$0xff] %vm598, 0.0
        %632 = vst.msk [vmem:[#allocation2 + $0x100] sm:$0x3] %vm601, 0.0
        %633 = vst.msk [vmem:[#allocation2 + $0x108] sm:$0xff] %vm598, 0.0
        %634 = vst.msk [vmem:[#allocation2 + $0x110] sm:$0xff] %vm598, 0.0
        %635 = vst.msk [vmem:[#allocation2 + $0x118] sm:$0x3] %vm601, 0.0
        %636 = vst.msk [vmem:[#allocation2 + $0x120] sm:$0xff] %vm598, 0.0
        %637 = vst.msk [vmem:[#allocation2 + $0x128] sm:$0xff] %vm598, 0.0
        %638 = vst.msk [vmem:[#allocation2 + $0x130] sm:$0x3] %vm601, 0.0
        %639 = vst.msk [vmem:[#allocation2 + $0x138] sm:$0xff] %vm598, 0.0
        %640 = vst.msk [vmem:[#allocation2 + $0x140] sm:$0xff] %vm598, 0.0
        %641 = vst.msk [vmem:[#allocation2 + $0x148] sm:$0x3] %vm601, 0.0
        %642 = vst.msk [vmem:[#allocation2 + $0x150] sm:$0xff] %vm598, 0.0
        %643 = vst.msk [vmem:[#allocation2 + $0x158] sm:$0xff] %vm598, 0.0
        %644 = vst.msk [vmem:[#allocation2 + $0x160] sm:$0x3] %vm601, 0.0
        %645 = vst.msk [vmem:[#allocation2 + $0x168] sm:$0xff] %vm598, 0.0
        %646 = vst.msk [vmem:[#allocation2 + $0x170] sm:$0xff] %vm598, 0.0
        %647 = vst.msk [vmem:[#allocation2 + $0x178] sm:$0x3] %vm601, 0.0
        %648 = vst.msk [vmem:[#allocation2 + $0x180] sm:$0xff] %vm598, 0.0
        %649 = vst.msk [vmem:[#allocation2 + $0x188] sm:$0xff] %vm598, 0.0
        %650 = vst.msk [vmem:[#allocation2 + $0x190] sm:$0x3] %vm601, 0.0
        %651 = vst.msk [vmem:[#allocation2 + $0x198] sm:$0xff] %vm598, 0.0
        %652 = vst.msk [vmem:[#allocation2 + $0x1a0] sm:$0xff] %vm598, 0.0
        %653 = vst.msk [vmem:[#allocation2 + $0x1a8] sm:$0x3] %vm601, 0.0
        %v654 = vld [vmem:[%s567] sm:$0xff]
        %v655 = vld [vmem:[%s567 + $0x8] sm:$0xff]
        %v656 = vld [vmem:[%s567 + $0x10] sm:$0xff]
        %v657 = vld [vmem:[%s567 + $0x18] sm:$0xff]
        %v658 = vld [vmem:[%s567 + $0x20] sm:$0xff]
        %v659 = vld [vmem:[%s567 + $0x28] sm:$0xff]
        %v660 = vld [vmem:[%s567 + $0x30] sm:$0xff]
        %v661 = vld [vmem:[%s567 + $0x38] sm:$0xff]
        %v662 = vld [vmem:[%s567 + $0x40] sm:$0xff]
        %v663 = vld [vmem:[%s567 + $0x48] sm:$0xff]
        %v664 = vld [vmem:[%s567 + $0x50] sm:$0xff]
        %v665 = vld [vmem:[%s567 + $0x58] sm:$0xff]
        %v666 = vld [vmem:[%s567 + $0x60] sm:$0xff]
        %v667 = vld [vmem:[%s567 + $0x68] sm:$0xff]
        %v668 = vld [vmem:[%s567 + $0x70] sm:$0xff]
        %v669 = vld [vmem:[%s567 + $0x78] sm:$0xff]
        %v670 = vld [vmem:[%s567 + $0x80] sm:$0xff]
        %v671 = vld [vmem:[%s567 + $0x88] sm:$0xff]
        %v672 = vld [vmem:[%s567 + $0x90] sm:$0xff]
        %v673 = vld [vmem:[%s567 + $0x98] sm:$0xff]
        %v674 = vld [vmem:[%s567 + $0xa0] sm:$0xff]
        %v675 = vld [vmem:[%s567 + $0xa8] sm:$0xff]
        %v676 = vld [vmem:[%s567 + $0xb0] sm:$0xff]
        %v677 = vld [vmem:[%s567 + $0xb8] sm:$0xff]
        %v678 = vld [vmem:[%s567 + $0xc0] sm:$0xff]
        %v679 = vld [vmem:[%s567 + $0xc8] sm:$0xff]
        %v680 = vld [vmem:[%s567 + $0xd0] sm:$0xff]
        %v681 = vld [vmem:[%s567 + $0xd8] sm:$0xff]
        %v682 = vld [vmem:[%s567 + $0xe0] sm:$0xff]
        %v683 = vld [vmem:[%s567 + $0xe8] sm:$0xff]
        %v684 = vld [vmem:[%s567 + $0xf0] sm:$0xff]
        %v685 = vld [vmem:[%s567 + $0xf8] sm:$0xff]
        %s686 = scalar_lea.vmem [#allocation2], 24
        %vm687 = vcmask 31744
        %688 = vst.msk [vmem:[%s686 + $0x1] sm:$0xff] %vm687, %v654
        %689 = vst.msk [vmem:[%s686 + $0x9] sm:$0xff] %vm687, %v655
        %690 = vst.msk [vmem:[%s686 + $0x19] sm:$0xff] %vm687, %v656
        %691 = vst.msk [vmem:[%s686 + $0x21] sm:$0xff] %vm687, %v657
        %692 = vst.msk [vmem:[%s686 + $0x31] sm:$0xff] %vm687, %v658
        %693 = vst.msk [vmem:[%s686 + $0x39] sm:$0xff] %vm687, %v659
        %694 = vst.msk [vmem:[%s686 + $0x49] sm:$0xff] %vm687, %v660
        %695 = vst.msk [vmem:[%s686 + $0x51] sm:$0xff] %vm687, %v661
        %696 = vst.msk [vmem:[%s686 + $0x61] sm:$0xff] %vm687, %v662
        %697 = vst.msk [vmem:[%s686 + $0x69] sm:$0xff] %vm687, %v663
        %698 = vst.msk [vmem:[%s686 + $0x79] sm:$0xff] %vm687, %v664
        %699 = vst.msk [vmem:[%s686 + $0x81] sm:$0xff] %vm687, %v665
        %700 = vst.msk [vmem:[%s686 + $0x91] sm:$0xff] %vm687, %v666
        %701 = vst.msk [vmem:[%s686 + $0x99] sm:$0xff] %vm687, %v667
        %702 = vst.msk [vmem:[%s686 + $0xa9] sm:$0xff] %vm687, %v668
        %703 = vst.msk [vmem:[%s686 + $0xb1] sm:$0xff] %vm687, %v669
        %704 = vst.msk [vmem:[%s686 + $0xc1] sm:$0xff] %vm687, %v670
        %705 = vst.msk [vmem:[%s686 + $0xc9] sm:$0xff] %vm687, %v671
        %706 = vst.msk [vmem:[%s686 + $0xd9] sm:$0xff] %vm687, %v672
        %707 = vst.msk [vmem:[%s686 + $0xe1] sm:$0xff] %vm687, %v673
        %708 = vst.msk [vmem:[%s686 + $0xf1] sm:$0xff] %vm687, %v674
        %709 = vst.msk [vmem:[%s686 + $0xf9] sm:$0xff] %vm687, %v675
        %710 = vst.msk [vmem:[%s686 + $0x109] sm:$0xff] %vm687, %v676
        %711 = vst.msk [vmem:[%s686 + $0x111] sm:$0xff] %vm687, %v677
        %712 = vst.msk [vmem:[%s686 + $0x121] sm:$0xff] %vm687, %v678
        %713 = vst.msk [vmem:[%s686 + $0x129] sm:$0xff] %vm687, %v679
        %714 = vst.msk [vmem:[%s686 + $0x139] sm:$0xff] %vm687, %v680
        %715 = vst.msk [vmem:[%s686 + $0x141] sm:$0xff] %vm687, %v681
        %716 = vst.msk [vmem:[%s686 + $0x151] sm:$0xff] %vm687, %v682
        %717 = vst.msk [vmem:[%s686 + $0x159] sm:$0xff] %vm687, %v683
        %718 = vst.msk [vmem:[%s686 + $0x169] sm:$0xff] %vm687, %v684
        %719 = vst.msk [vmem:[%s686 + $0x171] sm:$0xff] %vm687, %v685
        %v720 = vld [vmem:[%s572] sm:$0xff]
        %v721 = vld [vmem:[%s572 + $0x8] sm:$0xff]
        %v722 = vld [vmem:[%s572 + $0x10] sm:$0xff]
        %v723 = vld [vmem:[%s572 + $0x18] sm:$0xff]
        %v724 = vld [vmem:[%s572 + $0x20] sm:$0xff]
        %v725 = vld [vmem:[%s572 + $0x28] sm:$0xff]
        %v726 = vld [vmem:[%s572 + $0x30] sm:$0xff]
        %v727 = vld [vmem:[%s572 + $0x38] sm:$0xff]
        %v728 = vld [vmem:[%s572 + $0x40] sm:$0xff]
        %v729 = vld [vmem:[%s572 + $0x48] sm:$0xff]
        %v730 = vld [vmem:[%s572 + $0x50] sm:$0xff]
        %v731 = vld [vmem:[%s572 + $0x58] sm:$0xff]
        %v732 = vld [vmem:[%s572 + $0x60] sm:$0xff]
        %v733 = vld [vmem:[%s572 + $0x68] sm:$0xff]
        %v734 = vld [vmem:[%s572 + $0x70] sm:$0xff]
        %v735 = vld [vmem:[%s572 + $0x78] sm:$0xff]
        %v736 = vld [vmem:[%s572 + $0x80] sm:$0xff]
        %v737 = vld [vmem:[%s572 + $0x88] sm:$0xff]
        %v738 = vld [vmem:[%s572 + $0x90] sm:$0xff]
        %v739 = vld [vmem:[%s572 + $0x98] sm:$0xff]
        %v740 = vld [vmem:[%s572 + $0xa0] sm:$0xff]
        %v741 = vld [vmem:[%s572 + $0xa8] sm:$0xff]
        %v742 = vld [vmem:[%s572 + $0xb0] sm:$0xff]
        %v743 = vld [vmem:[%s572 + $0xb8] sm:$0xff]
        %v744 = vld [vmem:[%s572 + $0xc0] sm:$0xff]
        %v745 = vld [vmem:[%s572 + $0xc8] sm:$0xff]
        %v746 = vld [vmem:[%s572 + $0xd0] sm:$0xff]
        %v747 = vld [vmem:[%s572 + $0xd8] sm:$0xff]
        %v748 = vld [vmem:[%s572 + $0xe0] sm:$0xff]
        %v749 = vld [vmem:[%s572 + $0xe8] sm:$0xff]
        %v750 = vld [vmem:[%s572 + $0xf0] sm:$0xff]
        %v751 = vld [vmem:[%s572 + $0xf8] sm:$0xff]
        %784 = vrot.lane.b32.xlu0 %v720, 4
        %v785 = vpop.permute.xlu0 %784
        %786 = vrot.lane.b32.xlu0 %v721, 4
        %v787 = vpop.permute.xlu0 %786
        %788 = vrot.lane.b32.xlu0 %v722, 4
        %v789 = vpop.permute.xlu0 %788
        %790 = vrot.lane.b32.xlu0 %v723, 4
        %v791 = vpop.permute.xlu0 %790
        %792 = vrot.lane.b32.xlu0 %v724, 4
        %v793 = vpop.permute.xlu0 %792
        %794 = vrot.lane.b32.xlu0 %v725, 4
        %v795 = vpop.permute.xlu0 %794
        %796 = vrot.lane.b32.xlu0 %v726, 4
        %v797 = vpop.permute.xlu0 %796
        %798 = vrot.lane.b32.xlu0 %v727, 4
        %v799 = vpop.permute.xlu0 %798
        %800 = vrot.lane.b32.xlu0 %v728, 4
        %v801 = vpop.permute.xlu0 %800
        %802 = vrot.lane.b32.xlu0 %v729, 4
        %v803 = vpop.permute.xlu0 %802
        %804 = vrot.lane.b32.xlu0 %v730, 4
        %v805 = vpop.permute.xlu0 %804
        %806 = vrot.lane.b32.xlu0 %v731, 4
        %v807 = vpop.permute.xlu0 %806
        %808 = vrot.lane.b32.xlu0 %v732, 4
        %v809 = vpop.permute.xlu0 %808
        %810 = vrot.lane.b32.xlu0 %v733, 4
        %v811 = vpop.permute.xlu0 %810
        %812 = vrot.lane.b32.xlu0 %v734, 4
        %v813 = vpop.permute.xlu0 %812
        %814 = vrot.lane.b32.xlu0 %v735, 4
        %v815 = vpop.permute.xlu0 %814
        %816 = vrot.lane.b32.xlu0 %v736, 4
        %v817 = vpop.permute.xlu0 %816
        %818 = vrot.lane.b32.xlu0 %v737, 4
        %v819 = vpop.permute.xlu0 %818
        %820 = vrot.lane.b32.xlu0 %v738, 4
        %v821 = vpop.permute.xlu0 %820
        %822 = vrot.lane.b32.xlu0 %v739, 4
        %v823 = vpop.permute.xlu0 %822
        %824 = vrot.lane.b32.xlu0 %v740, 4
        %v825 = vpop.permute.xlu0 %824
        %826 = vrot.lane.b32.xlu0 %v741, 4
        %v827 = vpop.permute.xlu0 %826
        %828 = vrot.lane.b32.xlu0 %v742, 4
        %v829 = vpop.permute.xlu0 %828
        %830 = vrot.lane.b32.xlu0 %v743, 4
        %v831 = vpop.permute.xlu0 %830
        %832 = vrot.lane.b32.xlu0 %v744, 4
        %v833 = vpop.permute.xlu0 %832
        %834 = vrot.lane.b32.xlu0 %v745, 4
        %v835 = vpop.permute.xlu0 %834
        %836 = vrot.lane.b32.xlu0 %v746, 4
        %v837 = vpop.permute.xlu0 %836
        %838 = vrot.lane.b32.xlu0 %v747, 4
        %v839 = vpop.permute.xlu0 %838
        %840 = vrot.lane.b32.xlu0 %v748, 4
        %v841 = vpop.permute.xlu0 %840
        %842 = vrot.lane.b32.xlu0 %v749, 4
        %v843 = vpop.permute.xlu0 %842
        %844 = vrot.lane.b32.xlu0 %v750, 4
        %v845 = vpop.permute.xlu0 %844
        %846 = vrot.lane.b32.xlu0 %v751, 4
        %v847 = vpop.permute.xlu0 %846
        %vm880 = vcmask 293920
        %881 = vst.msk [vmem:[%s686 + $0x1] sm:$0xff] %vm880, %v785
        %882 = vst.msk [vmem:[%s686 + $0x9] sm:$0xff] %vm880, %v787
        %883 = vst.msk [vmem:[%s686 + $0x19] sm:$0xff] %vm880, %v789
        %884 = vst.msk [vmem:[%s686 + $0x21] sm:$0xff] %vm880, %v791
        %885 = vst.msk [vmem:[%s686 + $0x31] sm:$0xff] %vm880, %v793
        %886 = vst.msk [vmem:[%s686 + $0x39] sm:$0xff] %vm880, %v795
        %887 = vst.msk [vmem:[%s686 + $0x49] sm:$0xff] %vm880, %v797
        %888 = vst.msk [vmem:[%s686 + $0x51] sm:$0xff] %vm880, %v799
        %889 = vst.msk [vmem:[%s686 + $0x61] sm:$0xff] %vm880, %v801
        %890 = vst.msk [vmem:[%s686 + $0x69] sm:$0xff] %vm880, %v803
        %891 = vst.msk [vmem:[%s686 + $0x79] sm:$0xff] %vm880, %v805
        %892 = vst.msk [vmem:[%s686 + $0x81] sm:$0xff] %vm880, %v807
        %893 = vst.msk [vmem:[%s686 + $0x91] sm:$0xff] %vm880, %v809
        %894 = vst.msk [vmem:[%s686 + $0x99] sm:$0xff] %vm880, %v811
        %895 = vst.msk [vmem:[%s686 + $0xa9] sm:$0xff] %vm880, %v813
        %896 = vst.msk [vmem:[%s686 + $0xb1] sm:$0xff] %vm880, %v815
        %897 = vst.msk [vmem:[%s686 + $0xc1] sm:$0xff] %vm880, %v817
        %898 = vst.msk [vmem:[%s686 + $0xc9] sm:$0xff] %vm880, %v819
        %899 = vst.msk [vmem:[%s686 + $0xd9] sm:$0xff] %vm880, %v821
        %900 = vst.msk [vmem:[%s686 + $0xe1] sm:$0xff] %vm880, %v823
        %901 = vst.msk [vmem:[%s686 + $0xf1] sm:$0xff] %vm880, %v825
        %902 = vst.msk [vmem:[%s686 + $0xf9] sm:$0xff] %vm880, %v827
        %903 = vst.msk [vmem:[%s686 + $0x109] sm:$0xff] %vm880, %v829
        %904 = vst.msk [vmem:[%s686 + $0x111] sm:$0xff] %vm880, %v831
        %905 = vst.msk [vmem:[%s686 + $0x121] sm:$0xff] %vm880, %v833
        %906 = vst.msk [vmem:[%s686 + $0x129] sm:$0xff] %vm880, %v835
        %907 = vst.msk [vmem:[%s686 + $0x139] sm:$0xff] %vm880, %v837
        %908 = vst.msk [vmem:[%s686 + $0x141] sm:$0xff] %vm880, %v839
        %909 = vst.msk [vmem:[%s686 + $0x151] sm:$0xff] %vm880, %v841
        %910 = vst.msk [vmem:[%s686 + $0x159] sm:$0xff] %vm880, %v843
        %911 = vst.msk [vmem:[%s686 + $0x169] sm:$0xff] %vm880, %v845
        %912 = vst.msk [vmem:[%s686 + $0x171] sm:$0xff] %vm880, %v847
        %v913 = vld [vmem:[#allocation2] sm:$0xff]
        %v914 = vld [vmem:[#allocation2 + $0x8] sm:$0xff]
        %v915 = vld [vmem:[#allocation2 + $0x18] sm:$0xff]
        %v916 = vld [vmem:[#allocation2 + $0x20] sm:$0xff]
        %v917 = vld [vmem:[#allocation2 + $0x30] sm:$0xff]
        %v918 = vld [vmem:[#allocation2 + $0x38] sm:$0xff]
        %v919 = vld [vmem:[#allocation2 + $0x48] sm:$0xff]
        %v920 = vld [vmem:[#allocation2 + $0x50] sm:$0xff]
        %v921 = vld [vmem:[#allocation2 + $0x60] sm:$0xff]
        %v922 = vld [vmem:[#allocation2 + $0x68] sm:$0xff]
        %v923 = vld [vmem:[#allocation2 + $0x78] sm:$0xff]
        %v924 = vld [vmem:[#allocation2 + $0x80] sm:$0xff]
        %v925 = vld [vmem:[#allocation2 + $0x90] sm:$0xff]
        %v926 = vld [vmem:[#allocation2 + $0x98] sm:$0xff]
        %v927 = vld [vmem:[#allocation2 + $0xa8] sm:$0xff]
        %v928 = vld [vmem:[#allocation2 + $0xb0] sm:$0xff]
        %v929 = vld [vmem:[#allocation2 + $0xc0] sm:$0xff]
        %v930 = vld [vmem:[#allocation2 + $0xc8] sm:$0xff]
        %v931 = vld [vmem:[#allocation2 + $0xd8] sm:$0xff]
        %v932 = vld [vmem:[#allocation2 + $0xe0] sm:$0xff]
        %v933 = vld [vmem:[#allocation2 + $0xf0] sm:$0xff]
        %v934 = vld [vmem:[#allocation2 + $0xf8] sm:$0xff]
        %v935 = vld [vmem:[#allocation2 + $0x108] sm:$0xff]
        %v936 = vld [vmem:[#allocation2 + $0x110] sm:$0xff]
        %v937 = vld [vmem:[#allocation2 + $0x120] sm:$0xff]
        %v938 = vld [vmem:[#allocation2 + $0x128] sm:$0xff]
        %v939 = vld [vmem:[#allocation2 + $0x138] sm:$0xff]
        %v940 = vld [vmem:[#allocation2 + $0x140] sm:$0xff]
        %v941 = vld [vmem:[#allocation2 + $0x150] sm:$0xff]
        %v942 = vld [vmem:[#allocation2 + $0x158] sm:$0xff]
        %v943 = vld [vmem:[#allocation2 + $0x168] sm:$0xff]
        %v944 = vld [vmem:[#allocation2 + $0x170] sm:$0xff]
        %945 = vst.msk [vmem:[#allocation3] sm:$0xff] %vm598, %v913
        %946 = vst.msk [vmem:[#allocation3 + $0x18] sm:$0xff] %vm598, %v914
        %947 = vst.msk [vmem:[#allocation3 + $0x30] sm:$0xff] %vm598, %v915
        %948 = vst.msk [vmem:[#allocation3 + $0x48] sm:$0xff] %vm598, %v916
        %949 = vst.msk [vmem:[#allocation3 + $0x60] sm:$0xff] %vm598, %v917
        %950 = vst.msk [vmem:[#allocation3 + $0x78] sm:$0xff] %vm598, %v918
        %951 = vst.msk [vmem:[#allocation3 + $0x90] sm:$0xff] %vm598, %v919
        %952 = vst.msk [vmem:[#allocation3 + $0xa8] sm:$0xff] %vm598, %v920
        %953 = vst.msk [vmem:[#allocation3 + $0xc0] sm:$0xff] %vm598, %v921
        %954 = vst.msk [vmem:[#allocation3 + $0xd8] sm:$0xff] %vm598, %v922
        %955 = vst.msk [vmem:[#allocation3 + $0xf0] sm:$0xff] %vm598, %v923
        %956 = vst.msk [vmem:[#allocation3 + $0x108] sm:$0xff] %vm598, %v924
        %957 = vst.msk [vmem:[#allocation3 + $0x120] sm:$0xff] %vm598, %v925
        %958 = vst.msk [vmem:[#allocation3 + $0x138] sm:$0xff] %vm598, %v926
        %959 = vst.msk [vmem:[#allocation3 + $0x150] sm:$0xff] %vm598, %v927
        %960 = vst.msk [vmem:[#allocation3 + $0x168] sm:$0xff] %vm598, %v928
        %961 = vst.msk [vmem:[#allocation3 + $0x180] sm:$0xff] %vm598, %v929
        %962 = vst.msk [vmem:[#allocation3 + $0x198] sm:$0xff] %vm598, %v930
        %963 = vst.msk [vmem:[#allocation3 + $0x1b0] sm:$0xff] %vm598, %v931
        %964 = vst.msk [vmem:[#allocation3 + $0x1c8] sm:$0xff] %vm598, %v932
        %965 = vst.msk [vmem:[#allocation3 + $0x1e0] sm:$0xff] %vm598, %v933
        %966 = vst.msk [vmem:[#allocation3 + $0x1f8] sm:$0xff] %vm598, %v934
        %967 = vst.msk [vmem:[#allocation3 + $0x210] sm:$0xff] %vm598, %v935
        %968 = vst.msk [vmem:[#allocation3 + $0x228] sm:$0xff] %vm598, %v936
        %969 = vst.msk [vmem:[#allocation3 + $0x240] sm:$0xff] %vm598, %v937
        %970 = vst.msk [vmem:[#allocation3 + $0x258] sm:$0xff] %vm598, %v938
        %971 = vst.msk [vmem:[#allocation3 + $0x270] sm:$0xff] %vm598, %v939
        %972 = vst.msk [vmem:[#allocation3 + $0x288] sm:$0xff] %vm598, %v940
        %973 = vst.msk [vmem:[#allocation3 + $0x2a0] sm:$0xff] %vm598, %v941
        %974 = vst.msk [vmem:[#allocation3 + $0x2b8] sm:$0xff] %vm598, %v942
        %975 = vst.msk [vmem:[#allocation3 + $0x2d0] sm:$0xff] %vm598, %v943
        %976 = vst.msk [vmem:[#allocation3 + $0x2e8] sm:$0xff] %vm598, %v944
        %v977 = vld [vmem:[#allocation2 + $0x1] sm:$0xff]
        %v978 = vld [vmem:[#allocation2 + $0x9] sm:$0xff]
        %v979 = vld [vmem:[#allocation2 + $0x19] sm:$0xff]
        %v980 = vld [vmem:[#allocation2 + $0x21] sm:$0xff]
        %v981 = vld [vmem:[#allocation2 + $0x31] sm:$0xff]
        %v982 = vld [vmem:[#allocation2 + $0x39] sm:$0xff]
        %v983 = vld [vmem:[#allocation2 + $0x49] sm:$0xff]
        %v984 = vld [vmem:[#allocation2 + $0x51] sm:$0xff]
        %v985 = vld [vmem:[#allocation2 + $0x61] sm:$0xff]
        %v986 = vld [vmem:[#allocation2 + $0x69] sm:$0xff]
        %v987 = vld [vmem:[#allocation2 + $0x79] sm:$0xff]
        %v988 = vld [vmem:[#allocation2 + $0x81] sm:$0xff]
        %v989 = vld [vmem:[#allocation2 + $0x91] sm:$0xff]
        %v990 = vld [vmem:[#allocation2 + $0x99] sm:$0xff]
        %v991 = vld [vmem:[#allocation2 + $0xa9] sm:$0xff]
        %v992 = vld [vmem:[#allocation2 + $0xb1] sm:$0xff]
        %v993 = vld [vmem:[#allocation2 + $0xc1] sm:$0xff]
        %v994 = vld [vmem:[#allocation2 + $0xc9] sm:$0xff]
        %v995 = vld [vmem:[#allocation2 + $0xd9] sm:$0xff]
        %v996 = vld [vmem:[#allocation2 + $0xe1] sm:$0xff]
        %v997 = vld [vmem:[#allocation2 + $0xf1] sm:$0xff]
        %v998 = vld [vmem:[#allocation2 + $0xf9] sm:$0xff]
        %v999 = vld [vmem:[#allocation2 + $0x109] sm:$0xff]
        %v1000 = vld [vmem:[#allocation2 + $0x111] sm:$0xff]
        %v1001 = vld [vmem:[#allocation2 + $0x121] sm:$0xff]
        %v1002 = vld [vmem:[#allocation2 + $0x129] sm:$0xff]
        %v1003 = vld [vmem:[#allocation2 + $0x139] sm:$0xff]
        %v1004 = vld [vmem:[#allocation2 + $0x141] sm:$0xff]
        %v1005 = vld [vmem:[#allocation2 + $0x151] sm:$0xff]
        %v1006 = vld [vmem:[#allocation2 + $0x159] sm:$0xff]
        %v1007 = vld [vmem:[#allocation2 + $0x169] sm:$0xff]
        %v1008 = vld [vmem:[#allocation2 + $0x171] sm:$0xff]
        %1041 = vrot.lane.b32.xlu0 %v977, 36
        %v1042 = vpop.permute.xlu0 %1041
        %1043 = vrot.lane.b32.xlu0 %v978, 36
        %v1044 = vpop.permute.xlu0 %1043
        %1045 = vrot.lane.b32.xlu0 %v979, 36
        %v1046 = vpop.permute.xlu0 %1045
        %1047 = vrot.lane.b32.xlu0 %v980, 36
        %v1048 = vpop.permute.xlu0 %1047
        %1049 = vrot.lane.b32.xlu0 %v981, 36
        %v1050 = vpop.permute.xlu0 %1049
        %1051 = vrot.lane.b32.xlu0 %v982, 36
        %v1052 = vpop.permute.xlu0 %1051
        %1053 = vrot.lane.b32.xlu0 %v983, 36
        %v1054 = vpop.permute.xlu0 %1053
        %1055 = vrot.lane.b32.xlu0 %v984, 36
        %v1056 = vpop.permute.xlu0 %1055
        %1057 = vrot.lane.b32.xlu0 %v985, 36
        %v1058 = vpop.permute.xlu0 %1057
        %1059 = vrot.lane.b32.xlu0 %v986, 36
        %v1060 = vpop.permute.xlu0 %1059
        %1061 = vrot.lane.b32.xlu0 %v987, 36
        %v1062 = vpop.permute.xlu0 %1061
        %1063 = vrot.lane.b32.xlu0 %v988, 36
        %v1064 = vpop.permute.xlu0 %1063
        %1065 = vrot.lane.b32.xlu0 %v989, 36
        %v1066 = vpop.permute.xlu0 %1065
        %1067 = vrot.lane.b32.xlu0 %v990, 36
        %v1068 = vpop.permute.xlu0 %1067
        %1069 = vrot.lane.b32.xlu0 %v991, 36
        %v1070 = vpop.permute.xlu0 %1069
        %1071 = vrot.lane.b32.xlu0 %v992, 36
        %v1072 = vpop.permute.xlu0 %1071
        %1073 = vrot.lane.b32.xlu0 %v993, 36
        %v1074 = vpop.permute.xlu0 %1073
        %1075 = vrot.lane.b32.xlu0 %v994, 36
        %v1076 = vpop.permute.xlu0 %1075
        %1077 = vrot.lane.b32.xlu0 %v995, 36
        %v1078 = vpop.permute.xlu0 %1077
        %1079 = vrot.lane.b32.xlu0 %v996, 36
        %v1080 = vpop.permute.xlu0 %1079
        %1081 = vrot.lane.b32.xlu0 %v997, 36
        %v1082 = vpop.permute.xlu0 %1081
        %1083 = vrot.lane.b32.xlu0 %v998, 36
        %v1084 = vpop.permute.xlu0 %1083
        %1085 = vrot.lane.b32.xlu0 %v999, 36
        %v1086 = vpop.permute.xlu0 %1085
        %1087 = vrot.lane.b32.xlu0 %v1000, 36
        %v1088 = vpop.permute.xlu0 %1087
        %1089 = vrot.lane.b32.xlu0 %v1001, 36
        %v1090 = vpop.permute.xlu0 %1089
        %1091 = vrot.lane.b32.xlu0 %v1002, 36
        %v1092 = vpop.permute.xlu0 %1091
        %1093 = vrot.lane.b32.xlu0 %v1003, 36
        %v1094 = vpop.permute.xlu0 %1093
        %1095 = vrot.lane.b32.xlu0 %v1004, 36
        %v1096 = vpop.permute.xlu0 %1095
        %1097 = vrot.lane.b32.xlu0 %v1005, 36
        %v1098 = vpop.permute.xlu0 %1097
        %1099 = vrot.lane.b32.xlu0 %v1006, 36
        %v1100 = vpop.permute.xlu0 %1099
        %1101 = vrot.lane.b32.xlu0 %v1007, 36
        %v1102 = vpop.permute.xlu0 %1101
        %1103 = vrot.lane.b32.xlu0 %v1008, 36
        %v1104 = vpop.permute.xlu0 %1103
        %vm1137 = vcmask 589088
        %1138 = vst.msk [vmem:[#allocation3] sm:$0xff] %vm1137, %v1042
        %1139 = vst.msk [vmem:[#allocation3 + $0x18] sm:$0xff] %vm1137, %v1044
        %1140 = vst.msk [vmem:[#allocation3 + $0x30] sm:$0xff] %vm1137, %v1046
        %1141 = vst.msk [vmem:[#allocation3 + $0x48] sm:$0xff] %vm1137, %v1048
        %1142 = vst.msk [vmem:[#allocation3 + $0x60] sm:$0xff] %vm1137, %v1050
        %1143 = vst.msk [vmem:[#allocation3 + $0x78] sm:$0xff] %vm1137, %v1052
        %1144 = vst.msk [vmem:[#allocation3 + $0x90] sm:$0xff] %vm1137, %v1054
        %1145 = vst.msk [vmem:[#allocation3 + $0xa8] sm:$0xff] %vm1137, %v1056
        %1146 = vst.msk [vmem:[#allocation3 + $0xc0] sm:$0xff] %vm1137, %v1058
        %1147 = vst.msk [vmem:[#allocation3 + $0xd8] sm:$0xff] %vm1137, %v1060
        %1148 = vst.msk [vmem:[#allocation3 + $0xf0] sm:$0xff] %vm1137, %v1062
        %1149 = vst.msk [vmem:[#allocation3 + $0x108] sm:$0xff] %vm1137, %v1064
        %1150 = vst.msk [vmem:[#allocation3 + $0x120] sm:$0xff] %vm1137, %v1066
        %1151 = vst.msk [vmem:[#allocation3 + $0x138] sm:$0xff] %vm1137, %v1068
        %1152 = vst.msk [vmem:[#allocation3 + $0x150] sm:$0xff] %vm1137, %v1070
        %1153 = vst.msk [vmem:[#allocation3 + $0x168] sm:$0xff] %vm1137, %v1072
        %1154 = vst.msk [vmem:[#allocation3 + $0x180] sm:$0xff] %vm1137, %v1074
        %1155 = vst.msk [vmem:[#allocation3 + $0x198] sm:$0xff] %vm1137, %v1076
        %1156 = vst.msk [vmem:[#allocation3 + $0x1b0] sm:$0xff] %vm1137, %v1078
        %1157 = vst.msk [vmem:[#allocation3 + $0x1c8] sm:$0xff] %vm1137, %v1080
        %1158 = vst.msk [vmem:[#allocation3 + $0x1e0] sm:$0xff] %vm1137, %v1082
        %1159 = vst.msk [vmem:[#allocation3 + $0x1f8] sm:$0xff] %vm1137, %v1084
        %1160 = vst.msk [vmem:[#allocation3 + $0x210] sm:$0xff] %vm1137, %v1086
        %1161 = vst.msk [vmem:[#allocation3 + $0x228] sm:$0xff] %vm1137, %v1088
        %1162 = vst.msk [vmem:[#allocation3 + $0x240] sm:$0xff] %vm1137, %v1090
        %1163 = vst.msk [vmem:[#allocation3 + $0x258] sm:$0xff] %vm1137, %v1092
        %1164 = vst.msk [vmem:[#allocation3 + $0x270] sm:$0xff] %vm1137, %v1094
        %1165 = vst.msk [vmem:[#allocation3 + $0x288] sm:$0xff] %vm1137, %v1096
        %1166 = vst.msk [vmem:[#allocation3 + $0x2a0] sm:$0xff] %vm1137, %v1098
        %1167 = vst.msk [vmem:[#allocation3 + $0x2b8] sm:$0xff] %vm1137, %v1100
        %1168 = vst.msk [vmem:[#allocation3 + $0x2d0] sm:$0xff] %vm1137, %v1102
        %1169 = vst.msk [vmem:[#allocation3 + $0x2e8] sm:$0xff] %vm1137, %v1104
        %v1170 = vld [vmem:[#allocation2 + $0x2] sm:$0xff]
        %v1171 = vld [vmem:[#allocation2 + $0xa] sm:$0xff]
        %v1172 = vld [vmem:[#allocation2 + $0x1a] sm:$0xff]
        %v1173 = vld [vmem:[#allocation2 + $0x22] sm:$0xff]
        %v1174 = vld [vmem:[#allocation2 + $0x32] sm:$0xff]
        %v1175 = vld [vmem:[#allocation2 + $0x3a] sm:$0xff]
        %v1176 = vld [vmem:[#allocation2 + $0x4a] sm:$0xff]
        %v1177 = vld [vmem:[#allocation2 + $0x52] sm:$0xff]
        %v1178 = vld [vmem:[#allocation2 + $0x62] sm:$0xff]
        %v1179 = vld [vmem:[#allocation2 + $0x6a] sm:$0xff]
        %v1180 = vld [vmem:[#allocation2 + $0x7a] sm:$0xff]
        %v1181 = vld [vmem:[#allocation2 + $0x82] sm:$0xff]
        %v1182 = vld [vmem:[#allocation2 + $0x92] sm:$0xff]
        %v1183 = vld [vmem:[#allocation2 + $0x9a] sm:$0xff]
        %v1184 = vld [vmem:[#allocation2 + $0xaa] sm:$0xff]
        %v1185 = vld [vmem:[#allocation2 + $0xb2] sm:$0xff]
        %v1186 = vld [vmem:[#allocation2 + $0xc2] sm:$0xff]
        %v1187 = vld [vmem:[#allocation2 + $0xca] sm:$0xff]
        %v1188 = vld [vmem:[#allocation2 + $0xda] sm:$0xff]
        %v1189 = vld [vmem:[#allocation2 + $0xe2] sm:$0xff]
        %v1190 = vld [vmem:[#allocation2 + $0xf2] sm:$0xff]
        %v1191 = vld [vmem:[#allocation2 + $0xfa] sm:$0xff]
        %v1192 = vld [vmem:[#allocation2 + $0x10a] sm:$0xff]
        %v1193 = vld [vmem:[#allocation2 + $0x112] sm:$0xff]
        %v1194 = vld [vmem:[#allocation2 + $0x122] sm:$0xff]
        %v1195 = vld [vmem:[#allocation2 + $0x12a] sm:$0xff]
        %v1196 = vld [vmem:[#allocation2 + $0x13a] sm:$0xff]
        %v1197 = vld [vmem:[#allocation2 + $0x142] sm:$0xff]
        %v1198 = vld [vmem:[#allocation2 + $0x152] sm:$0xff]
        %v1199 = vld [vmem:[#allocation2 + $0x15a] sm:$0xff]
        %v1200 = vld [vmem:[#allocation2 + $0x16a] sm:$0xff]
        %v1201 = vld [vmem:[#allocation2 + $0x172] sm:$0xff]
        %1234 = vrot.lane.b32.xlu0 %v1170, 72
        %v1235 = vpop.permute.xlu0 %1234
        %1236 = vrot.lane.b32.xlu0 %v1171, 72
        %v1237 = vpop.permute.xlu0 %1236
        %1238 = vrot.lane.b32.xlu0 %v1172, 72
        %v1239 = vpop.permute.xlu0 %1238
        %1240 = vrot.lane.b32.xlu0 %v1173, 72
        %v1241 = vpop.permute.xlu0 %1240
        %1242 = vrot.lane.b32.xlu0 %v1174, 72
        %v1243 = vpop.permute.xlu0 %1242
        %1244 = vrot.lane.b32.xlu0 %v1175, 72
        %v1245 = vpop.permute.xlu0 %1244
        %1246 = vrot.lane.b32.xlu0 %v1176, 72
        %v1247 = vpop.permute.xlu0 %1246
        %1248 = vrot.lane.b32.xlu0 %v1177, 72
        %v1249 = vpop.permute.xlu0 %1248
        %1250 = vrot.lane.b32.xlu0 %v1178, 72
        %v1251 = vpop.permute.xlu0 %1250
        %1252 = vrot.lane.b32.xlu0 %v1179, 72
        %v1253 = vpop.permute.xlu0 %1252
        %1254 = vrot.lane.b32.xlu0 %v1180, 72
        %v1255 = vpop.permute.xlu0 %1254
        %1256 = vrot.lane.b32.xlu0 %v1181, 72
        %v1257 = vpop.permute.xlu0 %1256
        %1258 = vrot.lane.b32.xlu0 %v1182, 72
        %v1259 = vpop.permute.xlu0 %1258
        %1260 = vrot.lane.b32.xlu0 %v1183, 72
        %v1261 = vpop.permute.xlu0 %1260
        %1262 = vrot.lane.b32.xlu0 %v1184, 72
        %v1263 = vpop.permute.xlu0 %1262
        %1264 = vrot.lane.b32.xlu0 %v1185, 72
        %v1265 = vpop.permute.xlu0 %1264
        %1266 = vrot.lane.b32.xlu0 %v1186, 72
        %v1267 = vpop.permute.xlu0 %1266
        %1268 = vrot.lane.b32.xlu0 %v1187, 72
        %v1269 = vpop.permute.xlu0 %1268
        %1270 = vrot.lane.b32.xlu0 %v1188, 72
        %v1271 = vpop.permute.xlu0 %1270
        %1272 = vrot.lane.b32.xlu0 %v1189, 72
        %v1273 = vpop.permute.xlu0 %1272
        %1274 = vrot.lane.b32.xlu0 %v1190, 72
        %v1275 = vpop.permute.xlu0 %1274
        %1276 = vrot.lane.b32.xlu0 %v1191, 72
        %v1277 = vpop.permute.xlu0 %1276
        %1278 = vrot.lane.b32.xlu0 %v1192, 72
        %v1279 = vpop.permute.xlu0 %1278
        %1280 = vrot.lane.b32.xlu0 %v1193, 72
        %v1281 = vpop.permute.xlu0 %1280
        %1282 = vrot.lane.b32.xlu0 %v1194, 72
        %v1283 = vpop.permute.xlu0 %1282
        %1284 = vrot.lane.b32.xlu0 %v1195, 72
        %v1285 = vpop.permute.xlu0 %1284
        %1286 = vrot.lane.b32.xlu0 %v1196, 72
        %v1287 = vpop.permute.xlu0 %1286
        %1288 = vrot.lane.b32.xlu0 %v1197, 72
        %v1289 = vpop.permute.xlu0 %1288
        %1290 = vrot.lane.b32.xlu0 %v1198, 72
        %v1291 = vpop.permute.xlu0 %1290
        %1292 = vrot.lane.b32.xlu0 %v1199, 72
        %v1293 = vpop.permute.xlu0 %1292
        %1294 = vrot.lane.b32.xlu0 %v1200, 72
        %v1295 = vpop.permute.xlu0 %1294
        %1296 = vrot.lane.b32.xlu0 %v1201, 72
        %v1297 = vpop.permute.xlu0 %1296
        %vm1330 = vcmask 884288
        %1331 = vst.msk [vmem:[#allocation3] sm:$0xff] %vm1330, %v1235
        %1332 = vst.msk [vmem:[#allocation3 + $0x18] sm:$0xff] %vm1330, %v1237
        %1333 = vst.msk [vmem:[#allocation3 + $0x30] sm:$0xff] %vm1330, %v1239
        %1334 = vst.msk [vmem:[#allocation3 + $0x48] sm:$0xff] %vm1330, %v1241
        %1335 = vst.msk [vmem:[#allocation3 + $0x60] sm:$0xff] %vm1330, %v1243
        %1336 = vst.msk [vmem:[#allocation3 + $0x78] sm:$0xff] %vm1330, %v1245
        %1337 = vst.msk [vmem:[#allocation3 + $0x90] sm:$0xff] %vm1330, %v1247
        %1338 = vst.msk [vmem:[#allocation3 + $0xa8] sm:$0xff] %vm1330, %v1249
        %1339 = vst.msk [vmem:[#allocation3 + $0xc0] sm:$0xff] %vm1330, %v1251
        %1340 = vst.msk [vmem:[#allocation3 + $0xd8] sm:$0xff] %vm1330, %v1253
        %1341 = vst.msk [vmem:[#allocation3 + $0xf0] sm:$0xff] %vm1330, %v1255
        %1342 = vst.msk [vmem:[#allocation3 + $0x108] sm:$0xff] %vm1330, %v1257
        %1343 = vst.msk [vmem:[#allocation3 + $0x120] sm:$0xff] %vm1330, %v1259
        %1344 = vst.msk [vmem:[#allocation3 + $0x138] sm:$0xff] %vm1330, %v1261
        %1345 = vst.msk [vmem:[#allocation3 + $0x150] sm:$0xff] %vm1330, %v1263
        %1346 = vst.msk [vmem:[#allocation3 + $0x168] sm:$0xff] %vm1330, %v1265
        %1347 = vst.msk [vmem:[#allocation3 + $0x180] sm:$0xff] %vm1330, %v1267
        %1348 = vst.msk [vmem:[#allocation3 + $0x198] sm:$0xff] %vm1330, %v1269
        %1349 = vst.msk [vmem:[#allocation3 + $0x1b0] sm:$0xff] %vm1330, %v1271
        %1350 = vst.msk [vmem:[#allocation3 + $0x1c8] sm:$0xff] %vm1330, %v1273
        %1351 = vst.msk [vmem:[#allocation3 + $0x1e0] sm:$0xff] %vm1330, %v1275
        %1352 = vst.msk [vmem:[#allocation3 + $0x1f8] sm:$0xff] %vm1330, %v1277
        %1353 = vst.msk [vmem:[#allocation3 + $0x210] sm:$0xff] %vm1330, %v1279
        %1354 = vst.msk [vmem:[#allocation3 + $0x228] sm:$0xff] %vm1330, %v1281
        %1355 = vst.msk [vmem:[#allocation3 + $0x240] sm:$0xff] %vm1330, %v1283
        %1356 = vst.msk [vmem:[#allocation3 + $0x258] sm:$0xff] %vm1330, %v1285
        %1357 = vst.msk [vmem:[#allocation3 + $0x270] sm:$0xff] %vm1330, %v1287
        %1358 = vst.msk [vmem:[#allocation3 + $0x288] sm:$0xff] %vm1330, %v1289
        %1359 = vst.msk [vmem:[#allocation3 + $0x2a0] sm:$0xff] %vm1330, %v1291
        %1360 = vst.msk [vmem:[#allocation3 + $0x2b8] sm:$0xff] %vm1330, %v1293
        %1361 = vst.msk [vmem:[#allocation3 + $0x2d0] sm:$0xff] %vm1330, %v1295
        %1362 = vst.msk [vmem:[#allocation3 + $0x2e8] sm:$0xff] %vm1330, %v1297
        %v1363 = vld [vmem:[%s686] sm:$0xff]
        %v1364 = vld [vmem:[%s686 + $0x8] sm:$0xff]
        %v1365 = vld [vmem:[%s686 + $0x18] sm:$0xff]
        %v1366 = vld [vmem:[%s686 + $0x20] sm:$0xff]
        %v1367 = vld [vmem:[%s686 + $0x30] sm:$0xff]
        %v1368 = vld [vmem:[%s686 + $0x38] sm:$0xff]
        %v1369 = vld [vmem:[%s686 + $0x48] sm:$0xff]
        %v1370 = vld [vmem:[%s686 + $0x50] sm:$0xff]
        %v1371 = vld [vmem:[%s686 + $0x60] sm:$0xff]
        %v1372 = vld [vmem:[%s686 + $0x68] sm:$0xff]
        %v1373 = vld [vmem:[%s686 + $0x78] sm:$0xff]
        %v1374 = vld [vmem:[%s686 + $0x80] sm:$0xff]
        %v1375 = vld [vmem:[%s686 + $0x90] sm:$0xff]
        %v1376 = vld [vmem:[%s686 + $0x98] sm:$0xff]
        %v1377 = vld [vmem:[%s686 + $0xa8] sm:$0xff]
        %v1378 = vld [vmem:[%s686 + $0xb0] sm:$0xff]
        %v1379 = vld [vmem:[%s686 + $0xc0] sm:$0xff]
        %v1380 = vld [vmem:[%s686 + $0xc8] sm:$0xff]
        %v1381 = vld [vmem:[%s686 + $0xd8] sm:$0xff]
        %v1382 = vld [vmem:[%s686 + $0xe0] sm:$0xff]
        %v1383 = vld [vmem:[%s686 + $0xf0] sm:$0xff]
        %v1384 = vld [vmem:[%s686 + $0xf8] sm:$0xff]
        %v1385 = vld [vmem:[%s686 + $0x108] sm:$0xff]
        %v1386 = vld [vmem:[%s686 + $0x110] sm:$0xff]
        %v1387 = vld [vmem:[%s686 + $0x120] sm:$0xff]
        %v1388 = vld [vmem:[%s686 + $0x128] sm:$0xff]
        %v1389 = vld [vmem:[%s686 + $0x138] sm:$0xff]
        %v1390 = vld [vmem:[%s686 + $0x140] sm:$0xff]
        %v1391 = vld [vmem:[%s686 + $0x150] sm:$0xff]
        %v1392 = vld [vmem:[%s686 + $0x158] sm:$0xff]
        %v1393 = vld [vmem:[%s686 + $0x168] sm:$0xff]
        %v1394 = vld [vmem:[%s686 + $0x170] sm:$0xff]
        %1427 = vrot.lane.b32.xlu0 %v1363, 108
        %v1428 = vpop.permute.xlu0 %1427
        %1429 = vrot.lane.b32.xlu0 %v1364, 108
        %v1430 = vpop.permute.xlu0 %1429
        %1431 = vrot.lane.b32.xlu0 %v1365, 108
        %v1432 = vpop.permute.xlu0 %1431
        %1433 = vrot.lane.b32.xlu0 %v1366, 108
        %v1434 = vpop.permute.xlu0 %1433
        %1435 = vrot.lane.b32.xlu0 %v1367, 108
        %v1436 = vpop.permute.xlu0 %1435
        %1437 = vrot.lane.b32.xlu0 %v1368, 108
        %v1438 = vpop.permute.xlu0 %1437
        %1439 = vrot.lane.b32.xlu0 %v1369, 108
        %v1440 = vpop.permute.xlu0 %1439
        %1441 = vrot.lane.b32.xlu0 %v1370, 108
        %v1442 = vpop.permute.xlu0 %1441
        %1443 = vrot.lane.b32.xlu0 %v1371, 108
        %v1444 = vpop.permute.xlu0 %1443
        %1445 = vrot.lane.b32.xlu0 %v1372, 108
        %v1446 = vpop.permute.xlu0 %1445
        %1447 = vrot.lane.b32.xlu0 %v1373, 108
        %v1448 = vpop.permute.xlu0 %1447
        %1449 = vrot.lane.b32.xlu0 %v1374, 108
        %v1450 = vpop.permute.xlu0 %1449
        %1451 = vrot.lane.b32.xlu0 %v1375, 108
        %v1452 = vpop.permute.xlu0 %1451
        %1453 = vrot.lane.b32.xlu0 %v1376, 108
        %v1454 = vpop.permute.xlu0 %1453
        %1455 = vrot.lane.b32.xlu0 %v1377, 108
        %v1456 = vpop.permute.xlu0 %1455
        %1457 = vrot.lane.b32.xlu0 %v1378, 108
        %v1458 = vpop.permute.xlu0 %1457
        %1459 = vrot.lane.b32.xlu0 %v1379, 108
        %v1460 = vpop.permute.xlu0 %1459
        %1461 = vrot.lane.b32.xlu0 %v1380, 108
        %v1462 = vpop.permute.xlu0 %1461
        %1463 = vrot.lane.b32.xlu0 %v1381, 108
        %v1464 = vpop.permute.xlu0 %1463
        %1465 = vrot.lane.b32.xlu0 %v1382, 108
        %v1466 = vpop.permute.xlu0 %1465
        %1467 = vrot.lane.b32.xlu0 %v1383, 108
        %v1468 = vpop.permute.xlu0 %1467
        %1469 = vrot.lane.b32.xlu0 %v1384, 108
        %v1470 = vpop.permute.xlu0 %1469
        %1471 = vrot.lane.b32.xlu0 %v1385, 108
        %v1472 = vpop.permute.xlu0 %1471
        %1473 = vrot.lane.b32.xlu0 %v1386, 108
        %v1474 = vpop.permute.xlu0 %1473
        %1475 = vrot.lane.b32.xlu0 %v1387, 108
        %v1476 = vpop.permute.xlu0 %1475
        %1477 = vrot.lane.b32.xlu0 %v1388, 108
        %v1478 = vpop.permute.xlu0 %1477
        %1479 = vrot.lane.b32.xlu0 %v1389, 108
        %v1480 = vpop.permute.xlu0 %1479
        %1481 = vrot.lane.b32.xlu0 %v1390, 108
        %v1482 = vpop.permute.xlu0 %1481
        %1483 = vrot.lane.b32.xlu0 %v1391, 108
        %v1484 = vpop.permute.xlu0 %1483
        %1485 = vrot.lane.b32.xlu0 %v1392, 108
        %v1486 = vpop.permute.xlu0 %1485
        %1487 = vrot.lane.b32.xlu0 %v1393, 108
        %v1488 = vpop.permute.xlu0 %1487
        %1489 = vrot.lane.b32.xlu0 %v1394, 108
        %v1490 = vpop.permute.xlu0 %1489
        %vm1523 = vcmask 1048416
        %1524 = vst.msk [vmem:[#allocation3] sm:$0xff] %vm1523, %v1428
        %vm1525 = vcmask 130048
        %1526 = vst.msk [vmem:[#allocation3 + $0x8] sm:$0xff] %vm1525, %v1428
        %1527 = vst.msk [vmem:[#allocation3 + $0x18] sm:$0xff] %vm1523, %v1430
        %1528 = vst.msk [vmem:[#allocation3 + $0x20] sm:$0xff] %vm1525, %v1430
        %1529 = vst.msk [vmem:[#allocation3 + $0x30] sm:$0xff] %vm1523, %v1432
        %1530 = vst.msk [vmem:[#allocation3 + $0x38] sm:$0xff] %vm1525, %v1432
        %1531 = vst.msk [vmem:[#allocation3 + $0x48] sm:$0xff] %vm1523, %v1434
        %1532 = vst.msk [vmem:[#allocation3 + $0x50] sm:$0xff] %vm1525, %v1434
        %1533 = vst.msk [vmem:[#allocation3 + $0x60] sm:$0xff] %vm1523, %v1436
        %1534 = vst.msk [vmem:[#allocation3 + $0x68] sm:$0xff] %vm1525, %v1436
        %1535 = vst.msk [vmem:[#allocation3 + $0x78] sm:$0xff] %vm1523, %v1438
        %1536 = vst.msk [vmem:[#allocation3 + $0x80] sm:$0xff] %vm1525, %v1438
        %1537 = vst.msk [vmem:[#allocation3 + $0x90] sm:$0xff] %vm1523, %v1440
        %1538 = vst.msk [vmem:[#allocation3 + $0x98] sm:$0xff] %vm1525, %v1440
        %1539 = vst.msk [vmem:[#allocation3 + $0xa8] sm:$0xff] %vm1523, %v1442
        %1540 = vst.msk [vmem:[#allocation3 + $0xb0] sm:$0xff] %vm1525, %v1442
        %1541 = vst.msk [vmem:[#allocation3 + $0xc0] sm:$0xff] %vm1523, %v1444
        %1542 = vst.msk [vmem:[#allocation3 + $0xc8] sm:$0xff] %vm1525, %v1444
        %1543 = vst.msk [vmem:[#allocation3 + $0xd8] sm:$0xff] %vm1523, %v1446
        %1544 = vst.msk [vmem:[#allocation3 + $0xe0] sm:$0xff] %vm1525, %v1446
        %1545 = vst.msk [vmem:[#allocation3 + $0xf0] sm:$0xff] %vm1523, %v1448
        %1546 = vst.msk [vmem:[#allocation3 + $0xf8] sm:$0xff] %vm1525, %v1448
        %1547 = vst.msk [vmem:[#allocation3 + $0x108] sm:$0xff] %vm1523, %v1450
        %1548 = vst.msk [vmem:[#allocation3 + $0x110] sm:$0xff] %vm1525, %v1450
        %1549 = vst.msk [vmem:[#allocation3 + $0x120] sm:$0xff] %vm1523, %v1452
        %1550 = vst.msk [vmem:[#allocation3 + $0x128] sm:$0xff] %vm1525, %v1452
        %1551 = vst.msk [vmem:[#allocation3 + $0x138] sm:$0xff] %vm1523, %v1454
        %1552 = vst.msk [vmem:[#allocation3 + $0x140] sm:$0xff] %vm1525, %v1454
        %1553 = vst.msk [vmem:[#allocation3 + $0x150] sm:$0xff] %vm1523, %v1456
        %1554 = vst.msk [vmem:[#allocation3 + $0x158] sm:$0xff] %vm1525, %v1456
        %1555 = vst.msk [vmem:[#allocation3 + $0x168] sm:$0xff] %vm1523, %v1458
        %1556 = vst.msk [vmem:[#allocation3 + $0x170] sm:$0xff] %vm1525, %v1458
        %1557 = vst.msk [vmem:[#allocation3 + $0x180] sm:$0xff] %vm1523, %v1460
        %1558 = vst.msk [vmem:[#allocation3 + $0x188] sm:$0xff] %vm1525, %v1460
        %1559 = vst.msk [vmem:[#allocation3 + $0x198] sm:$0xff] %vm1523, %v1462
        %1560 = vst.msk [vmem:[#allocation3 + $0x1a0] sm:$0xff] %vm1525, %v1462
        %1561 = vst.msk [vmem:[#allocation3 + $0x1b0] sm:$0xff] %vm1523, %v1464
        %1562 = vst.msk [vmem:[#allocation3 + $0x1b8] sm:$0xff] %vm1525, %v1464
        %1563 = vst.msk [vmem:[#allocation3 + $0x1c8] sm:$0xff] %vm1523, %v1466
        %1564 = vst.msk [vmem:[#allocation3 + $0x1d0] sm:$0xff] %vm1525, %v1466
        %1565 = vst.msk [vmem:[#allocation3 + $0x1e0] sm:$0xff] %vm1523, %v1468
        %1566 = vst.msk [vmem:[#allocation3 + $0x1e8] sm:$0xff] %vm1525, %v1468
        %1567 = vst.msk [vmem:[#allocation3 + $0x1f8] sm:$0xff] %vm1523, %v1470
        %1568 = vst.msk [vmem:[#allocation3 + $0x200] sm:$0xff] %vm1525, %v1470
        %1569 = vst.msk [vmem:[#allocation3 + $0x210] sm:$0xff] %vm1523, %v1472
        %1570 = vst.msk [vmem:[#allocation3 + $0x218] sm:$0xff] %vm1525, %v1472
        %1571 = vst.msk [vmem:[#allocation3 + $0x228] sm:$0xff] %vm1523, %v1474
        %1572 = vst.msk [vmem:[#allocation3 + $0x230] sm:$0xff] %vm1525, %v1474
        %1573 = vst.msk [vmem:[#allocation3 + $0x240] sm:$0xff] %vm1523, %v1476
        %1574 = vst.msk [vmem:[#allocation3 + $0x248] sm:$0xff] %vm1525, %v1476
        %1575 = vst.msk [vmem:[#allocation3 + $0x258] sm:$0xff] %vm1523, %v1478
        %1576 = vst.msk [vmem:[#allocation3 + $0x260] sm:$0xff] %vm1525, %v1478
        %1577 = vst.msk [vmem:[#allocation3 + $0x270] sm:$0xff] %vm1523, %v1480
        %1578 = vst.msk [vmem:[#allocation3 + $0x278] sm:$0xff] %vm1525, %v1480
        %1579 = vst.msk [vmem:[#allocation3 + $0x288] sm:$0xff] %vm1523, %v1482
        %1580 = vst.msk [vmem:[#allocation3 + $0x290] sm:$0xff] %vm1525, %v1482
        %1581 = vst.msk [vmem:[#allocation3 + $0x2a0] sm:$0xff] %vm1523, %v1484
        %1582 = vst.msk [vmem:[#allocation3 + $0x2a8] sm:$0xff] %vm1525, %v1484
        %1583 = vst.msk [vmem:[#allocation3 + $0x2b8] sm:$0xff] %vm1523, %v1486
        %1584 = vst.msk [vmem:[#allocation3 + $0x2c0] sm:$0xff] %vm1525, %v1486
        %1585 = vst.msk [vmem:[#allocation3 + $0x2d0] sm:$0xff] %vm1523, %v1488
        %1586 = vst.msk [vmem:[#allocation3 + $0x2d8] sm:$0xff] %vm1525, %v1488
        %1587 = vst.msk [vmem:[#allocation3 + $0x2e8] sm:$0xff] %vm1523, %v1490
        %1588 = vst.msk [vmem:[#allocation3 + $0x2f0] sm:$0xff] %vm1525, %v1490
        %v1589 = vld [vmem:[%s686 + $0x1] sm:$0xff]
        %v1590 = vld [vmem:[%s686 + $0x9] sm:$0xff]
        %v1591 = vld [vmem:[%s686 + $0x19] sm:$0xff]
        %v1592 = vld [vmem:[%s686 + $0x21] sm:$0xff]
        %v1593 = vld [vmem:[%s686 + $0x31] sm:$0xff]
        %v1594 = vld [vmem:[%s686 + $0x39] sm:$0xff]
        %v1595 = vld [vmem:[%s686 + $0x49] sm:$0xff]
        %v1596 = vld [vmem:[%s686 + $0x51] sm:$0xff]
        %v1597 = vld [vmem:[%s686 + $0x61] sm:$0xff]
        %v1598 = vld [vmem:[%s686 + $0x69] sm:$0xff]
        %v1599 = vld [vmem:[%s686 + $0x79] sm:$0xff]
        %v1600 = vld [vmem:[%s686 + $0x81] sm:$0xff]
        %v1601 = vld [vmem:[%s686 + $0x91] sm:$0xff]
        %v1602 = vld [vmem:[%s686 + $0x99] sm:$0xff]
        %v1603 = vld [vmem:[%s686 + $0xa9] sm:$0xff]
        %v1604 = vld [vmem:[%s686 + $0xb1] sm:$0xff]
        %v1605 = vld [vmem:[%s686 + $0xc1] sm:$0xff]
        %v1606 = vld [vmem:[%s686 + $0xc9] sm:$0xff]
        %v1607 = vld [vmem:[%s686 + $0xd9] sm:$0xff]
        %v1608 = vld [vmem:[%s686 + $0xe1] sm:$0xff]
        %v1609 = vld [vmem:[%s686 + $0xf1] sm:$0xff]
        %v1610 = vld [vmem:[%s686 + $0xf9] sm:$0xff]
        %v1611 = vld [vmem:[%s686 + $0x109] sm:$0xff]
        %v1612 = vld [vmem:[%s686 + $0x111] sm:$0xff]
        %v1613 = vld [vmem:[%s686 + $0x121] sm:$0xff]
        %v1614 = vld [vmem:[%s686 + $0x129] sm:$0xff]
        %v1615 = vld [vmem:[%s686 + $0x139] sm:$0xff]
        %v1616 = vld [vmem:[%s686 + $0x141] sm:$0xff]
        %v1617 = vld [vmem:[%s686 + $0x151] sm:$0xff]
        %v1618 = vld [vmem:[%s686 + $0x159] sm:$0xff]
        %v1619 = vld [vmem:[%s686 + $0x169] sm:$0xff]
        %v1620 = vld [vmem:[%s686 + $0x171] sm:$0xff]
        %1653 = vrot.lane.b32.xlu0 %v1589, 16
        %v1654 = vpop.permute.xlu0 %1653
        %1655 = vrot.lane.b32.xlu0 %v1590, 16
        %v1656 = vpop.permute.xlu0 %1655
        %1657 = vrot.lane.b32.xlu0 %v1591, 16
        %v1658 = vpop.permute.xlu0 %1657
        %1659 = vrot.lane.b32.xlu0 %v1592, 16
        %v1660 = vpop.permute.xlu0 %1659
        %1661 = vrot.lane.b32.xlu0 %v1593, 16
        %v1662 = vpop.permute.xlu0 %1661
        %1663 = vrot.lane.b32.xlu0 %v1594, 16
        %v1664 = vpop.permute.xlu0 %1663
        %1665 = vrot.lane.b32.xlu0 %v1595, 16
        %v1666 = vpop.permute.xlu0 %1665
        %1667 = vrot.lane.b32.xlu0 %v1596, 16
        %v1668 = vpop.permute.xlu0 %1667
        %1669 = vrot.lane.b32.xlu0 %v1597, 16
        %v1670 = vpop.permute.xlu0 %1669
        %1671 = vrot.lane.b32.xlu0 %v1598, 16
        %v1672 = vpop.permute.xlu0 %1671
        %1673 = vrot.lane.b32.xlu0 %v1599, 16
        %v1674 = vpop.permute.xlu0 %1673
        %1675 = vrot.lane.b32.xlu0 %v1600, 16
        %v1676 = vpop.permute.xlu0 %1675
        %1677 = vrot.lane.b32.xlu0 %v1601, 16
        %v1678 = vpop.permute.xlu0 %1677
        %1679 = vrot.lane.b32.xlu0 %v1602, 16
        %v1680 = vpop.permute.xlu0 %1679
        %1681 = vrot.lane.b32.xlu0 %v1603, 16
        %v1682 = vpop.permute.xlu0 %1681
        %1683 = vrot.lane.b32.xlu0 %v1604, 16
        %v1684 = vpop.permute.xlu0 %1683
        %1685 = vrot.lane.b32.xlu0 %v1605, 16
        %v1686 = vpop.permute.xlu0 %1685
        %1687 = vrot.lane.b32.xlu0 %v1606, 16
        %v1688 = vpop.permute.xlu0 %1687
        %1689 = vrot.lane.b32.xlu0 %v1607, 16
        %v1690 = vpop.permute.xlu0 %1689
        %1691 = vrot.lane.b32.xlu0 %v1608, 16
        %v1692 = vpop.permute.xlu0 %1691
        %1693 = vrot.lane.b32.xlu0 %v1609, 16
        %v1694 = vpop.permute.xlu0 %1693
        %1695 = vrot.lane.b32.xlu0 %v1610, 16
        %v1696 = vpop.permute.xlu0 %1695
        %1697 = vrot.lane.b32.xlu0 %v1611, 16
        %v1698 = vpop.permute.xlu0 %1697
        %1699 = vrot.lane.b32.xlu0 %v1612, 16
        %v1700 = vpop.permute.xlu0 %1699
        %1701 = vrot.lane.b32.xlu0 %v1613, 16
        %v1702 = vpop.permute.xlu0 %1701
        %1703 = vrot.lane.b32.xlu0 %v1614, 16
        %v1704 = vpop.permute.xlu0 %1703
        %1705 = vrot.lane.b32.xlu0 %v1615, 16
        %v1706 = vpop.permute.xlu0 %1705
        %1707 = vrot.lane.b32.xlu0 %v1616, 16
        %v1708 = vpop.permute.xlu0 %1707
        %1709 = vrot.lane.b32.xlu0 %v1617, 16
        %v1710 = vpop.permute.xlu0 %1709
        %1711 = vrot.lane.b32.xlu0 %v1618, 16
        %v1712 = vpop.permute.xlu0 %1711
        %1713 = vrot.lane.b32.xlu0 %v1619, 16
        %v1714 = vpop.permute.xlu0 %1713
        %1715 = vrot.lane.b32.xlu0 %v1620, 16
        %v1716 = vpop.permute.xlu0 %1715
        %vm1749 = vcmask 425088
        %1750 = vst.msk [vmem:[#allocation3 + $0x8] sm:$0xff] %vm1749, %v1654
        %1751 = vst.msk [vmem:[#allocation3 + $0x20] sm:$0xff] %vm1749, %v1656
        %1752 = vst.msk [vmem:[#allocation3 + $0x38] sm:$0xff] %vm1749, %v1658
        %1753 = vst.msk [vmem:[#allocation3 + $0x50] sm:$0xff] %vm1749, %v1660
        %1754 = vst.msk [vmem:[#allocation3 + $0x68] sm:$0xff] %vm1749, %v1662
        %1755 = vst.msk [vmem:[#allocation3 + $0x80] sm:$0xff] %vm1749, %v1664
        %1756 = vst.msk [vmem:[#allocation3 + $0x98] sm:$0xff] %vm1749, %v1666
        %1757 = vst.msk [vmem:[#allocation3 + $0xb0] sm:$0xff] %vm1749, %v1668
        %1758 = vst.msk [vmem:[#allocation3 + $0xc8] sm:$0xff] %vm1749, %v1670
        %1759 = vst.msk [vmem:[#allocation3 + $0xe0] sm:$0xff] %vm1749, %v1672
        %1760 = vst.msk [vmem:[#allocation3 + $0xf8] sm:$0xff] %vm1749, %v1674
        %1761 = vst.msk [vmem:[#allocation3 + $0x110] sm:$0xff] %vm1749, %v1676
        %1762 = vst.msk [vmem:[#allocation3 + $0x128] sm:$0xff] %vm1749, %v1678
        %1763 = vst.msk [vmem:[#allocation3 + $0x140] sm:$0xff] %vm1749, %v1680
        %1764 = vst.msk [vmem:[#allocation3 + $0x158] sm:$0xff] %vm1749, %v1682
        %1765 = vst.msk [vmem:[#allocation3 + $0x170] sm:$0xff] %vm1749, %v1684
        %1766 = vst.msk [vmem:[#allocation3 + $0x188] sm:$0xff] %vm1749, %v1686
        %1767 = vst.msk [vmem:[#allocation3 + $0x1a0] sm:$0xff] %vm1749, %v1688
        %1768 = vst.msk [vmem:[#allocation3 + $0x1b8] sm:$0xff] %vm1749, %v1690
        %1769 = vst.msk [vmem:[#allocation3 + $0x1d0] sm:$0xff] %vm1749, %v1692
        %1770 = vst.msk [vmem:[#allocation3 + $0x1e8] sm:$0xff] %vm1749, %v1694
        %1771 = vst.msk [vmem:[#allocation3 + $0x200] sm:$0xff] %vm1749, %v1696
        %1772 = vst.msk [vmem:[#allocation3 + $0x218] sm:$0xff] %vm1749, %v1698
        %1773 = vst.msk [vmem:[#allocation3 + $0x230] sm:$0xff] %vm1749, %v1700
        %1774 = vst.msk [vmem:[#allocation3 + $0x248] sm:$0xff] %vm1749, %v1702
        %1775 = vst.msk [vmem:[#allocation3 + $0x260] sm:$0xff] %vm1749, %v1704
        %1776 = vst.msk [vmem:[#allocation3 + $0x278] sm:$0xff] %vm1749, %v1706
        %1777 = vst.msk [vmem:[#allocation3 + $0x290] sm:$0xff] %vm1749, %v1708
        %1778 = vst.msk [vmem:[#allocation3 + $0x2a8] sm:$0xff] %vm1749, %v1710
        %1779 = vst.msk [vmem:[#allocation3 + $0x2c0] sm:$0xff] %vm1749, %v1712
        %1780 = vst.msk [vmem:[#allocation3 + $0x2d8] sm:$0xff] %vm1749, %v1714
        %1781 = vst.msk [vmem:[#allocation3 + $0x2f0] sm:$0xff] %vm1749, %v1716
        %v1782 = vld [vmem:[%s686 + $0x2] sm:$0xff]
        %v1783 = vld [vmem:[%s686 + $0xa] sm:$0xff]
        %v1784 = vld [vmem:[%s686 + $0x1a] sm:$0xff]
        %v1785 = vld [vmem:[%s686 + $0x22] sm:$0xff]
        %v1786 = vld [vmem:[%s686 + $0x32] sm:$0xff]
        %v1787 = vld [vmem:[%s686 + $0x3a] sm:$0xff]
        %v1788 = vld [vmem:[%s686 + $0x4a] sm:$0xff]
        %v1789 = vld [vmem:[%s686 + $0x52] sm:$0xff]
        %v1790 = vld [vmem:[%s686 + $0x62] sm:$0xff]
        %v1791 = vld [vmem:[%s686 + $0x6a] sm:$0xff]
        %v1792 = vld [vmem:[%s686 + $0x7a] sm:$0xff]
        %v1793 = vld [vmem:[%s686 + $0x82] sm:$0xff]
        %v1794 = vld [vmem:[%s686 + $0x92] sm:$0xff]
        %v1795 = vld [vmem:[%s686 + $0x9a] sm:$0xff]
        %v1796 = vld [vmem:[%s686 + $0xaa] sm:$0xff]
        %v1797 = vld [vmem:[%s686 + $0xb2] sm:$0xff]
        %v1798 = vld [vmem:[%s686 + $0xc2] sm:$0xff]
        %v1799 = vld [vmem:[%s686 + $0xca] sm:$0xff]
        %v1800 = vld [vmem:[%s686 + $0xda] sm:$0xff]
        %v1801 = vld [vmem:[%s686 + $0xe2] sm:$0xff]
        %v1802 = vld [vmem:[%s686 + $0xf2] sm:$0xff]
        %v1803 = vld [vmem:[%s686 + $0xfa] sm:$0xff]
        %v1804 = vld [vmem:[%s686 + $0x10a] sm:$0xff]
        %v1805 = vld [vmem:[%s686 + $0x112] sm:$0xff]
        %v1806 = vld [vmem:[%s686 + $0x122] sm:$0xff]
        %v1807 = vld [vmem:[%s686 + $0x12a] sm:$0xff]
        %v1808 = vld [vmem:[%s686 + $0x13a] sm:$0xff]
        %v1809 = vld [vmem:[%s686 + $0x142] sm:$0xff]
        %v1810 = vld [vmem:[%s686 + $0x152] sm:$0xff]
        %v1811 = vld [vmem:[%s686 + $0x15a] sm:$0xff]
        %v1812 = vld [vmem:[%s686 + $0x16a] sm:$0xff]
        %v1813 = vld [vmem:[%s686 + $0x172] sm:$0xff]
        %1846 = vrot.lane.b32.xlu0 %v1782, 52
        %v1847 = vpop.permute.xlu0 %1846
        %1848 = vrot.lane.b32.xlu0 %v1783, 52
        %v1849 = vpop.permute.xlu0 %1848
        %1850 = vrot.lane.b32.xlu0 %v1784, 52
        %v1851 = vpop.permute.xlu0 %1850
        %1852 = vrot.lane.b32.xlu0 %v1785, 52
        %v1853 = vpop.permute.xlu0 %1852
        %1854 = vrot.lane.b32.xlu0 %v1786, 52
        %v1855 = vpop.permute.xlu0 %1854
        %1856 = vrot.lane.b32.xlu0 %v1787, 52
        %v1857 = vpop.permute.xlu0 %1856
        %1858 = vrot.lane.b32.xlu0 %v1788, 52
        %v1859 = vpop.permute.xlu0 %1858
        %1860 = vrot.lane.b32.xlu0 %v1789, 52
        %v1861 = vpop.permute.xlu0 %1860
        %1862 = vrot.lane.b32.xlu0 %v1790, 52
        %v1863 = vpop.permute.xlu0 %1862
        %1864 = vrot.lane.b32.xlu0 %v1791, 52
        %v1865 = vpop.permute.xlu0 %1864
        %1866 = vrot.lane.b32.xlu0 %v1792, 52
        %v1867 = vpop.permute.xlu0 %1866
        %1868 = vrot.lane.b32.xlu0 %v1793, 52
        %v1869 = vpop.permute.xlu0 %1868
        %1870 = vrot.lane.b32.xlu0 %v1794, 52
        %v1871 = vpop.permute.xlu0 %1870
        %1872 = vrot.lane.b32.xlu0 %v1795, 52
        %v1873 = vpop.permute.xlu0 %1872
        %1874 = vrot.lane.b32.xlu0 %v1796, 52
        %v1875 = vpop.permute.xlu0 %1874
        %1876 = vrot.lane.b32.xlu0 %v1797, 52
        %v1877 = vpop.permute.xlu0 %1876
        %1878 = vrot.lane.b32.xlu0 %v1798, 52
        %v1879 = vpop.permute.xlu0 %1878
        %1880 = vrot.lane.b32.xlu0 %v1799, 52
        %v1881 = vpop.permute.xlu0 %1880
        %1882 = vrot.lane.b32.xlu0 %v1800, 52
        %v1883 = vpop.permute.xlu0 %1882
        %1884 = vrot.lane.b32.xlu0 %v1801, 52
        %v1885 = vpop.permute.xlu0 %1884
        %1886 = vrot.lane.b32.xlu0 %v1802, 52
        %v1887 = vpop.permute.xlu0 %1886
        %1888 = vrot.lane.b32.xlu0 %v1803, 52
        %v1889 = vpop.permute.xlu0 %1888
        %1890 = vrot.lane.b32.xlu0 %v1804, 52
        %v1891 = vpop.permute.xlu0 %1890
        %1892 = vrot.lane.b32.xlu0 %v1805, 52
        %v1893 = vpop.permute.xlu0 %1892
        %1894 = vrot.lane.b32.xlu0 %v1806, 52
        %v1895 = vpop.permute.xlu0 %1894
        %1896 = vrot.lane.b32.xlu0 %v1807, 52
        %v1897 = vpop.permute.xlu0 %1896
        %1898 = vrot.lane.b32.xlu0 %v1808, 52
        %v1899 = vpop.permute.xlu0 %1898
        %1900 = vrot.lane.b32.xlu0 %v1809, 52
        %v1901 = vpop.permute.xlu0 %1900
        %1902 = vrot.lane.b32.xlu0 %v1810, 52
        %v1903 = vpop.permute.xlu0 %1902
        %1904 = vrot.lane.b32.xlu0 %v1811, 52
        %v1905 = vpop.permute.xlu0 %1904
        %1906 = vrot.lane.b32.xlu0 %v1812, 52
        %v1907 = vpop.permute.xlu0 %1906
        %1908 = vrot.lane.b32.xlu0 %v1813, 52
        %v1909 = vpop.permute.xlu0 %1908
        %vm1942 = vcmask 720288
        %1943 = vst.msk [vmem:[#allocation3 + $0x8] sm:$0xff] %vm1942, %v1847
        %1944 = vst.msk [vmem:[#allocation3 + $0x20] sm:$0xff] %vm1942, %v1849
        %1945 = vst.msk [vmem:[#allocation3 + $0x38] sm:$0xff] %vm1942, %v1851
        %1946 = vst.msk [vmem:[#allocation3 + $0x50] sm:$0xff] %vm1942, %v1853
        %1947 = vst.msk [vmem:[#allocation3 + $0x68] sm:$0xff] %vm1942, %v1855
        %1948 = vst.msk [vmem:[#allocation3 + $0x80] sm:$0xff] %vm1942, %v1857
        %1949 = vst.msk [vmem:[#allocation3 + $0x98] sm:$0xff] %vm1942, %v1859
        %1950 = vst.msk [vmem:[#allocation3 + $0xb0] sm:$0xff] %vm1942, %v1861
        %1951 = vst.msk [vmem:[#allocation3 + $0xc8] sm:$0xff] %vm1942, %v1863
        %1952 = vst.msk [vmem:[#allocation3 + $0xe0] sm:$0xff] %vm1942, %v1865
        %1953 = vst.msk [vmem:[#allocation3 + $0xf8] sm:$0xff] %vm1942, %v1867
        %1954 = vst.msk [vmem:[#allocation3 + $0x110] sm:$0xff] %vm1942, %v1869
        %1955 = vst.msk [vmem:[#allocation3 + $0x128] sm:$0xff] %vm1942, %v1871
        %1956 = vst.msk [vmem:[#allocation3 + $0x140] sm:$0xff] %vm1942, %v1873
        %1957 = vst.msk [vmem:[#allocation3 + $0x158] sm:$0xff] %vm1942, %v1875
        %1958 = vst.msk [vmem:[#allocation3 + $0x170] sm:$0xff] %vm1942, %v1877
        %1959 = vst.msk [vmem:[#allocation3 + $0x188] sm:$0xff] %vm1942, %v1879
        %1960 = vst.msk [vmem:[#allocation3 + $0x1a0] sm:$0xff] %vm1942, %v1881
        %1961 = vst.msk [vmem:[#allocation3 + $0x1b8] sm:$0xff] %vm1942, %v1883
        %1962 = vst.msk [vmem:[#allocation3 + $0x1d0] sm:$0xff] %vm1942, %v1885
        %1963 = vst.msk [vmem:[#allocation3 + $0x1e8] sm:$0xff] %vm1942, %v1887
        %1964 = vst.msk [vmem:[#allocation3 + $0x200] sm:$0xff] %vm1942, %v1889
        %1965 = vst.msk [vmem:[#allocation3 + $0x218] sm:$0xff] %vm1942, %v1891
        %1966 = vst.msk [vmem:[#allocation3 + $0x230] sm:$0xff] %vm1942, %v1893
        %1967 = vst.msk [vmem:[#allocation3 + $0x248] sm:$0xff] %vm1942, %v1895
        %1968 = vst.msk [vmem:[#allocation3 + $0x260] sm:$0xff] %vm1942, %v1897
        %1969 = vst.msk [vmem:[#allocation3 + $0x278] sm:$0xff] %vm1942, %v1899
        %1970 = vst.msk [vmem:[#allocation3 + $0x290] sm:$0xff] %vm1942, %v1901
        %1971 = vst.msk [vmem:[#allocation3 + $0x2a8] sm:$0xff] %vm1942, %v1903
        %1972 = vst.msk [vmem:[#allocation3 + $0x2c0] sm:$0xff] %vm1942, %v1905
        %1973 = vst.msk [vmem:[#allocation3 + $0x2d8] sm:$0xff] %vm1942, %v1907
        %1974 = vst.msk [vmem:[#allocation3 + $0x2f0] sm:$0xff] %vm1942, %v1909
        %s1975 = scalar_lea.vmem [#allocation2], 48
        %v1976 = vld [vmem:[%s1975] sm:$0xff]
        %v1977 = vld [vmem:[%s1975 + $0x8] sm:$0xff]
        %v1978 = vld [vmem:[%s1975 + $0x18] sm:$0xff]
        %v1979 = vld [vmem:[%s1975 + $0x20] sm:$0xff]
        %v1980 = vld [vmem:[%s1975 + $0x30] sm:$0xff]
        %v1981 = vld [vmem:[%s1975 + $0x38] sm:$0xff]
        %v1982 = vld [vmem:[%s1975 + $0x48] sm:$0xff]
        %v1983 = vld [vmem:[%s1975 + $0x50] sm:$0xff]
        %v1984 = vld [vmem:[%s1975 + $0x60] sm:$0xff]
        %v1985 = vld [vmem:[%s1975 + $0x68] sm:$0xff]
        %v1986 = vld [vmem:[%s1975 + $0x78] sm:$0xff]
        %v1987 = vld [vmem:[%s1975 + $0x80] sm:$0xff]
        %v1988 = vld [vmem:[%s1975 + $0x90] sm:$0xff]
        %v1989 = vld [vmem:[%s1975 + $0x98] sm:$0xff]
        %v1990 = vld [vmem:[%s1975 + $0xa8] sm:$0xff]
        %v1991 = vld [vmem:[%s1975 + $0xb0] sm:$0xff]
        %v1992 = vld [vmem:[%s1975 + $0xc0] sm:$0xff]
        %v1993 = vld [vmem:[%s1975 + $0xc8] sm:$0xff]
        %v1994 = vld [vmem:[%s1975 + $0xd8] sm:$0xff]
        %v1995 = vld [vmem:[%s1975 + $0xe0] sm:$0xff]
        %v1996 = vld [vmem:[%s1975 + $0xf0] sm:$0xff]
        %v1997 = vld [vmem:[%s1975 + $0xf8] sm:$0xff]
        %v1998 = vld [vmem:[%s1975 + $0x108] sm:$0xff]
        %v1999 = vld [vmem:[%s1975 + $0x110] sm:$0xff]
        %v2000 = vld [vmem:[%s1975 + $0x120] sm:$0xff]
        %v2001 = vld [vmem:[%s1975 + $0x128] sm:$0xff]
        %v2002 = vld [vmem:[%s1975 + $0x138] sm:$0xff]
        %v2003 = vld [vmem:[%s1975 + $0x140] sm:$0xff]
        %v2004 = vld [vmem:[%s1975 + $0x150] sm:$0xff]
        %v2005 = vld [vmem:[%s1975 + $0x158] sm:$0xff]
        %v2006 = vld [vmem:[%s1975 + $0x168] sm:$0xff]
        %v2007 = vld [vmem:[%s1975 + $0x170] sm:$0xff]
        %2040 = vrot.lane.b32.xlu0 %v1976, 88
        %v2041 = vpop.permute.xlu0 %2040
        %2042 = vrot.lane.b32.xlu0 %v1977, 88
        %v2043 = vpop.permute.xlu0 %2042
        %2044 = vrot.lane.b32.xlu0 %v1978, 88
        %v2045 = vpop.permute.xlu0 %2044
        %2046 = vrot.lane.b32.xlu0 %v1979, 88
        %v2047 = vpop.permute.xlu0 %2046
        %2048 = vrot.lane.b32.xlu0 %v1980, 88
        %v2049 = vpop.permute.xlu0 %2048
        %2050 = vrot.lane.b32.xlu0 %v1981, 88
        %v2051 = vpop.permute.xlu0 %2050
        %2052 = vrot.lane.b32.xlu0 %v1982, 88
        %v2053 = vpop.permute.xlu0 %2052
        %2054 = vrot.lane.b32.xlu0 %v1983, 88
        %v2055 = vpop.permute.xlu0 %2054
        %2056 = vrot.lane.b32.xlu0 %v1984, 88
        %v2057 = vpop.permute.xlu0 %2056
        %2058 = vrot.lane.b32.xlu0 %v1985, 88
        %v2059 = vpop.permute.xlu0 %2058
        %2060 = vrot.lane.b32.xlu0 %v1986, 88
        %v2061 = vpop.permute.xlu0 %2060
        %2062 = vrot.lane.b32.xlu0 %v1987, 88
        %v2063 = vpop.permute.xlu0 %2062
        %2064 = vrot.lane.b32.xlu0 %v1988, 88
        %v2065 = vpop.permute.xlu0 %2064
        %2066 = vrot.lane.b32.xlu0 %v1989, 88
        %v2067 = vpop.permute.xlu0 %2066
        %2068 = vrot.lane.b32.xlu0 %v1990, 88
        %v2069 = vpop.permute.xlu0 %2068
        %2070 = vrot.lane.b32.xlu0 %v1991, 88
        %v2071 = vpop.permute.xlu0 %2070
        %2072 = vrot.lane.b32.xlu0 %v1992, 88
        %v2073 = vpop.permute.xlu0 %2072
        %2074 = vrot.lane.b32.xlu0 %v1993, 88
        %v2075 = vpop.permute.xlu0 %2074
        %2076 = vrot.lane.b32.xlu0 %v1994, 88
        %v2077 = vpop.permute.xlu0 %2076
        %2078 = vrot.lane.b32.xlu0 %v1995, 88
        %v2079 = vpop.permute.xlu0 %2078
        %2080 = vrot.lane.b32.xlu0 %v1996, 88
        %v2081 = vpop.permute.xlu0 %2080
        %2082 = vrot.lane.b32.xlu0 %v1997, 88
        %v2083 = vpop.permute.xlu0 %2082
        %2084 = vrot.lane.b32.xlu0 %v1998, 88
        %v2085 = vpop.permute.xlu0 %2084
        %2086 = vrot.lane.b32.xlu0 %v1999, 88
        %v2087 = vpop.permute.xlu0 %2086
        %2088 = vrot.lane.b32.xlu0 %v2000, 88
        %v2089 = vpop.permute.xlu0 %2088
        %2090 = vrot.lane.b32.xlu0 %v2001, 88
        %v2091 = vpop.permute.xlu0 %2090
        %2092 = vrot.lane.b32.xlu0 %v2002, 88
        %v2093 = vpop.permute.xlu0 %2092
        %2094 = vrot.lane.b32.xlu0 %v2003, 88
        %v2095 = vpop.permute.xlu0 %2094
        %2096 = vrot.lane.b32.xlu0 %v2004, 88
        %v2097 = vpop.permute.xlu0 %2096
        %2098 = vrot.lane.b32.xlu0 %v2005, 88
        %v2099 = vpop.permute.xlu0 %2098
        %2100 = vrot.lane.b32.xlu0 %v2006, 88
        %v2101 = vpop.permute.xlu0 %2100
        %2102 = vrot.lane.b32.xlu0 %v2007, 88
        %v2103 = vpop.permute.xlu0 %2102
        %vm2136 = vcmask 1015488
        %2137 = vst.msk [vmem:[#allocation3 + $0x8] sm:$0xff] %vm2136, %v2041
        %2138 = vst.msk [vmem:[#allocation3 + $0x20] sm:$0xff] %vm2136, %v2043
        %2139 = vst.msk [vmem:[#allocation3 + $0x38] sm:$0xff] %vm2136, %v2045
        %2140 = vst.msk [vmem:[#allocation3 + $0x50] sm:$0xff] %vm2136, %v2047
        %2141 = vst.msk [vmem:[#allocation3 + $0x68] sm:$0xff] %vm2136, %v2049
        %2142 = vst.msk [vmem:[#allocation3 + $0x80] sm:$0xff] %vm2136, %v2051
        %2143 = vst.msk [vmem:[#allocation3 + $0x98] sm:$0xff] %vm2136, %v2053
        %2144 = vst.msk [vmem:[#allocation3 + $0xb0] sm:$0xff] %vm2136, %v2055
        %2145 = vst.msk [vmem:[#allocation3 + $0xc8] sm:$0xff] %vm2136, %v2057
        %2146 = vst.msk [vmem:[#allocation3 + $0xe0] sm:$0xff] %vm2136, %v2059
        %2147 = vst.msk [vmem:[#allocation3 + $0xf8] sm:$0xff] %vm2136, %v2061
        %2148 = vst.msk [vmem:[#allocation3 + $0x110] sm:$0xff] %vm2136, %v2063
        %2149 = vst.msk [vmem:[#allocation3 + $0x128] sm:$0xff] %vm2136, %v2065
        %2150 = vst.msk [vmem:[#allocation3 + $0x140] sm:$0xff] %vm2136, %v2067
        %2151 = vst.msk [vmem:[#allocation3 + $0x158] sm:$0xff] %vm2136, %v2069
        %2152 = vst.msk [vmem:[#allocation3 + $0x170] sm:$0xff] %vm2136, %v2071
        %2153 = vst.msk [vmem:[#allocation3 + $0x188] sm:$0xff] %vm2136, %v2073
        %2154 = vst.msk [vmem:[#allocation3 + $0x1a0] sm:$0xff] %vm2136, %v2075
        %2155 = vst.msk [vmem:[#allocation3 + $0x1b8] sm:$0xff] %vm2136, %v2077
        %2156 = vst.msk [vmem:[#allocation3 + $0x1d0] sm:$0xff] %vm2136, %v2079
        %2157 = vst.msk [vmem:[#allocation3 + $0x1e8] sm:$0xff] %vm2136, %v2081
        %2158 = vst.msk [vmem:[#allocation3 + $0x200] sm:$0xff] %vm2136, %v2083
        %2159 = vst.msk [vmem:[#allocation3 + $0x218] sm:$0xff] %vm2136, %v2085
        %2160 = vst.msk [vmem:[#allocation3 + $0x230] sm:$0xff] %vm2136, %v2087
        %2161 = vst.msk [vmem:[#allocation3 + $0x248] sm:$0xff] %vm2136, %v2089
        %2162 = vst.msk [vmem:[#allocation3 + $0x260] sm:$0xff] %vm2136, %v2091
        %2163 = vst.msk [vmem:[#allocation3 + $0x278] sm:$0xff] %vm2136, %v2093
        %2164 = vst.msk [vmem:[#allocation3 + $0x290] sm:$0xff] %vm2136, %v2095
        %2165 = vst.msk [vmem:[#allocation3 + $0x2a8] sm:$0xff] %vm2136, %v2097
        %2166 = vst.msk [vmem:[#allocation3 + $0x2c0] sm:$0xff] %vm2136, %v2099
        %2167 = vst.msk [vmem:[#allocation3 + $0x2d8] sm:$0xff] %vm2136, %v2101
        %2168 = vst.msk [vmem:[#allocation3 + $0x2f0] sm:$0xff] %vm2136, %v2103
        %v2169 = vld [vmem:[%s1975 + $0x1] sm:$0xff]
        %v2170 = vld [vmem:[%s1975 + $0x9] sm:$0xff]
        %v2171 = vld [vmem:[%s1975 + $0x19] sm:$0xff]
        %v2172 = vld [vmem:[%s1975 + $0x21] sm:$0xff]
        %v2173 = vld [vmem:[%s1975 + $0x31] sm:$0xff]
        %v2174 = vld [vmem:[%s1975 + $0x39] sm:$0xff]
        %v2175 = vld [vmem:[%s1975 + $0x49] sm:$0xff]
        %v2176 = vld [vmem:[%s1975 + $0x51] sm:$0xff]
        %v2177 = vld [vmem:[%s1975 + $0x61] sm:$0xff]
        %v2178 = vld [vmem:[%s1975 + $0x69] sm:$0xff]
        %v2179 = vld [vmem:[%s1975 + $0x79] sm:$0xff]
        %v2180 = vld [vmem:[%s1975 + $0x81] sm:$0xff]
        %v2181 = vld [vmem:[%s1975 + $0x91] sm:$0xff]
        %v2182 = vld [vmem:[%s1975 + $0x99] sm:$0xff]
        %v2183 = vld [vmem:[%s1975 + $0xa9] sm:$0xff]
        %v2184 = vld [vmem:[%s1975 + $0xb1] sm:$0xff]
        %v2185 = vld [vmem:[%s1975 + $0xc1] sm:$0xff]
        %v2186 = vld [vmem:[%s1975 + $0xc9] sm:$0xff]
        %v2187 = vld [vmem:[%s1975 + $0xd9] sm:$0xff]
        %v2188 = vld [vmem:[%s1975 + $0xe1] sm:$0xff]
        %v2189 = vld [vmem:[%s1975 + $0xf1] sm:$0xff]
        %v2190 = vld [vmem:[%s1975 + $0xf9] sm:$0xff]
        %v2191 = vld [vmem:[%s1975 + $0x109] sm:$0xff]
        %v2192 = vld [vmem:[%s1975 + $0x111] sm:$0xff]
        %v2193 = vld [vmem:[%s1975 + $0x121] sm:$0xff]
        %v2194 = vld [vmem:[%s1975 + $0x129] sm:$0xff]
        %v2195 = vld [vmem:[%s1975 + $0x139] sm:$0xff]
        %v2196 = vld [vmem:[%s1975 + $0x141] sm:$0xff]
        %v2197 = vld [vmem:[%s1975 + $0x151] sm:$0xff]
        %v2198 = vld [vmem:[%s1975 + $0x159] sm:$0xff]
        %v2199 = vld [vmem:[%s1975 + $0x169] sm:$0xff]
        %v2200 = vld [vmem:[%s1975 + $0x171] sm:$0xff]
        %2233 = vrot.lane.b32.xlu0 %v2169, 124
        %v2234 = vpop.permute.xlu0 %2233
        %2235 = vrot.lane.b32.xlu0 %v2170, 124
        %v2236 = vpop.permute.xlu0 %2235
        %2237 = vrot.lane.b32.xlu0 %v2171, 124
        %v2238 = vpop.permute.xlu0 %2237
        %2239 = vrot.lane.b32.xlu0 %v2172, 124
        %v2240 = vpop.permute.xlu0 %2239
        %2241 = vrot.lane.b32.xlu0 %v2173, 124
        %v2242 = vpop.permute.xlu0 %2241
        %2243 = vrot.lane.b32.xlu0 %v2174, 124
        %v2244 = vpop.permute.xlu0 %2243
        %2245 = vrot.lane.b32.xlu0 %v2175, 124
        %v2246 = vpop.permute.xlu0 %2245
        %2247 = vrot.lane.b32.xlu0 %v2176, 124
        %v2248 = vpop.permute.xlu0 %2247
        %2249 = vrot.lane.b32.xlu0 %v2177, 124
        %v2250 = vpop.permute.xlu0 %2249
        %2251 = vrot.lane.b32.xlu0 %v2178, 124
        %v2252 = vpop.permute.xlu0 %2251
        %2253 = vrot.lane.b32.xlu0 %v2179, 124
        %v2254 = vpop.permute.xlu0 %2253
        %2255 = vrot.lane.b32.xlu0 %v2180, 124
        %v2256 = vpop.permute.xlu0 %2255
        %2257 = vrot.lane.b32.xlu0 %v2181, 124
        %v2258 = vpop.permute.xlu0 %2257
        %2259 = vrot.lane.b32.xlu0 %v2182, 124
        %v2260 = vpop.permute.xlu0 %2259
        %2261 = vrot.lane.b32.xlu0 %v2183, 124
        %v2262 = vpop.permute.xlu0 %2261
        %2263 = vrot.lane.b32.xlu0 %v2184, 124
        %v2264 = vpop.permute.xlu0 %2263
        %2265 = vrot.lane.b32.xlu0 %v2185, 124
        %v2266 = vpop.permute.xlu0 %2265
        %2267 = vrot.lane.b32.xlu0 %v2186, 124
        %v2268 = vpop.permute.xlu0 %2267
        %2269 = vrot.lane.b32.xlu0 %v2187, 124
        %v2270 = vpop.permute.xlu0 %2269
        %2271 = vrot.lane.b32.xlu0 %v2188, 124
        %v2272 = vpop.permute.xlu0 %2271
        %2273 = vrot.lane.b32.xlu0 %v2189, 124
        %v2274 = vpop.permute.xlu0 %2273
        %2275 = vrot.lane.b32.xlu0 %v2190, 124
        %v2276 = vpop.permute.xlu0 %2275
        %2277 = vrot.lane.b32.xlu0 %v2191, 124
        %v2278 = vpop.permute.xlu0 %2277
        %2279 = vrot.lane.b32.xlu0 %v2192, 124
        %v2280 = vpop.permute.xlu0 %2279
        %2281 = vrot.lane.b32.xlu0 %v2193, 124
        %v2282 = vpop.permute.xlu0 %2281
        %2283 = vrot.lane.b32.xlu0 %v2194, 124
        %v2284 = vpop.permute.xlu0 %2283
        %2285 = vrot.lane.b32.xlu0 %v2195, 124
        %v2286 = vpop.permute.xlu0 %2285
        %2287 = vrot.lane.b32.xlu0 %v2196, 124
        %v2288 = vpop.permute.xlu0 %2287
        %2289 = vrot.lane.b32.xlu0 %v2197, 124
        %v2290 = vpop.permute.xlu0 %2289
        %2291 = vrot.lane.b32.xlu0 %v2198, 124
        %v2292 = vpop.permute.xlu0 %2291
        %2293 = vrot.lane.b32.xlu0 %v2199, 124
        %v2294 = vpop.permute.xlu0 %2293
        %2295 = vrot.lane.b32.xlu0 %v2200, 124
        %v2296 = vpop.permute.xlu0 %2295
        %vm2329 = vcmask 1048544
        %2330 = vst.msk [vmem:[#allocation3 + $0x8] sm:$0xff] %vm2329, %v2234
        %vm2331 = vcmask 261120
        %2332 = vst.msk [vmem:[#allocation3 + $0x10] sm:$0xff] %vm2331, %v2234
        %2333 = vst.msk [vmem:[#allocation3 + $0x20] sm:$0xff] %vm2329, %v2236
        %2334 = vst.msk [vmem:[#allocation3 + $0x28] sm:$0xff] %vm2331, %v2236
        %2335 = vst.msk [vmem:[#allocation3 + $0x38] sm:$0xff] %vm2329, %v2238
        %2336 = vst.msk [vmem:[#allocation3 + $0x40] sm:$0xff] %vm2331, %v2238
        %2337 = vst.msk [vmem:[#allocation3 + $0x50] sm:$0xff] %vm2329, %v2240
        %2338 = vst.msk [vmem:[#allocation3 + $0x58] sm:$0xff] %vm2331, %v2240
        %2339 = vst.msk [vmem:[#allocation3 + $0x68] sm:$0xff] %vm2329, %v2242
        %2340 = vst.msk [vmem:[#allocation3 + $0x70] sm:$0xff] %vm2331, %v2242
        %2341 = vst.msk [vmem:[#allocation3 + $0x80] sm:$0xff] %vm2329, %v2244
        %2342 = vst.msk [vmem:[#allocation3 + $0x88] sm:$0xff] %vm2331, %v2244
        %2343 = vst.msk [vmem:[#allocation3 + $0x98] sm:$0xff] %vm2329, %v2246
        %2344 = vst.msk [vmem:[#allocation3 + $0xa0] sm:$0xff] %vm2331, %v2246
        %2345 = vst.msk [vmem:[#allocation3 + $0xb0] sm:$0xff] %vm2329, %v2248
        %2346 = vst.msk [vmem:[#allocation3 + $0xb8] sm:$0xff] %vm2331, %v2248
        %2347 = vst.msk [vmem:[#allocation3 + $0xc8] sm:$0xff] %vm2329, %v2250
        %2348 = vst.msk [vmem:[#allocation3 + $0xd0] sm:$0xff] %vm2331, %v2250
        %2349 = vst.msk [vmem:[#allocation3 + $0xe0] sm:$0xff] %vm2329, %v2252
        %2350 = vst.msk [vmem:[#allocation3 + $0xe8] sm:$0xff] %vm2331, %v2252
        %2351 = vst.msk [vmem:[#allocation3 + $0xf8] sm:$0xff] %vm2329, %v2254
        %2352 = vst.msk [vmem:[#allocation3 + $0x100] sm:$0xff] %vm2331, %v2254
        %2353 = vst.msk [vmem:[#allocation3 + $0x110] sm:$0xff] %vm2329, %v2256
        %2354 = vst.msk [vmem:[#allocation3 + $0x118] sm:$0xff] %vm2331, %v2256
        %2355 = vst.msk [vmem:[#allocation3 + $0x128] sm:$0xff] %vm2329, %v2258
        %2356 = vst.msk [vmem:[#allocation3 + $0x130] sm:$0xff] %vm2331, %v2258
        %2357 = vst.msk [vmem:[#allocation3 + $0x140] sm:$0xff] %vm2329, %v2260
        %2358 = vst.msk [vmem:[#allocation3 + $0x148] sm:$0xff] %vm2331, %v2260
        %2359 = vst.msk [vmem:[#allocation3 + $0x158] sm:$0xff] %vm2329, %v2262
        %2360 = vst.msk [vmem:[#allocation3 + $0x160] sm:$0xff] %vm2331, %v2262
        %2361 = vst.msk [vmem:[#allocation3 + $0x170] sm:$0xff] %vm2329, %v2264
        %2362 = vst.msk [vmem:[#allocation3 + $0x178] sm:$0xff] %vm2331, %v2264
        %2363 = vst.msk [vmem:[#allocation3 + $0x188] sm:$0xff] %vm2329, %v2266
        %2364 = vst.msk [vmem:[#allocation3 + $0x190] sm:$0xff] %vm2331, %v2266
        %2365 = vst.msk [vmem:[#allocation3 + $0x1a0] sm:$0xff] %vm2329, %v2268
        %2366 = vst.msk [vmem:[#allocation3 + $0x1a8] sm:$0xff] %vm2331, %v2268
        %2367 = vst.msk [vmem:[#allocation3 + $0x1b8] sm:$0xff] %vm2329, %v2270
        %2368 = vst.msk [vmem:[#allocation3 + $0x1c0] sm:$0xff] %vm2331, %v2270
        %2369 = vst.msk [vmem:[#allocation3 + $0x1d0] sm:$0xff] %vm2329, %v2272
        %2370 = vst.msk [vmem:[#allocation3 + $0x1d8] sm:$0xff] %vm2331, %v2272
        %2371 = vst.msk [vmem:[#allocation3 + $0x1e8] sm:$0xff] %vm2329, %v2274
        %2372 = vst.msk [vmem:[#allocation3 + $0x1f0] sm:$0xff] %vm2331, %v2274
        %2373 = vst.msk [vmem:[#allocation3 + $0x200] sm:$0xff] %vm2329, %v2276
        %2374 = vst.msk [vmem:[#allocation3 + $0x208] sm:$0xff] %vm2331, %v2276
        %2375 = vst.msk [vmem:[#allocation3 + $0x218] sm:$0xff] %vm2329, %v2278
        %2376 = vst.msk [vmem:[#allocation3 + $0x220] sm:$0xff] %vm2331, %v2278
        %2377 = vst.msk [vmem:[#allocation3 + $0x230] sm:$0xff] %vm2329, %v2280
        %2378 = vst.msk [vmem:[#allocation3 + $0x238] sm:$0xff] %vm2331, %v2280
        %2379 = vst.msk [vmem:[#allocation3 + $0x248] sm:$0xff] %vm2329, %v2282
        %2380 = vst.msk [vmem:[#allocation3 + $0x250] sm:$0xff] %vm2331, %v2282
        %2381 = vst.msk [vmem:[#allocation3 + $0x260] sm:$0xff] %vm2329, %v2284
        %2382 = vst.msk [vmem:[#allocation3 + $0x268] sm:$0xff] %vm2331, %v2284
        %2383 = vst.msk [vmem:[#allocation3 + $0x278] sm:$0xff] %vm2329, %v2286
        %2384 = vst.msk [vmem:[#allocation3 + $0x280] sm:$0xff] %vm2331, %v2286
        %2385 = vst.msk [vmem:[#allocation3 + $0x290] sm:$0xff] %vm2329, %v2288
        %2386 = vst.msk [vmem:[#allocation3 + $0x298] sm:$0xff] %vm2331, %v2288
        %2387 = vst.msk [vmem:[#allocation3 + $0x2a8] sm:$0xff] %vm2329, %v2290
        %2388 = vst.msk [vmem:[#allocation3 + $0x2b0] sm:$0xff] %vm2331, %v2290
        %2389 = vst.msk [vmem:[#allocation3 + $0x2c0] sm:$0xff] %vm2329, %v2292
        %2390 = vst.msk [vmem:[#allocation3 + $0x2c8] sm:$0xff] %vm2331, %v2292
        %2391 = vst.msk [vmem:[#allocation3 + $0x2d8] sm:$0xff] %vm2329, %v2294
        %2392 = vst.msk [vmem:[#allocation3 + $0x2e0] sm:$0xff] %vm2331, %v2294
        %2393 = vst.msk [vmem:[#allocation3 + $0x2f0] sm:$0xff] %vm2329, %v2296
        %2394 = vst.msk [vmem:[#allocation3 + $0x2f8] sm:$0xff] %vm2331, %v2296
        %v2395 = vld [vmem:[%s1975 + $0x2] sm:$0xff]
        %v2396 = vld [vmem:[%s1975 + $0xa] sm:$0xff]
        %v2397 = vld [vmem:[%s1975 + $0x1a] sm:$0xff]
        %v2398 = vld [vmem:[%s1975 + $0x22] sm:$0xff]
        %v2399 = vld [vmem:[%s1975 + $0x32] sm:$0xff]
        %v2400 = vld [vmem:[%s1975 + $0x3a] sm:$0xff]
        %v2401 = vld [vmem:[%s1975 + $0x4a] sm:$0xff]
        %v2402 = vld [vmem:[%s1975 + $0x52] sm:$0xff]
        %v2403 = vld [vmem:[%s1975 + $0x62] sm:$0xff]
        %v2404 = vld [vmem:[%s1975 + $0x6a] sm:$0xff]
        %v2405 = vld [vmem:[%s1975 + $0x7a] sm:$0xff]
        %v2406 = vld [vmem:[%s1975 + $0x82] sm:$0xff]
        %v2407 = vld [vmem:[%s1975 + $0x92] sm:$0xff]
        %v2408 = vld [vmem:[%s1975 + $0x9a] sm:$0xff]
        %v2409 = vld [vmem:[%s1975 + $0xaa] sm:$0xff]
        %v2410 = vld [vmem:[%s1975 + $0xb2] sm:$0xff]
        %v2411 = vld [vmem:[%s1975 + $0xc2] sm:$0xff]
        %v2412 = vld [vmem:[%s1975 + $0xca] sm:$0xff]
        %v2413 = vld [vmem:[%s1975 + $0xda] sm:$0xff]
        %v2414 = vld [vmem:[%s1975 + $0xe2] sm:$0xff]
        %v2415 = vld [vmem:[%s1975 + $0xf2] sm:$0xff]
        %v2416 = vld [vmem:[%s1975 + $0xfa] sm:$0xff]
        %v2417 = vld [vmem:[%s1975 + $0x10a] sm:$0xff]
        %v2418 = vld [vmem:[%s1975 + $0x112] sm:$0xff]
        %v2419 = vld [vmem:[%s1975 + $0x122] sm:$0xff]
        %v2420 = vld [vmem:[%s1975 + $0x12a] sm:$0xff]
        %v2421 = vld [vmem:[%s1975 + $0x13a] sm:$0xff]
        %v2422 = vld [vmem:[%s1975 + $0x142] sm:$0xff]
        %v2423 = vld [vmem:[%s1975 + $0x152] sm:$0xff]
        %v2424 = vld [vmem:[%s1975 + $0x15a] sm:$0xff]
        %v2425 = vld [vmem:[%s1975 + $0x16a] sm:$0xff]
        %v2426 = vld [vmem:[%s1975 + $0x172] sm:$0xff]
        %2459 = vrot.lane.b32.xlu0 %v2395, 32
        %v2460 = vpop.permute.xlu0 %2459
        %2461 = vrot.lane.b32.xlu0 %v2396, 32
        %v2462 = vpop.permute.xlu0 %2461
        %2463 = vrot.lane.b32.xlu0 %v2397, 32
        %v2464 = vpop.permute.xlu0 %2463
        %2465 = vrot.lane.b32.xlu0 %v2398, 32
        %v2466 = vpop.permute.xlu0 %2465
        %2467 = vrot.lane.b32.xlu0 %v2399, 32
        %v2468 = vpop.permute.xlu0 %2467
        %2469 = vrot.lane.b32.xlu0 %v2400, 32
        %v2470 = vpop.permute.xlu0 %2469
        %2471 = vrot.lane.b32.xlu0 %v2401, 32
        %v2472 = vpop.permute.xlu0 %2471
        %2473 = vrot.lane.b32.xlu0 %v2402, 32
        %v2474 = vpop.permute.xlu0 %2473
        %2475 = vrot.lane.b32.xlu0 %v2403, 32
        %v2476 = vpop.permute.xlu0 %2475
        %2477 = vrot.lane.b32.xlu0 %v2404, 32
        %v2478 = vpop.permute.xlu0 %2477
        %2479 = vrot.lane.b32.xlu0 %v2405, 32
        %v2480 = vpop.permute.xlu0 %2479
        %2481 = vrot.lane.b32.xlu0 %v2406, 32
        %v2482 = vpop.permute.xlu0 %2481
        %2483 = vrot.lane.b32.xlu0 %v2407, 32
        %v2484 = vpop.permute.xlu0 %2483
        %2485 = vrot.lane.b32.xlu0 %v2408, 32
        %v2486 = vpop.permute.xlu0 %2485
        %2487 = vrot.lane.b32.xlu0 %v2409, 32
        %v2488 = vpop.permute.xlu0 %2487
        %2489 = vrot.lane.b32.xlu0 %v2410, 32
        %v2490 = vpop.permute.xlu0 %2489
        %2491 = vrot.lane.b32.xlu0 %v2411, 32
        %v2492 = vpop.permute.xlu0 %2491
        %2493 = vrot.lane.b32.xlu0 %v2412, 32
        %v2494 = vpop.permute.xlu0 %2493
        %2495 = vrot.lane.b32.xlu0 %v2413, 32
        %v2496 = vpop.permute.xlu0 %2495
        %2497 = vrot.lane.b32.xlu0 %v2414, 32
        %v2498 = vpop.permute.xlu0 %2497
        %2499 = vrot.lane.b32.xlu0 %v2415, 32
        %v2500 = vpop.permute.xlu0 %2499
        %2501 = vrot.lane.b32.xlu0 %v2416, 32
        %v2502 = vpop.permute.xlu0 %2501
        %2503 = vrot.lane.b32.xlu0 %v2417, 32
        %v2504 = vpop.permute.xlu0 %2503
        %2505 = vrot.lane.b32.xlu0 %v2418, 32
        %v2506 = vpop.permute.xlu0 %2505
        %2507 = vrot.lane.b32.xlu0 %v2419, 32
        %v2508 = vpop.permute.xlu0 %2507
        %2509 = vrot.lane.b32.xlu0 %v2420, 32
        %v2510 = vpop.permute.xlu0 %2509
        %2511 = vrot.lane.b32.xlu0 %v2421, 32
        %v2512 = vpop.permute.xlu0 %2511
        %2513 = vrot.lane.b32.xlu0 %v2422, 32
        %v2514 = vpop.permute.xlu0 %2513
        %2515 = vrot.lane.b32.xlu0 %v2423, 32
        %v2516 = vpop.permute.xlu0 %2515
        %2517 = vrot.lane.b32.xlu0 %v2424, 32
        %v2518 = vpop.permute.xlu0 %2517
        %2519 = vrot.lane.b32.xlu0 %v2425, 32
        %v2520 = vpop.permute.xlu0 %2519
        %2521 = vrot.lane.b32.xlu0 %v2426, 32
        %v2522 = vpop.permute.xlu0 %2521
        %vm2555 = vcmask 556288
        %2556 = vst.msk [vmem:[#allocation3 + $0x10] sm:$0xff] %vm2555, %v2460
        %2557 = vst.msk [vmem:[#allocation3 + $0x28] sm:$0xff] %vm2555, %v2462
        %2558 = vst.msk [vmem:[#allocation3 + $0x40] sm:$0xff] %vm2555, %v2464
        %2559 = vst.msk [vmem:[#allocation3 + $0x58] sm:$0xff] %vm2555, %v2466
        %2560 = vst.msk [vmem:[#allocation3 + $0x70] sm:$0xff] %vm2555, %v2468
        %2561 = vst.msk [vmem:[#allocation3 + $0x88] sm:$0xff] %vm2555, %v2470
        %2562 = vst.msk [vmem:[#allocation3 + $0xa0] sm:$0xff] %vm2555, %v2472
        %2563 = vst.msk [vmem:[#allocation3 + $0xb8] sm:$0xff] %vm2555, %v2474
        %2564 = vst.msk [vmem:[#allocation3 + $0xd0] sm:$0xff] %vm2555, %v2476
        %2565 = vst.msk [vmem:[#allocation3 + $0xe8] sm:$0xff] %vm2555, %v2478
        %2566 = vst.msk [vmem:[#allocation3 + $0x100] sm:$0xff] %vm2555, %v2480
        %2567 = vst.msk [vmem:[#allocation3 + $0x118] sm:$0xff] %vm2555, %v2482
        %2568 = vst.msk [vmem:[#allocation3 + $0x130] sm:$0xff] %vm2555, %v2484
        %2569 = vst.msk [vmem:[#allocation3 + $0x148] sm:$0xff] %vm2555, %v2486
        %2570 = vst.msk [vmem:[#allocation3 + $0x160] sm:$0xff] %vm2555, %v2488
        %2571 = vst.msk [vmem:[#allocation3 + $0x178] sm:$0xff] %vm2555, %v2490
        %2572 = vst.msk [vmem:[#allocation3 + $0x190] sm:$0xff] %vm2555, %v2492
        %2573 = vst.msk [vmem:[#allocation3 + $0x1a8] sm:$0xff] %vm2555, %v2494
        %2574 = vst.msk [vmem:[#allocation3 + $0x1c0] sm:$0xff] %vm2555, %v2496
        %2575 = vst.msk [vmem:[#allocation3 + $0x1d8] sm:$0xff] %vm2555, %v2498
        %2576 = vst.msk [vmem:[#allocation3 + $0x1f0] sm:$0xff] %vm2555, %v2500
        %2577 = vst.msk [vmem:[#allocation3 + $0x208] sm:$0xff] %vm2555, %v2502
        %2578 = vst.msk [vmem:[#allocation3 + $0x220] sm:$0xff] %vm2555, %v2504
        %2579 = vst.msk [vmem:[#allocation3 + $0x238] sm:$0xff] %vm2555, %v2506
        %2580 = vst.msk [vmem:[#allocation3 + $0x250] sm:$0xff] %vm2555, %v2508
        %2581 = vst.msk [vmem:[#allocation3 + $0x268] sm:$0xff] %vm2555, %v2510
        %2582 = vst.msk [vmem:[#allocation3 + $0x280] sm:$0xff] %vm2555, %v2512
        %2583 = vst.msk [vmem:[#allocation3 + $0x298] sm:$0xff] %vm2555, %v2514
        %2584 = vst.msk [vmem:[#allocation3 + $0x2b0] sm:$0xff] %vm2555, %v2516
        %2585 = vst.msk [vmem:[#allocation3 + $0x2c8] sm:$0xff] %vm2555, %v2518
        %2586 = vst.msk [vmem:[#allocation3 + $0x2e0] sm:$0xff] %vm2555, %v2520
        %2587 = vst.msk [vmem:[#allocation3 + $0x2f8] sm:$0xff] %vm2555, %v2522
        %v2588 = vld [vmem:[#allocation3] sm:$0xff]
        %v2589 = vld [vmem:[#allocation3 + $0x8] sm:$0xff]
        %v2590 = vld [vmem:[#allocation3 + $0x10] sm:$0xff]
        %v2591 = vld [vmem:[#allocation3 + $0x18] sm:$0xff]
        %v2592 = vld [vmem:[#allocation3 + $0x20] sm:$0xff]
        %v2593 = vld [vmem:[#allocation3 + $0x28] sm:$0xff]
        %v2594 = vld [vmem:[#allocation3 + $0x30] sm:$0xff]
        %v2595 = vld [vmem:[#allocation3 + $0x38] sm:$0xff]
        %v2596 = vld [vmem:[#allocation3 + $0x40] sm:$0xff]
        %v2597 = vld [vmem:[#allocation3 + $0x48] sm:$0xff]
        %v2598 = vld [vmem:[#allocation3 + $0x50] sm:$0xff]
        %v2599 = vld [vmem:[#allocation3 + $0x58] sm:$0xff]
        %v2600 = vld [vmem:[#allocation3 + $0x60] sm:$0xff]
        %v2601 = vld [vmem:[#allocation3 + $0x68] sm:$0xff]
        %v2602 = vld [vmem:[#allocation3 + $0x70] sm:$0xff]
        %v2603 = vld [vmem:[#allocation3 + $0x78] sm:$0xff]
        %v2604 = vld [vmem:[#allocation3 + $0x80] sm:$0xff]
        %v2605 = vld [vmem:[#allocation3 + $0x88] sm:$0xff]
        %v2606 = vld [vmem:[#allocation3 + $0x90] sm:$0xff]
        %v2607 = vld [vmem:[#allocation3 + $0x98] sm:$0xff]
        %v2608 = vld [vmem:[#allocation3 + $0xa0] sm:$0xff]
        %v2609 = vld [vmem:[#allocation3 + $0xa8] sm:$0xff]
        %v2610 = vld [vmem:[#allocation3 + $0xb0] sm:$0xff]
        %v2611 = vld [vmem:[#allocation3 + $0xb8] sm:$0xff]
        %v2612 = vld [vmem:[#allocation3 + $0xc0] sm:$0xff]
        %v2613 = vld [vmem:[#allocation3 + $0xc8] sm:$0xff]
        %v2614 = vld [vmem:[#allocation3 + $0xd0] sm:$0xff]
        %v2615 = vld [vmem:[#allocation3 + $0xd8] sm:$0xff]
        %v2616 = vld [vmem:[#allocation3 + $0xe0] sm:$0xff]
        %v2617 = vld [vmem:[#allocation3 + $0xe8] sm:$0xff]
        %v2618 = vld [vmem:[#allocation3 + $0xf0] sm:$0xff]
        %v2619 = vld [vmem:[#allocation3 + $0xf8] sm:$0xff]
        %v2620 = vld [vmem:[#allocation3 + $0x100] sm:$0xff]
        %v2621 = vld [vmem:[#allocation3 + $0x108] sm:$0xff]
        %v2622 = vld [vmem:[#allocation3 + $0x110] sm:$0xff]
        %v2623 = vld [vmem:[#allocation3 + $0x118] sm:$0xff]
        %v2624 = vld [vmem:[#allocation3 + $0x120] sm:$0xff]
        %v2625 = vld [vmem:[#allocation3 + $0x128] sm:$0xff]
        %v2626 = vld [vmem:[#allocation3 + $0x130] sm:$0xff]
        %v2627 = vld [vmem:[#allocation3 + $0x138] sm:$0xff]
        %v2628 = vld [vmem:[#allocation3 + $0x140] sm:$0xff]
        %v2629 = vld [vmem:[#allocation3 + $0x148] sm:$0xff]
        %v2630 = vld [vmem:[#allocation3 + $0x150] sm:$0xff]
        %v2631 = vld [vmem:[#allocation3 + $0x158] sm:$0xff]
        %v2632 = vld [vmem:[#allocation3 + $0x160] sm:$0xff]
        %v2633 = vld [vmem:[#allocation3 + $0x168] sm:$0xff]
        %v2634 = vld [vmem:[#allocation3 + $0x170] sm:$0xff]
        %v2635 = vld [vmem:[#allocation3 + $0x178] sm:$0xff]
        %v2636 = vld [vmem:[#allocation3 + $0x180] sm:$0xff]
        %v2637 = vld [vmem:[#allocation3 + $0x188] sm:$0xff]
        %v2638 = vld [vmem:[#allocation3 + $0x190] sm:$0xff]
        %v2639 = vld [vmem:[#allocation3 + $0x198] sm:$0xff]
        %v2640 = vld [vmem:[#allocation3 + $0x1a0] sm:$0xff]
        %v2641 = vld [vmem:[#allocation3 + $0x1a8] sm:$0xff]
        %v2642 = vld [vmem:[#allocation3 + $0x1b0] sm:$0xff]
        %v2643 = vld [vmem:[#allocation3 + $0x1b8] sm:$0xff]
        %v2644 = vld [vmem:[#allocation3 + $0x1c0] sm:$0xff]
        %v2645 = vld [vmem:[#allocation3 + $0x1c8] sm:$0xff]
        %v2646 = vld [vmem:[#allocation3 + $0x1d0] sm:$0xff]
        %v2647 = vld [vmem:[#allocation3 + $0x1d8] sm:$0xff]
        %v2648 = vld [vmem:[#allocation3 + $0x1e0] sm:$0xff]
        %v2649 = vld [vmem:[#allocation3 + $0x1e8] sm:$0xff]
        %v2650 = vld [vmem:[#allocation3 + $0x1f0] sm:$0xff]
        %v2651 = vld [vmem:[#allocation3 + $0x1f8] sm:$0xff]
        %v2652 = vld [vmem:[#allocation3 + $0x200] sm:$0xff]
        %v2653 = vld [vmem:[#allocation3 + $0x208] sm:$0xff]
        %v2654 = vld [vmem:[#allocation3 + $0x210] sm:$0xff]
        %v2655 = vld [vmem:[#allocation3 + $0x218] sm:$0xff]
        %v2656 = vld [vmem:[#allocation3 + $0x220] sm:$0xff]
        %v2657 = vld [vmem:[#allocation3 + $0x228] sm:$0xff]
        %v2658 = vld [vmem:[#allocation3 + $0x230] sm:$0xff]
        %v2659 = vld [vmem:[#allocation3 + $0x238] sm:$0xff]
        %v2660 = vld [vmem:[#allocation3 + $0x240] sm:$0xff]
        %v2661 = vld [vmem:[#allocation3 + $0x248] sm:$0xff]
        %v2662 = vld [vmem:[#allocation3 + $0x250] sm:$0xff]
        %v2663 = vld [vmem:[#allocation3 + $0x258] sm:$0xff]
        %v2664 = vld [vmem:[#allocation3 + $0x260] sm:$0xff]
        %v2665 = vld [vmem:[#allocation3 + $0x268] sm:$0xff]
        %v2666 = vld [vmem:[#allocation3 + $0x270] sm:$0xff]
        %v2667 = vld [vmem:[#allocation3 + $0x278] sm:$0xff]
        %v2668 = vld [vmem:[#allocation3 + $0x280] sm:$0xff]
        %v2669 = vld [vmem:[#allocation3 + $0x288] sm:$0xff]
        %v2670 = vld [vmem:[#allocation3 + $0x290] sm:$0xff]
        %v2671 = vld [vmem:[#allocation3 + $0x298] sm:$0xff]
        %v2672 = vld [vmem:[#allocation3 + $0x2a0] sm:$0xff]
        %v2673 = vld [vmem:[#allocation3 + $0x2a8] sm:$0xff]
        %v2674 = vld [vmem:[#allocation3 + $0x2b0] sm:$0xff]
        %v2675 = vld [vmem:[#allocation3 + $0x2b8] sm:$0xff]
        %v2676 = vld [vmem:[#allocation3 + $0x2c0] sm:$0xff]
        %v2677 = vld [vmem:[#allocation3 + $0x2c8] sm:$0xff]
        %v2678 = vld [vmem:[#allocation3 + $0x2d0] sm:$0xff]
        %v2679 = vld [vmem:[#allocation3 + $0x2d8] sm:$0xff]
        %v2680 = vld [vmem:[#allocation3 + $0x2e0] sm:$0xff]
        %v2681 = vld [vmem:[#allocation3 + $0x2e8] sm:$0xff]
        %v2682 = vld [vmem:[#allocation3 + $0x2f0] sm:$0xff]
        %v2683 = vld [vmem:[#allocation3 + $0x2f8] sm:$0xff]
        %v2684 = vld [vmem:[%s5] sm:$0xff]
        %v2685 = vld [vmem:[%s5 + $0x8] sm:$0xff]
        %v2686 = vld [vmem:[%s5 + $0x10] sm:$0xff]
        %v2687 = vld [vmem:[%s5 + $0x18] sm:$0xff]
        %v2688 = vld [vmem:[%s5 + $0x20] sm:$0xff]
        %v2689 = vld [vmem:[%s5 + $0x28] sm:$0xff]
        %v2690 = vld [vmem:[%s5 + $0x30] sm:$0xff]
        %v2691 = vld [vmem:[%s5 + $0x38] sm:$0xff]
        %v2692 = vld [vmem:[%s5 + $0x40] sm:$0xff]
        %v2693 = vld [vmem:[%s5 + $0x48] sm:$0xff]
        %v2694 = vld [vmem:[%s5 + $0x50] sm:$0xff]
        %v2695 = vld [vmem:[%s5 + $0x58] sm:$0xff]
        %v2696 = vld [vmem:[%s5 + $0x60] sm:$0xff]
        %v2697 = vld [vmem:[%s5 + $0x68] sm:$0xff]
        %v2698 = vld [vmem:[%s5 + $0x70] sm:$0xff]
        %v2699 = vld [vmem:[%s5 + $0x78] sm:$0xff]
        %v2700 = vld [vmem:[%s5 + $0x80] sm:$0xff]
        %v2701 = vld [vmem:[%s5 + $0x88] sm:$0xff]
        %v2702 = vld [vmem:[%s5 + $0x90] sm:$0xff]
        %v2703 = vld [vmem:[%s5 + $0x98] sm:$0xff]
        %v2704 = vld [vmem:[%s5 + $0xa0] sm:$0xff]
        %v2705 = vld [vmem:[%s5 + $0xa8] sm:$0xff]
        %v2706 = vld [vmem:[%s5 + $0xb0] sm:$0xff]
        %v2707 = vld [vmem:[%s5 + $0xb8] sm:$0xff]
        %v2708 = vld [vmem:[%s5 + $0xc0] sm:$0xff]
        %v2709 = vld [vmem:[%s5 + $0xc8] sm:$0xff]
        %v2710 = vld [vmem:[%s5 + $0xd0] sm:$0xff]
        %v2711 = vld [vmem:[%s5 + $0xd8] sm:$0xff]
        %v2712 = vld [vmem:[%s5 + $0xe0] sm:$0xff]
        %v2713 = vld [vmem:[%s5 + $0xe8] sm:$0xff]
        %v2714 = vld [vmem:[%s5 + $0xf0] sm:$0xff]
        %v2715 = vld [vmem:[%s5 + $0xf8] sm:$0xff]
        %v2716 = vld [vmem:[%s5 + $0x100] sm:$0xff]
        %v2717 = vld [vmem:[%s5 + $0x108] sm:$0xff]
        %v2718 = vld [vmem:[%s5 + $0x110] sm:$0xff]
        %v2719 = vld [vmem:[%s5 + $0x118] sm:$0xff]
        %v2720 = vld [vmem:[%s5 + $0x120] sm:$0xff]
        %v2721 = vld [vmem:[%s5 + $0x128] sm:$0xff]
        %v2722 = vld [vmem:[%s5 + $0x130] sm:$0xff]
        %v2723 = vld [vmem:[%s5 + $0x138] sm:$0xff]
        %v2724 = vld [vmem:[%s5 + $0x140] sm:$0xf]
        %v2725 = vld [vmem:[%s6] sm:$0x1]
        %v2727 = vlaneseq
        %v2728 = vshrl.u32 %v2727, 7
        %v2729 = vsub.s32 0, %v2728
        %v2730 = vrot.slane %v2725, %v2729
        %vm2732 = vcmask 556032
        %v2734 = vsel %vm2732, %v2590, 0
        %v2737 = vsel %vm2732, %v2593, 0
        %v2740 = vsel %vm2732, %v2596, 0
        %v2743 = vsel %vm2732, %v2599, 0
        %v2746 = vsel %vm2732, %v2602, 0
        %v2749 = vsel %vm2732, %v2605, 0
        %v2752 = vsel %vm2732, %v2608, 0
        %v2755 = vsel %vm2732, %v2611, 0
        %v2758 = vsel %vm2732, %v2614, 0
        %v2761 = vsel %vm2732, %v2617, 0
        %v2764 = vsel %vm2732, %v2620, 0
        %v2767 = vsel %vm2732, %v2623, 0
        %v2770 = vsel %vm2732, %v2626, 0
        %v2773 = vsel %vm2732, %v2629, 0
        %v2776 = vsel %vm2732, %v2632, 0
        %v2779 = vsel %vm2732, %v2635, 0
        %v2782 = vsel %vm2732, %v2638, 0
        %v2785 = vsel %vm2732, %v2641, 0
        %v2788 = vsel %vm2732, %v2644, 0
        %v2791 = vsel %vm2732, %v2647, 0
        %v2794 = vsel %vm2732, %v2650, 0
        %v2797 = vsel %vm2732, %v2653, 0
        %v2800 = vsel %vm2732, %v2656, 0
        %v2803 = vsel %vm2732, %v2659, 0
        %v2806 = vsel %vm2732, %v2662, 0
        %v2809 = vsel %vm2732, %v2665, 0
        %v2812 = vsel %vm2732, %v2668, 0
        %v2815 = vsel %vm2732, %v2671, 0
        %v2818 = vsel %vm2732, %v2674, 0
        %v2821 = vsel %vm2732, %v2677, 0
        %v2824 = vsel %vm2732, %v2680, 0
        %v2827 = vsel %vm2732, %v2683, 0
        %vm2829 = vcmask 1043456
        %v2831 = vsel %vm2829, %v2724, 0
        %2833 = vmatprep.subr.mxu0 0.0
        %2834 = vmatpush1.msra.mxu0 %v2684
        %2835 = vmatprep.subr.mxu0 0.0
        %2836 = vmatpush1.msra.mxu0 %v2685
        %2837 = vmatprep.subr.mxu0 0.0
        %2838 = vmatpush1.msra.mxu0 %v2686
        %2839 = vmatprep.subr.mxu0 0.0
        %2840 = vmatpush1.msra.mxu0 %v2687
        %2841 = vmatprep.subr.mxu0 0.0
        %2842 = vmatpush1.msra.mxu0 %v2688
        %2843 = vmatprep.subr.mxu0 0.0
        %2844 = vmatpush1.msra.mxu0 %v2689
        %2845 = vmatprep.subr.mxu0 0.0
        %2846 = vmatpush1.msra.mxu0 %v2690
        %2847 = vmatprep.subr.mxu0 0.0
        %2848 = vmatpush1.msra.mxu0 %v2691
        %2849 = vmatprep.subr.mxu0 0.0
        %2850 = vmatpush1.msra.mxu0 %v2692
        %2851 = vmatprep.subr.mxu0 0.0
        %2852 = vmatpush1.msra.mxu0 %v2693
        %2853 = vmatprep.subr.mxu0 0.0
        %2854 = vmatpush1.msra.mxu0 %v2694
        %2855 = vmatprep.subr.mxu0 0.0
        %2856 = vmatpush1.msra.mxu0 %v2695
        %2857 = vmatprep.subr.mxu0 0.0
        %2858 = vmatpush1.msra.mxu0 %v2696
        %2859 = vmatprep.subr.mxu0 0.0
        %2860 = vmatpush1.msra.mxu0 %v2697
        %2861 = vmatprep.subr.mxu0 0.0
        %2862 = vmatpush1.msra.mxu0 %v2698
        %2863 = vmatprep.subr.mxu0 0.0
        %2864 = vmatpush1.msra.mxu0 %v2699
        %2865 = vmatprep.subr.mxu0 0.0
        %2866 = vmatpush1.msra.mxu0 %v2700
        %2867 = vmatprep.subr.mxu0 0.0
        %2868 = vmatpush1.msra.mxu0 %v2701
        %2869 = vmatprep.subr.mxu0 0.0
        %2870 = vmatpush1.msra.mxu0 %v2702
        %2871 = vmatprep.subr.mxu0 0.0
        %2872 = vmatpush1.msra.mxu0 %v2703
        %2873 = vmatprep.subr.mxu0 0.0
        %2874 = vmatpush1.msra.mxu0 %v2704
        %2875 = vmatprep.subr.mxu0 0.0
        %2876 = vmatpush1.msra.mxu0 %v2705
        %2877 = vmatprep.subr.mxu0 0.0
        %2878 = vmatpush1.msra.mxu0 %v2706
        %2879 = vmatprep.subr.mxu0 0.0
        %2880 = vmatpush1.msra.mxu0 %v2707
        %2881 = vmatprep.subr.mxu0 0.0
        %2882 = vmatpush1.msra.mxu0 %v2708
        %2883 = vmatprep.subr.mxu0 0.0
        %2884 = vmatpush1.msra.mxu0 %v2709
        %2885 = vmatprep.subr.mxu0 0.0
        %2886 = vmatpush1.msra.mxu0 %v2710
        %2887 = vmatprep.subr.mxu0 0.0
        %2888 = vmatpush1.msra.mxu0 %v2711
        %2889 = vmatprep.subr.mxu0 0.0
        %2890 = vmatpush1.msra.mxu0 %v2712
        %2891 = vmatprep.subr.mxu0 0.0
        %2892 = vmatpush1.msra.mxu0 %v2713
        %2893 = vmatprep.subr.mxu0 0.0
        %2894 = vmatpush1.msra.mxu0 %v2714
        %2895 = vmatprep.subr.mxu0 0.0
        %2896 = vmatpush1.msra.mxu0 %v2715
        %2897 = vmatprep.mubr.f32.mxu0 %v2589
        %2898 = vmatmul.mubr.f32.gmra.mrb[0].mxu0 %v2588
        %v2899 = vpop.f32.mrb[0].mxu0
        %v2900 = vadd.f32 %v2730, %v2899
        %v2901 = vpop.f32.mrb[0].mxu0
        %2902 = vmatprep.mubr.f32.mxu0 %v2592
        %2903 = vmatmul.mubr.f32.gmra.mrb[0].mxu0 %v2591
        %v2904 = vpop.f32.mrb[0].mxu0
        %v2905 = vadd.f32 %v2730, %v2904
        %v2906 = vpop.f32.mrb[0].mxu0
        %2907 = vmatprep.mubr.f32.mxu0 %v2595
        %2908 = vmatmul.mubr.f32.gmra.mrb[0].mxu0 %v2594
        %v2909 = vpop.f32.mrb[0].mxu0
        %v2910 = vadd.f32 %v2730, %v2909
        %v2911 = vpop.f32.mrb[0].mxu0
        %2912 = vmatprep.mubr.f32.mxu0 %v2598
        %2913 = vmatmul.mubr.f32.gmra.mrb[0].mxu0 %v2597
        %v2914 = vpop.f32.mrb[0].mxu0
        %v2915 = vadd.f32 %v2730, %v2914
        %v2916 = vpop.f32.mrb[0].mxu0
        %2917 = vmatprep.mubr.f32.mxu0 %v2601
        %2918 = vmatmul.mubr.f32.gmra.mrb[0].mxu0 %v2600
        %v2919 = vpop.f32.mrb[0].mxu0
        %v2920 = vadd.f32 %v2730, %v2919
        %v2921 = vpop.f32.mrb[0].mxu0
        %2922 = vmatprep.mubr.f32.mxu0 %v2604
        %2923 = vmatmul.mubr.f32.gmra.mrb[0].mxu0 %v2603
        %v2924 = vpop.f32.mrb[0].mxu0
        %v2925 = vadd.f32 %v2730, %v2924
        %v2926 = vpop.f32.mrb[0].mxu0
        %2927 = vmatprep.mubr.f32.mxu0 %v2607
        %2928 = vmatmul.mubr.f32.gmra.mrb[0].mxu0 %v2606
        %v2929 = vpop.f32.mrb[0].mxu0
        %v2930 = vadd.f32 %v2730, %v2929
        %v2931 = vpop.f32.mrb[0].mxu0
        %2932 = vmatprep.mubr.f32.mxu0 %v2610
        %2933 = vmatmul.mubr.f32.gmra.mrb[0].mxu0 %v2609
        %v2934 = vpop.f32.mrb[0].mxu0
        %v2935 = vadd.f32 %v2730, %v2934
        %v2936 = vpop.f32.mrb[0].mxu0
        %2937 = vmatprep.mubr.f32.mxu0 %v2613
        %2938 = vmatmul.mubr.f32.gmra.mrb[0].mxu0 %v2612
        %v2939 = vpop.f32.mrb[0].mxu0
        %v2940 = vadd.f32 %v2730, %v2939
        %v2941 = vpop.f32.mrb[0].mxu0
        %2942 = vmatprep.mubr.f32.mxu0 %v2616
        %2943 = vmatmul.mubr.f32.gmra.mrb[0].mxu0 %v2615
        %v2944 = vpop.f32.mrb[0].mxu0
        %v2945 = vadd.f32 %v2730, %v2944
        %v2946 = vpop.f32.mrb[0].mxu0
        %2947 = vmatprep.mubr.f32.mxu0 %v2619
        %2948 = vmatmul.mubr.f32.gmra.mrb[0].mxu0 %v2618
        %v2949 = vpop.f32.mrb[0].mxu0
        %v2950 = vadd.f32 %v2730, %v2949
        %v2951 = vpop.f32.mrb[0].mxu0
        %2952 = vmatprep.mubr.f32.mxu0 %v2622
        %2953 = vmatmul.mubr.f32.gmra.mrb[0].mxu0 %v2621
        %v2954 = vpop.f32.mrb[0].mxu0
        %v2955 = vadd.f32 %v2730, %v2954
        %v2956 = vpop.f32.mrb[0].mxu0
        %2957 = vmatprep.mubr.f32.mxu0 %v2625
        %2958 = vmatmul.mubr.f32.gmra.mrb[0].mxu0 %v2624
        %v2959 = vpop.f32.mrb[0].mxu0
        %v2960 = vadd.f32 %v2730, %v2959
        %v2961 = vpop.f32.mrb[0].mxu0
        %2962 = vmatprep.mubr.f32.mxu0 %v2628
        %2963 = vmatmul.mubr.f32.gmra.mrb[0].mxu0 %v2627
        %v2964 = vpop.f32.mrb[0].mxu0
        %v2965 = vadd.f32 %v2730, %v2964
        %v2966 = vpop.f32.mrb[0].mxu0
        %2967 = vmatprep.mubr.f32.mxu0 %v2631
        %2968 = vmatmul.mubr.f32.gmra.mrb[0].mxu0 %v2630
        %v2969 = vpop.f32.mrb[0].mxu0
        %v2970 = vadd.f32 %v2730, %v2969
        %v2971 = vpop.f32.mrb[0].mxu0
        %2972 = vmatprep.mubr.f32.mxu0 %v2634
        %2973 = vmatmul.mubr.f32.gmra.mrb[0].mxu0 %v2633
        %v2974 = vpop.f32.mrb[0].mxu0
        %v2975 = vadd.f32 %v2730, %v2974
        %v2976 = vpop.f32.mrb[0].mxu0
        %2977 = vmatprep.mubr.f32.mxu0 %v2637
        %2978 = vmatmul.mubr.f32.gmra.mrb[0].mxu0 %v2636
        %v2979 = vpop.f32.mrb[0].mxu0
        %v2980 = vadd.f32 %v2730, %v2979
        %v2981 = vpop.f32.mrb[0].mxu0
        %2982 = vmatprep.mubr.f32.mxu0 %v2640
        %2983 = vmatmul.mubr.f32.gmra.mrb[0].mxu0 %v2639
        %v2984 = vpop.f32.mrb[0].mxu0
        %v2985 = vadd.f32 %v2730, %v2984
        %v2986 = vpop.f32.mrb[0].mxu0
        %2987 = vmatprep.mubr.f32.mxu0 %v2643
        %2988 = vmatmul.mubr.f32.gmra.mrb[0].mxu0 %v2642
        %v2989 = vpop.f32.mrb[0].mxu0
        %v2990 = vadd.f32 %v2730, %v2989
        %v2991 = vpop.f32.mrb[0].mxu0
        %2992 = vmatprep.mubr.f32.mxu0 %v2646
        %2993 = vmatmul.mubr.f32.gmra.mrb[0].mxu0 %v2645
        %v2994 = vpop.f32.mrb[0].mxu0
        %v2995 = vadd.f32 %v2730, %v2994
        %v2996 = vpop.f32.mrb[0].mxu0
        %2997 = vmatprep.mubr.f32.mxu0 %v2649
        %2998 = vmatmul.mubr.f32.gmra.mrb[0].mxu0 %v2648
        %v2999 = vpop.f32.mrb[0].mxu0
        %v3000 = vadd.f32 %v2730, %v2999
        %v3001 = vpop.f32.mrb[0].mxu0
        %3002 = vmatprep.mubr.f32.mxu0 %v2652
        %3003 = vmatmul.mubr.f32.gmra.mrb[0].mxu0 %v2651
        %v3004 = vpop.f32.mrb[0].mxu0
        %v3005 = vadd.f32 %v2730, %v3004
        %v3006 = vpop.f32.mrb[0].mxu0
        %3007 = vmatprep.mubr.f32.mxu0 %v2655
        %3008 = vmatmul.mubr.f32.gmra.mrb[0].mxu0 %v2654
        %v3009 = vpop.f32.mrb[0].mxu0
        %v3010 = vadd.f32 %v2730, %v3009
        %v3011 = vpop.f32.mrb[0].mxu0
        %3012 = vmatprep.mubr.f32.mxu0 %v2658
        %3013 = vmatmul.mubr.f32.gmra.mrb[0].mxu0 %v2657
        %v3014 = vpop.f32.mrb[0].mxu0
        %v3015 = vadd.f32 %v2730, %v3014
        %v3016 = vpop.f32.mrb[0].mxu0
        %3017 = vmatprep.mubr.f32.mxu0 %v2661
        %3018 = vmatmul.mubr.f32.gmra.mrb[0].mxu0 %v2660
        %v3019 = vpop.f32.mrb[0].mxu0
        %v3020 = vadd.f32 %v2730, %v3019
        %v3021 = vpop.f32.mrb[0].mxu0
        %3022 = vmatprep.mubr.f32.mxu0 %v2664
        %3023 = vmatmul.mubr.f32.gmra.mrb[0].mxu0 %v2663
        %v3024 = vpop.f32.mrb[0].mxu0
        %v3025 = vadd.f32 %v2730, %v3024
        %v3026 = vpop.f32.mrb[0].mxu0
        %3027 = vmatprep.mubr.f32.mxu0 %v2667
        %3028 = vmatmul.mubr.f32.gmra.mrb[0].mxu0 %v2666
        %v3029 = vpop.f32.mrb[0].mxu0
        %v3030 = vadd.f32 %v2730, %v3029
        %v3031 = vpop.f32.mrb[0].mxu0
        %3032 = vmatprep.mubr.f32.mxu0 %v2670
        %3033 = vmatmul.mubr.f32.gmra.mrb[0].mxu0 %v2669
        %v3034 = vpop.f32.mrb[0].mxu0
        %v3035 = vadd.f32 %v2730, %v3034
        %v3036 = vpop.f32.mrb[0].mxu0
        %3037 = vmatprep.mubr.f32.mxu0 %v2673
        %3038 = vmatmul.mubr.f32.gmra.mrb[0].mxu0 %v2672
        %v3039 = vpop.f32.mrb[0].mxu0
        %v3040 = vadd.f32 %v2730, %v3039
        %v3041 = vpop.f32.mrb[0].mxu0
        %3042 = vmatprep.mubr.f32.mxu0 %v2676
        %3043 = vmatmul.mubr.f32.gmra.mrb[0].mxu0 %v2675
        %v3044 = vpop.f32.mrb[0].mxu0
        %v3045 = vadd.f32 %v2730, %v3044
        %v3046 = vpop.f32.mrb[0].mxu0
        %3047 = vmatprep.mubr.f32.mxu0 %v2679
        %3048 = vmatmul.mubr.f32.gmra.mrb[0].mxu0 %v2678
        %v3049 = vpop.f32.mrb[0].mxu0
        %v3050 = vadd.f32 %v2730, %v3049
        %v3051 = vpop.f32.mrb[0].mxu0
        %3052 = vmatprep.mubr.f32.mxu0 %v2682
        %3053 = vmatmul.mubr.f32.gmra.mrb[0].mxu0 %v2681
        %v3054 = vpop.f32.mrb[0].mxu0
        %v3055 = vadd.f32 %v2730, %v3054
        %v3056 = vpop.f32.mrb[0].mxu0
        %3057 = vdwg.mxu0
        %3058 = vmatprep.subr.mxu0 0.0
        %3059 = vmatpush1.msra.mxu0 %v2716
        %3060 = vmatprep.subr.mxu0 0.0
        %3061 = vmatpush1.msra.mxu0 %v2717
        %3062 = vmatprep.subr.mxu0 0.0
        %3063 = vmatpush1.msra.mxu0 %v2718
        %3064 = vmatprep.subr.mxu0 0.0
        %3065 = vmatpush1.msra.mxu0 %v2719
        %3066 = vmatprep.subr.mxu0 0.0
        %3067 = vmatpush1.msra.mxu0 %v2720
        %3068 = vmatprep.subr.mxu0 0.0
        %3069 = vmatpush1.msra.mxu0 %v2721
        %3070 = vmatprep.subr.mxu0 0.0
        %3071 = vmatpush1.msra.mxu0 %v2722
        %3072 = vmatprep.subr.mxu0 0.0
        %3073 = vmatpush1.msra.mxu0 %v2723
        %3074 = vmatprep.subr.mxu0 0.0
        %3075 = vmatpush1.msra.mxu0 %v2831
        %3076 = vmatprep.subr.mxu0 0.0
        %3077 = vmatpush1.msra.mxu0 0.0
        %3078 = vmatprep.subr.mxu0 0.0
        %3079 = vmatpush1.msra.mxu0 0.0
        %3080 = vmatprep.subr.mxu0 0.0
        %3081 = vmatpush1.msra.mxu0 0.0
        %3082 = vmatprep.subr.mxu0 0.0
        %3083 = vmatpush1.msra.mxu0 0.0
        %3084 = vmatprep.subr.mxu0 0.0
        %3085 = vmatpush1.msra.mxu0 0.0
        %3086 = vmatprep.subr.mxu0 0.0
        %3087 = vmatpush1.msra.mxu0 0.0
        %3088 = vmatprep.subr.mxu0 0.0
        %3089 = vmatpush1.msra.mxu0 0.0
        %3090 = vmatprep.subr.mxu0 0.0
        %3091 = vmatpush1.msra.mxu0 0.0
        %3092 = vmatprep.subr.mxu0 0.0
        %3093 = vmatpush1.msra.mxu0 0.0
        %3094 = vmatprep.subr.mxu0 0.0
        %3095 = vmatpush1.msra.mxu0 0.0
        %3096 = vmatprep.subr.mxu0 0.0
        %3097 = vmatpush1.msra.mxu0 0.0
        %3098 = vmatprep.subr.mxu0 0.0
        %3099 = vmatpush1.msra.mxu0 0.0
        %3100 = vmatprep.subr.mxu0 0.0
        %3101 = vmatpush1.msra.mxu0 0.0
        %3102 = vmatprep.subr.mxu0 0.0
        %3103 = vmatpush1.msra.mxu0 0.0
        %3104 = vmatprep.subr.mxu0 0.0
        %3105 = vmatpush1.msra.mxu0 0.0
        %3106 = vmatprep.subr.mxu0 0.0
        %3107 = vmatpush1.msra.mxu0 0.0
        %3108 = vmatprep.subr.mxu0 0.0
        %3109 = vmatpush1.msra.mxu0 0.0
        %3110 = vmatprep.subr.mxu0 0.0
        %3111 = vmatpush1.msra.mxu0 0.0
        %3112 = vmatprep.subr.mxu0 0.0
        %3113 = vmatpush1.msra.mxu0 0.0
        %3114 = vmatprep.subr.mxu0 0.0
        %3115 = vmatpush1.msra.mxu0 0.0
        %3116 = vmatprep.subr.mxu0 0.0
        %3117 = vmatpush1.msra.mxu0 0.0
        %3118 = vmatprep.subr.mxu0 0.0
        %3119 = vmatpush1.msra.mxu0 0.0
        %3120 = vmatprep.subr.mxu0 0.0
        %3121 = vmatpush1.msra.mxu0 0.0
        %3122 = vmatprep.mubr.f32.mxu0 0.0
        %3123 = vmatmul.mubr.f32.gmra.mrb[0].mxu0 %v2734
        %v3124 = vpop.f32.mrb[0].mxu0
        %v3125 = vadd.f32 %v2900, %v3124
        %v3126 = vpop.f32.mrb[0].mxu0
        %3127 = vmatprep.mubr.f32.mxu0 0.0
        %3128 = vmatmul.mubr.f32.gmra.mrb[0].mxu0 %v2737
        %v3129 = vpop.f32.mrb[0].mxu0
        %v3130 = vadd.f32 %v2905, %v3129
        %v3131 = vpop.f32.mrb[0].mxu0
        %3132 = vmatprep.mubr.f32.mxu0 0.0
        %3133 = vmatmul.mubr.f32.gmra.mrb[0].mxu0 %v2740
        %v3134 = vpop.f32.mrb[0].mxu0
        %v3135 = vadd.f32 %v2910, %v3134
        %v3136 = vpop.f32.mrb[0].mxu0
        %3137 = vmatprep.mubr.f32.mxu0 0.0
        %3138 = vmatmul.mubr.f32.gmra.mrb[0].mxu0 %v2743
        %v3139 = vpop.f32.mrb[0].mxu0
        %v3140 = vadd.f32 %v2915, %v3139
        %v3141 = vpop.f32.mrb[0].mxu0
        %3142 = vmatprep.mubr.f32.mxu0 0.0
        %3143 = vmatmul.mubr.f32.gmra.mrb[0].mxu0 %v2746
        %v3144 = vpop.f32.mrb[0].mxu0
        %v3145 = vadd.f32 %v2920, %v3144
        %v3146 = vpop.f32.mrb[0].mxu0
        %3147 = vmatprep.mubr.f32.mxu0 0.0
        %3148 = vmatmul.mubr.f32.gmra.mrb[0].mxu0 %v2749
        %v3149 = vpop.f32.mrb[0].mxu0
        %v3150 = vadd.f32 %v2925, %v3149
        %v3151 = vpop.f32.mrb[0].mxu0
        %3152 = vmatprep.mubr.f32.mxu0 0.0
        %3153 = vmatmul.mubr.f32.gmra.mrb[0].mxu0 %v2752
        %v3154 = vpop.f32.mrb[0].mxu0
        %v3155 = vadd.f32 %v2930, %v3154
        %v3156 = vpop.f32.mrb[0].mxu0
        %3157 = vmatprep.mubr.f32.mxu0 0.0
        %3158 = vmatmul.mubr.f32.gmra.mrb[0].mxu0 %v2755
        %v3159 = vpop.f32.mrb[0].mxu0
        %v3160 = vadd.f32 %v2935, %v3159
        %v3161 = vpop.f32.mrb[0].mxu0
        %3162 = vmatprep.mubr.f32.mxu0 0.0
        %3163 = vmatmul.mubr.f32.gmra.mrb[0].mxu0 %v2758
        %v3164 = vpop.f32.mrb[0].mxu0
        %v3165 = vadd.f32 %v2940, %v3164
        %v3166 = vpop.f32.mrb[0].mxu0
        %3167 = vmatprep.mubr.f32.mxu0 0.0
        %3168 = vmatmul.mubr.f32.gmra.mrb[0].mxu0 %v2761
        %v3169 = vpop.f32.mrb[0].mxu0
        %v3170 = vadd.f32 %v2945, %v3169
        %v3171 = vpop.f32.mrb[0].mxu0
        %3172 = vmatprep.mubr.f32.mxu0 0.0
        %3173 = vmatmul.mubr.f32.gmra.mrb[0].mxu0 %v2764
        %v3174 = vpop.f32.mrb[0].mxu0
        %v3175 = vadd.f32 %v2950, %v3174
        %v3176 = vpop.f32.mrb[0].mxu0
        %3177 = vmatprep.mubr.f32.mxu0 0.0
        %3178 = vmatmul.mubr.f32.gmra.mrb[0].mxu0 %v2767
        %v3179 = vpop.f32.mrb[0].mxu0
        %v3180 = vadd.f32 %v2955, %v3179
        %v3181 = vpop.f32.mrb[0].mxu0
        %3182 = vmatprep.mubr.f32.mxu0 0.0
        %3183 = vmatmul.mubr.f32.gmra.mrb[0].mxu0 %v2770
        %v3184 = vpop.f32.mrb[0].mxu0
        %v3185 = vadd.f32 %v2960, %v3184
        %v3186 = vpop.f32.mrb[0].mxu0
        %3187 = vmatprep.mubr.f32.mxu0 0.0
        %3188 = vmatmul.mubr.f32.gmra.mrb[0].mxu0 %v2773
        %v3189 = vpop.f32.mrb[0].mxu0
        %v3190 = vadd.f32 %v2965, %v3189
        %v3191 = vpop.f32.mrb[0].mxu0
        %3192 = vmatprep.mubr.f32.mxu0 0.0
        %3193 = vmatmul.mubr.f32.gmra.mrb[0].mxu0 %v2776
        %v3194 = vpop.f32.mrb[0].mxu0
        %v3195 = vadd.f32 %v2970, %v3194
        %v3196 = vpop.f32.mrb[0].mxu0
        %3197 = vmatprep.mubr.f32.mxu0 0.0
        %3198 = vmatmul.mubr.f32.gmra.mrb[0].mxu0 %v2779
        %v3199 = vpop.f32.mrb[0].mxu0
        %v3200 = vadd.f32 %v2975, %v3199
        %v3201 = vpop.f32.mrb[0].mxu0
        %3202 = vmatprep.mubr.f32.mxu0 0.0
        %3203 = vmatmul.mubr.f32.gmra.mrb[0].mxu0 %v2782
        %v3204 = vpop.f32.mrb[0].mxu0
        %v3205 = vadd.f32 %v2980, %v3204
        %v3206 = vpop.f32.mrb[0].mxu0
        %3207 = vmatprep.mubr.f32.mxu0 0.0
        %3208 = vmatmul.mubr.f32.gmra.mrb[0].mxu0 %v2785
        %v3209 = vpop.f32.mrb[0].mxu0
        %v3210 = vadd.f32 %v2985, %v3209
        %v3211 = vpop.f32.mrb[0].mxu0
        %3212 = vmatprep.mubr.f32.mxu0 0.0
        %3213 = vmatmul.mubr.f32.gmra.mrb[0].mxu0 %v2788
        %v3214 = vpop.f32.mrb[0].mxu0
        %v3215 = vadd.f32 %v2990, %v3214
        %v3216 = vpop.f32.mrb[0].mxu0
        %3217 = vmatprep.mubr.f32.mxu0 0.0
        %3218 = vmatmul.mubr.f32.gmra.mrb[0].mxu0 %v2791
        %v3219 = vpop.f32.mrb[0].mxu0
        %v3220 = vadd.f32 %v2995, %v3219
        %v3221 = vpop.f32.mrb[0].mxu0
        %3222 = vmatprep.mubr.f32.mxu0 0.0
        %3223 = vmatmul.mubr.f32.gmra.mrb[0].mxu0 %v2794
        %v3224 = vpop.f32.mrb[0].mxu0
        %v3225 = vadd.f32 %v3000, %v3224
        %v3226 = vpop.f32.mrb[0].mxu0
        %3227 = vmatprep.mubr.f32.mxu0 0.0
        %3228 = vmatmul.mubr.f32.gmra.mrb[0].mxu0 %v2797
        %v3229 = vpop.f32.mrb[0].mxu0
        %v3230 = vadd.f32 %v3005, %v3229
        %v3231 = vpop.f32.mrb[0].mxu0
        %3232 = vmatprep.mubr.f32.mxu0 0.0
        %3233 = vmatmul.mubr.f32.gmra.mrb[0].mxu0 %v2800
        %v3234 = vpop.f32.mrb[0].mxu0
        %v3235 = vadd.f32 %v3010, %v3234
        %v3236 = vpop.f32.mrb[0].mxu0
        %3237 = vmatprep.mubr.f32.mxu0 0.0
        %3238 = vmatmul.mubr.f32.gmra.mrb[0].mxu0 %v2803
        %v3239 = vpop.f32.mrb[0].mxu0
        %v3240 = vadd.f32 %v3015, %v3239
        %v3241 = vpop.f32.mrb[0].mxu0
        %3242 = vmatprep.mubr.f32.mxu0 0.0
        %3243 = vmatmul.mubr.f32.gmra.mrb[0].mxu0 %v2806
        %v3244 = vpop.f32.mrb[0].mxu0
        %v3245 = vadd.f32 %v3020, %v3244
        %v3246 = vpop.f32.mrb[0].mxu0
        %3247 = vmatprep.mubr.f32.mxu0 0.0
        %3248 = vmatmul.mubr.f32.gmra.mrb[0].mxu0 %v2809
        %v3249 = vpop.f32.mrb[0].mxu0
        %v3250 = vadd.f32 %v3025, %v3249
        %v3251 = vpop.f32.mrb[0].mxu0
        %3252 = vmatprep.mubr.f32.mxu0 0.0
        %3253 = vmatmul.mubr.f32.gmra.mrb[0].mxu0 %v2812
        %v3254 = vpop.f32.mrb[0].mxu0
        %v3255 = vadd.f32 %v3030, %v3254
        %v3256 = vpop.f32.mrb[0].mxu0
        %3257 = vmatprep.mubr.f32.mxu0 0.0
        %3258 = vmatmul.mubr.f32.gmra.mrb[0].mxu0 %v2815
        %v3259 = vpop.f32.mrb[0].mxu0
        %v3260 = vadd.f32 %v3035, %v3259
        %v3261 = vpop.f32.mrb[0].mxu0
        %3262 = vmatprep.mubr.f32.mxu0 0.0
        %3263 = vmatmul.mubr.f32.gmra.mrb[0].mxu0 %v2818
        %v3264 = vpop.f32.mrb[0].mxu0
        %v3265 = vadd.f32 %v3040, %v3264
        %v3266 = vpop.f32.mrb[0].mxu0
        %3267 = vmatprep.mubr.f32.mxu0 0.0
        %3268 = vmatmul.mubr.f32.gmra.mrb[0].mxu0 %v2821
        %v3269 = vpop.f32.mrb[0].mxu0
        %v3270 = vadd.f32 %v3045, %v3269
        %v3271 = vpop.f32.mrb[0].mxu0
        %3272 = vmatprep.mubr.f32.mxu0 0.0
        %3273 = vmatmul.mubr.f32.gmra.mrb[0].mxu0 %v2824
        %v3274 = vpop.f32.mrb[0].mxu0
        %v3275 = vadd.f32 %v3050, %v3274
        %v3276 = vpop.f32.mrb[0].mxu0
        %3277 = vmatprep.mubr.f32.mxu0 0.0
        %3278 = vmatmul.mubr.f32.gmra.mrb[0].mxu0 %v2827
        %v3279 = vpop.f32.mrb[0].mxu0
        %v3280 = vadd.f32 %v3055, %v3279
        %v3281 = vpop.f32.mrb[0].mxu0
        %3282 = vdwg.mxu0
        %v3283 = vxor.u32 %v3125, 2147483648
        %v3284 = vxor.u32 %v3130, 2147483648
        %v3285 = vxor.u32 %v3135, 2147483648
        %v3286 = vxor.u32 %v3140, 2147483648
        %v3287 = vxor.u32 %v3145, 2147483648
        %v3288 = vxor.u32 %v3150, 2147483648
        %v3289 = vxor.u32 %v3155, 2147483648
        %v3290 = vxor.u32 %v3160, 2147483648
        %v3291 = vxor.u32 %v3165, 2147483648
        %v3292 = vxor.u32 %v3170, 2147483648
        %v3293 = vxor.u32 %v3175, 2147483648
        %v3294 = vxor.u32 %v3180, 2147483648
        %v3295 = vxor.u32 %v3185, 2147483648
        %v3296 = vxor.u32 %v3190, 2147483648
        %v3297 = vxor.u32 %v3195, 2147483648
        %v3298 = vxor.u32 %v3200, 2147483648
        %v3299 = vxor.u32 %v3205, 2147483648
        %v3300 = vxor.u32 %v3210, 2147483648
        %v3301 = vxor.u32 %v3215, 2147483648
        %v3302 = vxor.u32 %v3220, 2147483648
        %v3303 = vxor.u32 %v3225, 2147483648
        %v3304 = vxor.u32 %v3230, 2147483648
        %v3305 = vxor.u32 %v3235, 2147483648
        %v3306 = vxor.u32 %v3240, 2147483648
        %v3307 = vxor.u32 %v3245, 2147483648
        %v3308 = vxor.u32 %v3250, 2147483648
        %v3309 = vxor.u32 %v3255, 2147483648
        %v3310 = vxor.u32 %v3260, 2147483648
        %v3311 = vxor.u32 %v3265, 2147483648
        %v3312 = vxor.u32 %v3270, 2147483648
        %v3313 = vxor.u32 %v3275, 2147483648
        %v3314 = vxor.u32 %v3280, 2147483648
        %v3315 = vmul.f32 %v3283, 1.442695
        %v3316 = vpow.pop %v3315
        %v3317 = vmul.f32 %v3284, 1.442695
        %v3318 = vpow.pop %v3317
        %v3319 = vmul.f32 %v3285, 1.442695
        %v3320 = vpow.pop %v3319
        %v3321 = vmul.f32 %v3286, 1.442695
        %v3322 = vpow.pop %v3321
        %v3323 = vmul.f32 %v3287, 1.442695
        %v3324 = vpow.pop %v3323
        %v3325 = vmul.f32 %v3288, 1.442695
        %v3326 = vpow.pop %v3325
        %v3327 = vmul.f32 %v3289, 1.442695
        %v3328 = vpow.pop %v3327
        %v3329 = vmul.f32 %v3290, 1.442695
        %v3330 = vpow.pop %v3329
        %v3331 = vmul.f32 %v3291, 1.442695
        %v3332 = vpow.pop %v3331
        %v3333 = vmul.f32 %v3292, 1.442695
        %v3334 = vpow.pop %v3333
        %v3335 = vmul.f32 %v3293, 1.442695
        %v3336 = vpow.pop %v3335
        %v3337 = vmul.f32 %v3294, 1.442695
        %v3338 = vpow.pop %v3337
        %v3339 = vmul.f32 %v3295, 1.442695
        %v3340 = vpow.pop %v3339
        %v3341 = vmul.f32 %v3296, 1.442695
        %v3342 = vpow.pop %v3341
        %v3343 = vmul.f32 %v3297, 1.442695
        %v3344 = vpow.pop %v3343
        %v3345 = vmul.f32 %v3298, 1.442695
        %v3346 = vpow.pop %v3345
        %v3347 = vmul.f32 %v3299, 1.442695
        %v3348 = vpow.pop %v3347
        %v3349 = vmul.f32 %v3300, 1.442695
        %v3350 = vpow.pop %v3349
        %v3351 = vmul.f32 %v3301, 1.442695
        %v3352 = vpow.pop %v3351
        %v3353 = vmul.f32 %v3302, 1.442695
        %v3354 = vpow.pop %v3353
        %v3355 = vmul.f32 %v3303, 1.442695
        %v3356 = vpow.pop %v3355
        %v3357 = vmul.f32 %v3304, 1.442695
        %v3358 = vpow.pop %v3357
        %v3359 = vmul.f32 %v3305, 1.442695
        %v3360 = vpow.pop %v3359
        %v3361 = vmul.f32 %v3306, 1.442695
        %v3362 = vpow.pop %v3361
        %v3363 = vmul.f32 %v3307, 1.442695
        %v3364 = vpow.pop %v3363
        %v3365 = vmul.f32 %v3308, 1.442695
        %v3366 = vpow.pop %v3365
        %v3367 = vmul.f32 %v3309, 1.442695
        %v3368 = vpow.pop %v3367
        %v3369 = vmul.f32 %v3310, 1.442695
        %v3370 = vpow.pop %v3369
        %v3371 = vmul.f32 %v3311, 1.442695
        %v3372 = vpow.pop %v3371
        %v3373 = vmul.f32 %v3312, 1.442695
        %v3374 = vpow.pop %v3373
        %v3375 = vmul.f32 %v3313, 1.442695
        %v3376 = vpow.pop %v3375
        %v3377 = vmul.f32 %v3314, 1.442695
        %v3378 = vpow.pop %v3377
        %v3379 = vadd.f32 %v3316, 1.0
        %v3380 = vadd.f32 %v3318, 1.0
        %v3381 = vadd.f32 %v3320, 1.0
        %v3382 = vadd.f32 %v3322, 1.0
        %v3383 = vadd.f32 %v3324, 1.0
        %v3384 = vadd.f32 %v3326, 1.0
        %v3385 = vadd.f32 %v3328, 1.0
        %v3386 = vadd.f32 %v3330, 1.0
        %v3387 = vadd.f32 %v3332, 1.0
        %v3388 = vadd.f32 %v3334, 1.0
        %v3389 = vadd.f32 %v3336, 1.0
        %v3390 = vadd.f32 %v3338, 1.0
        %v3391 = vadd.f32 %v3340, 1.0
        %v3392 = vadd.f32 %v3342, 1.0
        %v3393 = vadd.f32 %v3344, 1.0
        %v3394 = vadd.f32 %v3346, 1.0
        %v3395 = vadd.f32 %v3348, 1.0
        %v3396 = vadd.f32 %v3350, 1.0
        %v3397 = vadd.f32 %v3352, 1.0
        %v3398 = vadd.f32 %v3354, 1.0
        %v3399 = vadd.f32 %v3356, 1.0
        %v3400 = vadd.f32 %v3358, 1.0
        %v3401 = vadd.f32 %v3360, 1.0
        %v3402 = vadd.f32 %v3362, 1.0
        %v3403 = vadd.f32 %v3364, 1.0
        %v3404 = vadd.f32 %v3366, 1.0
        %v3405 = vadd.f32 %v3368, 1.0
        %v3406 = vadd.f32 %v3370, 1.0
        %v3407 = vadd.f32 %v3372, 1.0
        %v3408 = vadd.f32 %v3374, 1.0
        %v3409 = vadd.f32 %v3376, 1.0
        %v3410 = vadd.f32 %v3378, 1.0
        %v3411 = vrcp.pop %v3379
        %v3412 = vmul.f32 1.0, %v3411
        %v3413 = vrcp.pop %v3380
        %v3414 = vmul.f32 1.0, %v3413
        %v3415 = vrcp.pop %v3381
        %v3416 = vmul.f32 1.0, %v3415
        %v3417 = vrcp.pop %v3382
        %v3418 = vmul.f32 1.0, %v3417
        %v3419 = vrcp.pop %v3383
        %v3420 = vmul.f32 1.0, %v3419
        %v3421 = vrcp.pop %v3384
        %v3422 = vmul.f32 1.0, %v3421
        %v3423 = vrcp.pop %v3385
        %v3424 = vmul.f32 1.0, %v3423
        %v3425 = vrcp.pop %v3386
        %v3426 = vmul.f32 1.0, %v3425
        %v3427 = vrcp.pop %v3387
        %v3428 = vmul.f32 1.0, %v3427
        %v3429 = vrcp.pop %v3388
        %v3430 = vmul.f32 1.0, %v3429
        %v3431 = vrcp.pop %v3389
        %v3432 = vmul.f32 1.0, %v3431
        %v3433 = vrcp.pop %v3390
        %v3434 = vmul.f32 1.0, %v3433
        %v3435 = vrcp.pop %v3391
        %v3436 = vmul.f32 1.0, %v3435
        %v3437 = vrcp.pop %v3392
        %v3438 = vmul.f32 1.0, %v3437
        %v3439 = vrcp.pop %v3393
        %v3440 = vmul.f32 1.0, %v3439
        %v3441 = vrcp.pop %v3394
        %v3442 = vmul.f32 1.0, %v3441
        %v3443 = vrcp.pop %v3395
        %v3444 = vmul.f32 1.0, %v3443
        %v3445 = vrcp.pop %v3396
        %v3446 = vmul.f32 1.0, %v3445
        %v3447 = vrcp.pop %v3397
        %v3448 = vmul.f32 1.0, %v3447
        %v3449 = vrcp.pop %v3398
        %v3450 = vmul.f32 1.0, %v3449
        %v3451 = vrcp.pop %v3399
        %v3452 = vmul.f32 1.0, %v3451
        %v3453 = vrcp.pop %v3400
        %v3454 = vmul.f32 1.0, %v3453
        %v3455 = vrcp.pop %v3401
        %v3456 = vmul.f32 1.0, %v3455
        %v3457 = vrcp.pop %v3402
        %v3458 = vmul.f32 1.0, %v3457
        %v3459 = vrcp.pop %v3403
        %v3460 = vmul.f32 1.0, %v3459
        %v3461 = vrcp.pop %v3404
        %v3462 = vmul.f32 1.0, %v3461
        %v3463 = vrcp.pop %v3405
        %v3464 = vmul.f32 1.0, %v3463
        %v3465 = vrcp.pop %v3406
        %v3466 = vmul.f32 1.0, %v3465
        %v3467 = vrcp.pop %v3407
        %v3468 = vmul.f32 1.0, %v3467
        %v3469 = vrcp.pop %v3408
        %v3470 = vmul.f32 1.0, %v3469
        %v3471 = vrcp.pop %v3409
        %v3472 = vmul.f32 1.0, %v3471
        %v3473 = vrcp.pop %v3410
        %v3474 = vmul.f32 1.0, %v3473
        %v3475 = vtanh.pop %v3125
        %v3476 = vtanh.pop %v3130
        %v3477 = vtanh.pop %v3135
        %v3478 = vtanh.pop %v3140
        %v3479 = vtanh.pop %v3145
        %v3480 = vtanh.pop %v3150
        %v3481 = vtanh.pop %v3155
        %v3482 = vtanh.pop %v3160
        %v3483 = vtanh.pop %v3165
        %v3484 = vtanh.pop %v3170
        %v3485 = vtanh.pop %v3175
        %v3486 = vtanh.pop %v3180
        %v3487 = vtanh.pop %v3185
        %v3488 = vtanh.pop %v3190
        %v3489 = vtanh.pop %v3195
        %v3490 = vtanh.pop %v3200
        %v3491 = vtanh.pop %v3205
        %v3492 = vtanh.pop %v3210
        %v3493 = vtanh.pop %v3215
        %v3494 = vtanh.pop %v3220
        %v3495 = vtanh.pop %v3225
        %v3496 = vtanh.pop %v3230
        %v3497 = vtanh.pop %v3235
        %v3498 = vtanh.pop %v3240
        %v3499 = vtanh.pop %v3245
        %v3500 = vtanh.pop %v3250
        %v3501 = vtanh.pop %v3255
        %v3502 = vtanh.pop %v3260
        %v3503 = vtanh.pop %v3265
        %v3504 = vtanh.pop %v3270
        %v3505 = vtanh.pop %v3275
        %v3506 = vtanh.pop %v3280
        %v3507 = vld [vmem:[%s577] sm:$0xff]
        %v3508 = vld [vmem:[%s577 + $0x8] sm:$0xff]
        %v3509 = vld [vmem:[%s577 + $0x10] sm:$0xff]
        %v3510 = vld [vmem:[%s577 + $0x18] sm:$0xff]
        %v3511 = vld [vmem:[%s577 + $0x20] sm:$0xff]
        %v3512 = vld [vmem:[%s577 + $0x28] sm:$0xff]
        %v3513 = vld [vmem:[%s577 + $0x30] sm:$0xff]
        %v3514 = vld [vmem:[%s577 + $0x38] sm:$0xff]
        %v3515 = vld [vmem:[%s577 + $0x40] sm:$0xff]
        %v3516 = vld [vmem:[%s577 + $0x48] sm:$0xff]
        %v3517 = vld [vmem:[%s577 + $0x50] sm:$0xff]
        %v3518 = vld [vmem:[%s577 + $0x58] sm:$0xff]
        %v3519 = vld [vmem:[%s577 + $0x60] sm:$0xff]
        %v3520 = vld [vmem:[%s577 + $0x68] sm:$0xff]
        %v3521 = vld [vmem:[%s577 + $0x70] sm:$0xff]
        %v3522 = vld [vmem:[%s577 + $0x78] sm:$0xff]
        %v3523 = vld [vmem:[%s577 + $0x80] sm:$0xff]
        %v3524 = vld [vmem:[%s577 + $0x88] sm:$0xff]
        %v3525 = vld [vmem:[%s577 + $0x90] sm:$0xff]
        %v3526 = vld [vmem:[%s577 + $0x98] sm:$0xff]
        %v3527 = vld [vmem:[%s577 + $0xa0] sm:$0xff]
        %v3528 = vld [vmem:[%s577 + $0xa8] sm:$0xff]
        %v3529 = vld [vmem:[%s577 + $0xb0] sm:$0xff]
        %v3530 = vld [vmem:[%s577 + $0xb8] sm:$0xff]
        %v3531 = vld [vmem:[%s577 + $0xc0] sm:$0xff]
        %v3532 = vld [vmem:[%s577 + $0xc8] sm:$0xff]
        %v3533 = vld [vmem:[%s577 + $0xd0] sm:$0xff]
        %v3534 = vld [vmem:[%s577 + $0xd8] sm:$0xff]
        %v3535 = vld [vmem:[%s577 + $0xe0] sm:$0xff]
        %v3536 = vld [vmem:[%s577 + $0xe8] sm:$0xff]
        %v3537 = vld [vmem:[%s577 + $0xf0] sm:$0xff]
        %v3538 = vld [vmem:[%s577 + $0xf8] sm:$0xff]
        %3571 = vrot.lane.b32.xlu0 %v3507, 32
        %v3572 = vpop.permute.xlu0 %3571
        %3573 = vrot.lane.b32.xlu0 %v3508, 32
        %v3574 = vpop.permute.xlu0 %3573
        %3575 = vrot.lane.b32.xlu0 %v3509, 32
        %v3576 = vpop.permute.xlu0 %3575
        %3577 = vrot.lane.b32.xlu0 %v3510, 32
        %v3578 = vpop.permute.xlu0 %3577
        %3579 = vrot.lane.b32.xlu0 %v3511, 32
        %v3580 = vpop.permute.xlu0 %3579
        %3581 = vrot.lane.b32.xlu0 %v3512, 32
        %v3582 = vpop.permute.xlu0 %3581
        %3583 = vrot.lane.b32.xlu0 %v3513, 32
        %v3584 = vpop.permute.xlu0 %3583
        %3585 = vrot.lane.b32.xlu0 %v3514, 32
        %v3586 = vpop.permute.xlu0 %3585
        %3587 = vrot.lane.b32.xlu0 %v3515, 32
        %v3588 = vpop.permute.xlu0 %3587
        %3589 = vrot.lane.b32.xlu0 %v3516, 32
        %v3590 = vpop.permute.xlu0 %3589
        %3591 = vrot.lane.b32.xlu0 %v3517, 32
        %v3592 = vpop.permute.xlu0 %3591
        %3593 = vrot.lane.b32.xlu0 %v3518, 32
        %v3594 = vpop.permute.xlu0 %3593
        %3595 = vrot.lane.b32.xlu0 %v3519, 32
        %v3596 = vpop.permute.xlu0 %3595
        %3597 = vrot.lane.b32.xlu0 %v3520, 32
        %v3598 = vpop.permute.xlu0 %3597
        %3599 = vrot.lane.b32.xlu0 %v3521, 32
        %v3600 = vpop.permute.xlu0 %3599
        %3601 = vrot.lane.b32.xlu0 %v3522, 32
        %v3602 = vpop.permute.xlu0 %3601
        %3603 = vrot.lane.b32.xlu0 %v3523, 32
        %v3604 = vpop.permute.xlu0 %3603
        %3605 = vrot.lane.b32.xlu0 %v3524, 32
        %v3606 = vpop.permute.xlu0 %3605
        %3607 = vrot.lane.b32.xlu0 %v3525, 32
        %v3608 = vpop.permute.xlu0 %3607
        %3609 = vrot.lane.b32.xlu0 %v3526, 32
        %v3610 = vpop.permute.xlu0 %3609
        %3611 = vrot.lane.b32.xlu0 %v3527, 32
        %v3612 = vpop.permute.xlu0 %3611
        %3613 = vrot.lane.b32.xlu0 %v3528, 32
        %v3614 = vpop.permute.xlu0 %3613
        %3615 = vrot.lane.b32.xlu0 %v3529, 32
        %v3616 = vpop.permute.xlu0 %3615
        %3617 = vrot.lane.b32.xlu0 %v3530, 32
        %v3618 = vpop.permute.xlu0 %3617
        %3619 = vrot.lane.b32.xlu0 %v3531, 32
        %v3620 = vpop.permute.xlu0 %3619
        %3621 = vrot.lane.b32.xlu0 %v3532, 32
        %v3622 = vpop.permute.xlu0 %3621
        %3623 = vrot.lane.b32.xlu0 %v3533, 32
        %v3624 = vpop.permute.xlu0 %3623
        %3625 = vrot.lane.b32.xlu0 %v3534, 32
        %v3626 = vpop.permute.xlu0 %3625
        %3627 = vrot.lane.b32.xlu0 %v3535, 32
        %v3628 = vpop.permute.xlu0 %3627
        %3629 = vrot.lane.b32.xlu0 %v3536, 32
        %v3630 = vpop.permute.xlu0 %3629
        %3631 = vrot.lane.b32.xlu0 %v3537, 32
        %v3632 = vpop.permute.xlu0 %3631
        %3633 = vrot.lane.b32.xlu0 %v3538, 32
        %v3634 = vpop.permute.xlu0 %3633
        %v3667 = vmul.f32 %v3412, %v3572
        %v3668 = vmul.f32 %v3414, %v3574
        %v3669 = vmul.f32 %v3416, %v3576
        %v3670 = vmul.f32 %v3418, %v3578
        %v3671 = vmul.f32 %v3420, %v3580
        %v3672 = vmul.f32 %v3422, %v3582
        %v3673 = vmul.f32 %v3424, %v3584
        %v3674 = vmul.f32 %v3426, %v3586
        %v3675 = vmul.f32 %v3428, %v3588
        %v3676 = vmul.f32 %v3430, %v3590
        %v3677 = vmul.f32 %v3432, %v3592
        %v3678 = vmul.f32 %v3434, %v3594
        %v3679 = vmul.f32 %v3436, %v3596
        %v3680 = vmul.f32 %v3438, %v3598
        %v3681 = vmul.f32 %v3440, %v3600
        %v3682 = vmul.f32 %v3442, %v3602
        %v3683 = vmul.f32 %v3444, %v3604
        %v3684 = vmul.f32 %v3446, %v3606
        %v3685 = vmul.f32 %v3448, %v3608
        %v3686 = vmul.f32 %v3450, %v3610
        %v3687 = vmul.f32 %v3452, %v3612
        %v3688 = vmul.f32 %v3454, %v3614
        %v3689 = vmul.f32 %v3456, %v3616
        %v3690 = vmul.f32 %v3458, %v3618
        %v3691 = vmul.f32 %v3460, %v3620
        %v3692 = vmul.f32 %v3462, %v3622
        %v3693 = vmul.f32 %v3464, %v3624
        %v3694 = vmul.f32 %v3466, %v3626
        %v3695 = vmul.f32 %v3468, %v3628
        %v3696 = vmul.f32 %v3470, %v3630
        %v3697 = vmul.f32 %v3472, %v3632
        %v3698 = vmul.f32 %v3474, %v3634
        %3731 = vrot.lane.b32.xlu0 %v3475, 32
        %v3732 = vpop.permute.xlu0 %3731
        %3733 = vrot.lane.b32.xlu0 %v3476, 32
        %v3734 = vpop.permute.xlu0 %3733
        %3735 = vrot.lane.b32.xlu0 %v3477, 32
        %v3736 = vpop.permute.xlu0 %3735
        %3737 = vrot.lane.b32.xlu0 %v3478, 32
        %v3738 = vpop.permute.xlu0 %3737
        %3739 = vrot.lane.b32.xlu0 %v3479, 32
        %v3740 = vpop.permute.xlu0 %3739
        %3741 = vrot.lane.b32.xlu0 %v3480, 32
        %v3742 = vpop.permute.xlu0 %3741
        %3743 = vrot.lane.b32.xlu0 %v3481, 32
        %v3744 = vpop.permute.xlu0 %3743
        %3745 = vrot.lane.b32.xlu0 %v3482, 32
        %v3746 = vpop.permute.xlu0 %3745
        %3747 = vrot.lane.b32.xlu0 %v3483, 32
        %v3748 = vpop.permute.xlu0 %3747
        %3749 = vrot.lane.b32.xlu0 %v3484, 32
        %v3750 = vpop.permute.xlu0 %3749
        %3751 = vrot.lane.b32.xlu0 %v3485, 32
        %v3752 = vpop.permute.xlu0 %3751
        %3753 = vrot.lane.b32.xlu0 %v3486, 32
        %v3754 = vpop.permute.xlu0 %3753
        %3755 = vrot.lane.b32.xlu0 %v3487, 32
        %v3756 = vpop.permute.xlu0 %3755
        %3757 = vrot.lane.b32.xlu0 %v3488, 32
        %v3758 = vpop.permute.xlu0 %3757
        %3759 = vrot.lane.b32.xlu0 %v3489, 32
        %v3760 = vpop.permute.xlu0 %3759
        %3761 = vrot.lane.b32.xlu0 %v3490, 32
        %v3762 = vpop.permute.xlu0 %3761
        %3763 = vrot.lane.b32.xlu0 %v3491, 32
        %v3764 = vpop.permute.xlu0 %3763
        %3765 = vrot.lane.b32.xlu0 %v3492, 32
        %v3766 = vpop.permute.xlu0 %3765
        %3767 = vrot.lane.b32.xlu0 %v3493, 32
        %v3768 = vpop.permute.xlu0 %3767
        %3769 = vrot.lane.b32.xlu0 %v3494, 32
        %v3770 = vpop.permute.xlu0 %3769
        %3771 = vrot.lane.b32.xlu0 %v3495, 32
        %v3772 = vpop.permute.xlu0 %3771
        %3773 = vrot.lane.b32.xlu0 %v3496, 32
        %v3774 = vpop.permute.xlu0 %3773
        %3775 = vrot.lane.b32.xlu0 %v3497, 32
        %v3776 = vpop.permute.xlu0 %3775
        %3777 = vrot.lane.b32.xlu0 %v3498, 32
        %v3778 = vpop.permute.xlu0 %3777
        %3779 = vrot.lane.b32.xlu0 %v3499, 32
        %v3780 = vpop.permute.xlu0 %3779
        %3781 = vrot.lane.b32.xlu0 %v3500, 32
        %v3782 = vpop.permute.xlu0 %3781
        %3783 = vrot.lane.b32.xlu0 %v3501, 32
        %v3784 = vpop.permute.xlu0 %3783
        %3785 = vrot.lane.b32.xlu0 %v3502, 32
        %v3786 = vpop.permute.xlu0 %3785
        %3787 = vrot.lane.b32.xlu0 %v3503, 32
        %v3788 = vpop.permute.xlu0 %3787
        %3789 = vrot.lane.b32.xlu0 %v3504, 32
        %v3790 = vpop.permute.xlu0 %3789
        %3791 = vrot.lane.b32.xlu0 %v3505, 32
        %v3792 = vpop.permute.xlu0 %3791
        %3793 = vrot.lane.b32.xlu0 %v3506, 32
        %v3794 = vpop.permute.xlu0 %3793
        %v3827 = vmul.f32 %v3412, %v3732
        %v3828 = vmul.f32 %v3414, %v3734
        %v3829 = vmul.f32 %v3416, %v3736
        %v3830 = vmul.f32 %v3418, %v3738
        %v3831 = vmul.f32 %v3420, %v3740
        %v3832 = vmul.f32 %v3422, %v3742
        %v3833 = vmul.f32 %v3424, %v3744
        %v3834 = vmul.f32 %v3426, %v3746
        %v3835 = vmul.f32 %v3428, %v3748
        %v3836 = vmul.f32 %v3430, %v3750
        %v3837 = vmul.f32 %v3432, %v3752
        %v3838 = vmul.f32 %v3434, %v3754
        %v3839 = vmul.f32 %v3436, %v3756
        %v3840 = vmul.f32 %v3438, %v3758
        %v3841 = vmul.f32 %v3440, %v3760
        %v3842 = vmul.f32 %v3442, %v3762
        %v3843 = vmul.f32 %v3444, %v3764
        %v3844 = vmul.f32 %v3446, %v3766
        %v3845 = vmul.f32 %v3448, %v3768
        %v3846 = vmul.f32 %v3450, %v3770
        %v3847 = vmul.f32 %v3452, %v3772
        %v3848 = vmul.f32 %v3454, %v3774
        %v3849 = vmul.f32 %v3456, %v3776
        %v3850 = vmul.f32 %v3458, %v3778
        %v3851 = vmul.f32 %v3460, %v3780
        %v3852 = vmul.f32 %v3462, %v3782
        %v3853 = vmul.f32 %v3464, %v3784
        %v3854 = vmul.f32 %v3466, %v3786
        %v3855 = vmul.f32 %v3468, %v3788
        %v3856 = vmul.f32 %v3470, %v3790
        %v3857 = vmul.f32 %v3472, %v3792
        %v3858 = vmul.f32 %v3474, %v3794
        %3891 = vrot.lane.b32.xlu0 %v3827, 32
        %v3892 = vpop.permute.xlu0 %3891
        %3893 = vrot.lane.b32.xlu0 %v3828, 32
        %v3894 = vpop.permute.xlu0 %3893
        %3895 = vrot.lane.b32.xlu0 %v3829, 32
        %v3896 = vpop.permute.xlu0 %3895
        %3897 = vrot.lane.b32.xlu0 %v3830, 32
        %v3898 = vpop.permute.xlu0 %3897
        %3899 = vrot.lane.b32.xlu0 %v3831, 32
        %v3900 = vpop.permute.xlu0 %3899
        %3901 = vrot.lane.b32.xlu0 %v3832, 32
        %v3902 = vpop.permute.xlu0 %3901
        %3903 = vrot.lane.b32.xlu0 %v3833, 32
        %v3904 = vpop.permute.xlu0 %3903
        %3905 = vrot.lane.b32.xlu0 %v3834, 32
        %v3906 = vpop.permute.xlu0 %3905
        %3907 = vrot.lane.b32.xlu0 %v3835, 32
        %v3908 = vpop.permute.xlu0 %3907
        %3909 = vrot.lane.b32.xlu0 %v3836, 32
        %v3910 = vpop.permute.xlu0 %3909
        %3911 = vrot.lane.b32.xlu0 %v3837, 32
        %v3912 = vpop.permute.xlu0 %3911
        %3913 = vrot.lane.b32.xlu0 %v3838, 32
        %v3914 = vpop.permute.xlu0 %3913
        %3915 = vrot.lane.b32.xlu0 %v3839, 32
        %v3916 = vpop.permute.xlu0 %3915
        %3917 = vrot.lane.b32.xlu0 %v3840, 32
        %v3918 = vpop.permute.xlu0 %3917
        %3919 = vrot.lane.b32.xlu0 %v3841, 32
        %v3920 = vpop.permute.xlu0 %3919
        %3921 = vrot.lane.b32.xlu0 %v3842, 32
        %v3922 = vpop.permute.xlu0 %3921
        %3923 = vrot.lane.b32.xlu0 %v3843, 32
        %v3924 = vpop.permute.xlu0 %3923
        %3925 = vrot.lane.b32.xlu0 %v3844, 32
        %v3926 = vpop.permute.xlu0 %3925
        %3927 = vrot.lane.b32.xlu0 %v3845, 32
        %v3928 = vpop.permute.xlu0 %3927
        %3929 = vrot.lane.b32.xlu0 %v3846, 32
        %v3930 = vpop.permute.xlu0 %3929
        %3931 = vrot.lane.b32.xlu0 %v3847, 32
        %v3932 = vpop.permute.xlu0 %3931
        %3933 = vrot.lane.b32.xlu0 %v3848, 32
        %v3934 = vpop.permute.xlu0 %3933
        %3935 = vrot.lane.b32.xlu0 %v3849, 32
        %v3936 = vpop.permute.xlu0 %3935
        %3937 = vrot.lane.b32.xlu0 %v3850, 32
        %v3938 = vpop.permute.xlu0 %3937
        %3939 = vrot.lane.b32.xlu0 %v3851, 32
        %v3940 = vpop.permute.xlu0 %3939
        %3941 = vrot.lane.b32.xlu0 %v3852, 32
        %v3942 = vpop.permute.xlu0 %3941
        %3943 = vrot.lane.b32.xlu0 %v3853, 32
        %v3944 = vpop.permute.xlu0 %3943
        %3945 = vrot.lane.b32.xlu0 %v3854, 32
        %v3946 = vpop.permute.xlu0 %3945
        %3947 = vrot.lane.b32.xlu0 %v3855, 32
        %v3948 = vpop.permute.xlu0 %3947
        %3949 = vrot.lane.b32.xlu0 %v3856, 32
        %v3950 = vpop.permute.xlu0 %3949
        %3951 = vrot.lane.b32.xlu0 %v3857, 32
        %v3952 = vpop.permute.xlu0 %3951
        %3953 = vrot.lane.b32.xlu0 %v3858, 32
        %v3954 = vpop.permute.xlu0 %3953
        %v3987 = vadd.f32 %v3667, %v3892
        %v3988 = vadd.f32 %v3668, %v3894
        %v3989 = vadd.f32 %v3669, %v3896
        %v3990 = vadd.f32 %v3670, %v3898
        %v3991 = vadd.f32 %v3671, %v3900
        %v3992 = vadd.f32 %v3672, %v3902
        %v3993 = vadd.f32 %v3673, %v3904
        %v3994 = vadd.f32 %v3674, %v3906
        %v3995 = vadd.f32 %v3675, %v3908
        %v3996 = vadd.f32 %v3676, %v3910
        %v3997 = vadd.f32 %v3677, %v3912
        %v3998 = vadd.f32 %v3678, %v3914
        %v3999 = vadd.f32 %v3679, %v3916
        %v4000 = vadd.f32 %v3680, %v3918
        %v4001 = vadd.f32 %v3681, %v3920
        %v4002 = vadd.f32 %v3682, %v3922
        %v4003 = vadd.f32 %v3683, %v3924
        %v4004 = vadd.f32 %v3684, %v3926
        %v4005 = vadd.f32 %v3685, %v3928
        %v4006 = vadd.f32 %v3686, %v3930
        %v4007 = vadd.f32 %v3687, %v3932
        %v4008 = vadd.f32 %v3688, %v3934
        %v4009 = vadd.f32 %v3689, %v3936
        %v4010 = vadd.f32 %v3690, %v3938
        %v4011 = vadd.f32 %v3691, %v3940
        %v4012 = vadd.f32 %v3692, %v3942
        %v4013 = vadd.f32 %v3693, %v3944
        %v4014 = vadd.f32 %v3694, %v3946
        %v4015 = vadd.f32 %v3695, %v3948
        %v4016 = vadd.f32 %v3696, %v3950
        %v4017 = vadd.f32 %v3697, %v3952
        %v4018 = vadd.f32 %v3698, %v3954
        %v4019 = vtanh.pop %v3987
        %v4020 = vtanh.pop %v3988
        %v4021 = vtanh.pop %v3989
        %v4022 = vtanh.pop %v3990
        %v4023 = vtanh.pop %v3991
        %v4024 = vtanh.pop %v3992
        %v4025 = vtanh.pop %v3993
        %v4026 = vtanh.pop %v3994
        %v4027 = vtanh.pop %v3995
        %v4028 = vtanh.pop %v3996
        %v4029 = vtanh.pop %v3997
        %v4030 = vtanh.pop %v3998
        %v4031 = vtanh.pop %v3999
        %v4032 = vtanh.pop %v4000
        %v4033 = vtanh.pop %v4001
        %v4034 = vtanh.pop %v4002
        %v4035 = vtanh.pop %v4003
        %v4036 = vtanh.pop %v4004
        %v4037 = vtanh.pop %v4005
        %v4038 = vtanh.pop %v4006
        %v4039 = vtanh.pop %v4007
        %v4040 = vtanh.pop %v4008
        %v4041 = vtanh.pop %v4009
        %v4042 = vtanh.pop %v4010
        %v4043 = vtanh.pop %v4011
        %v4044 = vtanh.pop %v4012
        %v4045 = vtanh.pop %v4013
        %v4046 = vtanh.pop %v4014
        %v4047 = vtanh.pop %v4015
        %v4048 = vtanh.pop %v4016
        %v4049 = vtanh.pop %v4017
        %v4050 = vtanh.pop %v4018
        %4083 = vrot.lane.b32.xlu0 %v4019, 32
        %v4084 = vpop.permute.xlu0 %4083
        %4085 = vrot.lane.b32.xlu0 %v4020, 32
        %v4086 = vpop.permute.xlu0 %4085
        %4087 = vrot.lane.b32.xlu0 %v4021, 32
        %v4088 = vpop.permute.xlu0 %4087
        %4089 = vrot.lane.b32.xlu0 %v4022, 32
        %v4090 = vpop.permute.xlu0 %4089
        %4091 = vrot.lane.b32.xlu0 %v4023, 32
        %v4092 = vpop.permute.xlu0 %4091
        %4093 = vrot.lane.b32.xlu0 %v4024, 32
        %v4094 = vpop.permute.xlu0 %4093
        %4095 = vrot.lane.b32.xlu0 %v4025, 32
        %v4096 = vpop.permute.xlu0 %4095
        %4097 = vrot.lane.b32.xlu0 %v4026, 32
        %v4098 = vpop.permute.xlu0 %4097
        %4099 = vrot.lane.b32.xlu0 %v4027, 32
        %v4100 = vpop.permute.xlu0 %4099
        %4101 = vrot.lane.b32.xlu0 %v4028, 32
        %v4102 = vpop.permute.xlu0 %4101
        %4103 = vrot.lane.b32.xlu0 %v4029, 32
        %v4104 = vpop.permute.xlu0 %4103
        %4105 = vrot.lane.b32.xlu0 %v4030, 32
        %v4106 = vpop.permute.xlu0 %4105
        %4107 = vrot.lane.b32.xlu0 %v4031, 32
        %v4108 = vpop.permute.xlu0 %4107
        %4109 = vrot.lane.b32.xlu0 %v4032, 32
        %v4110 = vpop.permute.xlu0 %4109
        %4111 = vrot.lane.b32.xlu0 %v4033, 32
        %v4112 = vpop.permute.xlu0 %4111
        %4113 = vrot.lane.b32.xlu0 %v4034, 32
        %v4114 = vpop.permute.xlu0 %4113
        %4115 = vrot.lane.b32.xlu0 %v4035, 32
        %v4116 = vpop.permute.xlu0 %4115
        %4117 = vrot.lane.b32.xlu0 %v4036, 32
        %v4118 = vpop.permute.xlu0 %4117
        %4119 = vrot.lane.b32.xlu0 %v4037, 32
        %v4120 = vpop.permute.xlu0 %4119
        %4121 = vrot.lane.b32.xlu0 %v4038, 32
        %v4122 = vpop.permute.xlu0 %4121
        %4123 = vrot.lane.b32.xlu0 %v4039, 32
        %v4124 = vpop.permute.xlu0 %4123
        %4125 = vrot.lane.b32.xlu0 %v4040, 32
        %v4126 = vpop.permute.xlu0 %4125
        %4127 = vrot.lane.b32.xlu0 %v4041, 32
        %v4128 = vpop.permute.xlu0 %4127
        %4129 = vrot.lane.b32.xlu0 %v4042, 32
        %v4130 = vpop.permute.xlu0 %4129
        %4131 = vrot.lane.b32.xlu0 %v4043, 32
        %v4132 = vpop.permute.xlu0 %4131
        %4133 = vrot.lane.b32.xlu0 %v4044, 32
        %v4134 = vpop.permute.xlu0 %4133
        %4135 = vrot.lane.b32.xlu0 %v4045, 32
        %v4136 = vpop.permute.xlu0 %4135
        %4137 = vrot.lane.b32.xlu0 %v4046, 32
        %v4138 = vpop.permute.xlu0 %4137
        %4139 = vrot.lane.b32.xlu0 %v4047, 32
        %v4140 = vpop.permute.xlu0 %4139
        %4141 = vrot.lane.b32.xlu0 %v4048, 32
        %v4142 = vpop.permute.xlu0 %4141
        %4143 = vrot.lane.b32.xlu0 %v4049, 32
        %v4144 = vpop.permute.xlu0 %4143
        %4145 = vrot.lane.b32.xlu0 %v4050, 32
        %v4146 = vpop.permute.xlu0 %4145
        %v4179 = vmul.f32 %v3412, %v4084
        %v4180 = vmul.f32 %v3414, %v4086
        %v4181 = vmul.f32 %v3416, %v4088
        %v4182 = vmul.f32 %v3418, %v4090
        %v4183 = vmul.f32 %v3420, %v4092
        %v4184 = vmul.f32 %v3422, %v4094
        %v4185 = vmul.f32 %v3424, %v4096
        %v4186 = vmul.f32 %v3426, %v4098
        %v4187 = vmul.f32 %v3428, %v4100
        %v4188 = vmul.f32 %v3430, %v4102
        %v4189 = vmul.f32 %v3432, %v4104
        %v4190 = vmul.f32 %v3434, %v4106
        %v4191 = vmul.f32 %v3436, %v4108
        %v4192 = vmul.f32 %v3438, %v4110
        %v4193 = vmul.f32 %v3440, %v4112
        %v4194 = vmul.f32 %v3442, %v4114
        %v4195 = vmul.f32 %v3444, %v4116
        %v4196 = vmul.f32 %v3446, %v4118
        %v4197 = vmul.f32 %v3448, %v4120
        %v4198 = vmul.f32 %v3450, %v4122
        %v4199 = vmul.f32 %v3452, %v4124
        %v4200 = vmul.f32 %v3454, %v4126
        %v4201 = vmul.f32 %v3456, %v4128
        %v4202 = vmul.f32 %v3458, %v4130
        %v4203 = vmul.f32 %v3460, %v4132
        %v4204 = vmul.f32 %v3462, %v4134
        %v4205 = vmul.f32 %v3464, %v4136
        %v4206 = vmul.f32 %v3466, %v4138
        %v4207 = vmul.f32 %v3468, %v4140
        %v4208 = vmul.f32 %v3470, %v4142
        %v4209 = vmul.f32 %v3472, %v4144
        %v4210 = vmul.f32 %v3474, %v4146
        %v4211 = vld [vmem:[%s587] sm:$0xff]
        %v4212 = vld [vmem:[%s587 + $0x8] sm:$0xff]
        %v4213 = vld [vmem:[%s587 + $0x10] sm:$0xff]
        %v4214 = vld [vmem:[%s587 + $0x18] sm:$0xff]
        %v4215 = vld [vmem:[%s587 + $0x20] sm:$0xff]
        %v4216 = vld [vmem:[%s587 + $0x28] sm:$0xff]
        %v4217 = vld [vmem:[%s587 + $0x30] sm:$0xff]
        %v4218 = vld [vmem:[%s587 + $0x38] sm:$0xff]
        %v4219 = vld [vmem:[%s587 + $0x40] sm:$0xff]
        %v4220 = vld [vmem:[%s587 + $0x48] sm:$0xff]
        %v4221 = vld [vmem:[%s587 + $0x50] sm:$0xff]
        %v4222 = vld [vmem:[%s587 + $0x58] sm:$0xff]
        %v4223 = vld [vmem:[%s587 + $0x60] sm:$0xff]
        %v4224 = vld [vmem:[%s587 + $0x68] sm:$0xff]
        %v4225 = vld [vmem:[%s587 + $0x70] sm:$0xff]
        %v4226 = vld [vmem:[%s587 + $0x78] sm:$0xff]
        %v4227 = vld [vmem:[%s587 + $0x80] sm:$0xff]
        %v4228 = vld [vmem:[%s587 + $0x88] sm:$0xff]
        %v4229 = vld [vmem:[%s587 + $0x90] sm:$0xff]
        %v4230 = vld [vmem:[%s587 + $0x98] sm:$0xff]
        %v4231 = vld [vmem:[%s587 + $0xa0] sm:$0xff]
        %v4232 = vld [vmem:[%s587 + $0xa8] sm:$0xff]
        %v4233 = vld [vmem:[%s587 + $0xb0] sm:$0xff]
        %v4234 = vld [vmem:[%s587 + $0xb8] sm:$0xff]
        %v4235 = vld [vmem:[%s587 + $0xc0] sm:$0xff]
        %v4236 = vld [vmem:[%s587 + $0xc8] sm:$0xff]
        %v4237 = vld [vmem:[%s587 + $0xd0] sm:$0xff]
        %v4238 = vld [vmem:[%s587 + $0xd8] sm:$0xff]
        %v4239 = vld [vmem:[%s587 + $0xe0] sm:$0xff]
        %v4240 = vld [vmem:[%s587 + $0xe8] sm:$0xff]
        %v4241 = vld [vmem:[%s587 + $0xf0] sm:$0xff]
        %v4242 = vld [vmem:[%s587 + $0xf8] sm:$0xff]
        %v4243 = vld [vmem:[%s7] sm:$0xff]
        %v4244 = vld [vmem:[%s7 + $0x8] sm:$0xff]
        %v4245 = vld [vmem:[%s7 + $0x10] sm:$0xff]
        %v4246 = vld [vmem:[%s7 + $0x18] sm:$0xff]
        %v4247 = vld [vmem:[%s8] sm:$0x1]
        %v4249 = vlaneseq
        %v4250 = vshrl.u32 %v4249, 7
        %v4251 = vsub.s32 0, %v4250
        %v4252 = vrot.slane %v4247, %v4251
        %4286 = vrot.lane.b32.xlu0 %v4179, 64
        %v4287 = vpop.permute.xlu0 %4286
        %4288 = vrot.lane.b32.xlu0 %v4180, 64
        %v4289 = vpop.permute.xlu0 %4288
        %4290 = vrot.lane.b32.xlu0 %v4181, 64
        %v4291 = vpop.permute.xlu0 %4290
        %4292 = vrot.lane.b32.xlu0 %v4182, 64
        %v4293 = vpop.permute.xlu0 %4292
        %4294 = vrot.lane.b32.xlu0 %v4183, 64
        %v4295 = vpop.permute.xlu0 %4294
        %4296 = vrot.lane.b32.xlu0 %v4184, 64
        %v4297 = vpop.permute.xlu0 %4296
        %4298 = vrot.lane.b32.xlu0 %v4185, 64
        %v4299 = vpop.permute.xlu0 %4298
        %4300 = vrot.lane.b32.xlu0 %v4186, 64
        %v4301 = vpop.permute.xlu0 %4300
        %4302 = vrot.lane.b32.xlu0 %v4187, 64
        %v4303 = vpop.permute.xlu0 %4302
        %4304 = vrot.lane.b32.xlu0 %v4188, 64
        %v4305 = vpop.permute.xlu0 %4304
        %4306 = vrot.lane.b32.xlu0 %v4189, 64
        %v4307 = vpop.permute.xlu0 %4306
        %4308 = vrot.lane.b32.xlu0 %v4190, 64
        %v4309 = vpop.permute.xlu0 %4308
        %4310 = vrot.lane.b32.xlu0 %v4191, 64
        %v4311 = vpop.permute.xlu0 %4310
        %4312 = vrot.lane.b32.xlu0 %v4192, 64
        %v4313 = vpop.permute.xlu0 %4312
        %4314 = vrot.lane.b32.xlu0 %v4193, 64
        %v4315 = vpop.permute.xlu0 %4314
        %4316 = vrot.lane.b32.xlu0 %v4194, 64
        %v4317 = vpop.permute.xlu0 %4316
        %4318 = vrot.lane.b32.xlu0 %v4195, 64
        %v4319 = vpop.permute.xlu0 %4318
        %4320 = vrot.lane.b32.xlu0 %v4196, 64
        %v4321 = vpop.permute.xlu0 %4320
        %4322 = vrot.lane.b32.xlu0 %v4197, 64
        %v4323 = vpop.permute.xlu0 %4322
        %4324 = vrot.lane.b32.xlu0 %v4198, 64
        %v4325 = vpop.permute.xlu0 %4324
        %4326 = vrot.lane.b32.xlu0 %v4199, 64
        %v4327 = vpop.permute.xlu0 %4326
        %4328 = vrot.lane.b32.xlu0 %v4200, 64
        %v4329 = vpop.permute.xlu0 %4328
        %4330 = vrot.lane.b32.xlu0 %v4201, 64
        %v4331 = vpop.permute.xlu0 %4330
        %4332 = vrot.lane.b32.xlu0 %v4202, 64
        %v4333 = vpop.permute.xlu0 %4332
        %4334 = vrot.lane.b32.xlu0 %v4203, 64
        %v4335 = vpop.permute.xlu0 %4334
        %4336 = vrot.lane.b32.xlu0 %v4204, 64
        %v4337 = vpop.permute.xlu0 %4336
        %4338 = vrot.lane.b32.xlu0 %v4205, 64
        %v4339 = vpop.permute.xlu0 %4338
        %4340 = vrot.lane.b32.xlu0 %v4206, 64
        %v4341 = vpop.permute.xlu0 %4340
        %4342 = vrot.lane.b32.xlu0 %v4207, 64
        %v4343 = vpop.permute.xlu0 %4342
        %4344 = vrot.lane.b32.xlu0 %v4208, 64
        %v4345 = vpop.permute.xlu0 %4344
        %4346 = vrot.lane.b32.xlu0 %v4209, 64
        %v4347 = vpop.permute.xlu0 %4346
        %4348 = vrot.lane.b32.xlu0 %v4210, 64
        %v4349 = vpop.permute.xlu0 %4348
        %v4350 = vsel %vm2331, %v4287, 0
        %v4352 = vsel %vm2331, %v4289, 0
        %v4354 = vsel %vm2331, %v4291, 0
        %v4356 = vsel %vm2331, %v4293, 0
        %v4358 = vsel %vm2331, %v4295, 0
        %v4360 = vsel %vm2331, %v4297, 0
        %v4362 = vsel %vm2331, %v4299, 0
        %v4364 = vsel %vm2331, %v4301, 0
        %v4366 = vsel %vm2331, %v4303, 0
        %v4368 = vsel %vm2331, %v4305, 0
        %v4370 = vsel %vm2331, %v4307, 0
        %v4372 = vsel %vm2331, %v4309, 0
        %v4374 = vsel %vm2331, %v4311, 0
        %v4376 = vsel %vm2331, %v4313, 0
        %v4378 = vsel %vm2331, %v4315, 0
        %v4380 = vsel %vm2331, %v4317, 0
        %v4382 = vsel %vm2331, %v4319, 0
        %v4384 = vsel %vm2331, %v4321, 0
        %v4386 = vsel %vm2331, %v4323, 0
        %v4388 = vsel %vm2331, %v4325, 0
        %v4390 = vsel %vm2331, %v4327, 0
        %v4392 = vsel %vm2331, %v4329, 0
        %v4394 = vsel %vm2331, %v4331, 0
        %v4396 = vsel %vm2331, %v4333, 0
        %v4398 = vsel %vm2331, %v4335, 0
        %v4400 = vsel %vm2331, %v4337, 0
        %v4402 = vsel %vm2331, %v4339, 0
        %v4404 = vsel %vm2331, %v4341, 0
        %v4406 = vsel %vm2331, %v4343, 0
        %v4408 = vsel %vm2331, %v4345, 0
        %v4410 = vsel %vm2331, %v4347, 0
        %v4412 = vsel %vm2331, %v4349, 0
        %4414 = vmatprep.subr.mxu0 0.0
        %4415 = vmatpush1.msra.mxu0 %v4243
        %4416 = vmatprep.subr.mxu0 0.0
        %4417 = vmatpush1.msra.mxu0 %v4244
        %4418 = vmatprep.subr.mxu0 0.0
        %4419 = vmatpush1.msra.mxu0 %v4245
        %4420 = vmatprep.subr.mxu0 0.0
        %4421 = vmatpush1.msra.mxu0 %v4246
        %4422 = vmatprep.subr.mxu0 0.0
        %4423 = vmatpush1.msra.mxu0 0.0
        %4424 = vmatprep.subr.mxu0 0.0
        %4425 = vmatpush1.msra.mxu0 0.0
        %4426 = vmatprep.subr.mxu0 0.0
        %4427 = vmatpush1.msra.mxu0 0.0
        %4428 = vmatprep.subr.mxu0 0.0
        %4429 = vmatpush1.msra.mxu0 0.0
        %4430 = vmatprep.subr.mxu0 0.0
        %4431 = vmatpush1.msra.mxu0 0.0
        %4432 = vmatprep.subr.mxu0 0.0
        %4433 = vmatpush1.msra.mxu0 0.0
        %4434 = vmatprep.subr.mxu0 0.0
        %4435 = vmatpush1.msra.mxu0 0.0
        %4436 = vmatprep.subr.mxu0 0.0
        %4437 = vmatpush1.msra.mxu0 0.0
        %4438 = vmatprep.subr.mxu0 0.0
        %4439 = vmatpush1.msra.mxu0 0.0
        %4440 = vmatprep.subr.mxu0 0.0
        %4441 = vmatpush1.msra.mxu0 0.0
        %4442 = vmatprep.subr.mxu0 0.0
        %4443 = vmatpush1.msra.mxu0 0.0
        %4444 = vmatprep.subr.mxu0 0.0
        %4445 = vmatpush1.msra.mxu0 0.0
        %4446 = vmatprep.subr.mxu0 0.0
        %4447 = vmatpush1.msra.mxu0 0.0
        %4448 = vmatprep.subr.mxu0 0.0
        %4449 = vmatpush1.msra.mxu0 0.0
        %4450 = vmatprep.subr.mxu0 0.0
        %4451 = vmatpush1.msra.mxu0 0.0
        %4452 = vmatprep.subr.mxu0 0.0
        %4453 = vmatpush1.msra.mxu0 0.0
        %4454 = vmatprep.subr.mxu0 0.0
        %4455 = vmatpush1.msra.mxu0 0.0
        %4456 = vmatprep.subr.mxu0 0.0
        %4457 = vmatpush1.msra.mxu0 0.0
        %4458 = vmatprep.subr.mxu0 0.0
        %4459 = vmatpush1.msra.mxu0 0.0
        %4460 = vmatprep.subr.mxu0 0.0
        %4461 = vmatpush1.msra.mxu0 0.0
        %4462 = vmatprep.subr.mxu0 0.0
        %4463 = vmatpush1.msra.mxu0 0.0
        %4464 = vmatprep.subr.mxu0 0.0
        %4465 = vmatpush1.msra.mxu0 0.0
        %4466 = vmatprep.subr.mxu0 0.0
        %4467 = vmatpush1.msra.mxu0 0.0
        %4468 = vmatprep.subr.mxu0 0.0
        %4469 = vmatpush1.msra.mxu0 0.0
        %4470 = vmatprep.subr.mxu0 0.0
        %4471 = vmatpush1.msra.mxu0 0.0
        %4472 = vmatprep.subr.mxu0 0.0
        %4473 = vmatpush1.msra.mxu0 0.0
        %4474 = vmatprep.subr.mxu0 0.0
        %4475 = vmatpush1.msra.mxu0 0.0
        %4476 = vmatprep.subr.mxu0 0.0
        %4477 = vmatpush1.msra.mxu0 0.0
        %4478 = vmatprep.mubr.f32.mxu0 0.0
        %4479 = vmatmul.mubr.f32.gmra.mrb[0].mxu0 %v4350
        %v4480 = vpop.f32.mrb[0].mxu0
        %v4481 = vadd.f32 %v4252, %v4480
        %v4482 = vpop.f32.mrb[0].mxu0
        %4483 = vmatprep.mubr.f32.mxu0 0.0
        %4484 = vmatmul.mubr.f32.gmra.mrb[0].mxu0 %v4352
        %v4485 = vpop.f32.mrb[0].mxu0
        %v4486 = vadd.f32 %v4252, %v4485
        %v4487 = vpop.f32.mrb[0].mxu0
        %4488 = vmatprep.mubr.f32.mxu0 0.0
        %4489 = vmatmul.mubr.f32.gmra.mrb[0].mxu0 %v4354
        %v4490 = vpop.f32.mrb[0].mxu0
        %v4491 = vadd.f32 %v4252, %v4490
        %v4492 = vpop.f32.mrb[0].mxu0
        %4493 = vmatprep.mubr.f32.mxu0 0.0
        %4494 = vmatmul.mubr.f32.gmra.mrb[0].mxu0 %v4356
        %v4495 = vpop.f32.mrb[0].mxu0
        %v4496 = vadd.f32 %v4252, %v4495
        %v4497 = vpop.f32.mrb[0].mxu0
        %4498 = vmatprep.mubr.f32.mxu0 0.0
        %4499 = vmatmul.mubr.f32.gmra.mrb[0].mxu0 %v4358
        %v4500 = vpop.f32.mrb[0].mxu0
        %v4501 = vadd.f32 %v4252, %v4500
        %v4502 = vpop.f32.mrb[0].mxu0
        %4503 = vmatprep.mubr.f32.mxu0 0.0
        %4504 = vmatmul.mubr.f32.gmra.mrb[0].mxu0 %v4360
        %v4505 = vpop.f32.mrb[0].mxu0
        %v4506 = vadd.f32 %v4252, %v4505
        %v4507 = vpop.f32.mrb[0].mxu0
        %4508 = vmatprep.mubr.f32.mxu0 0.0
        %4509 = vmatmul.mubr.f32.gmra.mrb[0].mxu0 %v4362
        %v4510 = vpop.f32.mrb[0].mxu0
        %v4511 = vadd.f32 %v4252, %v4510
        %v4512 = vpop.f32.mrb[0].mxu0
        %4513 = vmatprep.mubr.f32.mxu0 0.0
        %4514 = vmatmul.mubr.f32.gmra.mrb[0].mxu0 %v4364
        %v4515 = vpop.f32.mrb[0].mxu0
        %v4516 = vadd.f32 %v4252, %v4515
        %v4517 = vpop.f32.mrb[0].mxu0
        %4518 = vmatprep.mubr.f32.mxu0 0.0
        %4519 = vmatmul.mubr.f32.gmra.mrb[0].mxu0 %v4366
        %v4520 = vpop.f32.mrb[0].mxu0
        %v4521 = vadd.f32 %v4252, %v4520
        %v4522 = vpop.f32.mrb[0].mxu0
        %4523 = vmatprep.mubr.f32.mxu0 0.0
        %4524 = vmatmul.mubr.f32.gmra.mrb[0].mxu0 %v4368
        %v4525 = vpop.f32.mrb[0].mxu0
        %v4526 = vadd.f32 %v4252, %v4525
        %v4527 = vpop.f32.mrb[0].mxu0
        %4528 = vmatprep.mubr.f32.mxu0 0.0
        %4529 = vmatmul.mubr.f32.gmra.mrb[0].mxu0 %v4370
        %v4530 = vpop.f32.mrb[0].mxu0
        %v4531 = vadd.f32 %v4252, %v4530
        %v4532 = vpop.f32.mrb[0].mxu0
        %4533 = vmatprep.mubr.f32.mxu0 0.0
        %4534 = vmatmul.mubr.f32.gmra.mrb[0].mxu0 %v4372
        %v4535 = vpop.f32.mrb[0].mxu0
        %v4536 = vadd.f32 %v4252, %v4535
        %v4537 = vpop.f32.mrb[0].mxu0
        %4538 = vmatprep.mubr.f32.mxu0 0.0
        %4539 = vmatmul.mubr.f32.gmra.mrb[0].mxu0 %v4374
        %v4540 = vpop.f32.mrb[0].mxu0
        %v4541 = vadd.f32 %v4252, %v4540
        %v4542 = vpop.f32.mrb[0].mxu0
        %4543 = vmatprep.mubr.f32.mxu0 0.0
        %4544 = vmatmul.mubr.f32.gmra.mrb[0].mxu0 %v4376
        %v4545 = vpop.f32.mrb[0].mxu0
        %v4546 = vadd.f32 %v4252, %v4545
        %v4547 = vpop.f32.mrb[0].mxu0
        %4548 = vmatprep.mubr.f32.mxu0 0.0
        %4549 = vmatmul.mubr.f32.gmra.mrb[0].mxu0 %v4378
        %v4550 = vpop.f32.mrb[0].mxu0
        %v4551 = vadd.f32 %v4252, %v4550
        %v4552 = vpop.f32.mrb[0].mxu0
        %4553 = vmatprep.mubr.f32.mxu0 0.0
        %4554 = vmatmul.mubr.f32.gmra.mrb[0].mxu0 %v4380
        %v4555 = vpop.f32.mrb[0].mxu0
        %v4556 = vadd.f32 %v4252, %v4555
        %v4557 = vpop.f32.mrb[0].mxu0
        %4558 = vmatprep.mubr.f32.mxu0 0.0
        %4559 = vmatmul.mubr.f32.gmra.mrb[0].mxu0 %v4382
        %v4560 = vpop.f32.mrb[0].mxu0
        %v4561 = vadd.f32 %v4252, %v4560
        %v4562 = vpop.f32.mrb[0].mxu0
        %4563 = vmatprep.mubr.f32.mxu0 0.0
        %4564 = vmatmul.mubr.f32.gmra.mrb[0].mxu0 %v4384
        %v4565 = vpop.f32.mrb[0].mxu0
        %v4566 = vadd.f32 %v4252, %v4565
        %v4567 = vpop.f32.mrb[0].mxu0
        %4568 = vmatprep.mubr.f32.mxu0 0.0
        %4569 = vmatmul.mubr.f32.gmra.mrb[0].mxu0 %v4386
        %v4570 = vpop.f32.mrb[0].mxu0
        %v4571 = vadd.f32 %v4252, %v4570
        %v4572 = vpop.f32.mrb[0].mxu0
        %4573 = vmatprep.mubr.f32.mxu0 0.0
        %4574 = vmatmul.mubr.f32.gmra.mrb[0].mxu0 %v4388
        %v4575 = vpop.f32.mrb[0].mxu0
        %v4576 = vadd.f32 %v4252, %v4575
        %v4577 = vpop.f32.mrb[0].mxu0
        %4578 = vmatprep.mubr.f32.mxu0 0.0
        %4579 = vmatmul.mubr.f32.gmra.mrb[0].mxu0 %v4390
        %v4580 = vpop.f32.mrb[0].mxu0
        %v4581 = vadd.f32 %v4252, %v4580
        %v4582 = vpop.f32.mrb[0].mxu0
        %4583 = vmatprep.mubr.f32.mxu0 0.0
        %4584 = vmatmul.mubr.f32.gmra.mrb[0].mxu0 %v4392
        %v4585 = vpop.f32.mrb[0].mxu0
        %v4586 = vadd.f32 %v4252, %v4585
        %v4587 = vpop.f32.mrb[0].mxu0
        %4588 = vmatprep.mubr.f32.mxu0 0.0
        %4589 = vmatmul.mubr.f32.gmra.mrb[0].mxu0 %v4394
        %v4590 = vpop.f32.mrb[0].mxu0
        %v4591 = vadd.f32 %v4252, %v4590
        %v4592 = vpop.f32.mrb[0].mxu0
        %4593 = vmatprep.mubr.f32.mxu0 0.0
        %4594 = vmatmul.mubr.f32.gmra.mrb[0].mxu0 %v4396
        %v4595 = vpop.f32.mrb[0].mxu0
        %v4596 = vadd.f32 %v4252, %v4595
        %v4597 = vpop.f32.mrb[0].mxu0
        %4598 = vmatprep.mubr.f32.mxu0 0.0
        %4599 = vmatmul.mubr.f32.gmra.mrb[0].mxu0 %v4398
        %v4600 = vpop.f32.mrb[0].mxu0
        %v4601 = vadd.f32 %v4252, %v4600
        %v4602 = vpop.f32.mrb[0].mxu0
        %4603 = vmatprep.mubr.f32.mxu0 0.0
        %4604 = vmatmul.mubr.f32.gmra.mrb[0].mxu0 %v4400
        %v4605 = vpop.f32.mrb[0].mxu0
        %v4606 = vadd.f32 %v4252, %v4605
        %v4607 = vpop.f32.mrb[0].mxu0
        %4608 = vmatprep.mubr.f32.mxu0 0.0
        %4609 = vmatmul.mubr.f32.gmra.mrb[0].mxu0 %v4402
        %v4610 = vpop.f32.mrb[0].mxu0
        %v4611 = vadd.f32 %v4252, %v4610
        %v4612 = vpop.f32.mrb[0].mxu0
        %4613 = vmatprep.mubr.f32.mxu0 0.0
        %4614 = vmatmul.mubr.f32.gmra.mrb[0].mxu0 %v4404
        %v4615 = vpop.f32.mrb[0].mxu0
        %v4616 = vadd.f32 %v4252, %v4615
        %v4617 = vpop.f32.mrb[0].mxu0
        %4618 = vmatprep.mubr.f32.mxu0 0.0
        %4619 = vmatmul.mubr.f32.gmra.mrb[0].mxu0 %v4406
        %v4620 = vpop.f32.mrb[0].mxu0
        %v4621 = vadd.f32 %v4252, %v4620
        %v4622 = vpop.f32.mrb[0].mxu0
        %4623 = vmatprep.mubr.f32.mxu0 0.0
        %4624 = vmatmul.mubr.f32.gmra.mrb[0].mxu0 %v4408
        %v4625 = vpop.f32.mrb[0].mxu0
        %v4626 = vadd.f32 %v4252, %v4625
        %v4627 = vpop.f32.mrb[0].mxu0
        %4628 = vmatprep.mubr.f32.mxu0 0.0
        %4629 = vmatmul.mubr.f32.gmra.mrb[0].mxu0 %v4410
        %v4630 = vpop.f32.mrb[0].mxu0
        %v4631 = vadd.f32 %v4252, %v4630
        %v4632 = vpop.f32.mrb[0].mxu0
        %4633 = vmatprep.mubr.f32.mxu0 0.0
        %4634 = vmatmul.mubr.f32.gmra.mrb[0].mxu0 %v4412
        %v4635 = vpop.f32.mrb[0].mxu0
        %v4636 = vadd.f32 %v4252, %v4635
        %v4637 = vpop.f32.mrb[0].mxu0
        %4638 = vdwg.mxu0
        %v4639 = vld [vmem:[%s9] sm:$0xff]
        %v4640 = vld [vmem:[%s9 + $0x8] sm:$0xff]
        %v4641 = vld [vmem:[%s9 + $0x10] sm:$0xff]
        %v4642 = vld [vmem:[%s9 + $0x18] sm:$0xff]
        %v4643 = vld [vmem:[%s10] sm:$0x1]
        %v4645 = vlaneseq
        %v4646 = vshrl.u32 %v4645, 7
        %v4647 = vsub.s32 0, %v4646
        %v4648 = vrot.slane %v4643, %v4647
        %v4651 = vsel %vm2331, %v4211, 0
        %v4654 = vsel %vm2331, %v4212, 0
        %v4657 = vsel %vm2331, %v4213, 0
        %v4660 = vsel %vm2331, %v4214, 0
        %v4663 = vsel %vm2331, %v4215, 0
        %v4666 = vsel %vm2331, %v4216, 0
        %v4669 = vsel %vm2331, %v4217, 0
        %v4672 = vsel %vm2331, %v4218, 0
        %v4675 = vsel %vm2331, %v4219, 0
        %v4678 = vsel %vm2331, %v4220, 0
        %v4681 = vsel %vm2331, %v4221, 0
        %v4684 = vsel %vm2331, %v4222, 0
        %v4687 = vsel %vm2331, %v4223, 0
        %v4690 = vsel %vm2331, %v4224, 0
        %v4693 = vsel %vm2331, %v4225, 0
        %v4696 = vsel %vm2331, %v4226, 0
        %v4699 = vsel %vm2331, %v4227, 0
        %v4702 = vsel %vm2331, %v4228, 0
        %v4705 = vsel %vm2331, %v4229, 0
        %v4708 = vsel %vm2331, %v4230, 0
        %v4711 = vsel %vm2331, %v4231, 0
        %v4714 = vsel %vm2331, %v4232, 0
        %v4717 = vsel %vm2331, %v4233, 0
        %v4720 = vsel %vm2331, %v4234, 0
        %v4723 = vsel %vm2331, %v4235, 0
        %v4726 = vsel %vm2331, %v4236, 0
        %v4729 = vsel %vm2331, %v4237, 0
        %v4732 = vsel %vm2331, %v4238, 0
        %v4735 = vsel %vm2331, %v4239, 0
        %v4738 = vsel %vm2331, %v4240, 0
        %v4741 = vsel %vm2331, %v4241, 0
        %v4744 = vsel %vm2331, %v4242, 0
        %4746 = vmatprep.subr.mxu0 0.0
        %4747 = vmatpush1.msra.mxu0 %v4639
        %4748 = vmatprep.subr.mxu0 0.0
        %4749 = vmatpush1.msra.mxu0 %v4640
        %4750 = vmatprep.subr.mxu0 0.0
        %4751 = vmatpush1.msra.mxu0 %v4641
        %4752 = vmatprep.subr.mxu0 0.0
        %4753 = vmatpush1.msra.mxu0 %v4642
        %4754 = vmatprep.subr.mxu0 0.0
        %4755 = vmatpush1.msra.mxu0 0.0
        %4756 = vmatprep.subr.mxu0 0.0
        %4757 = vmatpush1.msra.mxu0 0.0
        %4758 = vmatprep.subr.mxu0 0.0
        %4759 = vmatpush1.msra.mxu0 0.0
        %4760 = vmatprep.subr.mxu0 0.0
        %4761 = vmatpush1.msra.mxu0 0.0
        %4762 = vmatprep.subr.mxu0 0.0
        %4763 = vmatpush1.msra.mxu0 0.0
        %4764 = vmatprep.subr.mxu0 0.0
        %4765 = vmatpush1.msra.mxu0 0.0
        %4766 = vmatprep.subr.mxu0 0.0
        %4767 = vmatpush1.msra.mxu0 0.0
        %4768 = vmatprep.subr.mxu0 0.0
        %4769 = vmatpush1.msra.mxu0 0.0
        %4770 = vmatprep.subr.mxu0 0.0
        %4771 = vmatpush1.msra.mxu0 0.0
        %4772 = vmatprep.subr.mxu0 0.0
        %4773 = vmatpush1.msra.mxu0 0.0
        %4774 = vmatprep.subr.mxu0 0.0
        %4775 = vmatpush1.msra.mxu0 0.0
        %4776 = vmatprep.subr.mxu0 0.0
        %4777 = vmatpush1.msra.mxu0 0.0
        %4778 = vmatprep.subr.mxu0 0.0
        %4779 = vmatpush1.msra.mxu0 0.0
        %4780 = vmatprep.subr.mxu0 0.0
        %4781 = vmatpush1.msra.mxu0 0.0
        %4782 = vmatprep.subr.mxu0 0.0
        %4783 = vmatpush1.msra.mxu0 0.0
        %4784 = vmatprep.subr.mxu0 0.0
        %4785 = vmatpush1.msra.mxu0 0.0
        %4786 = vmatprep.subr.mxu0 0.0
        %4787 = vmatpush1.msra.mxu0 0.0
        %4788 = vmatprep.subr.mxu0 0.0
        %4789 = vmatpush1.msra.mxu0 0.0
        %4790 = vmatprep.subr.mxu0 0.0
        %4791 = vmatpush1.msra.mxu0 0.0
        %4792 = vmatprep.subr.mxu0 0.0
        %4793 = vmatpush1.msra.mxu0 0.0
        %4794 = vmatprep.subr.mxu0 0.0
        %4795 = vmatpush1.msra.mxu0 0.0
        %4796 = vmatprep.subr.mxu0 0.0
        %4797 = vmatpush1.msra.mxu0 0.0
        %4798 = vmatprep.subr.mxu0 0.0
        %4799 = vmatpush1.msra.mxu0 0.0
        %4800 = vmatprep.subr.mxu0 0.0
        %4801 = vmatpush1.msra.mxu0 0.0
        %4802 = vmatprep.subr.mxu0 0.0
        %4803 = vmatpush1.msra.mxu0 0.0
        %4804 = vmatprep.subr.mxu0 0.0
        %4805 = vmatpush1.msra.mxu0 0.0
        %4806 = vmatprep.subr.mxu0 0.0
        %4807 = vmatpush1.msra.mxu0 0.0
        %4808 = vmatprep.subr.mxu0 0.0
        %4809 = vmatpush1.msra.mxu0 0.0
        %4810 = vmatprep.mubr.f32.mxu0 0.0
        %4811 = vmatmul.mubr.f32.gmra.mrb[0].mxu0 %v4651
        %v4812 = vpop.f32.mrb[0].mxu0
        %v4813 = vadd.f32 %v4648, %v4812
        %v4814 = vpop.f32.mrb[0].mxu0
        %4815 = vmatprep.mubr.f32.mxu0 0.0
        %4816 = vmatmul.mubr.f32.gmra.mrb[0].mxu0 %v4654
        %v4817 = vpop.f32.mrb[0].mxu0
        %v4818 = vadd.f32 %v4648, %v4817
        %v4819 = vpop.f32.mrb[0].mxu0
        %4820 = vmatprep.mubr.f32.mxu0 0.0
        %4821 = vmatmul.mubr.f32.gmra.mrb[0].mxu0 %v4657
        %v4822 = vpop.f32.mrb[0].mxu0
        %v4823 = vadd.f32 %v4648, %v4822
        %v4824 = vpop.f32.mrb[0].mxu0
        %4825 = vmatprep.mubr.f32.mxu0 0.0
        %4826 = vmatmul.mubr.f32.gmra.mrb[0].mxu0 %v4660
        %v4827 = vpop.f32.mrb[0].mxu0
        %v4828 = vadd.f32 %v4648, %v4827
        %v4829 = vpop.f32.mrb[0].mxu0
        %4830 = vmatprep.mubr.f32.mxu0 0.0
        %4831 = vmatmul.mubr.f32.gmra.mrb[0].mxu0 %v4663
        %v4832 = vpop.f32.mrb[0].mxu0
        %v4833 = vadd.f32 %v4648, %v4832
        %v4834 = vpop.f32.mrb[0].mxu0
        %4835 = vmatprep.mubr.f32.mxu0 0.0
        %4836 = vmatmul.mubr.f32.gmra.mrb[0].mxu0 %v4666
        %v4837 = vpop.f32.mrb[0].mxu0
        %v4838 = vadd.f32 %v4648, %v4837
        %v4839 = vpop.f32.mrb[0].mxu0
        %4840 = vmatprep.mubr.f32.mxu0 0.0
        %4841 = vmatmul.mubr.f32.gmra.mrb[0].mxu0 %v4669
        %v4842 = vpop.f32.mrb[0].mxu0
        %v4843 = vadd.f32 %v4648, %v4842
        %v4844 = vpop.f32.mrb[0].mxu0
        %4845 = vmatprep.mubr.f32.mxu0 0.0
        %4846 = vmatmul.mubr.f32.gmra.mrb[0].mxu0 %v4672
        %v4847 = vpop.f32.mrb[0].mxu0
        %v4848 = vadd.f32 %v4648, %v4847
        %v4849 = vpop.f32.mrb[0].mxu0
        %4850 = vmatprep.mubr.f32.mxu0 0.0
        %4851 = vmatmul.mubr.f32.gmra.mrb[0].mxu0 %v4675
        %v4852 = vpop.f32.mrb[0].mxu0
        %v4853 = vadd.f32 %v4648, %v4852
        %v4854 = vpop.f32.mrb[0].mxu0
        %4855 = vmatprep.mubr.f32.mxu0 0.0
        %4856 = vmatmul.mubr.f32.gmra.mrb[0].mxu0 %v4678
        %v4857 = vpop.f32.mrb[0].mxu0
        %v4858 = vadd.f32 %v4648, %v4857
        %v4859 = vpop.f32.mrb[0].mxu0
        %4860 = vmatprep.mubr.f32.mxu0 0.0
        %4861 = vmatmul.mubr.f32.gmra.mrb[0].mxu0 %v4681
        %v4862 = vpop.f32.mrb[0].mxu0
        %v4863 = vadd.f32 %v4648, %v4862
        %v4864 = vpop.f32.mrb[0].mxu0
        %4865 = vmatprep.mubr.f32.mxu0 0.0
        %4866 = vmatmul.mubr.f32.gmra.mrb[0].mxu0 %v4684
        %v4867 = vpop.f32.mrb[0].mxu0
        %v4868 = vadd.f32 %v4648, %v4867
        %v4869 = vpop.f32.mrb[0].mxu0
        %4870 = vmatprep.mubr.f32.mxu0 0.0
        %4871 = vmatmul.mubr.f32.gmra.mrb[0].mxu0 %v4687
        %v4872 = vpop.f32.mrb[0].mxu0
        %v4873 = vadd.f32 %v4648, %v4872
        %v4874 = vpop.f32.mrb[0].mxu0
        %4875 = vmatprep.mubr.f32.mxu0 0.0
        %4876 = vmatmul.mubr.f32.gmra.mrb[0].mxu0 %v4690
        %v4877 = vpop.f32.mrb[0].mxu0
        %v4878 = vadd.f32 %v4648, %v4877
        %v4879 = vpop.f32.mrb[0].mxu0
        %4880 = vmatprep.mubr.f32.mxu0 0.0
        %4881 = vmatmul.mubr.f32.gmra.mrb[0].mxu0 %v4693
        %v4882 = vpop.f32.mrb[0].mxu0
        %v4883 = vadd.f32 %v4648, %v4882
        %v4884 = vpop.f32.mrb[0].mxu0
        %4885 = vmatprep.mubr.f32.mxu0 0.0
        %4886 = vmatmul.mubr.f32.gmra.mrb[0].mxu0 %v4696
        %v4887 = vpop.f32.mrb[0].mxu0
        %v4888 = vadd.f32 %v4648, %v4887
        %v4889 = vpop.f32.mrb[0].mxu0
        %4890 = vmatprep.mubr.f32.mxu0 0.0
        %4891 = vmatmul.mubr.f32.gmra.mrb[0].mxu0 %v4699
        %v4892 = vpop.f32.mrb[0].mxu0
        %v4893 = vadd.f32 %v4648, %v4892
        %v4894 = vpop.f32.mrb[0].mxu0
        %4895 = vmatprep.mubr.f32.mxu0 0.0
        %4896 = vmatmul.mubr.f32.gmra.mrb[0].mxu0 %v4702
        %v4897 = vpop.f32.mrb[0].mxu0
        %v4898 = vadd.f32 %v4648, %v4897
        %v4899 = vpop.f32.mrb[0].mxu0
        %4900 = vmatprep.mubr.f32.mxu0 0.0
        %4901 = vmatmul.mubr.f32.gmra.mrb[0].mxu0 %v4705
        %v4902 = vpop.f32.mrb[0].mxu0
        %v4903 = vadd.f32 %v4648, %v4902
        %v4904 = vpop.f32.mrb[0].mxu0
        %4905 = vmatprep.mubr.f32.mxu0 0.0
        %4906 = vmatmul.mubr.f32.gmra.mrb[0].mxu0 %v4708
        %v4907 = vpop.f32.mrb[0].mxu0
        %v4908 = vadd.f32 %v4648, %v4907
        %v4909 = vpop.f32.mrb[0].mxu0
        %4910 = vmatprep.mubr.f32.mxu0 0.0
        %4911 = vmatmul.mubr.f32.gmra.mrb[0].mxu0 %v4711
        %v4912 = vpop.f32.mrb[0].mxu0
        %v4913 = vadd.f32 %v4648, %v4912
        %v4914 = vpop.f32.mrb[0].mxu0
        %4915 = vmatprep.mubr.f32.mxu0 0.0
        %4916 = vmatmul.mubr.f32.gmra.mrb[0].mxu0 %v4714
        %v4917 = vpop.f32.mrb[0].mxu0
        %v4918 = vadd.f32 %v4648, %v4917
        %v4919 = vpop.f32.mrb[0].mxu0
        %4920 = vmatprep.mubr.f32.mxu0 0.0
        %4921 = vmatmul.mubr.f32.gmra.mrb[0].mxu0 %v4717
        %v4922 = vpop.f32.mrb[0].mxu0
        %v4923 = vadd.f32 %v4648, %v4922
        %v4924 = vpop.f32.mrb[0].mxu0
        %4925 = vmatprep.mubr.f32.mxu0 0.0
        %4926 = vmatmul.mubr.f32.gmra.mrb[0].mxu0 %v4720
        %v4927 = vpop.f32.mrb[0].mxu0
        %v4928 = vadd.f32 %v4648, %v4927
        %v4929 = vpop.f32.mrb[0].mxu0
        %4930 = vmatprep.mubr.f32.mxu0 0.0
        %4931 = vmatmul.mubr.f32.gmra.mrb[0].mxu0 %v4723
        %v4932 = vpop.f32.mrb[0].mxu0
        %v4933 = vadd.f32 %v4648, %v4932
        %v4934 = vpop.f32.mrb[0].mxu0
        %4935 = vmatprep.mubr.f32.mxu0 0.0
        %4936 = vmatmul.mubr.f32.gmra.mrb[0].mxu0 %v4726
        %v4937 = vpop.f32.mrb[0].mxu0
        %v4938 = vadd.f32 %v4648, %v4937
        %v4939 = vpop.f32.mrb[0].mxu0
        %4940 = vmatprep.mubr.f32.mxu0 0.0
        %4941 = vmatmul.mubr.f32.gmra.mrb[0].mxu0 %v4729
        %v4942 = vpop.f32.mrb[0].mxu0
        %v4943 = vadd.f32 %v4648, %v4942
        %v4944 = vpop.f32.mrb[0].mxu0
        %4945 = vmatprep.mubr.f32.mxu0 0.0
        %4946 = vmatmul.mubr.f32.gmra.mrb[0].mxu0 %v4732
        %v4947 = vpop.f32.mrb[0].mxu0
        %v4948 = vadd.f32 %v4648, %v4947
        %v4949 = vpop.f32.mrb[0].mxu0
        %4950 = vmatprep.mubr.f32.mxu0 0.0
        %4951 = vmatmul.mubr.f32.gmra.mrb[0].mxu0 %v4735
        %v4952 = vpop.f32.mrb[0].mxu0
        %v4953 = vadd.f32 %v4648, %v4952
        %v4954 = vpop.f32.mrb[0].mxu0
        %4955 = vmatprep.mubr.f32.mxu0 0.0
        %4956 = vmatmul.mubr.f32.gmra.mrb[0].mxu0 %v4738
        %v4957 = vpop.f32.mrb[0].mxu0
        %v4958 = vadd.f32 %v4648, %v4957
        %v4959 = vpop.f32.mrb[0].mxu0
        %4960 = vmatprep.mubr.f32.mxu0 0.0
        %4961 = vmatmul.mubr.f32.gmra.mrb[0].mxu0 %v4741
        %v4962 = vpop.f32.mrb[0].mxu0
        %v4963 = vadd.f32 %v4648, %v4962
        %v4964 = vpop.f32.mrb[0].mxu0
        %4965 = vmatprep.mubr.f32.mxu0 0.0
        %4966 = vmatmul.mubr.f32.gmra.mrb[0].mxu0 %v4744
        %v4967 = vpop.f32.mrb[0].mxu0
        %v4968 = vadd.f32 %v4648, %v4967
        %v4969 = vpop.f32.mrb[0].mxu0
        %4970 = vdwg.mxu0
        %v4971 = vmul.f32 %v4481, %v4813
        %v4972 = vmul.f32 %v4486, %v4818
        %v4973 = vmul.f32 %v4491, %v4823
        %v4974 = vmul.f32 %v4496, %v4828
        %v4975 = vmul.f32 %v4501, %v4833
        %v4976 = vmul.f32 %v4506, %v4838
        %v4977 = vmul.f32 %v4511, %v4843
        %v4978 = vmul.f32 %v4516, %v4848
        %v4979 = vmul.f32 %v4521, %v4853
        %v4980 = vmul.f32 %v4526, %v4858
        %v4981 = vmul.f32 %v4531, %v4863
        %v4982 = vmul.f32 %v4536, %v4868
        %v4983 = vmul.f32 %v4541, %v4873
        %v4984 = vmul.f32 %v4546, %v4878
        %v4985 = vmul.f32 %v4551, %v4883
        %v4986 = vmul.f32 %v4556, %v4888
        %v4987 = vmul.f32 %v4561, %v4893
        %v4988 = vmul.f32 %v4566, %v4898
        %v4989 = vmul.f32 %v4571, %v4903
        %v4990 = vmul.f32 %v4576, %v4908
        %v4991 = vmul.f32 %v4581, %v4913
        %v4992 = vmul.f32 %v4586, %v4918
        %v4993 = vmul.f32 %v4591, %v4923
        %v4994 = vmul.f32 %v4596, %v4928
        %v4995 = vmul.f32 %v4601, %v4933
        %v4996 = vmul.f32 %v4606, %v4938
        %v4997 = vmul.f32 %v4611, %v4943
        %v4998 = vmul.f32 %v4616, %v4948
        %v4999 = vmul.f32 %v4621, %v4953
        %v5000 = vmul.f32 %v4626, %v4958
        %v5001 = vmul.f32 %v4631, %v4963
        %v5002 = vmul.f32 %v4636, %v4968
        %v5003 = vsel %vm2331, %v4971, 0.0
        %5004 = vadd.xlane.f32.xlu0 %v5003
        %v5005 = vpop.xlane.xlu0 %5004
        %v5006 = vsel %vm2331, %v4972, 0.0
        %5007 = vadd.xlane.f32.xlu0 %v5006
        %v5008 = vpop.xlane.xlu0 %5007
        %v5009 = vsel %vm2331, %v4973, 0.0
        %5010 = vadd.xlane.f32.xlu0 %v5009
        %v5011 = vpop.xlane.xlu0 %5010
        %v5012 = vsel %vm2331, %v4974, 0.0
        %5013 = vadd.xlane.f32.xlu0 %v5012
        %v5014 = vpop.xlane.xlu0 %5013
        %v5015 = vsel %vm2331, %v4975, 0.0
        %5016 = vadd.xlane.f32.xlu0 %v5015
        %v5017 = vpop.xlane.xlu0 %5016
        %v5018 = vsel %vm2331, %v4976, 0.0
        %5019 = vadd.xlane.f32.xlu0 %v5018
        %v5020 = vpop.xlane.xlu0 %5019
        %v5021 = vsel %vm2331, %v4977, 0.0
        %5022 = vadd.xlane.f32.xlu0 %v5021
        %v5023 = vpop.xlane.xlu0 %5022
        %v5024 = vsel %vm2331, %v4978, 0.0
        %5025 = vadd.xlane.f32.xlu0 %v5024
        %v5026 = vpop.xlane.xlu0 %5025
        %v5027 = vsel %vm2331, %v4979, 0.0
        %5028 = vadd.xlane.f32.xlu0 %v5027
        %v5029 = vpop.xlane.xlu0 %5028
        %v5030 = vsel %vm2331, %v4980, 0.0
        %5031 = vadd.xlane.f32.xlu0 %v5030
        %v5032 = vpop.xlane.xlu0 %5031
        %v5033 = vsel %vm2331, %v4981, 0.0
        %5034 = vadd.xlane.f32.xlu0 %v5033
        %v5035 = vpop.xlane.xlu0 %5034
        %v5036 = vsel %vm2331, %v4982, 0.0
        %5037 = vadd.xlane.f32.xlu0 %v5036
        %v5038 = vpop.xlane.xlu0 %5037
        %v5039 = vsel %vm2331, %v4983, 0.0
        %5040 = vadd.xlane.f32.xlu0 %v5039
        %v5041 = vpop.xlane.xlu0 %5040
        %v5042 = vsel %vm2331, %v4984, 0.0
        %5043 = vadd.xlane.f32.xlu0 %v5042
        %v5044 = vpop.xlane.xlu0 %5043
        %v5045 = vsel %vm2331, %v4985, 0.0
        %5046 = vadd.xlane.f32.xlu0 %v5045
        %v5047 = vpop.xlane.xlu0 %5046
        %v5048 = vsel %vm2331, %v4986, 0.0
        %5049 = vadd.xlane.f32.xlu0 %v5048
        %v5050 = vpop.xlane.xlu0 %5049
        %v5051 = vsel %vm2331, %v4987, 0.0
        %5052 = vadd.xlane.f32.xlu0 %v5051
        %v5053 = vpop.xlane.xlu0 %5052
        %v5054 = vsel %vm2331, %v4988, 0.0
        %5055 = vadd.xlane.f32.xlu0 %v5054
        %v5056 = vpop.xlane.xlu0 %5055
        %v5057 = vsel %vm2331, %v4989, 0.0
        %5058 = vadd.xlane.f32.xlu0 %v5057
        %v5059 = vpop.xlane.xlu0 %5058
        %v5060 = vsel %vm2331, %v4990, 0.0
        %5061 = vadd.xlane.f32.xlu0 %v5060
        %v5062 = vpop.xlane.xlu0 %5061
        %v5063 = vsel %vm2331, %v4991, 0.0
        %5064 = vadd.xlane.f32.xlu0 %v5063
        %v5065 = vpop.xlane.xlu0 %5064
        %v5066 = vsel %vm2331, %v4992, 0.0
        %5067 = vadd.xlane.f32.xlu0 %v5066
        %v5068 = vpop.xlane.xlu0 %5067
        %v5069 = vsel %vm2331, %v4993, 0.0
        %5070 = vadd.xlane.f32.xlu0 %v5069
        %v5071 = vpop.xlane.xlu0 %5070
        %v5072 = vsel %vm2331, %v4994, 0.0
        %5073 = vadd.xlane.f32.xlu0 %v5072
        %v5074 = vpop.xlane.xlu0 %5073
        %v5075 = vsel %vm2331, %v4995, 0.0
        %5076 = vadd.xlane.f32.xlu0 %v5075
        %v5077 = vpop.xlane.xlu0 %5076
        %v5078 = vsel %vm2331, %v4996, 0.0
        %5079 = vadd.xlane.f32.xlu0 %v5078
        %v5080 = vpop.xlane.xlu0 %5079
        %v5081 = vsel %vm2331, %v4997, 0.0
        %5082 = vadd.xlane.f32.xlu0 %v5081
        %v5083 = vpop.xlane.xlu0 %5082
        %v5084 = vsel %vm2331, %v4998, 0.0
        %5085 = vadd.xlane.f32.xlu0 %v5084
        %v5086 = vpop.xlane.xlu0 %5085
        %v5087 = vsel %vm2331, %v4999, 0.0
        %5088 = vadd.xlane.f32.xlu0 %v5087
        %v5089 = vpop.xlane.xlu0 %5088
        %v5090 = vsel %vm2331, %v5000, 0.0
        %5091 = vadd.xlane.f32.xlu0 %v5090
        %v5092 = vpop.xlane.xlu0 %5091
        %v5093 = vsel %vm2331, %v5001, 0.0
        %5094 = vadd.xlane.f32.xlu0 %v5093
        %v5095 = vpop.xlane.xlu0 %5094
        %v5096 = vsel %vm2331, %v5002, 0.0
        %5097 = vadd.xlane.f32.xlu0 %v5096
        %v5098 = vpop.xlane.xlu0 %5097
        %v5099 = vxor.u32 %v5005, 2147483648
        %v5100 = vxor.u32 %v5008, 2147483648
        %v5101 = vxor.u32 %v5011, 2147483648
        %v5102 = vxor.u32 %v5014, 2147483648
        %v5103 = vxor.u32 %v5017, 2147483648
        %v5104 = vxor.u32 %v5020, 2147483648
        %v5105 = vxor.u32 %v5023, 2147483648
        %v5106 = vxor.u32 %v5026, 2147483648
        %v5107 = vxor.u32 %v5029, 2147483648
        %v5108 = vxor.u32 %v5032, 2147483648
        %v5109 = vxor.u32 %v5035, 2147483648
        %v5110 = vxor.u32 %v5038, 2147483648
        %v5111 = vxor.u32 %v5041, 2147483648
        %v5112 = vxor.u32 %v5044, 2147483648
        %v5113 = vxor.u32 %v5047, 2147483648
        %v5114 = vxor.u32 %v5050, 2147483648
        %v5115 = vxor.u32 %v5053, 2147483648
        %v5116 = vxor.u32 %v5056, 2147483648
        %v5117 = vxor.u32 %v5059, 2147483648
        %v5118 = vxor.u32 %v5062, 2147483648
        %v5119 = vxor.u32 %v5065, 2147483648
        %v5120 = vxor.u32 %v5068, 2147483648
        %v5121 = vxor.u32 %v5071, 2147483648
        %v5122 = vxor.u32 %v5074, 2147483648
        %v5123 = vxor.u32 %v5077, 2147483648
        %v5124 = vxor.u32 %v5080, 2147483648
        %v5125 = vxor.u32 %v5083, 2147483648
        %v5126 = vxor.u32 %v5086, 2147483648
        %v5127 = vxor.u32 %v5089, 2147483648
        %v5128 = vxor.u32 %v5092, 2147483648
        %v5129 = vxor.u32 %v5095, 2147483648
        %v5130 = vxor.u32 %v5098, 2147483648
        %v5131 = vmul.f32 %v5099, 1.442695
        %v5132 = vpow.pop %v5131
        %v5133 = vmul.f32 %v5100, 1.442695
        %v5134 = vpow.pop %v5133
        %v5135 = vmul.f32 %v5101, 1.442695
        %v5136 = vpow.pop %v5135
        %v5137 = vmul.f32 %v5102, 1.442695
        %v5138 = vpow.pop %v5137
        %v5139 = vmul.f32 %v5103, 1.442695
        %v5140 = vpow.pop %v5139
        %v5141 = vmul.f32 %v5104, 1.442695
        %v5142 = vpow.pop %v5141
        %v5143 = vmul.f32 %v5105, 1.442695
        %v5144 = vpow.pop %v5143
        %v5145 = vmul.f32 %v5106, 1.442695
        %v5146 = vpow.pop %v5145
        %v5147 = vmul.f32 %v5107, 1.442695
        %v5148 = vpow.pop %v5147
        %v5149 = vmul.f32 %v5108, 1.442695
        %v5150 = vpow.pop %v5149
        %v5151 = vmul.f32 %v5109, 1.442695
        %v5152 = vpow.pop %v5151
        %v5153 = vmul.f32 %v5110, 1.442695
        %v5154 = vpow.pop %v5153
        %v5155 = vmul.f32 %v5111, 1.442695
        %v5156 = vpow.pop %v5155
        %v5157 = vmul.f32 %v5112, 1.442695
        %v5158 = vpow.pop %v5157
        %v5159 = vmul.f32 %v5113, 1.442695
        %v5160 = vpow.pop %v5159
        %v5161 = vmul.f32 %v5114, 1.442695
        %v5162 = vpow.pop %v5161
        %v5163 = vmul.f32 %v5115, 1.442695
        %v5164 = vpow.pop %v5163
        %v5165 = vmul.f32 %v5116, 1.442695
        %v5166 = vpow.pop %v5165
        %v5167 = vmul.f32 %v5117, 1.442695
        %v5168 = vpow.pop %v5167
        %v5169 = vmul.f32 %v5118, 1.442695
        %v5170 = vpow.pop %v5169
        %v5171 = vmul.f32 %v5119, 1.442695
        %v5172 = vpow.pop %v5171
        %v5173 = vmul.f32 %v5120, 1.442695
        %v5174 = vpow.pop %v5173
        %v5175 = vmul.f32 %v5121, 1.442695
        %v5176 = vpow.pop %v5175
        %v5177 = vmul.f32 %v5122, 1.442695
        %v5178 = vpow.pop %v5177
        %v5179 = vmul.f32 %v5123, 1.442695
        %v5180 = vpow.pop %v5179
        %v5181 = vmul.f32 %v5124, 1.442695
        %v5182 = vpow.pop %v5181
        %v5183 = vmul.f32 %v5125, 1.442695
        %v5184 = vpow.pop %v5183
        %v5185 = vmul.f32 %v5126, 1.442695
        %v5186 = vpow.pop %v5185
        %v5187 = vmul.f32 %v5127, 1.442695
        %v5188 = vpow.pop %v5187
        %v5189 = vmul.f32 %v5128, 1.442695
        %v5190 = vpow.pop %v5189
        %v5191 = vmul.f32 %v5129, 1.442695
        %v5192 = vpow.pop %v5191
        %v5193 = vmul.f32 %v5130, 1.442695
        %v5194 = vpow.pop %v5193
        %v5195 = vadd.f32 %v5132, 1.0
        %v5196 = vadd.f32 %v5134, 1.0
        %v5197 = vadd.f32 %v5136, 1.0
        %v5198 = vadd.f32 %v5138, 1.0
        %v5199 = vadd.f32 %v5140, 1.0
        %v5200 = vadd.f32 %v5142, 1.0
        %v5201 = vadd.f32 %v5144, 1.0
        %v5202 = vadd.f32 %v5146, 1.0
        %v5203 = vadd.f32 %v5148, 1.0
        %v5204 = vadd.f32 %v5150, 1.0
        %v5205 = vadd.f32 %v5152, 1.0
        %v5206 = vadd.f32 %v5154, 1.0
        %v5207 = vadd.f32 %v5156, 1.0
        %v5208 = vadd.f32 %v5158, 1.0
        %v5209 = vadd.f32 %v5160, 1.0
        %v5210 = vadd.f32 %v5162, 1.0
        %v5211 = vadd.f32 %v5164, 1.0
        %v5212 = vadd.f32 %v5166, 1.0
        %v5213 = vadd.f32 %v5168, 1.0
        %v5214 = vadd.f32 %v5170, 1.0
        %v5215 = vadd.f32 %v5172, 1.0
        %v5216 = vadd.f32 %v5174, 1.0
        %v5217 = vadd.f32 %v5176, 1.0
        %v5218 = vadd.f32 %v5178, 1.0
        %v5219 = vadd.f32 %v5180, 1.0
        %v5220 = vadd.f32 %v5182, 1.0
        %v5221 = vadd.f32 %v5184, 1.0
        %v5222 = vadd.f32 %v5186, 1.0
        %v5223 = vadd.f32 %v5188, 1.0
        %v5224 = vadd.f32 %v5190, 1.0
        %v5225 = vadd.f32 %v5192, 1.0
        %v5226 = vadd.f32 %v5194, 1.0
        %v5227 = vrcp.pop %v5195
        %v5228 = vmul.f32 1.0, %v5227
        %v5229 = vrcp.pop %v5196
        %v5230 = vmul.f32 1.0, %v5229
        %v5231 = vrcp.pop %v5197
        %v5232 = vmul.f32 1.0, %v5231
        %v5233 = vrcp.pop %v5198
        %v5234 = vmul.f32 1.0, %v5233
        %v5235 = vrcp.pop %v5199
        %v5236 = vmul.f32 1.0, %v5235
        %v5237 = vrcp.pop %v5200
        %v5238 = vmul.f32 1.0, %v5237
        %v5239 = vrcp.pop %v5201
        %v5240 = vmul.f32 1.0, %v5239
        %v5241 = vrcp.pop %v5202
        %v5242 = vmul.f32 1.0, %v5241
        %v5243 = vrcp.pop %v5203
        %v5244 = vmul.f32 1.0, %v5243
        %v5245 = vrcp.pop %v5204
        %v5246 = vmul.f32 1.0, %v5245
        %v5247 = vrcp.pop %v5205
        %v5248 = vmul.f32 1.0, %v5247
        %v5249 = vrcp.pop %v5206
        %v5250 = vmul.f32 1.0, %v5249
        %v5251 = vrcp.pop %v5207
        %v5252 = vmul.f32 1.0, %v5251
        %v5253 = vrcp.pop %v5208
        %v5254 = vmul.f32 1.0, %v5253
        %v5255 = vrcp.pop %v5209
        %v5256 = vmul.f32 1.0, %v5255
        %v5257 = vrcp.pop %v5210
        %v5258 = vmul.f32 1.0, %v5257
        %v5259 = vrcp.pop %v5211
        %v5260 = vmul.f32 1.0, %v5259
        %v5261 = vrcp.pop %v5212
        %v5262 = vmul.f32 1.0, %v5261
        %v5263 = vrcp.pop %v5213
        %v5264 = vmul.f32 1.0, %v5263
        %v5265 = vrcp.pop %v5214
        %v5266 = vmul.f32 1.0, %v5265
        %v5267 = vrcp.pop %v5215
        %v5268 = vmul.f32 1.0, %v5267
        %v5269 = vrcp.pop %v5216
        %v5270 = vmul.f32 1.0, %v5269
        %v5271 = vrcp.pop %v5217
        %v5272 = vmul.f32 1.0, %v5271
        %v5273 = vrcp.pop %v5218
        %v5274 = vmul.f32 1.0, %v5273
        %v5275 = vrcp.pop %v5219
        %v5276 = vmul.f32 1.0, %v5275
        %v5277 = vrcp.pop %v5220
        %v5278 = vmul.f32 1.0, %v5277
        %v5279 = vrcp.pop %v5221
        %v5280 = vmul.f32 1.0, %v5279
        %v5281 = vrcp.pop %v5222
        %v5282 = vmul.f32 1.0, %v5281
        %v5283 = vrcp.pop %v5223
        %v5284 = vmul.f32 1.0, %v5283
        %v5285 = vrcp.pop %v5224
        %v5286 = vmul.f32 1.0, %v5285
        %v5287 = vrcp.pop %v5225
        %v5288 = vmul.f32 1.0, %v5287
        %v5289 = vrcp.pop %v5226
        %v5290 = vmul.f32 1.0, %v5289
        %v5291 = vmul.f32 %v4813, %v5228
        %v5292 = vmul.f32 %v4818, %v5230
        %v5293 = vmul.f32 %v4823, %v5232
        %v5294 = vmul.f32 %v4828, %v5234
        %v5295 = vmul.f32 %v4833, %v5236
        %v5296 = vmul.f32 %v4838, %v5238
        %v5297 = vmul.f32 %v4843, %v5240
        %v5298 = vmul.f32 %v4848, %v5242
        %v5299 = vmul.f32 %v4853, %v5244
        %v5300 = vmul.f32 %v4858, %v5246
        %v5301 = vmul.f32 %v4863, %v5248
        %v5302 = vmul.f32 %v4868, %v5250
        %v5303 = vmul.f32 %v4873, %v5252
        %v5304 = vmul.f32 %v4878, %v5254
        %v5305 = vmul.f32 %v4883, %v5256
        %v5306 = vmul.f32 %v4888, %v5258
        %v5307 = vmul.f32 %v4893, %v5260
        %v5308 = vmul.f32 %v4898, %v5262
        %v5309 = vmul.f32 %v4903, %v5264
        %v5310 = vmul.f32 %v4908, %v5266
        %v5311 = vmul.f32 %v4913, %v5268
        %v5312 = vmul.f32 %v4918, %v5270
        %v5313 = vmul.f32 %v4923, %v5272
        %v5314 = vmul.f32 %v4928, %v5274
        %v5315 = vmul.f32 %v4933, %v5276
        %v5316 = vmul.f32 %v4938, %v5278
        %v5317 = vmul.f32 %v4943, %v5280
        %v5318 = vmul.f32 %v4948, %v5282
        %v5319 = vmul.f32 %v4953, %v5284
        %v5320 = vmul.f32 %v4958, %v5286
        %v5321 = vmul.f32 %v4963, %v5288
        %v5322 = vmul.f32 %v4968, %v5290
        %v5323 = vtanh.pop %v5291
        %v5324 = vtanh.pop %v5292
        %v5325 = vtanh.pop %v5293
        %v5326 = vtanh.pop %v5294
        %v5327 = vtanh.pop %v5295
        %v5328 = vtanh.pop %v5296
        %v5329 = vtanh.pop %v5297
        %v5330 = vtanh.pop %v5298
        %v5331 = vtanh.pop %v5299
        %v5332 = vtanh.pop %v5300
        %v5333 = vtanh.pop %v5301
        %v5334 = vtanh.pop %v5302
        %v5335 = vtanh.pop %v5303
        %v5336 = vtanh.pop %v5304
        %v5337 = vtanh.pop %v5305
        %v5338 = vtanh.pop %v5306
        %v5339 = vtanh.pop %v5307
        %v5340 = vtanh.pop %v5308
        %v5341 = vtanh.pop %v5309
        %v5342 = vtanh.pop %v5310
        %v5343 = vtanh.pop %v5311
        %v5344 = vtanh.pop %v5312
        %v5345 = vtanh.pop %v5313
        %v5346 = vtanh.pop %v5314
        %v5347 = vtanh.pop %v5315
        %v5348 = vtanh.pop %v5316
        %v5349 = vtanh.pop %v5317
        %v5350 = vtanh.pop %v5318
        %v5351 = vtanh.pop %v5319
        %v5352 = vtanh.pop %v5320
        %v5353 = vtanh.pop %v5321
        %v5354 = vtanh.pop %v5322
        %vm5355 = vcmask 523264
        %5356 = vst.msk [vmem:[#allocation4] sm:$0xff] %vm5355, 0.0
        %5357 = vst.msk [vmem:[#allocation4 + $0x8] sm:$0xff] %vm5355, 0.0
        %vm5358 = vcmask 517120
        %5359 = vst.msk [vmem:[#allocation4 + $0x10] sm:$0x3] %vm5358, 0.0
        %5360 = vst.msk [vmem:[#allocation4 + $0x18] sm:$0xff] %vm5355, 0.0
        %5361 = vst.msk [vmem:[#allocation4 + $0x20] sm:$0xff] %vm5355, 0.0
        %5362 = vst.msk [vmem:[#allocation4 + $0x28] sm:$0x3] %vm5358, 0.0
        %5363 = vst.msk [vmem:[#allocation4 + $0x30] sm:$0xff] %vm5355, 0.0
        %5364 = vst.msk [vmem:[#allocation4 + $0x38] sm:$0xff] %vm5355, 0.0
        %5365 = vst.msk [vmem:[#allocation4 + $0x40] sm:$0x3] %vm5358, 0.0
        %5366 = vst.msk [vmem:[#allocation4 + $0x48] sm:$0xff] %vm5355, 0.0
        %5367 = vst.msk [vmem:[#allocation4 + $0x50] sm:$0xff] %vm5355, 0.0
        %5368 = vst.msk [vmem:[#allocation4 + $0x58] sm:$0x3] %vm5358, 0.0
        %5369 = vst.msk [vmem:[#allocation4 + $0x60] sm:$0xff] %vm5355, 0.0
        %5370 = vst.msk [vmem:[#allocation4 + $0x68] sm:$0xff] %vm5355, 0.0
        %5371 = vst.msk [vmem:[#allocation4 + $0x70] sm:$0x3] %vm5358, 0.0
        %5372 = vst.msk [vmem:[#allocation4 + $0x78] sm:$0xff] %vm5355, 0.0
        %5373 = vst.msk [vmem:[#allocation4 + $0x80] sm:$0xff] %vm5355, 0.0
        %5374 = vst.msk [vmem:[#allocation4 + $0x88] sm:$0x3] %vm5358, 0.0
        %5375 = vst.msk [vmem:[#allocation4 + $0x90] sm:$0xff] %vm5355, 0.0
        %5376 = vst.msk [vmem:[#allocation4 + $0x98] sm:$0xff] %vm5355, 0.0
        %5377 = vst.msk [vmem:[#allocation4 + $0xa0] sm:$0x3] %vm5358, 0.0
        %5378 = vst.msk [vmem:[#allocation4 + $0xa8] sm:$0xff] %vm5355, 0.0
        %5379 = vst.msk [vmem:[#allocation4 + $0xb0] sm:$0xff] %vm5355, 0.0
        %5380 = vst.msk [vmem:[#allocation4 + $0xb8] sm:$0x3] %vm5358, 0.0
        %5381 = vst.msk [vmem:[#allocation4 + $0xc0] sm:$0xff] %vm5355, 0.0
        %5382 = vst.msk [vmem:[#allocation4 + $0xc8] sm:$0xff] %vm5355, 0.0
        %5383 = vst.msk [vmem:[#allocation4 + $0xd0] sm:$0x3] %vm5358, 0.0
        %5384 = vst.msk [vmem:[#allocation4 + $0xd8] sm:$0xff] %vm5355, 0.0
        %5385 = vst.msk [vmem:[#allocation4 + $0xe0] sm:$0xff] %vm5355, 0.0
        %5386 = vst.msk [vmem:[#allocation4 + $0xe8] sm:$0x3] %vm5358, 0.0
        %5387 = vst.msk [vmem:[#allocation4 + $0xf0] sm:$0xff] %vm5355, 0.0
        %5388 = vst.msk [vmem:[#allocation4 + $0xf8] sm:$0xff] %vm5355, 0.0
        %5389 = vst.msk [vmem:[#allocation4 + $0x100] sm:$0x3] %vm5358, 0.0
        %5390 = vst.msk [vmem:[#allocation4 + $0x108] sm:$0xff] %vm5355, 0.0
        %5391 = vst.msk [vmem:[#allocation4 + $0x110] sm:$0xff] %vm5355, 0.0
        %5392 = vst.msk [vmem:[#allocation4 + $0x118] sm:$0x3] %vm5358, 0.0
        %5393 = vst.msk [vmem:[#allocation4 + $0x120] sm:$0xff] %vm5355, 0.0
        %5394 = vst.msk [vmem:[#allocation4 + $0x128] sm:$0xff] %vm5355, 0.0
        %5395 = vst.msk [vmem:[#allocation4 + $0x130] sm:$0x3] %vm5358, 0.0
        %5396 = vst.msk [vmem:[#allocation4 + $0x138] sm:$0xff] %vm5355, 0.0
        %5397 = vst.msk [vmem:[#allocation4 + $0x140] sm:$0xff] %vm5355, 0.0
        %5398 = vst.msk [vmem:[#allocation4 + $0x148] sm:$0x3] %vm5358, 0.0
        %5399 = vst.msk [vmem:[#allocation4 + $0x150] sm:$0xff] %vm5355, 0.0
        %5400 = vst.msk [vmem:[#allocation4 + $0x158] sm:$0xff] %vm5355, 0.0
        %5401 = vst.msk [vmem:[#allocation4 + $0x160] sm:$0x3] %vm5358, 0.0
        %5402 = vst.msk [vmem:[#allocation4 + $0x168] sm:$0xff] %vm5355, 0.0
        %5403 = vst.msk [vmem:[#allocation4 + $0x170] sm:$0xff] %vm5355, 0.0
        %5404 = vst.msk [vmem:[#allocation4 + $0x178] sm:$0x3] %vm5358, 0.0
        %5405 = vst.msk [vmem:[#allocation4 + $0x180] sm:$0xff] %vm5355, 0.0
        %5406 = vst.msk [vmem:[#allocation4 + $0x188] sm:$0xff] %vm5355, 0.0
        %5407 = vst.msk [vmem:[#allocation4 + $0x190] sm:$0x3] %vm5358, 0.0
        %5408 = vst.msk [vmem:[#allocation4 + $0x198] sm:$0xff] %vm5355, 0.0
        %5409 = vst.msk [vmem:[#allocation4 + $0x1a0] sm:$0xff] %vm5355, 0.0
        %5410 = vst.msk [vmem:[#allocation4 + $0x1a8] sm:$0x3] %vm5358, 0.0
        %5443 = vrot.lane.b32.xlu0 %v5323, 96
        %v5444 = vpop.permute.xlu0 %5443
        %5445 = vrot.lane.b32.xlu0 %v5324, 96
        %v5446 = vpop.permute.xlu0 %5445
        %5447 = vrot.lane.b32.xlu0 %v5325, 96
        %v5448 = vpop.permute.xlu0 %5447
        %5449 = vrot.lane.b32.xlu0 %v5326, 96
        %v5450 = vpop.permute.xlu0 %5449
        %5451 = vrot.lane.b32.xlu0 %v5327, 96
        %v5452 = vpop.permute.xlu0 %5451
        %5453 = vrot.lane.b32.xlu0 %v5328, 96
        %v5454 = vpop.permute.xlu0 %5453
        %5455 = vrot.lane.b32.xlu0 %v5329, 96
        %v5456 = vpop.permute.xlu0 %5455
        %5457 = vrot.lane.b32.xlu0 %v5330, 96
        %v5458 = vpop.permute.xlu0 %5457
        %5459 = vrot.lane.b32.xlu0 %v5331, 96
        %v5460 = vpop.permute.xlu0 %5459
        %5461 = vrot.lane.b32.xlu0 %v5332, 96
        %v5462 = vpop.permute.xlu0 %5461
        %5463 = vrot.lane.b32.xlu0 %v5333, 96
        %v5464 = vpop.permute.xlu0 %5463
        %5465 = vrot.lane.b32.xlu0 %v5334, 96
        %v5466 = vpop.permute.xlu0 %5465
        %5467 = vrot.lane.b32.xlu0 %v5335, 96
        %v5468 = vpop.permute.xlu0 %5467
        %5469 = vrot.lane.b32.xlu0 %v5336, 96
        %v5470 = vpop.permute.xlu0 %5469
        %5471 = vrot.lane.b32.xlu0 %v5337, 96
        %v5472 = vpop.permute.xlu0 %5471
        %5473 = vrot.lane.b32.xlu0 %v5338, 96
        %v5474 = vpop.permute.xlu0 %5473
        %5475 = vrot.lane.b32.xlu0 %v5339, 96
        %v5476 = vpop.permute.xlu0 %5475
        %5477 = vrot.lane.b32.xlu0 %v5340, 96
        %v5478 = vpop.permute.xlu0 %5477
        %5479 = vrot.lane.b32.xlu0 %v5341, 96
        %v5480 = vpop.permute.xlu0 %5479
        %5481 = vrot.lane.b32.xlu0 %v5342, 96
        %v5482 = vpop.permute.xlu0 %5481
        %5483 = vrot.lane.b32.xlu0 %v5343, 96
        %v5484 = vpop.permute.xlu0 %5483
        %5485 = vrot.lane.b32.xlu0 %v5344, 96
        %v5486 = vpop.permute.xlu0 %5485
        %5487 = vrot.lane.b32.xlu0 %v5345, 96
        %v5488 = vpop.permute.xlu0 %5487
        %5489 = vrot.lane.b32.xlu0 %v5346, 96
        %v5490 = vpop.permute.xlu0 %5489
        %5491 = vrot.lane.b32.xlu0 %v5347, 96
        %v5492 = vpop.permute.xlu0 %5491
        %5493 = vrot.lane.b32.xlu0 %v5348, 96
        %v5494 = vpop.permute.xlu0 %5493
        %5495 = vrot.lane.b32.xlu0 %v5349, 96
        %v5496 = vpop.permute.xlu0 %5495
        %5497 = vrot.lane.b32.xlu0 %v5350, 96
        %v5498 = vpop.permute.xlu0 %5497
        %5499 = vrot.lane.b32.xlu0 %v5351, 96
        %v5500 = vpop.permute.xlu0 %5499
        %5501 = vrot.lane.b32.xlu0 %v5352, 96
        %v5502 = vpop.permute.xlu0 %5501
        %5503 = vrot.lane.b32.xlu0 %v5353, 96
        %v5504 = vpop.permute.xlu0 %5503
        %5505 = vrot.lane.b32.xlu0 %v5354, 96
        %v5506 = vpop.permute.xlu0 %5505
        %s5539 = scalar_lea.vmem [#allocation4], 24
        %5540 = vst.msk [vmem:[%s5539 + $0x1] sm:$0xff] %vm2331, %v5444
        %5541 = vst.msk [vmem:[%s5539 + $0x9] sm:$0xff] %vm2331, %v5446
        %5542 = vst.msk [vmem:[%s5539 + $0x19] sm:$0xff] %vm2331, %v5448
        %5543 = vst.msk [vmem:[%s5539 + $0x21] sm:$0xff] %vm2331, %v5450
        %5544 = vst.msk [vmem:[%s5539 + $0x31] sm:$0xff] %vm2331, %v5452
        %5545 = vst.msk [vmem:[%s5539 + $0x39] sm:$0xff] %vm2331, %v5454
        %5546 = vst.msk [vmem:[%s5539 + $0x49] sm:$0xff] %vm2331, %v5456
        %5547 = vst.msk [vmem:[%s5539 + $0x51] sm:$0xff] %vm2331, %v5458
        %5548 = vst.msk [vmem:[%s5539 + $0x61] sm:$0xff] %vm2331, %v5460
        %5549 = vst.msk [vmem:[%s5539 + $0x69] sm:$0xff] %vm2331, %v5462
        %5550 = vst.msk [vmem:[%s5539 + $0x79] sm:$0xff] %vm2331, %v5464
        %5551 = vst.msk [vmem:[%s5539 + $0x81] sm:$0xff] %vm2331, %v5466
        %5552 = vst.msk [vmem:[%s5539 + $0x91] sm:$0xff] %vm2331, %v5468
        %5553 = vst.msk [vmem:[%s5539 + $0x99] sm:$0xff] %vm2331, %v5470
        %5554 = vst.msk [vmem:[%s5539 + $0xa9] sm:$0xff] %vm2331, %v5472
        %5555 = vst.msk [vmem:[%s5539 + $0xb1] sm:$0xff] %vm2331, %v5474
        %5556 = vst.msk [vmem:[%s5539 + $0xc1] sm:$0xff] %vm2331, %v5476
        %5557 = vst.msk [vmem:[%s5539 + $0xc9] sm:$0xff] %vm2331, %v5478
        %5558 = vst.msk [vmem:[%s5539 + $0xd9] sm:$0xff] %vm2331, %v5480
        %5559 = vst.msk [vmem:[%s5539 + $0xe1] sm:$0xff] %vm2331, %v5482
        %5560 = vst.msk [vmem:[%s5539 + $0xf1] sm:$0xff] %vm2331, %v5484
        %5561 = vst.msk [vmem:[%s5539 + $0xf9] sm:$0xff] %vm2331, %v5486
        %5562 = vst.msk [vmem:[%s5539 + $0x109] sm:$0xff] %vm2331, %v5488
        %5563 = vst.msk [vmem:[%s5539 + $0x111] sm:$0xff] %vm2331, %v5490
        %5564 = vst.msk [vmem:[%s5539 + $0x121] sm:$0xff] %vm2331, %v5492
        %5565 = vst.msk [vmem:[%s5539 + $0x129] sm:$0xff] %vm2331, %v5494
        %5566 = vst.msk [vmem:[%s5539 + $0x139] sm:$0xff] %vm2331, %v5496
        %5567 = vst.msk [vmem:[%s5539 + $0x141] sm:$0xff] %vm2331, %v5498
        %5568 = vst.msk [vmem:[%s5539 + $0x151] sm:$0xff] %vm2331, %v5500
        %5569 = vst.msk [vmem:[%s5539 + $0x159] sm:$0xff] %vm2331, %v5502
        %5570 = vst.msk [vmem:[%s5539 + $0x169] sm:$0xff] %vm2331, %v5504
        %5571 = vst.msk [vmem:[%s5539 + $0x171] sm:$0xff] %vm2331, %v5506
        %5572 = vrot.lane.b32.xlu0 %v4179, 96
        %v5573 = vpop.permute.xlu0 %5572
        %5574 = vrot.lane.b32.xlu0 %v4180, 96
        %v5575 = vpop.permute.xlu0 %5574
        %5576 = vrot.lane.b32.xlu0 %v4181, 96
        %v5577 = vpop.permute.xlu0 %5576
        %5578 = vrot.lane.b32.xlu0 %v4182, 96
        %v5579 = vpop.permute.xlu0 %5578
        %5580 = vrot.lane.b32.xlu0 %v4183, 96
        %v5581 = vpop.permute.xlu0 %5580
        %5582 = vrot.lane.b32.xlu0 %v4184, 96
        %v5583 = vpop.permute.xlu0 %5582
        %5584 = vrot.lane.b32.xlu0 %v4185, 96
        %v5585 = vpop.permute.xlu0 %5584
        %5586 = vrot.lane.b32.xlu0 %v4186, 96
        %v5587 = vpop.permute.xlu0 %5586
        %5588 = vrot.lane.b32.xlu0 %v4187, 96
        %v5589 = vpop.permute.xlu0 %5588
        %5590 = vrot.lane.b32.xlu0 %v4188, 96
        %v5591 = vpop.permute.xlu0 %5590
        %5592 = vrot.lane.b32.xlu0 %v4189, 96
        %v5593 = vpop.permute.xlu0 %5592
        %5594 = vrot.lane.b32.xlu0 %v4190, 96
        %v5595 = vpop.permute.xlu0 %5594
        %5596 = vrot.lane.b32.xlu0 %v4191, 96
        %v5597 = vpop.permute.xlu0 %5596
        %5598 = vrot.lane.b32.xlu0 %v4192, 96
        %v5599 = vpop.permute.xlu0 %5598
        %5600 = vrot.lane.b32.xlu0 %v4193, 96
        %v5601 = vpop.permute.xlu0 %5600
        %5602 = vrot.lane.b32.xlu0 %v4194, 96
        %v5603 = vpop.permute.xlu0 %5602
        %5604 = vrot.lane.b32.xlu0 %v4195, 96
        %v5605 = vpop.permute.xlu0 %5604
        %5606 = vrot.lane.b32.xlu0 %v4196, 96
        %v5607 = vpop.permute.xlu0 %5606
        %5608 = vrot.lane.b32.xlu0 %v4197, 96
        %v5609 = vpop.permute.xlu0 %5608
        %5610 = vrot.lane.b32.xlu0 %v4198, 96
        %v5611 = vpop.permute.xlu0 %5610
        %5612 = vrot.lane.b32.xlu0 %v4199, 96
        %v5613 = vpop.permute.xlu0 %5612
        %5614 = vrot.lane.b32.xlu0 %v4200, 96
        %v5615 = vpop.permute.xlu0 %5614
        %5616 = vrot.lane.b32.xlu0 %v4201, 96
        %v5617 = vpop.permute.xlu0 %5616
        %5618 = vrot.lane.b32.xlu0 %v4202, 96
        %v5619 = vpop.permute.xlu0 %5618
        %5620 = vrot.lane.b32.xlu0 %v4203, 96
        %v5621 = vpop.permute.xlu0 %5620
        %5622 = vrot.lane.b32.xlu0 %v4204, 96
        %v5623 = vpop.permute.xlu0 %5622
        %5624 = vrot.lane.b32.xlu0 %v4205, 96
        %v5625 = vpop.permute.xlu0 %5624
        %5626 = vrot.lane.b32.xlu0 %v4206, 96
        %v5627 = vpop.permute.xlu0 %5626
        %5628 = vrot.lane.b32.xlu0 %v4207, 96
        %v5629 = vpop.permute.xlu0 %5628
        %5630 = vrot.lane.b32.xlu0 %v4208, 96
        %v5631 = vpop.permute.xlu0 %5630
        %5632 = vrot.lane.b32.xlu0 %v4209, 96
        %v5633 = vpop.permute.xlu0 %5632
        %5634 = vrot.lane.b32.xlu0 %v4210, 96
        %v5635 = vpop.permute.xlu0 %5634
        %vm5668 = vcmask 523520
        %5669 = vst.msk [vmem:[%s5539 + $0x1] sm:$0xff] %vm5668, %v5573
        %5670 = vst.msk [vmem:[%s5539 + $0x9] sm:$0xff] %vm5668, %v5575
        %5671 = vst.msk [vmem:[%s5539 + $0x19] sm:$0xff] %vm5668, %v5577
        %5672 = vst.msk [vmem:[%s5539 + $0x21] sm:$0xff] %vm5668, %v5579
        %5673 = vst.msk [vmem:[%s5539 + $0x31] sm:$0xff] %vm5668, %v5581
        %5674 = vst.msk [vmem:[%s5539 + $0x39] sm:$0xff] %vm5668, %v5583
        %5675 = vst.msk [vmem:[%s5539 + $0x49] sm:$0xff] %vm5668, %v5585
        %5676 = vst.msk [vmem:[%s5539 + $0x51] sm:$0xff] %vm5668, %v5587
        %5677 = vst.msk [vmem:[%s5539 + $0x61] sm:$0xff] %vm5668, %v5589
        %5678 = vst.msk [vmem:[%s5539 + $0x69] sm:$0xff] %vm5668, %v5591
        %5679 = vst.msk [vmem:[%s5539 + $0x79] sm:$0xff] %vm5668, %v5593
        %5680 = vst.msk [vmem:[%s5539 + $0x81] sm:$0xff] %vm5668, %v5595
        %5681 = vst.msk [vmem:[%s5539 + $0x91] sm:$0xff] %vm5668, %v5597
        %5682 = vst.msk [vmem:[%s5539 + $0x99] sm:$0xff] %vm5668, %v5599
        %5683 = vst.msk [vmem:[%s5539 + $0xa9] sm:$0xff] %vm5668, %v5601
        %5684 = vst.msk [vmem:[%s5539 + $0xb1] sm:$0xff] %vm5668, %v5603
        %5685 = vst.msk [vmem:[%s5539 + $0xc1] sm:$0xff] %vm5668, %v5605
        %5686 = vst.msk [vmem:[%s5539 + $0xc9] sm:$0xff] %vm5668, %v5607
        %5687 = vst.msk [vmem:[%s5539 + $0xd9] sm:$0xff] %vm5668, %v5609
        %5688 = vst.msk [vmem:[%s5539 + $0xe1] sm:$0xff] %vm5668, %v5611
        %5689 = vst.msk [vmem:[%s5539 + $0xf1] sm:$0xff] %vm5668, %v5613
        %5690 = vst.msk [vmem:[%s5539 + $0xf9] sm:$0xff] %vm5668, %v5615
        %5691 = vst.msk [vmem:[%s5539 + $0x109] sm:$0xff] %vm5668, %v5617
        %5692 = vst.msk [vmem:[%s5539 + $0x111] sm:$0xff] %vm5668, %v5619
        %5693 = vst.msk [vmem:[%s5539 + $0x121] sm:$0xff] %vm5668, %v5621
        %5694 = vst.msk [vmem:[%s5539 + $0x129] sm:$0xff] %vm5668, %v5623
        %5695 = vst.msk [vmem:[%s5539 + $0x139] sm:$0xff] %vm5668, %v5625
        %5696 = vst.msk [vmem:[%s5539 + $0x141] sm:$0xff] %vm5668, %v5627
        %5697 = vst.msk [vmem:[%s5539 + $0x151] sm:$0xff] %vm5668, %v5629
        %5698 = vst.msk [vmem:[%s5539 + $0x159] sm:$0xff] %vm5668, %v5631
        %5699 = vst.msk [vmem:[%s5539 + $0x169] sm:$0xff] %vm5668, %v5633
        %5700 = vst.msk [vmem:[%s5539 + $0x171] sm:$0xff] %vm5668, %v5635
        %v5701 = vld [vmem:[#allocation4] sm:$0xff]
        %v5702 = vld [vmem:[#allocation4 + $0x8] sm:$0xff]
        %v5703 = vld [vmem:[#allocation4 + $0x18] sm:$0xff]
        %v5704 = vld [vmem:[#allocation4 + $0x20] sm:$0xff]
        %v5705 = vld [vmem:[#allocation4 + $0x30] sm:$0xff]
        %v5706 = vld [vmem:[#allocation4 + $0x38] sm:$0xff]
        %v5707 = vld [vmem:[#allocation4 + $0x48] sm:$0xff]
        %v5708 = vld [vmem:[#allocation4 + $0x50] sm:$0xff]
        %v5709 = vld [vmem:[#allocation4 + $0x60] sm:$0xff]
        %v5710 = vld [vmem:[#allocation4 + $0x68] sm:$0xff]
        %v5711 = vld [vmem:[#allocation4 + $0x78] sm:$0xff]
        %v5712 = vld [vmem:[#allocation4 + $0x80] sm:$0xff]
        %v5713 = vld [vmem:[#allocation4 + $0x90] sm:$0xff]
        %v5714 = vld [vmem:[#allocation4 + $0x98] sm:$0xff]
        %v5715 = vld [vmem:[#allocation4 + $0xa8] sm:$0xff]
        %v5716 = vld [vmem:[#allocation4 + $0xb0] sm:$0xff]
        %v5717 = vld [vmem:[#allocation4 + $0xc0] sm:$0xff]
        %v5718 = vld [vmem:[#allocation4 + $0xc8] sm:$0xff]
        %v5719 = vld [vmem:[#allocation4 + $0xd8] sm:$0xff]
        %v5720 = vld [vmem:[#allocation4 + $0xe0] sm:$0xff]
        %v5721 = vld [vmem:[#allocation4 + $0xf0] sm:$0xff]
        %v5722 = vld [vmem:[#allocation4 + $0xf8] sm:$0xff]
        %v5723 = vld [vmem:[#allocation4 + $0x108] sm:$0xff]
        %v5724 = vld [vmem:[#allocation4 + $0x110] sm:$0xff]
        %v5725 = vld [vmem:[#allocation4 + $0x120] sm:$0xff]
        %v5726 = vld [vmem:[#allocation4 + $0x128] sm:$0xff]
        %v5727 = vld [vmem:[#allocation4 + $0x138] sm:$0xff]
        %v5728 = vld [vmem:[#allocation4 + $0x140] sm:$0xff]
        %v5729 = vld [vmem:[#allocation4 + $0x150] sm:$0xff]
        %v5730 = vld [vmem:[#allocation4 + $0x158] sm:$0xff]
        %v5731 = vld [vmem:[#allocation4 + $0x168] sm:$0xff]
        %v5732 = vld [vmem:[#allocation4 + $0x170] sm:$0xff]
        %5733 = vst.msk [vmem:[#allocation5] sm:$0xff] %vm5355, %v5701
        %5734 = vst.msk [vmem:[#allocation5 + $0x28] sm:$0xff] %vm5355, %v5702
        %5735 = vst.msk [vmem:[#allocation5 + $0x50] sm:$0xff] %vm5355, %v5703
        %5736 = vst.msk [vmem:[#allocation5 + $0x78] sm:$0xff] %vm5355, %v5704
        %5737 = vst.msk [vmem:[#allocation5 + $0xa0] sm:$0xff] %vm5355, %v5705
        %5738 = vst.msk [vmem:[#allocation5 + $0xc8] sm:$0xff] %vm5355, %v5706
        %5739 = vst.msk [vmem:[#allocation5 + $0xf0] sm:$0xff] %vm5355, %v5707
        %5740 = vst.msk [vmem:[#allocation5 + $0x118] sm:$0xff] %vm5355, %v5708
        %5741 = vst.msk [vmem:[#allocation5 + $0x140] sm:$0xff] %vm5355, %v5709
        %5742 = vst.msk [vmem:[#allocation5 + $0x168] sm:$0xff] %vm5355, %v5710
        %5743 = vst.msk [vmem:[#allocation5 + $0x190] sm:$0xff] %vm5355, %v5711
        %5744 = vst.msk [vmem:[#allocation5 + $0x1b8] sm:$0xff] %vm5355, %v5712
        %5745 = vst.msk [vmem:[#allocation5 + $0x1e0] sm:$0xff] %vm5355, %v5713
        %5746 = vst.msk [vmem:[#allocation5 + $0x208] sm:$0xff] %vm5355, %v5714
        %5747 = vst.msk [vmem:[#allocation5 + $0x230] sm:$0xff] %vm5355, %v5715
        %5748 = vst.msk [vmem:[#allocation5 + $0x258] sm:$0xff] %vm5355, %v5716
        %5749 = vst.msk [vmem:[#allocation5 + $0x280] sm:$0xff] %vm5355, %v5717
        %5750 = vst.msk [vmem:[#allocation5 + $0x2a8] sm:$0xff] %vm5355, %v5718
        %5751 = vst.msk [vmem:[#allocation5 + $0x2d0] sm:$0xff] %vm5355, %v5719
        %5752 = vst.msk [vmem:[#allocation5 + $0x2f8] sm:$0xff] %vm5355, %v5720
        %5753 = vst.msk [vmem:[#allocation5 + $0x320] sm:$0xff] %vm5355, %v5721
        %5754 = vst.msk [vmem:[#allocation5 + $0x348] sm:$0xff] %vm5355, %v5722
        %5755 = vst.msk [vmem:[#allocation5 + $0x370] sm:$0xff] %vm5355, %v5723
        %5756 = vst.msk [vmem:[#allocation5 + $0x398] sm:$0xff] %vm5355, %v5724
        %5757 = vst.msk [vmem:[#allocation5 + $0x3c0] sm:$0xff] %vm5355, %v5725
        %5758 = vst.msk [vmem:[#allocation5 + $0x3e8] sm:$0xff] %vm5355, %v5726
        %5759 = vst.msk [vmem:[#allocation5 + $0x410] sm:$0xff] %vm5355, %v5727
        %5760 = vst.msk [vmem:[#allocation5 + $0x438] sm:$0xff] %vm5355, %v5728
        %5761 = vst.msk [vmem:[#allocation5 + $0x460] sm:$0xff] %vm5355, %v5729
        %5762 = vst.msk [vmem:[#allocation5 + $0x488] sm:$0xff] %vm5355, %v5730
        %5763 = vst.msk [vmem:[#allocation5 + $0x4b0] sm:$0xff] %vm5355, %v5731
        %5764 = vst.msk [vmem:[#allocation5 + $0x4d8] sm:$0xff] %vm5355, %v5732
        %v5765 = vld [vmem:[#allocation4 + $0x1] sm:$0xff]
        %v5766 = vld [vmem:[#allocation4 + $0x9] sm:$0xff]
        %v5767 = vld [vmem:[#allocation4 + $0x19] sm:$0xff]
        %v5768 = vld [vmem:[#allocation4 + $0x21] sm:$0xff]
        %v5769 = vld [vmem:[#allocation4 + $0x31] sm:$0xff]
        %v5770 = vld [vmem:[#allocation4 + $0x39] sm:$0xff]
        %v5771 = vld [vmem:[#allocation4 + $0x49] sm:$0xff]
        %v5772 = vld [vmem:[#allocation4 + $0x51] sm:$0xff]
        %v5773 = vld [vmem:[#allocation4 + $0x61] sm:$0xff]
        %v5774 = vld [vmem:[#allocation4 + $0x69] sm:$0xff]
        %v5775 = vld [vmem:[#allocation4 + $0x79] sm:$0xff]
        %v5776 = vld [vmem:[#allocation4 + $0x81] sm:$0xff]
        %v5777 = vld [vmem:[#allocation4 + $0x91] sm:$0xff]
        %v5778 = vld [vmem:[#allocation4 + $0x99] sm:$0xff]
        %v5779 = vld [vmem:[#allocation4 + $0xa9] sm:$0xff]
        %v5780 = vld [vmem:[#allocation4 + $0xb1] sm:$0xff]
        %v5781 = vld [vmem:[#allocation4 + $0xc1] sm:$0xff]
        %v5782 = vld [vmem:[#allocation4 + $0xc9] sm:$0xff]
        %v5783 = vld [vmem:[#allocation4 + $0xd9] sm:$0xff]
        %v5784 = vld [vmem:[#allocation4 + $0xe1] sm:$0xff]
        %v5785 = vld [vmem:[#allocation4 + $0xf1] sm:$0xff]
        %v5786 = vld [vmem:[#allocation4 + $0xf9] sm:$0xff]
        %v5787 = vld [vmem:[#allocation4 + $0x109] sm:$0xff]
        %v5788 = vld [vmem:[#allocation4 + $0x111] sm:$0xff]
        %v5789 = vld [vmem:[#allocation4 + $0x121] sm:$0xff]
        %v5790 = vld [vmem:[#allocation4 + $0x129] sm:$0xff]
        %v5791 = vld [vmem:[#allocation4 + $0x139] sm:$0xff]
        %v5792 = vld [vmem:[#allocation4 + $0x141] sm:$0xff]
        %v5793 = vld [vmem:[#allocation4 + $0x151] sm:$0xff]
        %v5794 = vld [vmem:[#allocation4 + $0x159] sm:$0xff]
        %v5795 = vld [vmem:[#allocation4 + $0x169] sm:$0xff]
        %v5796 = vld [vmem:[#allocation4 + $0x171] sm:$0xff]
        %5829 = vrot.lane.b32.xlu0 %v5765, 64
        %v5830 = vpop.permute.xlu0 %5829
        %5831 = vrot.lane.b32.xlu0 %v5766, 64
        %v5832 = vpop.permute.xlu0 %5831
        %5833 = vrot.lane.b32.xlu0 %v5767, 64
        %v5834 = vpop.permute.xlu0 %5833
        %5835 = vrot.lane.b32.xlu0 %v5768, 64
        %v5836 = vpop.permute.xlu0 %5835
        %5837 = vrot.lane.b32.xlu0 %v5769, 64
        %v5838 = vpop.permute.xlu0 %5837
        %5839 = vrot.lane.b32.xlu0 %v5770, 64
        %v5840 = vpop.permute.xlu0 %5839
        %5841 = vrot.lane.b32.xlu0 %v5771, 64
        %v5842 = vpop.permute.xlu0 %5841
        %5843 = vrot.lane.b32.xlu0 %v5772, 64
        %v5844 = vpop.permute.xlu0 %5843
        %5845 = vrot.lane.b32.xlu0 %v5773, 64
        %v5846 = vpop.permute.xlu0 %5845
        %5847 = vrot.lane.b32.xlu0 %v5774, 64
        %v5848 = vpop.permute.xlu0 %5847
        %5849 = vrot.lane.b32.xlu0 %v5775, 64
        %v5850 = vpop.permute.xlu0 %5849
        %5851 = vrot.lane.b32.xlu0 %v5776, 64
        %v5852 = vpop.permute.xlu0 %5851
        %5853 = vrot.lane.b32.xlu0 %v5777, 64
        %v5854 = vpop.permute.xlu0 %5853
        %5855 = vrot.lane.b32.xlu0 %v5778, 64
        %v5856 = vpop.permute.xlu0 %5855
        %5857 = vrot.lane.b32.xlu0 %v5779, 64
        %v5858 = vpop.permute.xlu0 %5857
        %5859 = vrot.lane.b32.xlu0 %v5780, 64
        %v5860 = vpop.permute.xlu0 %5859
        %5861 = vrot.lane.b32.xlu0 %v5781, 64
        %v5862 = vpop.permute.xlu0 %5861
        %5863 = vrot.lane.b32.xlu0 %v5782, 64
        %v5864 = vpop.permute.xlu0 %5863
        %5865 = vrot.lane.b32.xlu0 %v5783, 64
        %v5866 = vpop.permute.xlu0 %5865
        %5867 = vrot.lane.b32.xlu0 %v5784, 64
        %v5868 = vpop.permute.xlu0 %5867
        %5869 = vrot.lane.b32.xlu0 %v5785, 64
        %v5870 = vpop.permute.xlu0 %5869
        %5871 = vrot.lane.b32.xlu0 %v5786, 64
        %v5872 = vpop.permute.xlu0 %5871
        %5873 = vrot.lane.b32.xlu0 %v5787, 64
        %v5874 = vpop.permute.xlu0 %5873
        %5875 = vrot.lane.b32.xlu0 %v5788, 64
        %v5876 = vpop.permute.xlu0 %5875
        %5877 = vrot.lane.b32.xlu0 %v5789, 64
        %v5878 = vpop.permute.xlu0 %5877
        %5879 = vrot.lane.b32.xlu0 %v5790, 64
        %v5880 = vpop.permute.xlu0 %5879
        %5881 = vrot.lane.b32.xlu0 %v5791, 64
        %v5882 = vpop.permute.xlu0 %5881
        %5883 = vrot.lane.b32.xlu0 %v5792, 64
        %v5884 = vpop.permute.xlu0 %5883
        %5885 = vrot.lane.b32.xlu0 %v5793, 64
        %v5886 = vpop.permute.xlu0 %5885
        %5887 = vrot.lane.b32.xlu0 %v5794, 64
        %v5888 = vpop.permute.xlu0 %5887
        %5889 = vrot.lane.b32.xlu0 %v5795, 64
        %v5890 = vpop.permute.xlu0 %5889
        %5891 = vrot.lane.b32.xlu0 %v5796, 64
        %v5892 = vpop.permute.xlu0 %5891
        %vm5925 = vcmask 1048064
        %5926 = vst.msk [vmem:[#allocation5] sm:$0xff] %vm5925, %v5830
        %5927 = vst.msk [vmem:[#allocation5 + $0x28] sm:$0xff] %vm5925, %v5832
        %5928 = vst.msk [vmem:[#allocation5 + $0x50] sm:$0xff] %vm5925, %v5834
        %5929 = vst.msk [vmem:[#allocation5 + $0x78] sm:$0xff] %vm5925, %v5836
        %5930 = vst.msk [vmem:[#allocation5 + $0xa0] sm:$0xff] %vm5925, %v5838
        %5931 = vst.msk [vmem:[#allocation5 + $0xc8] sm:$0xff] %vm5925, %v5840
        %5932 = vst.msk [vmem:[#allocation5 + $0xf0] sm:$0xff] %vm5925, %v5842
        %5933 = vst.msk [vmem:[#allocation5 + $0x118] sm:$0xff] %vm5925, %v5844
        %5934 = vst.msk [vmem:[#allocation5 + $0x140] sm:$0xff] %vm5925, %v5846
        %5935 = vst.msk [vmem:[#allocation5 + $0x168] sm:$0xff] %vm5925, %v5848
        %5936 = vst.msk [vmem:[#allocation5 + $0x190] sm:$0xff] %vm5925, %v5850
        %5937 = vst.msk [vmem:[#allocation5 + $0x1b8] sm:$0xff] %vm5925, %v5852
        %5938 = vst.msk [vmem:[#allocation5 + $0x1e0] sm:$0xff] %vm5925, %v5854
        %5939 = vst.msk [vmem:[#allocation5 + $0x208] sm:$0xff] %vm5925, %v5856
        %5940 = vst.msk [vmem:[#allocation5 + $0x230] sm:$0xff] %vm5925, %v5858
        %5941 = vst.msk [vmem:[#allocation5 + $0x258] sm:$0xff] %vm5925, %v5860
        %5942 = vst.msk [vmem:[#allocation5 + $0x280] sm:$0xff] %vm5925, %v5862
        %5943 = vst.msk [vmem:[#allocation5 + $0x2a8] sm:$0xff] %vm5925, %v5864
        %5944 = vst.msk [vmem:[#allocation5 + $0x2d0] sm:$0xff] %vm5925, %v5866
        %5945 = vst.msk [vmem:[#allocation5 + $0x2f8] sm:$0xff] %vm5925, %v5868
        %5946 = vst.msk [vmem:[#allocation5 + $0x320] sm:$0xff] %vm5925, %v5870
        %5947 = vst.msk [vmem:[#allocation5 + $0x348] sm:$0xff] %vm5925, %v5872
        %5948 = vst.msk [vmem:[#allocation5 + $0x370] sm:$0xff] %vm5925, %v5874
        %5949 = vst.msk [vmem:[#allocation5 + $0x398] sm:$0xff] %vm5925, %v5876
        %5950 = vst.msk [vmem:[#allocation5 + $0x3c0] sm:$0xff] %vm5925, %v5878
        %5951 = vst.msk [vmem:[#allocation5 + $0x3e8] sm:$0xff] %vm5925, %v5880
        %5952 = vst.msk [vmem:[#allocation5 + $0x410] sm:$0xff] %vm5925, %v5882
        %5953 = vst.msk [vmem:[#allocation5 + $0x438] sm:$0xff] %vm5925, %v5884
        %5954 = vst.msk [vmem:[#allocation5 + $0x460] sm:$0xff] %vm5925, %v5886
        %5955 = vst.msk [vmem:[#allocation5 + $0x488] sm:$0xff] %vm5925, %v5888
        %5956 = vst.msk [vmem:[#allocation5 + $0x4b0] sm:$0xff] %vm5925, %v5890
        %5957 = vst.msk [vmem:[#allocation5 + $0x4d8] sm:$0xff] %vm5925, %v5892
        %v5958 = vld [vmem:[#allocation4 + $0x2] sm:$0xff]
        %v5959 = vld [vmem:[#allocation4 + $0xa] sm:$0xff]
        %v5960 = vld [vmem:[#allocation4 + $0x1a] sm:$0xff]
        %v5961 = vld [vmem:[#allocation4 + $0x22] sm:$0xff]
        %v5962 = vld [vmem:[#allocation4 + $0x32] sm:$0xff]
        %v5963 = vld [vmem:[#allocation4 + $0x3a] sm:$0xff]
        %v5964 = vld [vmem:[#allocation4 + $0x4a] sm:$0xff]
        %v5965 = vld [vmem:[#allocation4 + $0x52] sm:$0xff]
        %v5966 = vld [vmem:[#allocation4 + $0x62] sm:$0xff]
        %v5967 = vld [vmem:[#allocation4 + $0x6a] sm:$0xff]
        %v5968 = vld [vmem:[#allocation4 + $0x7a] sm:$0xff]
        %v5969 = vld [vmem:[#allocation4 + $0x82] sm:$0xff]
        %v5970 = vld [vmem:[#allocation4 + $0x92] sm:$0xff]
        %v5971 = vld [vmem:[#allocation4 + $0x9a] sm:$0xff]
        %v5972 = vld [vmem:[#allocation4 + $0xaa] sm:$0xff]
        %v5973 = vld [vmem:[#allocation4 + $0xb2] sm:$0xff]
        %v5974 = vld [vmem:[#allocation4 + $0xc2] sm:$0xff]
        %v5975 = vld [vmem:[#allocation4 + $0xca] sm:$0xff]
        %v5976 = vld [vmem:[#allocation4 + $0xda] sm:$0xff]
        %v5977 = vld [vmem:[#allocation4 + $0xe2] sm:$0xff]
        %v5978 = vld [vmem:[#allocation4 + $0xf2] sm:$0xff]
        %v5979 = vld [vmem:[#allocation4 + $0xfa] sm:$0xff]
        %v5980 = vld [vmem:[#allocation4 + $0x10a] sm:$0xff]
        %v5981 = vld [vmem:[#allocation4 + $0x112] sm:$0xff]
        %v5982 = vld [vmem:[#allocation4 + $0x122] sm:$0xff]
        %v5983 = vld [vmem:[#allocation4 + $0x12a] sm:$0xff]
        %v5984 = vld [vmem:[#allocation4 + $0x13a] sm:$0xff]
        %v5985 = vld [vmem:[#allocation4 + $0x142] sm:$0xff]
        %v5986 = vld [vmem:[#allocation4 + $0x152] sm:$0xff]
        %v5987 = vld [vmem:[#allocation4 + $0x15a] sm:$0xff]
        %v5988 = vld [vmem:[#allocation4 + $0x16a] sm:$0xff]
        %v5989 = vld [vmem:[#allocation4 + $0x172] sm:$0xff]
        %5990 = vst.msk [vmem:[#allocation5 + $0x8] sm:$0xff] %vm5355, %v5958
        %5991 = vst.msk [vmem:[#allocation5 + $0x30] sm:$0xff] %vm5355, %v5959
        %5992 = vst.msk [vmem:[#allocation5 + $0x58] sm:$0xff] %vm5355, %v5960
        %5993 = vst.msk [vmem:[#allocation5 + $0x80] sm:$0xff] %vm5355, %v5961
        %5994 = vst.msk [vmem:[#allocation5 + $0xa8] sm:$0xff] %vm5355, %v5962
        %5995 = vst.msk [vmem:[#allocation5 + $0xd0] sm:$0xff] %vm5355, %v5963
        %5996 = vst.msk [vmem:[#allocation5 + $0xf8] sm:$0xff] %vm5355, %v5964
        %5997 = vst.msk [vmem:[#allocation5 + $0x120] sm:$0xff] %vm5355, %v5965
        %5998 = vst.msk [vmem:[#allocation5 + $0x148] sm:$0xff] %vm5355, %v5966
        %5999 = vst.msk [vmem:[#allocation5 + $0x170] sm:$0xff] %vm5355, %v5967
        %6000 = vst.msk [vmem:[#allocation5 + $0x198] sm:$0xff] %vm5355, %v5968
        %6001 = vst.msk [vmem:[#allocation5 + $0x1c0] sm:$0xff] %vm5355, %v5969
        %6002 = vst.msk [vmem:[#allocation5 + $0x1e8] sm:$0xff] %vm5355, %v5970
        %6003 = vst.msk [vmem:[#allocation5 + $0x210] sm:$0xff] %vm5355, %v5971
        %6004 = vst.msk [vmem:[#allocation5 + $0x238] sm:$0xff] %vm5355, %v5972
        %6005 = vst.msk [vmem:[#allocation5 + $0x260] sm:$0xff] %vm5355, %v5973
        %6006 = vst.msk [vmem:[#allocation5 + $0x288] sm:$0xff] %vm5355, %v5974
        %6007 = vst.msk [vmem:[#allocation5 + $0x2b0] sm:$0xff] %vm5355, %v5975
        %6008 = vst.msk [vmem:[#allocation5 + $0x2d8] sm:$0xff] %vm5355, %v5976
        %6009 = vst.msk [vmem:[#allocation5 + $0x300] sm:$0xff] %vm5355, %v5977
        %6010 = vst.msk [vmem:[#allocation5 + $0x328] sm:$0xff] %vm5355, %v5978
        %6011 = vst.msk [vmem:[#allocation5 + $0x350] sm:$0xff] %vm5355, %v5979
        %6012 = vst.msk [vmem:[#allocation5 + $0x378] sm:$0xff] %vm5355, %v5980
        %6013 = vst.msk [vmem:[#allocation5 + $0x3a0] sm:$0xff] %vm5355, %v5981
        %6014 = vst.msk [vmem:[#allocation5 + $0x3c8] sm:$0xff] %vm5355, %v5982
        %6015 = vst.msk [vmem:[#allocation5 + $0x3f0] sm:$0xff] %vm5355, %v5983
        %6016 = vst.msk [vmem:[#allocation5 + $0x418] sm:$0xff] %vm5355, %v5984
        %6017 = vst.msk [vmem:[#allocation5 + $0x440] sm:$0xff] %vm5355, %v5985
        %6018 = vst.msk [vmem:[#allocation5 + $0x468] sm:$0xff] %vm5355, %v5986
        %6019 = vst.msk [vmem:[#allocation5 + $0x490] sm:$0xff] %vm5355, %v5987
        %6020 = vst.msk [vmem:[#allocation5 + $0x4b8] sm:$0xff] %vm5355, %v5988
        %6021 = vst.msk [vmem:[#allocation5 + $0x4e0] sm:$0xff] %vm5355, %v5989
        %v6022 = vld [vmem:[%s5539] sm:$0xff]
        %v6023 = vld [vmem:[%s5539 + $0x8] sm:$0xff]
        %v6024 = vld [vmem:[%s5539 + $0x18] sm:$0xff]
        %v6025 = vld [vmem:[%s5539 + $0x20] sm:$0xff]
        %v6026 = vld [vmem:[%s5539 + $0x30] sm:$0xff]
        %v6027 = vld [vmem:[%s5539 + $0x38] sm:$0xff]
        %v6028 = vld [vmem:[%s5539 + $0x48] sm:$0xff]
        %v6029 = vld [vmem:[%s5539 + $0x50] sm:$0xff]
        %v6030 = vld [vmem:[%s5539 + $0x60] sm:$0xff]
        %v6031 = vld [vmem:[%s5539 + $0x68] sm:$0xff]
        %v6032 = vld [vmem:[%s5539 + $0x78] sm:$0xff]
        %v6033 = vld [vmem:[%s5539 + $0x80] sm:$0xff]
        %v6034 = vld [vmem:[%s5539 + $0x90] sm:$0xff]
        %v6035 = vld [vmem:[%s5539 + $0x98] sm:$0xff]
        %v6036 = vld [vmem:[%s5539 + $0xa8] sm:$0xff]
        %v6037 = vld [vmem:[%s5539 + $0xb0] sm:$0xff]
        %v6038 = vld [vmem:[%s5539 + $0xc0] sm:$0xff]
        %v6039 = vld [vmem:[%s5539 + $0xc8] sm:$0xff]
        %v6040 = vld [vmem:[%s5539 + $0xd8] sm:$0xff]
        %v6041 = vld [vmem:[%s5539 + $0xe0] sm:$0xff]
        %v6042 = vld [vmem:[%s5539 + $0xf0] sm:$0xff]
        %v6043 = vld [vmem:[%s5539 + $0xf8] sm:$0xff]
        %v6044 = vld [vmem:[%s5539 + $0x108] sm:$0xff]
        %v6045 = vld [vmem:[%s5539 + $0x110] sm:$0xff]
        %v6046 = vld [vmem:[%s5539 + $0x120] sm:$0xff]
        %v6047 = vld [vmem:[%s5539 + $0x128] sm:$0xff]
        %v6048 = vld [vmem:[%s5539 + $0x138] sm:$0xff]
        %v6049 = vld [vmem:[%s5539 + $0x140] sm:$0xff]
        %v6050 = vld [vmem:[%s5539 + $0x150] sm:$0xff]
        %v6051 = vld [vmem:[%s5539 + $0x158] sm:$0xff]
        %v6052 = vld [vmem:[%s5539 + $0x168] sm:$0xff]
        %v6053 = vld [vmem:[%s5539 + $0x170] sm:$0xff]
        %6086 = vrot.lane.b32.xlu0 %v6022, 64
        %v6087 = vpop.permute.xlu0 %6086
        %6088 = vrot.lane.b32.xlu0 %v6023, 64
        %v6089 = vpop.permute.xlu0 %6088
        %6090 = vrot.lane.b32.xlu0 %v6024, 64
        %v6091 = vpop.permute.xlu0 %6090
        %6092 = vrot.lane.b32.xlu0 %v6025, 64
        %v6093 = vpop.permute.xlu0 %6092
        %6094 = vrot.lane.b32.xlu0 %v6026, 64
        %v6095 = vpop.permute.xlu0 %6094
        %6096 = vrot.lane.b32.xlu0 %v6027, 64
        %v6097 = vpop.permute.xlu0 %6096
        %6098 = vrot.lane.b32.xlu0 %v6028, 64
        %v6099 = vpop.permute.xlu0 %6098
        %6100 = vrot.lane.b32.xlu0 %v6029, 64
        %v6101 = vpop.permute.xlu0 %6100
        %6102 = vrot.lane.b32.xlu0 %v6030, 64
        %v6103 = vpop.permute.xlu0 %6102
        %6104 = vrot.lane.b32.xlu0 %v6031, 64
        %v6105 = vpop.permute.xlu0 %6104
        %6106 = vrot.lane.b32.xlu0 %v6032, 64
        %v6107 = vpop.permute.xlu0 %6106
        %6108 = vrot.lane.b32.xlu0 %v6033, 64
        %v6109 = vpop.permute.xlu0 %6108
        %6110 = vrot.lane.b32.xlu0 %v6034, 64
        %v6111 = vpop.permute.xlu0 %6110
        %6112 = vrot.lane.b32.xlu0 %v6035, 64
        %v6113 = vpop.permute.xlu0 %6112
        %6114 = vrot.lane.b32.xlu0 %v6036, 64
        %v6115 = vpop.permute.xlu0 %6114
        %6116 = vrot.lane.b32.xlu0 %v6037, 64
        %v6117 = vpop.permute.xlu0 %6116
        %6118 = vrot.lane.b32.xlu0 %v6038, 64
        %v6119 = vpop.permute.xlu0 %6118
        %6120 = vrot.lane.b32.xlu0 %v6039, 64
        %v6121 = vpop.permute.xlu0 %6120
        %6122 = vrot.lane.b32.xlu0 %v6040, 64
        %v6123 = vpop.permute.xlu0 %6122
        %6124 = vrot.lane.b32.xlu0 %v6041, 64
        %v6125 = vpop.permute.xlu0 %6124
        %6126 = vrot.lane.b32.xlu0 %v6042, 64
        %v6127 = vpop.permute.xlu0 %6126
        %6128 = vrot.lane.b32.xlu0 %v6043, 64
        %v6129 = vpop.permute.xlu0 %6128
        %6130 = vrot.lane.b32.xlu0 %v6044, 64
        %v6131 = vpop.permute.xlu0 %6130
        %6132 = vrot.lane.b32.xlu0 %v6045, 64
        %v6133 = vpop.permute.xlu0 %6132
        %6134 = vrot.lane.b32.xlu0 %v6046, 64
        %v6135 = vpop.permute.xlu0 %6134
        %6136 = vrot.lane.b32.xlu0 %v6047, 64
        %v6137 = vpop.permute.xlu0 %6136
        %6138 = vrot.lane.b32.xlu0 %v6048, 64
        %v6139 = vpop.permute.xlu0 %6138
        %6140 = vrot.lane.b32.xlu0 %v6049, 64
        %v6141 = vpop.permute.xlu0 %6140
        %6142 = vrot.lane.b32.xlu0 %v6050, 64
        %v6143 = vpop.permute.xlu0 %6142
        %6144 = vrot.lane.b32.xlu0 %v6051, 64
        %v6145 = vpop.permute.xlu0 %6144
        %6146 = vrot.lane.b32.xlu0 %v6052, 64
        %v6147 = vpop.permute.xlu0 %6146
        %6148 = vrot.lane.b32.xlu0 %v6053, 64
        %v6149 = vpop.permute.xlu0 %6148
        %6182 = vst.msk [vmem:[#allocation5 + $0x8] sm:$0xff] %vm5925, %v6087
        %6183 = vst.msk [vmem:[#allocation5 + $0x30] sm:$0xff] %vm5925, %v6089
        %6184 = vst.msk [vmem:[#allocation5 + $0x58] sm:$0xff] %vm5925, %v6091
        %6185 = vst.msk [vmem:[#allocation5 + $0x80] sm:$0xff] %vm5925, %v6093
        %6186 = vst.msk [vmem:[#allocation5 + $0xa8] sm:$0xff] %vm5925, %v6095
        %6187 = vst.msk [vmem:[#allocation5 + $0xd0] sm:$0xff] %vm5925, %v6097
        %6188 = vst.msk [vmem:[#allocation5 + $0xf8] sm:$0xff] %vm5925, %v6099
        %6189 = vst.msk [vmem:[#allocation5 + $0x120] sm:$0xff] %vm5925, %v6101
        %6190 = vst.msk [vmem:[#allocation5 + $0x148] sm:$0xff] %vm5925, %v6103
        %6191 = vst.msk [vmem:[#allocation5 + $0x170] sm:$0xff] %vm5925, %v6105
        %6192 = vst.msk [vmem:[#allocation5 + $0x198] sm:$0xff] %vm5925, %v6107
        %6193 = vst.msk [vmem:[#allocation5 + $0x1c0] sm:$0xff] %vm5925, %v6109
        %6194 = vst.msk [vmem:[#allocation5 + $0x1e8] sm:$0xff] %vm5925, %v6111
        %6195 = vst.msk [vmem:[#allocation5 + $0x210] sm:$0xff] %vm5925, %v6113
        %6196 = vst.msk [vmem:[#allocation5 + $0x238] sm:$0xff] %vm5925, %v6115
        %6197 = vst.msk [vmem:[#allocation5 + $0x260] sm:$0xff] %vm5925, %v6117
        %6198 = vst.msk [vmem:[#allocation5 + $0x288] sm:$0xff] %vm5925, %v6119
        %6199 = vst.msk [vmem:[#allocation5 + $0x2b0] sm:$0xff] %vm5925, %v6121
        %6200 = vst.msk [vmem:[#allocation5 + $0x2d8] sm:$0xff] %vm5925, %v6123
        %6201 = vst.msk [vmem:[#allocation5 + $0x300] sm:$0xff] %vm5925, %v6125
        %6202 = vst.msk [vmem:[#allocation5 + $0x328] sm:$0xff] %vm5925, %v6127
        %6203 = vst.msk [vmem:[#allocation5 + $0x350] sm:$0xff] %vm5925, %v6129
        %6204 = vst.msk [vmem:[#allocation5 + $0x378] sm:$0xff] %vm5925, %v6131
        %6205 = vst.msk [vmem:[#allocation5 + $0x3a0] sm:$0xff] %vm5925, %v6133
        %6206 = vst.msk [vmem:[#allocation5 + $0x3c8] sm:$0xff] %vm5925, %v6135
        %6207 = vst.msk [vmem:[#allocation5 + $0x3f0] sm:$0xff] %vm5925, %v6137
        %6208 = vst.msk [vmem:[#allocation5 + $0x418] sm:$0xff] %vm5925, %v6139
        %6209 = vst.msk [vmem:[#allocation5 + $0x440] sm:$0xff] %vm5925, %v6141
        %6210 = vst.msk [vmem:[#allocation5 + $0x468] sm:$0xff] %vm5925, %v6143
        %6211 = vst.msk [vmem:[#allocation5 + $0x490] sm:$0xff] %vm5925, %v6145
        %6212 = vst.msk [vmem:[#allocation5 + $0x4b8] sm:$0xff] %vm5925, %v6147
        %6213 = vst.msk [vmem:[#allocation5 + $0x4e0] sm:$0xff] %vm5925, %v6149
        %v6214 = vld [vmem:[%s5539 + $0x1] sm:$0xff]
        %v6215 = vld [vmem:[%s5539 + $0x9] sm:$0xff]
        %v6216 = vld [vmem:[%s5539 + $0x19] sm:$0xff]
        %v6217 = vld [vmem:[%s5539 + $0x21] sm:$0xff]
        %v6218 = vld [vmem:[%s5539 + $0x31] sm:$0xff]
        %v6219 = vld [vmem:[%s5539 + $0x39] sm:$0xff]
        %v6220 = vld [vmem:[%s5539 + $0x49] sm:$0xff]
        %v6221 = vld [vmem:[%s5539 + $0x51] sm:$0xff]
        %v6222 = vld [vmem:[%s5539 + $0x61] sm:$0xff]
        %v6223 = vld [vmem:[%s5539 + $0x69] sm:$0xff]
        %v6224 = vld [vmem:[%s5539 + $0x79] sm:$0xff]
        %v6225 = vld [vmem:[%s5539 + $0x81] sm:$0xff]
        %v6226 = vld [vmem:[%s5539 + $0x91] sm:$0xff]
        %v6227 = vld [vmem:[%s5539 + $0x99] sm:$0xff]
        %v6228 = vld [vmem:[%s5539 + $0xa9] sm:$0xff]
        %v6229 = vld [vmem:[%s5539 + $0xb1] sm:$0xff]
        %v6230 = vld [vmem:[%s5539 + $0xc1] sm:$0xff]
        %v6231 = vld [vmem:[%s5539 + $0xc9] sm:$0xff]
        %v6232 = vld [vmem:[%s5539 + $0xd9] sm:$0xff]
        %v6233 = vld [vmem:[%s5539 + $0xe1] sm:$0xff]
        %v6234 = vld [vmem:[%s5539 + $0xf1] sm:$0xff]
        %v6235 = vld [vmem:[%s5539 + $0xf9] sm:$0xff]
        %v6236 = vld [vmem:[%s5539 + $0x109] sm:$0xff]
        %v6237 = vld [vmem:[%s5539 + $0x111] sm:$0xff]
        %v6238 = vld [vmem:[%s5539 + $0x121] sm:$0xff]
        %v6239 = vld [vmem:[%s5539 + $0x129] sm:$0xff]
        %v6240 = vld [vmem:[%s5539 + $0x139] sm:$0xff]
        %v6241 = vld [vmem:[%s5539 + $0x141] sm:$0xff]
        %v6242 = vld [vmem:[%s5539 + $0x151] sm:$0xff]
        %v6243 = vld [vmem:[%s5539 + $0x159] sm:$0xff]
        %v6244 = vld [vmem:[%s5539 + $0x169] sm:$0xff]
        %v6245 = vld [vmem:[%s5539 + $0x171] sm:$0xff]
        %6246 = vst.msk [vmem:[#allocation5 + $0x10] sm:$0xff] %vm5355, %v6214
        %6247 = vst.msk [vmem:[#allocation5 + $0x38] sm:$0xff] %vm5355, %v6215
        %6248 = vst.msk [vmem:[#allocation5 + $0x60] sm:$0xff] %vm5355, %v6216
        %6249 = vst.msk [vmem:[#allocation5 + $0x88] sm:$0xff] %vm5355, %v6217
        %6250 = vst.msk [vmem:[#allocation5 + $0xb0] sm:$0xff] %vm5355, %v6218
        %6251 = vst.msk [vmem:[#allocation5 + $0xd8] sm:$0xff] %vm5355, %v6219
        %6252 = vst.msk [vmem:[#allocation5 + $0x100] sm:$0xff] %vm5355, %v6220
        %6253 = vst.msk [vmem:[#allocation5 + $0x128] sm:$0xff] %vm5355, %v6221
        %6254 = vst.msk [vmem:[#allocation5 + $0x150] sm:$0xff] %vm5355, %v6222
        %6255 = vst.msk [vmem:[#allocation5 + $0x178] sm:$0xff] %vm5355, %v6223
        %6256 = vst.msk [vmem:[#allocation5 + $0x1a0] sm:$0xff] %vm5355, %v6224
        %6257 = vst.msk [vmem:[#allocation5 + $0x1c8] sm:$0xff] %vm5355, %v6225
        %6258 = vst.msk [vmem:[#allocation5 + $0x1f0] sm:$0xff] %vm5355, %v6226
        %6259 = vst.msk [vmem:[#allocation5 + $0x218] sm:$0xff] %vm5355, %v6227
        %6260 = vst.msk [vmem:[#allocation5 + $0x240] sm:$0xff] %vm5355, %v6228
        %6261 = vst.msk [vmem:[#allocation5 + $0x268] sm:$0xff] %vm5355, %v6229
        %6262 = vst.msk [vmem:[#allocation5 + $0x290] sm:$0xff] %vm5355, %v6230
        %6263 = vst.msk [vmem:[#allocation5 + $0x2b8] sm:$0xff] %vm5355, %v6231
        %6264 = vst.msk [vmem:[#allocation5 + $0x2e0] sm:$0xff] %vm5355, %v6232
        %6265 = vst.msk [vmem:[#allocation5 + $0x308] sm:$0xff] %vm5355, %v6233
        %6266 = vst.msk [vmem:[#allocation5 + $0x330] sm:$0xff] %vm5355, %v6234
        %6267 = vst.msk [vmem:[#allocation5 + $0x358] sm:$0xff] %vm5355, %v6235
        %6268 = vst.msk [vmem:[#allocation5 + $0x380] sm:$0xff] %vm5355, %v6236
        %6269 = vst.msk [vmem:[#allocation5 + $0x3a8] sm:$0xff] %vm5355, %v6237
        %6270 = vst.msk [vmem:[#allocation5 + $0x3d0] sm:$0xff] %vm5355, %v6238
        %6271 = vst.msk [vmem:[#allocation5 + $0x3f8] sm:$0xff] %vm5355, %v6239
        %6272 = vst.msk [vmem:[#allocation5 + $0x420] sm:$0xff] %vm5355, %v6240
        %6273 = vst.msk [vmem:[#allocation5 + $0x448] sm:$0xff] %vm5355, %v6241
        %6274 = vst.msk [vmem:[#allocation5 + $0x470] sm:$0xff] %vm5355, %v6242
        %6275 = vst.msk [vmem:[#allocation5 + $0x498] sm:$0xff] %vm5355, %v6243
        %6276 = vst.msk [vmem:[#allocation5 + $0x4c0] sm:$0xff] %vm5355, %v6244
        %6277 = vst.msk [vmem:[#allocation5 + $0x4e8] sm:$0xff] %vm5355, %v6245
        %v6278 = vld [vmem:[%s5539 + $0x2] sm:$0xff]
        %v6279 = vld [vmem:[%s5539 + $0xa] sm:$0xff]
        %v6280 = vld [vmem:[%s5539 + $0x1a] sm:$0xff]
        %v6281 = vld [vmem:[%s5539 + $0x22] sm:$0xff]
        %v6282 = vld [vmem:[%s5539 + $0x32] sm:$0xff]
        %v6283 = vld [vmem:[%s5539 + $0x3a] sm:$0xff]
        %v6284 = vld [vmem:[%s5539 + $0x4a] sm:$0xff]
        %v6285 = vld [vmem:[%s5539 + $0x52] sm:$0xff]
        %v6286 = vld [vmem:[%s5539 + $0x62] sm:$0xff]
        %v6287 = vld [vmem:[%s5539 + $0x6a] sm:$0xff]
        %v6288 = vld [vmem:[%s5539 + $0x7a] sm:$0xff]
        %v6289 = vld [vmem:[%s5539 + $0x82] sm:$0xff]
        %v6290 = vld [vmem:[%s5539 + $0x92] sm:$0xff]
        %v6291 = vld [vmem:[%s5539 + $0x9a] sm:$0xff]
        %v6292 = vld [vmem:[%s5539 + $0xaa] sm:$0xff]
        %v6293 = vld [vmem:[%s5539 + $0xb2] sm:$0xff]
        %v6294 = vld [vmem:[%s5539 + $0xc2] sm:$0xff]
        %v6295 = vld [vmem:[%s5539 + $0xca] sm:$0xff]
        %v6296 = vld [vmem:[%s5539 + $0xda] sm:$0xff]
        %v6297 = vld [vmem:[%s5539 + $0xe2] sm:$0xff]
        %v6298 = vld [vmem:[%s5539 + $0xf2] sm:$0xff]
        %v6299 = vld [vmem:[%s5539 + $0xfa] sm:$0xff]
        %v6300 = vld [vmem:[%s5539 + $0x10a] sm:$0xff]
        %v6301 = vld [vmem:[%s5539 + $0x112] sm:$0xff]
        %v6302 = vld [vmem:[%s5539 + $0x122] sm:$0xff]
        %v6303 = vld [vmem:[%s5539 + $0x12a] sm:$0xff]
        %v6304 = vld [vmem:[%s5539 + $0x13a] sm:$0xff]
        %v6305 = vld [vmem:[%s5539 + $0x142] sm:$0xff]
        %v6306 = vld [vmem:[%s5539 + $0x152] sm:$0xff]
        %v6307 = vld [vmem:[%s5539 + $0x15a] sm:$0xff]
        %v6308 = vld [vmem:[%s5539 + $0x16a] sm:$0xff]
        %v6309 = vld [vmem:[%s5539 + $0x172] sm:$0xff]
        %6342 = vrot.lane.b32.xlu0 %v6278, 64
        %v6343 = vpop.permute.xlu0 %6342
        %6344 = vrot.lane.b32.xlu0 %v6279, 64
        %v6345 = vpop.permute.xlu0 %6344
        %6346 = vrot.lane.b32.xlu0 %v6280, 64
        %v6347 = vpop.permute.xlu0 %6346
        %6348 = vrot.lane.b32.xlu0 %v6281, 64
        %v6349 = vpop.permute.xlu0 %6348
        %6350 = vrot.lane.b32.xlu0 %v6282, 64
        %v6351 = vpop.permute.xlu0 %6350
        %6352 = vrot.lane.b32.xlu0 %v6283, 64
        %v6353 = vpop.permute.xlu0 %6352
        %6354 = vrot.lane.b32.xlu0 %v6284, 64
        %v6355 = vpop.permute.xlu0 %6354
        %6356 = vrot.lane.b32.xlu0 %v6285, 64
        %v6357 = vpop.permute.xlu0 %6356
        %6358 = vrot.lane.b32.xlu0 %v6286, 64
        %v6359 = vpop.permute.xlu0 %6358
        %6360 = vrot.lane.b32.xlu0 %v6287, 64
        %v6361 = vpop.permute.xlu0 %6360
        %6362 = vrot.lane.b32.xlu0 %v6288, 64
        %v6363 = vpop.permute.xlu0 %6362
        %6364 = vrot.lane.b32.xlu0 %v6289, 64
        %v6365 = vpop.permute.xlu0 %6364
        %6366 = vrot.lane.b32.xlu0 %v6290, 64
        %v6367 = vpop.permute.xlu0 %6366
        %6368 = vrot.lane.b32.xlu0 %v6291, 64
        %v6369 = vpop.permute.xlu0 %6368
        %6370 = vrot.lane.b32.xlu0 %v6292, 64
        %v6371 = vpop.permute.xlu0 %6370
        %6372 = vrot.lane.b32.xlu0 %v6293, 64
        %v6373 = vpop.permute.xlu0 %6372
        %6374 = vrot.lane.b32.xlu0 %v6294, 64
        %v6375 = vpop.permute.xlu0 %6374
        %6376 = vrot.lane.b32.xlu0 %v6295, 64
        %v6377 = vpop.permute.xlu0 %6376
        %6378 = vrot.lane.b32.xlu0 %v6296, 64
        %v6379 = vpop.permute.xlu0 %6378
        %6380 = vrot.lane.b32.xlu0 %v6297, 64
        %v6381 = vpop.permute.xlu0 %6380
        %6382 = vrot.lane.b32.xlu0 %v6298, 64
        %v6383 = vpop.permute.xlu0 %6382
        %6384 = vrot.lane.b32.xlu0 %v6299, 64
        %v6385 = vpop.permute.xlu0 %6384
        %6386 = vrot.lane.b32.xlu0 %v6300, 64
        %v6387 = vpop.permute.xlu0 %6386
        %6388 = vrot.lane.b32.xlu0 %v6301, 64
        %v6389 = vpop.permute.xlu0 %6388
        %6390 = vrot.lane.b32.xlu0 %v6302, 64
        %v6391 = vpop.permute.xlu0 %6390
        %6392 = vrot.lane.b32.xlu0 %v6303, 64
        %v6393 = vpop.permute.xlu0 %6392
        %6394 = vrot.lane.b32.xlu0 %v6304, 64
        %v6395 = vpop.permute.xlu0 %6394
        %6396 = vrot.lane.b32.xlu0 %v6305, 64
        %v6397 = vpop.permute.xlu0 %6396
        %6398 = vrot.lane.b32.xlu0 %v6306, 64
        %v6399 = vpop.permute.xlu0 %6398
        %6400 = vrot.lane.b32.xlu0 %v6307, 64
        %v6401 = vpop.permute.xlu0 %6400
        %6402 = vrot.lane.b32.xlu0 %v6308, 64
        %v6403 = vpop.permute.xlu0 %6402
        %6404 = vrot.lane.b32.xlu0 %v6309, 64
        %v6405 = vpop.permute.xlu0 %6404
        %6438 = vst.msk [vmem:[#allocation5 + $0x10] sm:$0xff] %vm5925, %v6343
        %6439 = vst.msk [vmem:[#allocation5 + $0x38] sm:$0xff] %vm5925, %v6345
        %6440 = vst.msk [vmem:[#allocation5 + $0x60] sm:$0xff] %vm5925, %v6347
        %6441 = vst.msk [vmem:[#allocation5 + $0x88] sm:$0xff] %vm5925, %v6349
        %6442 = vst.msk [vmem:[#allocation5 + $0xb0] sm:$0xff] %vm5925, %v6351
        %6443 = vst.msk [vmem:[#allocation5 + $0xd8] sm:$0xff] %vm5925, %v6353
        %6444 = vst.msk [vmem:[#allocation5 + $0x100] sm:$0xff] %vm5925, %v6355
        %6445 = vst.msk [vmem:[#allocation5 + $0x128] sm:$0xff] %vm5925, %v6357
        %6446 = vst.msk [vmem:[#allocation5 + $0x150] sm:$0xff] %vm5925, %v6359
        %6447 = vst.msk [vmem:[#allocation5 + $0x178] sm:$0xff] %vm5925, %v6361
        %6448 = vst.msk [vmem:[#allocation5 + $0x1a0] sm:$0xff] %vm5925, %v6363
        %6449 = vst.msk [vmem:[#allocation5 + $0x1c8] sm:$0xff] %vm5925, %v6365
        %6450 = vst.msk [vmem:[#allocation5 + $0x1f0] sm:$0xff] %vm5925, %v6367
        %6451 = vst.msk [vmem:[#allocation5 + $0x218] sm:$0xff] %vm5925, %v6369
        %6452 = vst.msk [vmem:[#allocation5 + $0x240] sm:$0xff] %vm5925, %v6371
        %6453 = vst.msk [vmem:[#allocation5 + $0x268] sm:$0xff] %vm5925, %v6373
        %6454 = vst.msk [vmem:[#allocation5 + $0x290] sm:$0xff] %vm5925, %v6375
        %6455 = vst.msk [vmem:[#allocation5 + $0x2b8] sm:$0xff] %vm5925, %v6377
        %6456 = vst.msk [vmem:[#allocation5 + $0x2e0] sm:$0xff] %vm5925, %v6379
        %6457 = vst.msk [vmem:[#allocation5 + $0x308] sm:$0xff] %vm5925, %v6381
        %6458 = vst.msk [vmem:[#allocation5 + $0x330] sm:$0xff] %vm5925, %v6383
        %6459 = vst.msk [vmem:[#allocation5 + $0x358] sm:$0xff] %vm5925, %v6385
        %6460 = vst.msk [vmem:[#allocation5 + $0x380] sm:$0xff] %vm5925, %v6387
        %6461 = vst.msk [vmem:[#allocation5 + $0x3a8] sm:$0xff] %vm5925, %v6389
        %6462 = vst.msk [vmem:[#allocation5 + $0x3d0] sm:$0xff] %vm5925, %v6391
        %6463 = vst.msk [vmem:[#allocation5 + $0x3f8] sm:$0xff] %vm5925, %v6393
        %6464 = vst.msk [vmem:[#allocation5 + $0x420] sm:$0xff] %vm5925, %v6395
        %6465 = vst.msk [vmem:[#allocation5 + $0x448] sm:$0xff] %vm5925, %v6397
        %6466 = vst.msk [vmem:[#allocation5 + $0x470] sm:$0xff] %vm5925, %v6399
        %6467 = vst.msk [vmem:[#allocation5 + $0x498] sm:$0xff] %vm5925, %v6401
        %6468 = vst.msk [vmem:[#allocation5 + $0x4c0] sm:$0xff] %vm5925, %v6403
        %6469 = vst.msk [vmem:[#allocation5 + $0x4e8] sm:$0xff] %vm5925, %v6405
        %s6470 = scalar_lea.vmem [#allocation4], 48
        %v6471 = vld [vmem:[%s6470] sm:$0xff]
        %v6472 = vld [vmem:[%s6470 + $0x8] sm:$0xff]
        %v6473 = vld [vmem:[%s6470 + $0x18] sm:$0xff]
        %v6474 = vld [vmem:[%s6470 + $0x20] sm:$0xff]
        %v6475 = vld [vmem:[%s6470 + $0x30] sm:$0xff]
        %v6476 = vld [vmem:[%s6470 + $0x38] sm:$0xff]
        %v6477 = vld [vmem:[%s6470 + $0x48] sm:$0xff]
        %v6478 = vld [vmem:[%s6470 + $0x50] sm:$0xff]
        %v6479 = vld [vmem:[%s6470 + $0x60] sm:$0xff]
        %v6480 = vld [vmem:[%s6470 + $0x68] sm:$0xff]
        %v6481 = vld [vmem:[%s6470 + $0x78] sm:$0xff]
        %v6482 = vld [vmem:[%s6470 + $0x80] sm:$0xff]
        %v6483 = vld [vmem:[%s6470 + $0x90] sm:$0xff]
        %v6484 = vld [vmem:[%s6470 + $0x98] sm:$0xff]
        %v6485 = vld [vmem:[%s6470 + $0xa8] sm:$0xff]
        %v6486 = vld [vmem:[%s6470 + $0xb0] sm:$0xff]
        %v6487 = vld [vmem:[%s6470 + $0xc0] sm:$0xff]
        %v6488 = vld [vmem:[%s6470 + $0xc8] sm:$0xff]
        %v6489 = vld [vmem:[%s6470 + $0xd8] sm:$0xff]
        %v6490 = vld [vmem:[%s6470 + $0xe0] sm:$0xff]
        %v6491 = vld [vmem:[%s6470 + $0xf0] sm:$0xff]
        %v6492 = vld [vmem:[%s6470 + $0xf8] sm:$0xff]
        %v6493 = vld [vmem:[%s6470 + $0x108] sm:$0xff]
        %v6494 = vld [vmem:[%s6470 + $0x110] sm:$0xff]
        %v6495 = vld [vmem:[%s6470 + $0x120] sm:$0xff]
        %v6496 = vld [vmem:[%s6470 + $0x128] sm:$0xff]
        %v6497 = vld [vmem:[%s6470 + $0x138] sm:$0xff]
        %v6498 = vld [vmem:[%s6470 + $0x140] sm:$0xff]
        %v6499 = vld [vmem:[%s6470 + $0x150] sm:$0xff]
        %v6500 = vld [vmem:[%s6470 + $0x158] sm:$0xff]
        %v6501 = vld [vmem:[%s6470 + $0x168] sm:$0xff]
        %v6502 = vld [vmem:[%s6470 + $0x170] sm:$0xff]
        %6503 = vst.msk [vmem:[#allocation5 + $0x18] sm:$0xff] %vm5355, %v6471
        %6504 = vst.msk [vmem:[#allocation5 + $0x40] sm:$0xff] %vm5355, %v6472
        %6505 = vst.msk [vmem:[#allocation5 + $0x68] sm:$0xff] %vm5355, %v6473
        %6506 = vst.msk [vmem:[#allocation5 + $0x90] sm:$0xff] %vm5355, %v6474
        %6507 = vst.msk [vmem:[#allocation5 + $0xb8] sm:$0xff] %vm5355, %v6475
        %6508 = vst.msk [vmem:[#allocation5 + $0xe0] sm:$0xff] %vm5355, %v6476
        %6509 = vst.msk [vmem:[#allocation5 + $0x108] sm:$0xff] %vm5355, %v6477
        %6510 = vst.msk [vmem:[#allocation5 + $0x130] sm:$0xff] %vm5355, %v6478
        %6511 = vst.msk [vmem:[#allocation5 + $0x158] sm:$0xff] %vm5355, %v6479
        %6512 = vst.msk [vmem:[#allocation5 + $0x180] sm:$0xff] %vm5355, %v6480
        %6513 = vst.msk [vmem:[#allocation5 + $0x1a8] sm:$0xff] %vm5355, %v6481
        %6514 = vst.msk [vmem:[#allocation5 + $0x1d0] sm:$0xff] %vm5355, %v6482
        %6515 = vst.msk [vmem:[#allocation5 + $0x1f8] sm:$0xff] %vm5355, %v6483
        %6516 = vst.msk [vmem:[#allocation5 + $0x220] sm:$0xff] %vm5355, %v6484
        %6517 = vst.msk [vmem:[#allocation5 + $0x248] sm:$0xff] %vm5355, %v6485
        %6518 = vst.msk [vmem:[#allocation5 + $0x270] sm:$0xff] %vm5355, %v6486
        %6519 = vst.msk [vmem:[#allocation5 + $0x298] sm:$0xff] %vm5355, %v6487
        %6520 = vst.msk [vmem:[#allocation5 + $0x2c0] sm:$0xff] %vm5355, %v6488
        %6521 = vst.msk [vmem:[#allocation5 + $0x2e8] sm:$0xff] %vm5355, %v6489
        %6522 = vst.msk [vmem:[#allocation5 + $0x310] sm:$0xff] %vm5355, %v6490
        %6523 = vst.msk [vmem:[#allocation5 + $0x338] sm:$0xff] %vm5355, %v6491
        %6524 = vst.msk [vmem:[#allocation5 + $0x360] sm:$0xff] %vm5355, %v6492
        %6525 = vst.msk [vmem:[#allocation5 + $0x388] sm:$0xff] %vm5355, %v6493
        %6526 = vst.msk [vmem:[#allocation5 + $0x3b0] sm:$0xff] %vm5355, %v6494
        %6527 = vst.msk [vmem:[#allocation5 + $0x3d8] sm:$0xff] %vm5355, %v6495
        %6528 = vst.msk [vmem:[#allocation5 + $0x400] sm:$0xff] %vm5355, %v6496
        %6529 = vst.msk [vmem:[#allocation5 + $0x428] sm:$0xff] %vm5355, %v6497
        %6530 = vst.msk [vmem:[#allocation5 + $0x450] sm:$0xff] %vm5355, %v6498
        %6531 = vst.msk [vmem:[#allocation5 + $0x478] sm:$0xff] %vm5355, %v6499
        %6532 = vst.msk [vmem:[#allocation5 + $0x4a0] sm:$0xff] %vm5355, %v6500
        %6533 = vst.msk [vmem:[#allocation5 + $0x4c8] sm:$0xff] %vm5355, %v6501
        %6534 = vst.msk [vmem:[#allocation5 + $0x4f0] sm:$0xff] %vm5355, %v6502
        %v6535 = vld [vmem:[%s6470 + $0x1] sm:$0xff]
        %v6536 = vld [vmem:[%s6470 + $0x9] sm:$0xff]
        %v6537 = vld [vmem:[%s6470 + $0x19] sm:$0xff]
        %v6538 = vld [vmem:[%s6470 + $0x21] sm:$0xff]
        %v6539 = vld [vmem:[%s6470 + $0x31] sm:$0xff]
        %v6540 = vld [vmem:[%s6470 + $0x39] sm:$0xff]
        %v6541 = vld [vmem:[%s6470 + $0x49] sm:$0xff]
        %v6542 = vld [vmem:[%s6470 + $0x51] sm:$0xff]
        %v6543 = vld [vmem:[%s6470 + $0x61] sm:$0xff]
        %v6544 = vld [vmem:[%s6470 + $0x69] sm:$0xff]
        %v6545 = vld [vmem:[%s6470 + $0x79] sm:$0xff]
        %v6546 = vld [vmem:[%s6470 + $0x81] sm:$0xff]
        %v6547 = vld [vmem:[%s6470 + $0x91] sm:$0xff]
        %v6548 = vld [vmem:[%s6470 + $0x99] sm:$0xff]
        %v6549 = vld [vmem:[%s6470 + $0xa9] sm:$0xff]
        %v6550 = vld [vmem:[%s6470 + $0xb1] sm:$0xff]
        %v6551 = vld [vmem:[%s6470 + $0xc1] sm:$0xff]
        %v6552 = vld [vmem:[%s6470 + $0xc9] sm:$0xff]
        %v6553 = vld [vmem:[%s6470 + $0xd9] sm:$0xff]
        %v6554 = vld [vmem:[%s6470 + $0xe1] sm:$0xff]
        %v6555 = vld [vmem:[%s6470 + $0xf1] sm:$0xff]
        %v6556 = vld [vmem:[%s6470 + $0xf9] sm:$0xff]
        %v6557 = vld [vmem:[%s6470 + $0x109] sm:$0xff]
        %v6558 = vld [vmem:[%s6470 + $0x111] sm:$0xff]
        %v6559 = vld [vmem:[%s6470 + $0x121] sm:$0xff]
        %v6560 = vld [vmem:[%s6470 + $0x129] sm:$0xff]
        %v6561 = vld [vmem:[%s6470 + $0x139] sm:$0xff]
        %v6562 = vld [vmem:[%s6470 + $0x141] sm:$0xff]
        %v6563 = vld [vmem:[%s6470 + $0x151] sm:$0xff]
        %v6564 = vld [vmem:[%s6470 + $0x159] sm:$0xff]
        %v6565 = vld [vmem:[%s6470 + $0x169] sm:$0xff]
        %v6566 = vld [vmem:[%s6470 + $0x171] sm:$0xff]
        %6599 = vrot.lane.b32.xlu0 %v6535, 64
        %v6600 = vpop.permute.xlu0 %6599
        %6601 = vrot.lane.b32.xlu0 %v6536, 64
        %v6602 = vpop.permute.xlu0 %6601
        %6603 = vrot.lane.b32.xlu0 %v6537, 64
        %v6604 = vpop.permute.xlu0 %6603
        %6605 = vrot.lane.b32.xlu0 %v6538, 64
        %v6606 = vpop.permute.xlu0 %6605
        %6607 = vrot.lane.b32.xlu0 %v6539, 64
        %v6608 = vpop.permute.xlu0 %6607
        %6609 = vrot.lane.b32.xlu0 %v6540, 64
        %v6610 = vpop.permute.xlu0 %6609
        %6611 = vrot.lane.b32.xlu0 %v6541, 64
        %v6612 = vpop.permute.xlu0 %6611
        %6613 = vrot.lane.b32.xlu0 %v6542, 64
        %v6614 = vpop.permute.xlu0 %6613
        %6615 = vrot.lane.b32.xlu0 %v6543, 64
        %v6616 = vpop.permute.xlu0 %6615
        %6617 = vrot.lane.b32.xlu0 %v6544, 64
        %v6618 = vpop.permute.xlu0 %6617
        %6619 = vrot.lane.b32.xlu0 %v6545, 64
        %v6620 = vpop.permute.xlu0 %6619
        %6621 = vrot.lane.b32.xlu0 %v6546, 64
        %v6622 = vpop.permute.xlu0 %6621
        %6623 = vrot.lane.b32.xlu0 %v6547, 64
        %v6624 = vpop.permute.xlu0 %6623
        %6625 = vrot.lane.b32.xlu0 %v6548, 64
        %v6626 = vpop.permute.xlu0 %6625
        %6627 = vrot.lane.b32.xlu0 %v6549, 64
        %v6628 = vpop.permute.xlu0 %6627
        %6629 = vrot.lane.b32.xlu0 %v6550, 64
        %v6630 = vpop.permute.xlu0 %6629
        %6631 = vrot.lane.b32.xlu0 %v6551, 64
        %v6632 = vpop.permute.xlu0 %6631
        %6633 = vrot.lane.b32.xlu0 %v6552, 64
        %v6634 = vpop.permute.xlu0 %6633
        %6635 = vrot.lane.b32.xlu0 %v6553, 64
        %v6636 = vpop.permute.xlu0 %6635
        %6637 = vrot.lane.b32.xlu0 %v6554, 64
        %v6638 = vpop.permute.xlu0 %6637
        %6639 = vrot.lane.b32.xlu0 %v6555, 64
        %v6640 = vpop.permute.xlu0 %6639
        %6641 = vrot.lane.b32.xlu0 %v6556, 64
        %v6642 = vpop.permute.xlu0 %6641
        %6643 = vrot.lane.b32.xlu0 %v6557, 64
        %v6644 = vpop.permute.xlu0 %6643
        %6645 = vrot.lane.b32.xlu0 %v6558, 64
        %v6646 = vpop.permute.xlu0 %6645
        %6647 = vrot.lane.b32.xlu0 %v6559, 64
        %v6648 = vpop.permute.xlu0 %6647
        %6649 = vrot.lane.b32.xlu0 %v6560, 64
        %v6650 = vpop.permute.xlu0 %6649
        %6651 = vrot.lane.b32.xlu0 %v6561, 64
        %v6652 = vpop.permute.xlu0 %6651
        %6653 = vrot.lane.b32.xlu0 %v6562, 64
        %v6654 = vpop.permute.xlu0 %6653
        %6655 = vrot.lane.b32.xlu0 %v6563, 64
        %v6656 = vpop.permute.xlu0 %6655
        %6657 = vrot.lane.b32.xlu0 %v6564, 64
        %v6658 = vpop.permute.xlu0 %6657
        %6659 = vrot.lane.b32.xlu0 %v6565, 64
        %v6660 = vpop.permute.xlu0 %6659
        %6661 = vrot.lane.b32.xlu0 %v6566, 64
        %v6662 = vpop.permute.xlu0 %6661
        %6695 = vst.msk [vmem:[#allocation5 + $0x18] sm:$0xff] %vm5925, %v6600
        %6696 = vst.msk [vmem:[#allocation5 + $0x40] sm:$0xff] %vm5925, %v6602
        %6697 = vst.msk [vmem:[#allocation5 + $0x68] sm:$0xff] %vm5925, %v6604
        %6698 = vst.msk [vmem:[#allocation5 + $0x90] sm:$0xff] %vm5925, %v6606
        %6699 = vst.msk [vmem:[#allocation5 + $0xb8] sm:$0xff] %vm5925, %v6608
        %6700 = vst.msk [vmem:[#allocation5 + $0xe0] sm:$0xff] %vm5925, %v6610
        %6701 = vst.msk [vmem:[#allocation5 + $0x108] sm:$0xff] %vm5925, %v6612
        %6702 = vst.msk [vmem:[#allocation5 + $0x130] sm:$0xff] %vm5925, %v6614
        %6703 = vst.msk [vmem:[#allocation5 + $0x158] sm:$0xff] %vm5925, %v6616
        %6704 = vst.msk [vmem:[#allocation5 + $0x180] sm:$0xff] %vm5925, %v6618
        %6705 = vst.msk [vmem:[#allocation5 + $0x1a8] sm:$0xff] %vm5925, %v6620
        %6706 = vst.msk [vmem:[#allocation5 + $0x1d0] sm:$0xff] %vm5925, %v6622
        %6707 = vst.msk [vmem:[#allocation5 + $0x1f8] sm:$0xff] %vm5925, %v6624
        %6708 = vst.msk [vmem:[#allocation5 + $0x220] sm:$0xff] %vm5925, %v6626
        %6709 = vst.msk [vmem:[#allocation5 + $0x248] sm:$0xff] %vm5925, %v6628
        %6710 = vst.msk [vmem:[#allocation5 + $0x270] sm:$0xff] %vm5925, %v6630
        %6711 = vst.msk [vmem:[#allocation5 + $0x298] sm:$0xff] %vm5925, %v6632
        %6712 = vst.msk [vmem:[#allocation5 + $0x2c0] sm:$0xff] %vm5925, %v6634
        %6713 = vst.msk [vmem:[#allocation5 + $0x2e8] sm:$0xff] %vm5925, %v6636
        %6714 = vst.msk [vmem:[#allocation5 + $0x310] sm:$0xff] %vm5925, %v6638
        %6715 = vst.msk [vmem:[#allocation5 + $0x338] sm:$0xff] %vm5925, %v6640
        %6716 = vst.msk [vmem:[#allocation5 + $0x360] sm:$0xff] %vm5925, %v6642
        %6717 = vst.msk [vmem:[#allocation5 + $0x388] sm:$0xff] %vm5925, %v6644
        %6718 = vst.msk [vmem:[#allocation5 + $0x3b0] sm:$0xff] %vm5925, %v6646
        %6719 = vst.msk [vmem:[#allocation5 + $0x3d8] sm:$0xff] %vm5925, %v6648
        %6720 = vst.msk [vmem:[#allocation5 + $0x400] sm:$0xff] %vm5925, %v6650
        %6721 = vst.msk [vmem:[#allocation5 + $0x428] sm:$0xff] %vm5925, %v6652
        %6722 = vst.msk [vmem:[#allocation5 + $0x450] sm:$0xff] %vm5925, %v6654
        %6723 = vst.msk [vmem:[#allocation5 + $0x478] sm:$0xff] %vm5925, %v6656
        %6724 = vst.msk [vmem:[#allocation5 + $0x4a0] sm:$0xff] %vm5925, %v6658
        %6725 = vst.msk [vmem:[#allocation5 + $0x4c8] sm:$0xff] %vm5925, %v6660
        %6726 = vst.msk [vmem:[#allocation5 + $0x4f0] sm:$0xff] %vm5925, %v6662
        %v6727 = vld [vmem:[%s6470 + $0x2] sm:$0xff]
        %v6728 = vld [vmem:[%s6470 + $0xa] sm:$0xff]
        %v6729 = vld [vmem:[%s6470 + $0x1a] sm:$0xff]
        %v6730 = vld [vmem:[%s6470 + $0x22] sm:$0xff]
        %v6731 = vld [vmem:[%s6470 + $0x32] sm:$0xff]
        %v6732 = vld [vmem:[%s6470 + $0x3a] sm:$0xff]
        %v6733 = vld [vmem:[%s6470 + $0x4a] sm:$0xff]
        %v6734 = vld [vmem:[%s6470 + $0x52] sm:$0xff]
        %v6735 = vld [vmem:[%s6470 + $0x62] sm:$0xff]
        %v6736 = vld [vmem:[%s6470 + $0x6a] sm:$0xff]
        %v6737 = vld [vmem:[%s6470 + $0x7a] sm:$0xff]
        %v6738 = vld [vmem:[%s6470 + $0x82] sm:$0xff]
        %v6739 = vld [vmem:[%s6470 + $0x92] sm:$0xff]
        %v6740 = vld [vmem:[%s6470 + $0x9a] sm:$0xff]
        %v6741 = vld [vmem:[%s6470 + $0xaa] sm:$0xff]
        %v6742 = vld [vmem:[%s6470 + $0xb2] sm:$0xff]
        %v6743 = vld [vmem:[%s6470 + $0xc2] sm:$0xff]
        %v6744 = vld [vmem:[%s6470 + $0xca] sm:$0xff]
        %v6745 = vld [vmem:[%s6470 + $0xda] sm:$0xff]
        %v6746 = vld [vmem:[%s6470 + $0xe2] sm:$0xff]
        %v6747 = vld [vmem:[%s6470 + $0xf2] sm:$0xff]
        %v6748 = vld [vmem:[%s6470 + $0xfa] sm:$0xff]
        %v6749 = vld [vmem:[%s6470 + $0x10a] sm:$0xff]
        %v6750 = vld [vmem:[%s6470 + $0x112] sm:$0xff]
        %v6751 = vld [vmem:[%s6470 + $0x122] sm:$0xff]
        %v6752 = vld [vmem:[%s6470 + $0x12a] sm:$0xff]
        %v6753 = vld [vmem:[%s6470 + $0x13a] sm:$0xff]
        %v6754 = vld [vmem:[%s6470 + $0x142] sm:$0xff]
        %v6755 = vld [vmem:[%s6470 + $0x152] sm:$0xff]
        %v6756 = vld [vmem:[%s6470 + $0x15a] sm:$0xff]
        %v6757 = vld [vmem:[%s6470 + $0x16a] sm:$0xff]
        %v6758 = vld [vmem:[%s6470 + $0x172] sm:$0xff]
        %6759 = vst.msk [vmem:[#allocation5 + $0x20] sm:$0xff] %vm5355, %v6727
        %6760 = vst.msk [vmem:[#allocation5 + $0x48] sm:$0xff] %vm5355, %v6728
        %6761 = vst.msk [vmem:[#allocation5 + $0x70] sm:$0xff] %vm5355, %v6729
        %6762 = vst.msk [vmem:[#allocation5 + $0x98] sm:$0xff] %vm5355, %v6730
        %6763 = vst.msk [vmem:[#allocation5 + $0xc0] sm:$0xff] %vm5355, %v6731
        %6764 = vst.msk [vmem:[#allocation5 + $0xe8] sm:$0xff] %vm5355, %v6732
        %6765 = vst.msk [vmem:[#allocation5 + $0x110] sm:$0xff] %vm5355, %v6733
        %6766 = vst.msk [vmem:[#allocation5 + $0x138] sm:$0xff] %vm5355, %v6734
        %6767 = vst.msk [vmem:[#allocation5 + $0x160] sm:$0xff] %vm5355, %v6735
        %6768 = vst.msk [vmem:[#allocation5 + $0x188] sm:$0xff] %vm5355, %v6736
        %6769 = vst.msk [vmem:[#allocation5 + $0x1b0] sm:$0xff] %vm5355, %v6737
        %6770 = vst.msk [vmem:[#allocation5 + $0x1d8] sm:$0xff] %vm5355, %v6738
        %6771 = vst.msk [vmem:[#allocation5 + $0x200] sm:$0xff] %vm5355, %v6739
        %6772 = vst.msk [vmem:[#allocation5 + $0x228] sm:$0xff] %vm5355, %v6740
        %6773 = vst.msk [vmem:[#allocation5 + $0x250] sm:$0xff] %vm5355, %v6741
        %6774 = vst.msk [vmem:[#allocation5 + $0x278] sm:$0xff] %vm5355, %v6742
        %6775 = vst.msk [vmem:[#allocation5 + $0x2a0] sm:$0xff] %vm5355, %v6743
        %6776 = vst.msk [vmem:[#allocation5 + $0x2c8] sm:$0xff] %vm5355, %v6744
        %6777 = vst.msk [vmem:[#allocation5 + $0x2f0] sm:$0xff] %vm5355, %v6745
        %6778 = vst.msk [vmem:[#allocation5 + $0x318] sm:$0xff] %vm5355, %v6746
        %6779 = vst.msk [vmem:[#allocation5 + $0x340] sm:$0xff] %vm5355, %v6747
        %6780 = vst.msk [vmem:[#allocation5 + $0x368] sm:$0xff] %vm5355, %v6748
        %6781 = vst.msk [vmem:[#allocation5 + $0x390] sm:$0xff] %vm5355, %v6749
        %6782 = vst.msk [vmem:[#allocation5 + $0x3b8] sm:$0xff] %vm5355, %v6750
        %6783 = vst.msk [vmem:[#allocation5 + $0x3e0] sm:$0xff] %vm5355, %v6751
        %6784 = vst.msk [vmem:[#allocation5 + $0x408] sm:$0xff] %vm5355, %v6752
        %6785 = vst.msk [vmem:[#allocation5 + $0x430] sm:$0xff] %vm5355, %v6753
        %6786 = vst.msk [vmem:[#allocation5 + $0x458] sm:$0xff] %vm5355, %v6754
        %6787 = vst.msk [vmem:[#allocation5 + $0x480] sm:$0xff] %vm5355, %v6755
        %6788 = vst.msk [vmem:[#allocation5 + $0x4a8] sm:$0xff] %vm5355, %v6756
        %6789 = vst.msk [vmem:[#allocation5 + $0x4d0] sm:$0xff] %vm5355, %v6757
        %6790 = vst.msk [vmem:[#allocation5 + $0x4f8] sm:$0xff] %vm5355, %v6758
        %v6791 = vld [vmem:[#allocation5] sm:$0xff]
        %v6792 = vld [vmem:[#allocation5 + $0x8] sm:$0xff]
        %v6793 = vld [vmem:[#allocation5 + $0x10] sm:$0xff]
        %v6794 = vld [vmem:[#allocation5 + $0x18] sm:$0xff]
        %v6795 = vld [vmem:[#allocation5 + $0x20] sm:$0xff]
        %v6796 = vld [vmem:[#allocation5 + $0x28] sm:$0xff]
        %v6797 = vld [vmem:[#allocation5 + $0x30] sm:$0xff]
        %v6798 = vld [vmem:[#allocation5 + $0x38] sm:$0xff]
        %v6799 = vld [vmem:[#allocation5 + $0x40] sm:$0xff]
        %v6800 = vld [vmem:[#allocation5 + $0x48] sm:$0xff]
        %v6801 = vld [vmem:[#allocation5 + $0x50] sm:$0xff]
        %v6802 = vld [vmem:[#allocation5 + $0x58] sm:$0xff]
        %v6803 = vld [vmem:[#allocation5 + $0x60] sm:$0xff]
        %v6804 = vld [vmem:[#allocation5 + $0x68] sm:$0xff]
        %v6805 = vld [vmem:[#allocation5 + $0x70] sm:$0xff]
        %v6806 = vld [vmem:[#allocation5 + $0x78] sm:$0xff]
        %v6807 = vld [vmem:[#allocation5 + $0x80] sm:$0xff]
        %v6808 = vld [vmem:[#allocation5 + $0x88] sm:$0xff]
        %v6809 = vld [vmem:[#allocation5 + $0x90] sm:$0xff]
        %v6810 = vld [vmem:[#allocation5 + $0x98] sm:$0xff]
        %v6811 = vld [vmem:[#allocation5 + $0xa0] sm:$0xff]
        %v6812 = vld [vmem:[#allocation5 + $0xa8] sm:$0xff]
        %v6813 = vld [vmem:[#allocation5 + $0xb0] sm:$0xff]
        %v6814 = vld [vmem:[#allocation5 + $0xb8] sm:$0xff]
        %v6815 = vld [vmem:[#allocation5 + $0xc0] sm:$0xff]
        %v6816 = vld [vmem:[#allocation5 + $0xc8] sm:$0xff]
        %v6817 = vld [vmem:[#allocation5 + $0xd0] sm:$0xff]
        %v6818 = vld [vmem:[#allocation5 + $0xd8] sm:$0xff]
        %v6819 = vld [vmem:[#allocation5 + $0xe0] sm:$0xff]
        %v6820 = vld [vmem:[#allocation5 + $0xe8] sm:$0xff]
        %v6821 = vld [vmem:[#allocation5 + $0xf0] sm:$0xff]
        %v6822 = vld [vmem:[#allocation5 + $0xf8] sm:$0xff]
        %v6823 = vld [vmem:[#allocation5 + $0x100] sm:$0xff]
        %v6824 = vld [vmem:[#allocation5 + $0x108] sm:$0xff]
        %v6825 = vld [vmem:[#allocation5 + $0x110] sm:$0xff]
        %v6826 = vld [vmem:[#allocation5 + $0x118] sm:$0xff]
        %v6827 = vld [vmem:[#allocation5 + $0x120] sm:$0xff]
        %v6828 = vld [vmem:[#allocation5 + $0x128] sm:$0xff]
        %v6829 = vld [vmem:[#allocation5 + $0x130] sm:$0xff]
        %v6830 = vld [vmem:[#allocation5 + $0x138] sm:$0xff]
        %v6831 = vld [vmem:[#allocation5 + $0x140] sm:$0xff]
        %v6832 = vld [vmem:[#allocation5 + $0x148] sm:$0xff]
        %v6833 = vld [vmem:[#allocation5 + $0x150] sm:$0xff]
        %v6834 = vld [vmem:[#allocation5 + $0x158] sm:$0xff]
        %v6835 = vld [vmem:[#allocation5 + $0x160] sm:$0xff]
        %v6836 = vld [vmem:[#allocation5 + $0x168] sm:$0xff]
        %v6837 = vld [vmem:[#allocation5 + $0x170] sm:$0xff]
        %v6838 = vld [vmem:[#allocation5 + $0x178] sm:$0xff]
        %v6839 = vld [vmem:[#allocation5 + $0x180] sm:$0xff]
        %v6840 = vld [vmem:[#allocation5 + $0x188] sm:$0xff]
        %v6841 = vld [vmem:[#allocation5 + $0x190] sm:$0xff]
        %v6842 = vld [vmem:[#allocation5 + $0x198] sm:$0xff]
        %v6843 = vld [vmem:[#allocation5 + $0x1a0] sm:$0xff]
        %v6844 = vld [vmem:[#allocation5 + $0x1a8] sm:$0xff]
        %v6845 = vld [vmem:[#allocation5 + $0x1b0] sm:$0xff]
        %v6846 = vld [vmem:[#allocation5 + $0x1b8] sm:$0xff]
        %v6847 = vld [vmem:[#allocation5 + $0x1c0] sm:$0xff]
        %v6848 = vld [vmem:[#allocation5 + $0x1c8] sm:$0xff]
        %v6849 = vld [vmem:[#allocation5 + $0x1d0] sm:$0xff]
        %v6850 = vld [vmem:[#allocation5 + $0x1d8] sm:$0xff]
        %v6851 = vld [vmem:[#allocation5 + $0x1e0] sm:$0xff]
        %v6852 = vld [vmem:[#allocation5 + $0x1e8] sm:$0xff]
        %v6853 = vld [vmem:[#allocation5 + $0x1f0] sm:$0xff]
        %v6854 = vld [vmem:[#allocation5 + $0x1f8] sm:$0xff]
        %v6855 = vld [vmem:[#allocation5 + $0x200] sm:$0xff]
        %v6856 = vld [vmem:[#allocation5 + $0x208] sm:$0xff]
        %v6857 = vld [vmem:[#allocation5 + $0x210] sm:$0xff]
        %v6858 = vld [vmem:[#allocation5 + $0x218] sm:$0xff]
        %v6859 = vld [vmem:[#allocation5 + $0x220] sm:$0xff]
        %v6860 = vld [vmem:[#allocation5 + $0x228] sm:$0xff]
        %v6861 = vld [vmem:[#allocation5 + $0x230] sm:$0xff]
        %v6862 = vld [vmem:[#allocation5 + $0x238] sm:$0xff]
        %v6863 = vld [vmem:[#allocation5 + $0x240] sm:$0xff]
        %v6864 = vld [vmem:[#allocation5 + $0x248] sm:$0xff]
        %v6865 = vld [vmem:[#allocation5 + $0x250] sm:$0xff]
        %v6866 = vld [vmem:[#allocation5 + $0x258] sm:$0xff]
        %v6867 = vld [vmem:[#allocation5 + $0x260] sm:$0xff]
        %v6868 = vld [vmem:[#allocation5 + $0x268] sm:$0xff]
        %v6869 = vld [vmem:[#allocation5 + $0x270] sm:$0xff]
        %v6870 = vld [vmem:[#allocation5 + $0x278] sm:$0xff]
        %v6871 = vld [vmem:[#allocation5 + $0x280] sm:$0xff]
        %v6872 = vld [vmem:[#allocation5 + $0x288] sm:$0xff]
        %v6873 = vld [vmem:[#allocation5 + $0x290] sm:$0xff]
        %v6874 = vld [vmem:[#allocation5 + $0x298] sm:$0xff]
        %v6875 = vld [vmem:[#allocation5 + $0x2a0] sm:$0xff]
        %v6876 = vld [vmem:[#allocation5 + $0x2a8] sm:$0xff]
        %v6877 = vld [vmem:[#allocation5 + $0x2b0] sm:$0xff]
        %v6878 = vld [vmem:[#allocation5 + $0x2b8] sm:$0xff]
        %v6879 = vld [vmem:[#allocation5 + $0x2c0] sm:$0xff]
        %v6880 = vld [vmem:[#allocation5 + $0x2c8] sm:$0xff]
        %v6881 = vld [vmem:[#allocation5 + $0x2d0] sm:$0xff]
        %v6882 = vld [vmem:[#allocation5 + $0x2d8] sm:$0xff]
        %v6883 = vld [vmem:[#allocation5 + $0x2e0] sm:$0xff]
        %v6884 = vld [vmem:[#allocation5 + $0x2e8] sm:$0xff]
        %v6885 = vld [vmem:[#allocation5 + $0x2f0] sm:$0xff]
        %v6886 = vld [vmem:[#allocation5 + $0x2f8] sm:$0xff]
        %v6887 = vld [vmem:[#allocation5 + $0x300] sm:$0xff]
        %v6888 = vld [vmem:[#allocation5 + $0x308] sm:$0xff]
        %v6889 = vld [vmem:[#allocation5 + $0x310] sm:$0xff]
        %v6890 = vld [vmem:[#allocation5 + $0x318] sm:$0xff]
        %v6891 = vld [vmem:[#allocation5 + $0x320] sm:$0xff]
        %v6892 = vld [vmem:[#allocation5 + $0x328] sm:$0xff]
        %v6893 = vld [vmem:[#allocation5 + $0x330] sm:$0xff]
        %v6894 = vld [vmem:[#allocation5 + $0x338] sm:$0xff]
        %v6895 = vld [vmem:[#allocation5 + $0x340] sm:$0xff]
        %v6896 = vld [vmem:[#allocation5 + $0x348] sm:$0xff]
        %v6897 = vld [vmem:[#allocation5 + $0x350] sm:$0xff]
        %v6898 = vld [vmem:[#allocation5 + $0x358] sm:$0xff]
        %v6899 = vld [vmem:[#allocation5 + $0x360] sm:$0xff]
        %v6900 = vld [vmem:[#allocation5 + $0x368] sm:$0xff]
        %v6901 = vld [vmem:[#allocation5 + $0x370] sm:$0xff]
        %v6902 = vld [vmem:[#allocation5 + $0x378] sm:$0xff]
        %v6903 = vld [vmem:[#allocation5 + $0x380] sm:$0xff]
        %v6904 = vld [vmem:[#allocation5 + $0x388] sm:$0xff]
        %v6905 = vld [vmem:[#allocation5 + $0x390] sm:$0xff]
        %v6906 = vld [vmem:[#allocation5 + $0x398] sm:$0xff]
        %v6907 = vld [vmem:[#allocation5 + $0x3a0] sm:$0xff]
        %v6908 = vld [vmem:[#allocation5 + $0x3a8] sm:$0xff]
        %v6909 = vld [vmem:[#allocation5 + $0x3b0] sm:$0xff]
        %v6910 = vld [vmem:[#allocation5 + $0x3b8] sm:$0xff]
        %v6911 = vld [vmem:[#allocation5 + $0x3c0] sm:$0xff]
        %v6912 = vld [vmem:[#allocation5 + $0x3c8] sm:$0xff]
        %v6913 = vld [vmem:[#allocation5 + $0x3d0] sm:$0xff]
        %v6914 = vld [vmem:[#allocation5 + $0x3d8] sm:$0xff]
        %v6915 = vld [vmem:[#allocation5 + $0x3e0] sm:$0xff]
        %v6916 = vld [vmem:[#allocation5 + $0x3e8] sm:$0xff]
        %v6917 = vld [vmem:[#allocation5 + $0x3f0] sm:$0xff]
        %v6918 = vld [vmem:[#allocation5 + $0x3f8] sm:$0xff]
        %v6919 = vld [vmem:[#allocation5 + $0x400] sm:$0xff]
        %v6920 = vld [vmem:[#allocation5 + $0x408] sm:$0xff]
        %v6921 = vld [vmem:[#allocation5 + $0x410] sm:$0xff]
        %v6922 = vld [vmem:[#allocation5 + $0x418] sm:$0xff]
        %v6923 = vld [vmem:[#allocation5 + $0x420] sm:$0xff]
        %v6924 = vld [vmem:[#allocation5 + $0x428] sm:$0xff]
        %v6925 = vld [vmem:[#allocation5 + $0x430] sm:$0xff]
        %v6926 = vld [vmem:[#allocation5 + $0x438] sm:$0xff]
        %v6927 = vld [vmem:[#allocation5 + $0x440] sm:$0xff]
        %v6928 = vld [vmem:[#allocation5 + $0x448] sm:$0xff]
        %v6929 = vld [vmem:[#allocation5 + $0x450] sm:$0xff]
        %v6930 = vld [vmem:[#allocation5 + $0x458] sm:$0xff]
        %v6931 = vld [vmem:[#allocation5 + $0x460] sm:$0xff]
        %v6932 = vld [vmem:[#allocation5 + $0x468] sm:$0xff]
        %v6933 = vld [vmem:[#allocation5 + $0x470] sm:$0xff]
        %v6934 = vld [vmem:[#allocation5 + $0x478] sm:$0xff]
        %v6935 = vld [vmem:[#allocation5 + $0x480] sm:$0xff]
        %v6936 = vld [vmem:[#allocation5 + $0x488] sm:$0xff]
        %v6937 = vld [vmem:[#allocation5 + $0x490] sm:$0xff]
        %v6938 = vld [vmem:[#allocation5 + $0x498] sm:$0xff]
        %v6939 = vld [vmem:[#allocation5 + $0x4a0] sm:$0xff]
        %v6940 = vld [vmem:[#allocation5 + $0x4a8] sm:$0xff]
        %v6941 = vld [vmem:[#allocation5 + $0x4b0] sm:$0xff]
        %v6942 = vld [vmem:[#allocation5 + $0x4b8] sm:$0xff]
        %v6943 = vld [vmem:[#allocation5 + $0x4c0] sm:$0xff]
        %v6944 = vld [vmem:[#allocation5 + $0x4c8] sm:$0xff]
        %v6945 = vld [vmem:[#allocation5 + $0x4d0] sm:$0xff]
        %v6946 = vld [vmem:[#allocation5 + $0x4d8] sm:$0xff]
        %v6947 = vld [vmem:[#allocation5 + $0x4e0] sm:$0xff]
        %v6948 = vld [vmem:[#allocation5 + $0x4e8] sm:$0xff]
        %v6949 = vld [vmem:[#allocation5 + $0x4f0] sm:$0xff]
        %v6950 = vld [vmem:[#allocation5 + $0x4f8] sm:$0xff]
        %v6951 = vld [vmem:[%s11] sm:$0xff]
        %v6952 = vld [vmem:[%s11 + $0x8] sm:$0xff]
        %v6953 = vld [vmem:[%s11 + $0x10] sm:$0xff]
        %v6954 = vld [vmem:[%s11 + $0x18] sm:$0xff]
        %v6955 = vld [vmem:[%s11 + $0x20] sm:$0xff]
        %v6956 = vld [vmem:[%s11 + $0x28] sm:$0xff]
        %v6957 = vld [vmem:[%s11 + $0x30] sm:$0xff]
        %v6958 = vld [vmem:[%s11 + $0x38] sm:$0xff]
        %v6959 = vld [vmem:[%s11 + $0x40] sm:$0xff]
        %v6960 = vld [vmem:[%s11 + $0x48] sm:$0xff]
        %v6961 = vld [vmem:[%s11 + $0x50] sm:$0xff]
        %v6962 = vld [vmem:[%s11 + $0x58] sm:$0xff]
        %v6963 = vld [vmem:[%s11 + $0x60] sm:$0xff]
        %v6964 = vld [vmem:[%s11 + $0x68] sm:$0xff]
        %v6965 = vld [vmem:[%s11 + $0x70] sm:$0xff]
        %v6966 = vld [vmem:[%s11 + $0x78] sm:$0xff]
        %v6967 = vld [vmem:[%s11 + $0x80] sm:$0xff]
        %v6968 = vld [vmem:[%s11 + $0x88] sm:$0xff]
        %v6969 = vld [vmem:[%s11 + $0x90] sm:$0xff]
        %v6970 = vld [vmem:[%s11 + $0x98] sm:$0xff]
        %v6971 = vld [vmem:[%s11 + $0xa0] sm:$0xff]
        %v6972 = vld [vmem:[%s11 + $0xa8] sm:$0xff]
        %v6973 = vld [vmem:[%s11 + $0xb0] sm:$0xff]
        %v6974 = vld [vmem:[%s11 + $0xb8] sm:$0xff]
        %v6975 = vld [vmem:[%s11 + $0xc0] sm:$0xff]
        %v6976 = vld [vmem:[%s11 + $0xc8] sm:$0xff]
        %v6977 = vld [vmem:[%s11 + $0xd0] sm:$0xff]
        %v6978 = vld [vmem:[%s11 + $0xd8] sm:$0xff]
        %v6979 = vld [vmem:[%s11 + $0xe0] sm:$0xff]
        %v6980 = vld [vmem:[%s11 + $0xe8] sm:$0xff]
        %v6981 = vld [vmem:[%s11 + $0xf0] sm:$0xff]
        %v6982 = vld [vmem:[%s11 + $0xf8] sm:$0xff]
        %v6983 = vld [vmem:[%s11 + $0x100] sm:$0xff]
        %v6984 = vld [vmem:[%s11 + $0x108] sm:$0xff]
        %v6985 = vld [vmem:[%s11 + $0x110] sm:$0xff]
        %v6986 = vld [vmem:[%s11 + $0x118] sm:$0xff]
        %v6987 = vld [vmem:[%s11 + $0x120] sm:$0xff]
        %v6988 = vld [vmem:[%s11 + $0x128] sm:$0xff]
        %v6989 = vld [vmem:[%s11 + $0x130] sm:$0xff]
        %v6990 = vld [vmem:[%s11 + $0x138] sm:$0xff]
        %v6991 = vld [vmem:[%s11 + $0x140] sm:$0xff]
        %v6992 = vld [vmem:[%s11 + $0x148] sm:$0xff]
        %v6993 = vld [vmem:[%s11 + $0x150] sm:$0xff]
        %v6994 = vld [vmem:[%s11 + $0x158] sm:$0xff]
        %v6995 = vld [vmem:[%s11 + $0x160] sm:$0xff]
        %v6996 = vld [vmem:[%s11 + $0x168] sm:$0xff]
        %v6997 = vld [vmem:[%s11 + $0x170] sm:$0xff]
        %v6998 = vld [vmem:[%s11 + $0x178] sm:$0xff]
        %v6999 = vld [vmem:[%s11 + $0x180] sm:$0xff]
        %v7000 = vld [vmem:[%s11 + $0x188] sm:$0xff]
        %v7001 = vld [vmem:[%s11 + $0x190] sm:$0xff]
        %v7002 = vld [vmem:[%s11 + $0x198] sm:$0xff]
        %v7003 = vld [vmem:[%s11 + $0x1a0] sm:$0xff]
        %v7004 = vld [vmem:[%s11 + $0x1a8] sm:$0xff]
        %v7005 = vld [vmem:[%s11 + $0x1b0] sm:$0xff]
        %v7006 = vld [vmem:[%s11 + $0x1b8] sm:$0xff]
        %v7007 = vld [vmem:[%s11 + $0x1c0] sm:$0xff]
        %v7008 = vld [vmem:[%s11 + $0x1c8] sm:$0xff]
        %v7009 = vld [vmem:[%s11 + $0x1d0] sm:$0xff]
        %v7010 = vld [vmem:[%s11 + $0x1d8] sm:$0xff]
        %v7011 = vld [vmem:[%s11 + $0x1e0] sm:$0xff]
        %v7012 = vld [vmem:[%s11 + $0x1e8] sm:$0xff]
        %v7013 = vld [vmem:[%s11 + $0x1f0] sm:$0xff]
        %v7014 = vld [vmem:[%s11 + $0x1f8] sm:$0xff]
        %v7015 = vld [vmem:[%s11 + $0x200] sm:$0xff]
        %v7016 = vld [vmem:[%s11 + $0x208] sm:$0xff]
        %v7017 = vld [vmem:[%s11 + $0x210] sm:$0xff]
        %v7018 = vld [vmem:[%s11 + $0x218] sm:$0xff]
        %v7019 = vld [vmem:[%s11 + $0x220] sm:$0xff]
        %v7020 = vld [vmem:[%s11 + $0x228] sm:$0xff]
        %v7021 = vld [vmem:[%s11 + $0x230] sm:$0xff]
        %v7022 = vld [vmem:[%s11 + $0x238] sm:$0xff]
        %v7023 = vld [vmem:[%s12] sm:$0x1]
        %v7025 = vlaneseq
        %v7026 = vshrl.u32 %v7025, 7
        %v7027 = vsub.s32 0, %v7026
        %v7028 = vrot.slane %v7023, %v7027
        %v7031 = vsel %vm5355, %v6795, 0
        %v7034 = vsel %vm5355, %v6800, 0
        %v7037 = vsel %vm5355, %v6805, 0
        %v7040 = vsel %vm5355, %v6810, 0
        %v7043 = vsel %vm5355, %v6815, 0
        %v7046 = vsel %vm5355, %v6820, 0
        %v7049 = vsel %vm5355, %v6825, 0
        %v7052 = vsel %vm5355, %v6830, 0
        %v7055 = vsel %vm5355, %v6835, 0
        %v7058 = vsel %vm5355, %v6840, 0
        %v7061 = vsel %vm5355, %v6845, 0
        %v7064 = vsel %vm5355, %v6850, 0
        %v7067 = vsel %vm5355, %v6855, 0
        %v7070 = vsel %vm5355, %v6860, 0
        %v7073 = vsel %vm5355, %v6865, 0
        %v7076 = vsel %vm5355, %v6870, 0
        %v7079 = vsel %vm5355, %v6875, 0
        %v7082 = vsel %vm5355, %v6880, 0
        %v7085 = vsel %vm5355, %v6885, 0
        %v7088 = vsel %vm5355, %v6890, 0
        %v7091 = vsel %vm5355, %v6895, 0
        %v7094 = vsel %vm5355, %v6900, 0
        %v7097 = vsel %vm5355, %v6905, 0
        %v7100 = vsel %vm5355, %v6910, 0
        %v7103 = vsel %vm5355, %v6915, 0
        %v7106 = vsel %vm5355, %v6920, 0
        %v7109 = vsel %vm5355, %v6925, 0
        %v7112 = vsel %vm5355, %v6930, 0
        %v7115 = vsel %vm5355, %v6935, 0
        %v7118 = vsel %vm5355, %v6940, 0
        %v7121 = vsel %vm5355, %v6945, 0
        %v7124 = vsel %vm5355, %v6950, 0
        %7126 = vmatprep.subr.mxu0 0.0
        %7127 = vmatpush1.msra.mxu0 %v6951
        %7128 = vmatprep.subr.mxu0 0.0
        %7129 = vmatpush1.msra.mxu0 %v6952
        %7130 = vmatprep.subr.mxu0 0.0
        %7131 = vmatpush1.msra.mxu0 %v6953
        %7132 = vmatprep.subr.mxu0 0.0
        %7133 = vmatpush1.msra.mxu0 %v6954
        %7134 = vmatprep.subr.mxu0 0.0
        %7135 = vmatpush1.msra.mxu0 %v6955
        %7136 = vmatprep.subr.mxu0 0.0
        %7137 = vmatpush1.msra.mxu0 %v6956
        %7138 = vmatprep.subr.mxu0 0.0
        %7139 = vmatpush1.msra.mxu0 %v6957
        %7140 = vmatprep.subr.mxu0 0.0
        %7141 = vmatpush1.msra.mxu0 %v6958
        %7142 = vmatprep.subr.mxu0 0.0
        %7143 = vmatpush1.msra.mxu0 %v6959
        %7144 = vmatprep.subr.mxu0 0.0
        %7145 = vmatpush1.msra.mxu0 %v6960
        %7146 = vmatprep.subr.mxu0 0.0
        %7147 = vmatpush1.msra.mxu0 %v6961
        %7148 = vmatprep.subr.mxu0 0.0
        %7149 = vmatpush1.msra.mxu0 %v6962
        %7150 = vmatprep.subr.mxu0 0.0
        %7151 = vmatpush1.msra.mxu0 %v6963
        %7152 = vmatprep.subr.mxu0 0.0
        %7153 = vmatpush1.msra.mxu0 %v6964
        %7154 = vmatprep.subr.mxu0 0.0
        %7155 = vmatpush1.msra.mxu0 %v6965
        %7156 = vmatprep.subr.mxu0 0.0
        %7157 = vmatpush1.msra.mxu0 %v6966
        %7158 = vmatprep.subr.mxu0 0.0
        %7159 = vmatpush1.msra.mxu0 %v6967
        %7160 = vmatprep.subr.mxu0 0.0
        %7161 = vmatpush1.msra.mxu0 %v6968
        %7162 = vmatprep.subr.mxu0 0.0
        %7163 = vmatpush1.msra.mxu0 %v6969
        %7164 = vmatprep.subr.mxu0 0.0
        %7165 = vmatpush1.msra.mxu0 %v6970
        %7166 = vmatprep.subr.mxu0 0.0
        %7167 = vmatpush1.msra.mxu0 %v6971
        %7168 = vmatprep.subr.mxu0 0.0
        %7169 = vmatpush1.msra.mxu0 %v6972
        %7170 = vmatprep.subr.mxu0 0.0
        %7171 = vmatpush1.msra.mxu0 %v6973
        %7172 = vmatprep.subr.mxu0 0.0
        %7173 = vmatpush1.msra.mxu0 %v6974
        %7174 = vmatprep.subr.mxu0 0.0
        %7175 = vmatpush1.msra.mxu0 %v6975
        %7176 = vmatprep.subr.mxu0 0.0
        %7177 = vmatpush1.msra.mxu0 %v6976
        %7178 = vmatprep.subr.mxu0 0.0
        %7179 = vmatpush1.msra.mxu0 %v6977
        %7180 = vmatprep.subr.mxu0 0.0
        %7181 = vmatpush1.msra.mxu0 %v6978
        %7182 = vmatprep.subr.mxu0 0.0
        %7183 = vmatpush1.msra.mxu0 %v6979
        %7184 = vmatprep.subr.mxu0 0.0
        %7185 = vmatpush1.msra.mxu0 %v6980
        %7186 = vmatprep.subr.mxu0 0.0
        %7187 = vmatpush1.msra.mxu0 %v6981
        %7188 = vmatprep.subr.mxu0 0.0
        %7189 = vmatpush1.msra.mxu0 %v6982
        %7190 = vmatprep.mubr.f32.mxu0 %v6792
        %7191 = vmatmul.mubr.f32.gmra.mrb[0].mxu0 %v6791
        %v7192 = vpop.f32.mrb[0].mxu0
        %v7193 = vadd.f32 %v7028, %v7192
        %v7194 = vpop.f32.mrb[0].mxu0
        %7195 = vmatprep.mubr.f32.mxu0 %v6797
        %7196 = vmatmul.mubr.f32.gmra.mrb[0].mxu0 %v6796
        %v7197 = vpop.f32.mrb[0].mxu0
        %v7198 = vadd.f32 %v7028, %v7197
        %v7199 = vpop.f32.mrb[0].mxu0
        %7200 = vmatprep.mubr.f32.mxu0 %v6802
        %7201 = vmatmul.mubr.f32.gmra.mrb[0].mxu0 %v6801
        %v7202 = vpop.f32.mrb[0].mxu0
        %v7203 = vadd.f32 %v7028, %v7202
        %v7204 = vpop.f32.mrb[0].mxu0
        %7205 = vmatprep.mubr.f32.mxu0 %v6807
        %7206 = vmatmul.mubr.f32.gmra.mrb[0].mxu0 %v6806
        %v7207 = vpop.f32.mrb[0].mxu0
        %v7208 = vadd.f32 %v7028, %v7207
        %v7209 = vpop.f32.mrb[0].mxu0
        %7210 = vmatprep.mubr.f32.mxu0 %v6812
        %7211 = vmatmul.mubr.f32.gmra.mrb[0].mxu0 %v6811
        %v7212 = vpop.f32.mrb[0].mxu0
        %v7213 = vadd.f32 %v7028, %v7212
        %v7214 = vpop.f32.mrb[0].mxu0
        %7215 = vmatprep.mubr.f32.mxu0 %v6817
        %7216 = vmatmul.mubr.f32.gmra.mrb[0].mxu0 %v6816
        %v7217 = vpop.f32.mrb[0].mxu0
        %v7218 = vadd.f32 %v7028, %v7217
        %v7219 = vpop.f32.mrb[0].mxu0
        %7220 = vmatprep.mubr.f32.mxu0 %v6822
        %7221 = vmatmul.mubr.f32.gmra.mrb[0].mxu0 %v6821
        %v7222 = vpop.f32.mrb[0].mxu0
        %v7223 = vadd.f32 %v7028, %v7222
        %v7224 = vpop.f32.mrb[0].mxu0
        %7225 = vmatprep.mubr.f32.mxu0 %v6827
        %7226 = vmatmul.mubr.f32.gmra.mrb[0].mxu0 %v6826
        %v7227 = vpop.f32.mrb[0].mxu0
        %v7228 = vadd.f32 %v7028, %v7227
        %v7229 = vpop.f32.mrb[0].mxu0
        %7230 = vmatprep.mubr.f32.mxu0 %v6832
        %7231 = vmatmul.mubr.f32.gmra.mrb[0].mxu0 %v6831
        %v7232 = vpop.f32.mrb[0].mxu0
        %v7233 = vadd.f32 %v7028, %v7232
        %v7234 = vpop.f32.mrb[0].mxu0
        %7235 = vmatprep.mubr.f32.mxu0 %v6837
        %7236 = vmatmul.mubr.f32.gmra.mrb[0].mxu0 %v6836
        %v7237 = vpop.f32.mrb[0].mxu0
        %v7238 = vadd.f32 %v7028, %v7237
        %v7239 = vpop.f32.mrb[0].mxu0
        %7240 = vmatprep.mubr.f32.mxu0 %v6842
        %7241 = vmatmul.mubr.f32.gmra.mrb[0].mxu0 %v6841
        %v7242 = vpop.f32.mrb[0].mxu0
        %v7243 = vadd.f32 %v7028, %v7242
        %v7244 = vpop.f32.mrb[0].mxu0
        %7245 = vmatprep.mubr.f32.mxu0 %v6847
        %7246 = vmatmul.mubr.f32.gmra.mrb[0].mxu0 %v6846
        %v7247 = vpop.f32.mrb[0].mxu0
        %v7248 = vadd.f32 %v7028, %v7247
        %v7249 = vpop.f32.mrb[0].mxu0
        %7250 = vmatprep.mubr.f32.mxu0 %v6852
        %7251 = vmatmul.mubr.f32.gmra.mrb[0].mxu0 %v6851
        %v7252 = vpop.f32.mrb[0].mxu0
        %v7253 = vadd.f32 %v7028, %v7252
        %v7254 = vpop.f32.mrb[0].mxu0
        %7255 = vmatprep.mubr.f32.mxu0 %v6857
        %7256 = vmatmul.mubr.f32.gmra.mrb[0].mxu0 %v6856
        %v7257 = vpop.f32.mrb[0].mxu0
        %v7258 = vadd.f32 %v7028, %v7257
        %v7259 = vpop.f32.mrb[0].mxu0
        %7260 = vmatprep.mubr.f32.mxu0 %v6862
        %7261 = vmatmul.mubr.f32.gmra.mrb[0].mxu0 %v6861
        %v7262 = vpop.f32.mrb[0].mxu0
        %v7263 = vadd.f32 %v7028, %v7262
        %v7264 = vpop.f32.mrb[0].mxu0
        %7265 = vmatprep.mubr.f32.mxu0 %v6867
        %7266 = vmatmul.mubr.f32.gmra.mrb[0].mxu0 %v6866
        %v7267 = vpop.f32.mrb[0].mxu0
        %v7268 = vadd.f32 %v7028, %v7267
        %v7269 = vpop.f32.mrb[0].mxu0
        %7270 = vmatprep.mubr.f32.mxu0 %v6872
        %7271 = vmatmul.mubr.f32.gmra.mrb[0].mxu0 %v6871
        %v7272 = vpop.f32.mrb[0].mxu0
        %v7273 = vadd.f32 %v7028, %v7272
        %v7274 = vpop.f32.mrb[0].mxu0
        %7275 = vmatprep.mubr.f32.mxu0 %v6877
        %7276 = vmatmul.mubr.f32.gmra.mrb[0].mxu0 %v6876
        %v7277 = vpop.f32.mrb[0].mxu0
        %v7278 = vadd.f32 %v7028, %v7277
        %v7279 = vpop.f32.mrb[0].mxu0
        %7280 = vmatprep.mubr.f32.mxu0 %v6882
        %7281 = vmatmul.mubr.f32.gmra.mrb[0].mxu0 %v6881
        %v7282 = vpop.f32.mrb[0].mxu0
        %v7283 = vadd.f32 %v7028, %v7282
        %v7284 = vpop.f32.mrb[0].mxu0
        %7285 = vmatprep.mubr.f32.mxu0 %v6887
        %7286 = vmatmul.mubr.f32.gmra.mrb[0].mxu0 %v6886
        %v7287 = vpop.f32.mrb[0].mxu0
        %v7288 = vadd.f32 %v7028, %v7287
        %v7289 = vpop.f32.mrb[0].mxu0
        %7290 = vmatprep.mubr.f32.mxu0 %v6892
        %7291 = vmatmul.mubr.f32.gmra.mrb[0].mxu0 %v6891
        %v7292 = vpop.f32.mrb[0].mxu0
        %v7293 = vadd.f32 %v7028, %v7292
        %v7294 = vpop.f32.mrb[0].mxu0
        %7295 = vmatprep.mubr.f32.mxu0 %v6897
        %7296 = vmatmul.mubr.f32.gmra.mrb[0].mxu0 %v6896
        %v7297 = vpop.f32.mrb[0].mxu0
        %v7298 = vadd.f32 %v7028, %v7297
        %v7299 = vpop.f32.mrb[0].mxu0
        %7300 = vmatprep.mubr.f32.mxu0 %v6902
        %7301 = vmatmul.mubr.f32.gmra.mrb[0].mxu0 %v6901
        %v7302 = vpop.f32.mrb[0].mxu0
        %v7303 = vadd.f32 %v7028, %v7302
        %v7304 = vpop.f32.mrb[0].mxu0
        %7305 = vmatprep.mubr.f32.mxu0 %v6907
        %7306 = vmatmul.mubr.f32.gmra.mrb[0].mxu0 %v6906
        %v7307 = vpop.f32.mrb[0].mxu0
        %v7308 = vadd.f32 %v7028, %v7307
        %v7309 = vpop.f32.mrb[0].mxu0
        %7310 = vmatprep.mubr.f32.mxu0 %v6912
        %7311 = vmatmul.mubr.f32.gmra.mrb[0].mxu0 %v6911
        %v7312 = vpop.f32.mrb[0].mxu0
        %v7313 = vadd.f32 %v7028, %v7312
        %v7314 = vpop.f32.mrb[0].mxu0
        %7315 = vmatprep.mubr.f32.mxu0 %v6917
        %7316 = vmatmul.mubr.f32.gmra.mrb[0].mxu0 %v6916
        %v7317 = vpop.f32.mrb[0].mxu0
        %v7318 = vadd.f32 %v7028, %v7317
        %v7319 = vpop.f32.mrb[0].mxu0
        %7320 = vmatprep.mubr.f32.mxu0 %v6922
        %7321 = vmatmul.mubr.f32.gmra.mrb[0].mxu0 %v6921
        %v7322 = vpop.f32.mrb[0].mxu0
        %v7323 = vadd.f32 %v7028, %v7322
        %v7324 = vpop.f32.mrb[0].mxu0
        %7325 = vmatprep.mubr.f32.mxu0 %v6927
        %7326 = vmatmul.mubr.f32.gmra.mrb[0].mxu0 %v6926
        %v7327 = vpop.f32.mrb[0].mxu0
        %v7328 = vadd.f32 %v7028, %v7327
        %v7329 = vpop.f32.mrb[0].mxu0
        %7330 = vmatprep.mubr.f32.mxu0 %v6932
        %7331 = vmatmul.mubr.f32.gmra.mrb[0].mxu0 %v6931
        %v7332 = vpop.f32.mrb[0].mxu0
        %v7333 = vadd.f32 %v7028, %v7332
        %v7334 = vpop.f32.mrb[0].mxu0
        %7335 = vmatprep.mubr.f32.mxu0 %v6937
        %7336 = vmatmul.mubr.f32.gmra.mrb[0].mxu0 %v6936
        %v7337 = vpop.f32.mrb[0].mxu0
        %v7338 = vadd.f32 %v7028, %v7337
        %v7339 = vpop.f32.mrb[0].mxu0
        %7340 = vmatprep.mubr.f32.mxu0 %v6942
        %7341 = vmatmul.mubr.f32.gmra.mrb[0].mxu0 %v6941
        %v7342 = vpop.f32.mrb[0].mxu0
        %v7343 = vadd.f32 %v7028, %v7342
        %v7344 = vpop.f32.mrb[0].mxu0
        %7345 = vmatprep.mubr.f32.mxu0 %v6947
        %7346 = vmatmul.mubr.f32.gmra.mrb[0].mxu0 %v6946
        %v7347 = vpop.f32.mrb[0].mxu0
        %v7348 = vadd.f32 %v7028, %v7347
        %v7349 = vpop.f32.mrb[0].mxu0
        %7350 = vdwg.mxu0
        %7351 = vmatprep.subr.mxu0 0.0
        %7352 = vmatpush1.msra.mxu0 %v6983
        %7353 = vmatprep.subr.mxu0 0.0
        %7354 = vmatpush1.msra.mxu0 %v6984
        %7355 = vmatprep.subr.mxu0 0.0
        %7356 = vmatpush1.msra.mxu0 %v6985
        %7357 = vmatprep.subr.mxu0 0.0
        %7358 = vmatpush1.msra.mxu0 %v6986
        %7359 = vmatprep.subr.mxu0 0.0
        %7360 = vmatpush1.msra.mxu0 %v6987
        %7361 = vmatprep.subr.mxu0 0.0
        %7362 = vmatpush1.msra.mxu0 %v6988
        %7363 = vmatprep.subr.mxu0 0.0
        %7364 = vmatpush1.msra.mxu0 %v6989
        %7365 = vmatprep.subr.mxu0 0.0
        %7366 = vmatpush1.msra.mxu0 %v6990
        %7367 = vmatprep.subr.mxu0 0.0
        %7368 = vmatpush1.msra.mxu0 %v6991
        %7369 = vmatprep.subr.mxu0 0.0
        %7370 = vmatpush1.msra.mxu0 %v6992
        %7371 = vmatprep.subr.mxu0 0.0
        %7372 = vmatpush1.msra.mxu0 %v6993
        %7373 = vmatprep.subr.mxu0 0.0
        %7374 = vmatpush1.msra.mxu0 %v6994
        %7375 = vmatprep.subr.mxu0 0.0
        %7376 = vmatpush1.msra.mxu0 %v6995
        %7377 = vmatprep.subr.mxu0 0.0
        %7378 = vmatpush1.msra.mxu0 %v6996
        %7379 = vmatprep.subr.mxu0 0.0
        %7380 = vmatpush1.msra.mxu0 %v6997
        %7381 = vmatprep.subr.mxu0 0.0
        %7382 = vmatpush1.msra.mxu0 %v6998
        %7383 = vmatprep.subr.mxu0 0.0
        %7384 = vmatpush1.msra.mxu0 %v6999
        %7385 = vmatprep.subr.mxu0 0.0
        %7386 = vmatpush1.msra.mxu0 %v7000
        %7387 = vmatprep.subr.mxu0 0.0
        %7388 = vmatpush1.msra.mxu0 %v7001
        %7389 = vmatprep.subr.mxu0 0.0
        %7390 = vmatpush1.msra.mxu0 %v7002
        %7391 = vmatprep.subr.mxu0 0.0
        %7392 = vmatpush1.msra.mxu0 %v7003
        %7393 = vmatprep.subr.mxu0 0.0
        %7394 = vmatpush1.msra.mxu0 %v7004
        %7395 = vmatprep.subr.mxu0 0.0
        %7396 = vmatpush1.msra.mxu0 %v7005
        %7397 = vmatprep.subr.mxu0 0.0
        %7398 = vmatpush1.msra.mxu0 %v7006
        %7399 = vmatprep.subr.mxu0 0.0
        %7400 = vmatpush1.msra.mxu0 %v7007
        %7401 = vmatprep.subr.mxu0 0.0
        %7402 = vmatpush1.msra.mxu0 %v7008
        %7403 = vmatprep.subr.mxu0 0.0
        %7404 = vmatpush1.msra.mxu0 %v7009
        %7405 = vmatprep.subr.mxu0 0.0
        %7406 = vmatpush1.msra.mxu0 %v7010
        %7407 = vmatprep.subr.mxu0 0.0
        %7408 = vmatpush1.msra.mxu0 %v7011
        %7409 = vmatprep.subr.mxu0 0.0
        %7410 = vmatpush1.msra.mxu0 %v7012
        %7411 = vmatprep.subr.mxu0 0.0
        %7412 = vmatpush1.msra.mxu0 %v7013
        %7413 = vmatprep.subr.mxu0 0.0
        %7414 = vmatpush1.msra.mxu0 %v7014
        %7415 = vmatprep.mubr.f32.mxu0 %v6794
        %7416 = vmatmul.mubr.f32.gmra.mrb[0].mxu0 %v6793
        %v7417 = vpop.f32.mrb[0].mxu0
        %v7418 = vadd.f32 %v7193, %v7417
        %v7419 = vpop.f32.mrb[0].mxu0
        %7420 = vmatprep.mubr.f32.mxu0 %v6799
        %7421 = vmatmul.mubr.f32.gmra.mrb[0].mxu0 %v6798
        %v7422 = vpop.f32.mrb[0].mxu0
        %v7423 = vadd.f32 %v7198, %v7422
        %v7424 = vpop.f32.mrb[0].mxu0
        %7425 = vmatprep.mubr.f32.mxu0 %v6804
        %7426 = vmatmul.mubr.f32.gmra.mrb[0].mxu0 %v6803
        %v7427 = vpop.f32.mrb[0].mxu0
        %v7428 = vadd.f32 %v7203, %v7427
        %v7429 = vpop.f32.mrb[0].mxu0
        %7430 = vmatprep.mubr.f32.mxu0 %v6809
        %7431 = vmatmul.mubr.f32.gmra.mrb[0].mxu0 %v6808
        %v7432 = vpop.f32.mrb[0].mxu0
        %v7433 = vadd.f32 %v7208, %v7432
        %v7434 = vpop.f32.mrb[0].mxu0
        %7435 = vmatprep.mubr.f32.mxu0 %v6814
        %7436 = vmatmul.mubr.f32.gmra.mrb[0].mxu0 %v6813
        %v7437 = vpop.f32.mrb[0].mxu0
        %v7438 = vadd.f32 %v7213, %v7437
        %v7439 = vpop.f32.mrb[0].mxu0
        %7440 = vmatprep.mubr.f32.mxu0 %v6819
        %7441 = vmatmul.mubr.f32.gmra.mrb[0].mxu0 %v6818
        %v7442 = vpop.f32.mrb[0].mxu0
        %v7443 = vadd.f32 %v7218, %v7442
        %v7444 = vpop.f32.mrb[0].mxu0
        %7445 = vmatprep.mubr.f32.mxu0 %v6824
        %7446 = vmatmul.mubr.f32.gmra.mrb[0].mxu0 %v6823
        %v7447 = vpop.f32.mrb[0].mxu0
        %v7448 = vadd.f32 %v7223, %v7447
        %v7449 = vpop.f32.mrb[0].mxu0
        %7450 = vmatprep.mubr.f32.mxu0 %v6829
        %7451 = vmatmul.mubr.f32.gmra.mrb[0].mxu0 %v6828
        %v7452 = vpop.f32.mrb[0].mxu0
        %v7453 = vadd.f32 %v7228, %v7452
        %v7454 = vpop.f32.mrb[0].mxu0
        %7455 = vmatprep.mubr.f32.mxu0 %v6834
        %7456 = vmatmul.mubr.f32.gmra.mrb[0].mxu0 %v6833
        %v7457 = vpop.f32.mrb[0].mxu0
        %v7458 = vadd.f32 %v7233, %v7457
        %v7459 = vpop.f32.mrb[0].mxu0
        %7460 = vmatprep.mubr.f32.mxu0 %v6839
        %7461 = vmatmul.mubr.f32.gmra.mrb[0].mxu0 %v6838
        %v7462 = vpop.f32.mrb[0].mxu0
        %v7463 = vadd.f32 %v7238, %v7462
        %v7464 = vpop.f32.mrb[0].mxu0
        %7465 = vmatprep.mubr.f32.mxu0 %v6844
        %7466 = vmatmul.mubr.f32.gmra.mrb[0].mxu0 %v6843
        %v7467 = vpop.f32.mrb[0].mxu0
        %v7468 = vadd.f32 %v7243, %v7467
        %v7469 = vpop.f32.mrb[0].mxu0
        %7470 = vmatprep.mubr.f32.mxu0 %v6849
        %7471 = vmatmul.mubr.f32.gmra.mrb[0].mxu0 %v6848
        %v7472 = vpop.f32.mrb[0].mxu0
        %v7473 = vadd.f32 %v7248, %v7472
        %v7474 = vpop.f32.mrb[0].mxu0
        %7475 = vmatprep.mubr.f32.mxu0 %v6854
        %7476 = vmatmul.mubr.f32.gmra.mrb[0].mxu0 %v6853
        %v7477 = vpop.f32.mrb[0].mxu0
        %v7478 = vadd.f32 %v7253, %v7477
        %v7479 = vpop.f32.mrb[0].mxu0
        %7480 = vmatprep.mubr.f32.mxu0 %v6859
        %7481 = vmatmul.mubr.f32.gmra.mrb[0].mxu0 %v6858
        %v7482 = vpop.f32.mrb[0].mxu0
        %v7483 = vadd.f32 %v7258, %v7482
        %v7484 = vpop.f32.mrb[0].mxu0
        %7485 = vmatprep.mubr.f32.mxu0 %v6864
        %7486 = vmatmul.mubr.f32.gmra.mrb[0].mxu0 %v6863
        %v7487 = vpop.f32.mrb[0].mxu0
        %v7488 = vadd.f32 %v7263, %v7487
        %v7489 = vpop.f32.mrb[0].mxu0
        %7490 = vmatprep.mubr.f32.mxu0 %v6869
        %7491 = vmatmul.mubr.f32.gmra.mrb[0].mxu0 %v6868
        %v7492 = vpop.f32.mrb[0].mxu0
        %v7493 = vadd.f32 %v7268, %v7492
        %v7494 = vpop.f32.mrb[0].mxu0
        %7495 = vmatprep.mubr.f32.mxu0 %v6874
        %7496 = vmatmul.mubr.f32.gmra.mrb[0].mxu0 %v6873
        %v7497 = vpop.f32.mrb[0].mxu0
        %v7498 = vadd.f32 %v7273, %v7497
        %v7499 = vpop.f32.mrb[0].mxu0
        %7500 = vmatprep.mubr.f32.mxu0 %v6879
        %7501 = vmatmul.mubr.f32.gmra.mrb[0].mxu0 %v6878
        %v7502 = vpop.f32.mrb[0].mxu0
        %v7503 = vadd.f32 %v7278, %v7502
        %v7504 = vpop.f32.mrb[0].mxu0
        %7505 = vmatprep.mubr.f32.mxu0 %v6884
        %7506 = vmatmul.mubr.f32.gmra.mrb[0].mxu0 %v6883
        %v7507 = vpop.f32.mrb[0].mxu0
        %v7508 = vadd.f32 %v7283, %v7507
        %v7509 = vpop.f32.mrb[0].mxu0
        %7510 = vmatprep.mubr.f32.mxu0 %v6889
        %7511 = vmatmul.mubr.f32.gmra.mrb[0].mxu0 %v6888
        %v7512 = vpop.f32.mrb[0].mxu0
        %v7513 = vadd.f32 %v7288, %v7512
        %v7514 = vpop.f32.mrb[0].mxu0
        %7515 = vmatprep.mubr.f32.mxu0 %v6894
        %7516 = vmatmul.mubr.f32.gmra.mrb[0].mxu0 %v6893
        %v7517 = vpop.f32.mrb[0].mxu0
        %v7518 = vadd.f32 %v7293, %v7517
        %v7519 = vpop.f32.mrb[0].mxu0
        %7520 = vmatprep.mubr.f32.mxu0 %v6899
        %7521 = vmatmul.mubr.f32.gmra.mrb[0].mxu0 %v6898
        %v7522 = vpop.f32.mrb[0].mxu0
        %v7523 = vadd.f32 %v7298, %v7522
        %v7524 = vpop.f32.mrb[0].mxu0
        %7525 = vmatprep.mubr.f32.mxu0 %v6904
        %7526 = vmatmul.mubr.f32.gmra.mrb[0].mxu0 %v6903
        %v7527 = vpop.f32.mrb[0].mxu0
        %v7528 = vadd.f32 %v7303, %v7527
        %v7529 = vpop.f32.mrb[0].mxu0
        %7530 = vmatprep.mubr.f32.mxu0 %v6909
        %7531 = vmatmul.mubr.f32.gmra.mrb[0].mxu0 %v6908
        %v7532 = vpop.f32.mrb[0].mxu0
        %v7533 = vadd.f32 %v7308, %v7532
        %v7534 = vpop.f32.mrb[0].mxu0
        %7535 = vmatprep.mubr.f32.mxu0 %v6914
        %7536 = vmatmul.mubr.f32.gmra.mrb[0].mxu0 %v6913
        %v7537 = vpop.f32.mrb[0].mxu0
        %v7538 = vadd.f32 %v7313, %v7537
        %v7539 = vpop.f32.mrb[0].mxu0
        %7540 = vmatprep.mubr.f32.mxu0 %v6919
        %7541 = vmatmul.mubr.f32.gmra.mrb[0].mxu0 %v6918
        %v7542 = vpop.f32.mrb[0].mxu0
        %v7543 = vadd.f32 %v7318, %v7542
        %v7544 = vpop.f32.mrb[0].mxu0
        %7545 = vmatprep.mubr.f32.mxu0 %v6924
        %7546 = vmatmul.mubr.f32.gmra.mrb[0].mxu0 %v6923
        %v7547 = vpop.f32.mrb[0].mxu0
        %v7548 = vadd.f32 %v7323, %v7547
        %v7549 = vpop.f32.mrb[0].mxu0
        %7550 = vmatprep.mubr.f32.mxu0 %v6929
        %7551 = vmatmul.mubr.f32.gmra.mrb[0].mxu0 %v6928
        %v7552 = vpop.f32.mrb[0].mxu0
        %v7553 = vadd.f32 %v7328, %v7552
        %v7554 = vpop.f32.mrb[0].mxu0
        %7555 = vmatprep.mubr.f32.mxu0 %v6934
        %7556 = vmatmul.mubr.f32.gmra.mrb[0].mxu0 %v6933
        %v7557 = vpop.f32.mrb[0].mxu0
        %v7558 = vadd.f32 %v7333, %v7557
        %v7559 = vpop.f32.mrb[0].mxu0
        %7560 = vmatprep.mubr.f32.mxu0 %v6939
        %7561 = vmatmul.mubr.f32.gmra.mrb[0].mxu0 %v6938
        %v7562 = vpop.f32.mrb[0].mxu0
        %v7563 = vadd.f32 %v7338, %v7562
        %v7564 = vpop.f32.mrb[0].mxu0
        %7565 = vmatprep.mubr.f32.mxu0 %v6944
        %7566 = vmatmul.mubr.f32.gmra.mrb[0].mxu0 %v6943
        %v7567 = vpop.f32.mrb[0].mxu0
        %v7568 = vadd.f32 %v7343, %v7567
        %v7569 = vpop.f32.mrb[0].mxu0
        %7570 = vmatprep.mubr.f32.mxu0 %v6949
        %7571 = vmatmul.mubr.f32.gmra.mrb[0].mxu0 %v6948
        %v7572 = vpop.f32.mrb[0].mxu0
        %v7573 = vadd.f32 %v7348, %v7572
        %v7574 = vpop.f32.mrb[0].mxu0
        %7575 = vdwg.mxu0
        %7576 = vmatprep.subr.mxu0 0.0
        %7577 = vmatpush1.msra.mxu0 %v7015
        %7578 = vmatprep.subr.mxu0 0.0
        %7579 = vmatpush1.msra.mxu0 %v7016
        %7580 = vmatprep.subr.mxu0 0.0
        %7581 = vmatpush1.msra.mxu0 %v7017
        %7582 = vmatprep.subr.mxu0 0.0
        %7583 = vmatpush1.msra.mxu0 %v7018
        %7584 = vmatprep.subr.mxu0 0.0
        %7585 = vmatpush1.msra.mxu0 %v7019
        %7586 = vmatprep.subr.mxu0 0.0
        %7587 = vmatpush1.msra.mxu0 %v7020
        %7588 = vmatprep.subr.mxu0 0.0
        %7589 = vmatpush1.msra.mxu0 %v7021
        %7590 = vmatprep.subr.mxu0 0.0
        %7591 = vmatpush1.msra.mxu0 %v7022
        %7592 = vmatprep.subr.mxu0 0.0
        %7593 = vmatpush1.msra.mxu0 0.0
        %7594 = vmatprep.subr.mxu0 0.0
        %7595 = vmatpush1.msra.mxu0 0.0
        %7596 = vmatprep.subr.mxu0 0.0
        %7597 = vmatpush1.msra.mxu0 0.0
        %7598 = vmatprep.subr.mxu0 0.0
        %7599 = vmatpush1.msra.mxu0 0.0
        %7600 = vmatprep.subr.mxu0 0.0
        %7601 = vmatpush1.msra.mxu0 0.0
        %7602 = vmatprep.subr.mxu0 0.0
        %7603 = vmatpush1.msra.mxu0 0.0
        %7604 = vmatprep.subr.mxu0 0.0
        %7605 = vmatpush1.msra.mxu0 0.0
        %7606 = vmatprep.subr.mxu0 0.0
        %7607 = vmatpush1.msra.mxu0 0.0
        %7608 = vmatprep.subr.mxu0 0.0
        %7609 = vmatpush1.msra.mxu0 0.0
        %7610 = vmatprep.subr.mxu0 0.0
        %7611 = vmatpush1.msra.mxu0 0.0
        %7612 = vmatprep.subr.mxu0 0.0
        %7613 = vmatpush1.msra.mxu0 0.0
        %7614 = vmatprep.subr.mxu0 0.0
        %7615 = vmatpush1.msra.mxu0 0.0
        %7616 = vmatprep.subr.mxu0 0.0
        %7617 = vmatpush1.msra.mxu0 0.0
        %7618 = vmatprep.subr.mxu0 0.0
        %7619 = vmatpush1.msra.mxu0 0.0
        %7620 = vmatprep.subr.mxu0 0.0
        %7621 = vmatpush1.msra.mxu0 0.0
        %7622 = vmatprep.subr.mxu0 0.0
        %7623 = vmatpush1.msra.mxu0 0.0
        %7624 = vmatprep.subr.mxu0 0.0
        %7625 = vmatpush1.msra.mxu0 0.0
        %7626 = vmatprep.subr.mxu0 0.0
        %7627 = vmatpush1.msra.mxu0 0.0
        %7628 = vmatprep.subr.mxu0 0.0
        %7629 = vmatpush1.msra.mxu0 0.0
        %7630 = vmatprep.subr.mxu0 0.0
        %7631 = vmatpush1.msra.mxu0 0.0
        %7632 = vmatprep.subr.mxu0 0.0
        %7633 = vmatpush1.msra.mxu0 0.0
        %7634 = vmatprep.subr.mxu0 0.0
        %7635 = vmatpush1.msra.mxu0 0.0
        %7636 = vmatprep.subr.mxu0 0.0
        %7637 = vmatpush1.msra.mxu0 0.0
        %7638 = vmatprep.subr.mxu0 0.0
        %7639 = vmatpush1.msra.mxu0 0.0
        %7640 = vmatprep.mubr.f32.mxu0 0.0
        %7641 = vmatmul.mubr.f32.gmra.mrb[0].mxu0 %v7031
        %v7642 = vpop.f32.mrb[0].mxu0
        %v7643 = vadd.f32 %v7418, %v7642
        %v7644 = vpop.f32.mrb[0].mxu0
        %7645 = vmatprep.mubr.f32.mxu0 0.0
        %7646 = vmatmul.mubr.f32.gmra.mrb[0].mxu0 %v7034
        %v7647 = vpop.f32.mrb[0].mxu0
        %v7648 = vadd.f32 %v7423, %v7647
        %v7649 = vpop.f32.mrb[0].mxu0
        %7650 = vmatprep.mubr.f32.mxu0 0.0
        %7651 = vmatmul.mubr.f32.gmra.mrb[0].mxu0 %v7037
        %v7652 = vpop.f32.mrb[0].mxu0
        %v7653 = vadd.f32 %v7428, %v7652
        %v7654 = vpop.f32.mrb[0].mxu0
        %7655 = vmatprep.mubr.f32.mxu0 0.0
        %7656 = vmatmul.mubr.f32.gmra.mrb[0].mxu0 %v7040
        %v7657 = vpop.f32.mrb[0].mxu0
        %v7658 = vadd.f32 %v7433, %v7657
        %v7659 = vpop.f32.mrb[0].mxu0
        %7660 = vmatprep.mubr.f32.mxu0 0.0
        %7661 = vmatmul.mubr.f32.gmra.mrb[0].mxu0 %v7043
        %v7662 = vpop.f32.mrb[0].mxu0
        %v7663 = vadd.f32 %v7438, %v7662
        %v7664 = vpop.f32.mrb[0].mxu0
        %7665 = vmatprep.mubr.f32.mxu0 0.0
        %7666 = vmatmul.mubr.f32.gmra.mrb[0].mxu0 %v7046
        %v7667 = vpop.f32.mrb[0].mxu0
        %v7668 = vadd.f32 %v7443, %v7667
        %v7669 = vpop.f32.mrb[0].mxu0
        %7670 = vmatprep.mubr.f32.mxu0 0.0
        %7671 = vmatmul.mubr.f32.gmra.mrb[0].mxu0 %v7049
        %v7672 = vpop.f32.mrb[0].mxu0
        %v7673 = vadd.f32 %v7448, %v7672
        %v7674 = vpop.f32.mrb[0].mxu0
        %7675 = vmatprep.mubr.f32.mxu0 0.0
        %7676 = vmatmul.mubr.f32.gmra.mrb[0].mxu0 %v7052
        %v7677 = vpop.f32.mrb[0].mxu0
        %v7678 = vadd.f32 %v7453, %v7677
        %v7679 = vpop.f32.mrb[0].mxu0
        %7680 = vmatprep.mubr.f32.mxu0 0.0
        %7681 = vmatmul.mubr.f32.gmra.mrb[0].mxu0 %v7055
        %v7682 = vpop.f32.mrb[0].mxu0
        %v7683 = vadd.f32 %v7458, %v7682
        %v7684 = vpop.f32.mrb[0].mxu0
        %7685 = vmatprep.mubr.f32.mxu0 0.0
        %7686 = vmatmul.mubr.f32.gmra.mrb[0].mxu0 %v7058
        %v7687 = vpop.f32.mrb[0].mxu0
        %v7688 = vadd.f32 %v7463, %v7687
        %v7689 = vpop.f32.mrb[0].mxu0
        %7690 = vmatprep.mubr.f32.mxu0 0.0
        %7691 = vmatmul.mubr.f32.gmra.mrb[0].mxu0 %v7061
        %v7692 = vpop.f32.mrb[0].mxu0
        %v7693 = vadd.f32 %v7468, %v7692
        %v7694 = vpop.f32.mrb[0].mxu0
        %7695 = vmatprep.mubr.f32.mxu0 0.0
        %7696 = vmatmul.mubr.f32.gmra.mrb[0].mxu0 %v7064
        %v7697 = vpop.f32.mrb[0].mxu0
        %v7698 = vadd.f32 %v7473, %v7697
        %v7699 = vpop.f32.mrb[0].mxu0
        %7700 = vmatprep.mubr.f32.mxu0 0.0
        %7701 = vmatmul.mubr.f32.gmra.mrb[0].mxu0 %v7067
        %v7702 = vpop.f32.mrb[0].mxu0
        %v7703 = vadd.f32 %v7478, %v7702
        %v7704 = vpop.f32.mrb[0].mxu0
        %7705 = vmatprep.mubr.f32.mxu0 0.0
        %7706 = vmatmul.mubr.f32.gmra.mrb[0].mxu0 %v7070
        %v7707 = vpop.f32.mrb[0].mxu0
        %v7708 = vadd.f32 %v7483, %v7707
        %v7709 = vpop.f32.mrb[0].mxu0
        %7710 = vmatprep.mubr.f32.mxu0 0.0
        %7711 = vmatmul.mubr.f32.gmra.mrb[0].mxu0 %v7073
        %v7712 = vpop.f32.mrb[0].mxu0
        %v7713 = vadd.f32 %v7488, %v7712
        %v7714 = vpop.f32.mrb[0].mxu0
        %7715 = vmatprep.mubr.f32.mxu0 0.0
        %7716 = vmatmul.mubr.f32.gmra.mrb[0].mxu0 %v7076
        %v7717 = vpop.f32.mrb[0].mxu0
        %v7718 = vadd.f32 %v7493, %v7717
        %v7719 = vpop.f32.mrb[0].mxu0
        %7720 = vmatprep.mubr.f32.mxu0 0.0
        %7721 = vmatmul.mubr.f32.gmra.mrb[0].mxu0 %v7079
        %v7722 = vpop.f32.mrb[0].mxu0
        %v7723 = vadd.f32 %v7498, %v7722
        %v7724 = vpop.f32.mrb[0].mxu0
        %7725 = vmatprep.mubr.f32.mxu0 0.0
        %7726 = vmatmul.mubr.f32.gmra.mrb[0].mxu0 %v7082
        %v7727 = vpop.f32.mrb[0].mxu0
        %v7728 = vadd.f32 %v7503, %v7727
        %v7729 = vpop.f32.mrb[0].mxu0
        %7730 = vmatprep.mubr.f32.mxu0 0.0
        %7731 = vmatmul.mubr.f32.gmra.mrb[0].mxu0 %v7085
        %v7732 = vpop.f32.mrb[0].mxu0
        %v7733 = vadd.f32 %v7508, %v7732
        %v7734 = vpop.f32.mrb[0].mxu0
        %7735 = vmatprep.mubr.f32.mxu0 0.0
        %7736 = vmatmul.mubr.f32.gmra.mrb[0].mxu0 %v7088
        %v7737 = vpop.f32.mrb[0].mxu0
        %v7738 = vadd.f32 %v7513, %v7737
        %v7739 = vpop.f32.mrb[0].mxu0
        %7740 = vmatprep.mubr.f32.mxu0 0.0
        %7741 = vmatmul.mubr.f32.gmra.mrb[0].mxu0 %v7091
        %v7742 = vpop.f32.mrb[0].mxu0
        %v7743 = vadd.f32 %v7518, %v7742
        %v7744 = vpop.f32.mrb[0].mxu0
        %7745 = vmatprep.mubr.f32.mxu0 0.0
        %7746 = vmatmul.mubr.f32.gmra.mrb[0].mxu0 %v7094
        %v7747 = vpop.f32.mrb[0].mxu0
        %v7748 = vadd.f32 %v7523, %v7747
        %v7749 = vpop.f32.mrb[0].mxu0
        %7750 = vmatprep.mubr.f32.mxu0 0.0
        %7751 = vmatmul.mubr.f32.gmra.mrb[0].mxu0 %v7097
        %v7752 = vpop.f32.mrb[0].mxu0
        %v7753 = vadd.f32 %v7528, %v7752
        %v7754 = vpop.f32.mrb[0].mxu0
        %7755 = vmatprep.mubr.f32.mxu0 0.0
        %7756 = vmatmul.mubr.f32.gmra.mrb[0].mxu0 %v7100
        %v7757 = vpop.f32.mrb[0].mxu0
        %v7758 = vadd.f32 %v7533, %v7757
        %v7759 = vpop.f32.mrb[0].mxu0
        %7760 = vmatprep.mubr.f32.mxu0 0.0
        %7761 = vmatmul.mubr.f32.gmra.mrb[0].mxu0 %v7103
        %v7762 = vpop.f32.mrb[0].mxu0
        %v7763 = vadd.f32 %v7538, %v7762
        %v7764 = vpop.f32.mrb[0].mxu0
        %7765 = vmatprep.mubr.f32.mxu0 0.0
        %7766 = vmatmul.mubr.f32.gmra.mrb[0].mxu0 %v7106
        %v7767 = vpop.f32.mrb[0].mxu0
        %v7768 = vadd.f32 %v7543, %v7767
        %v7769 = vpop.f32.mrb[0].mxu0
        %7770 = vmatprep.mubr.f32.mxu0 0.0
        %7771 = vmatmul.mubr.f32.gmra.mrb[0].mxu0 %v7109
        %v7772 = vpop.f32.mrb[0].mxu0
        %v7773 = vadd.f32 %v7548, %v7772
        %v7774 = vpop.f32.mrb[0].mxu0
        %7775 = vmatprep.mubr.f32.mxu0 0.0
        %7776 = vmatmul.mubr.f32.gmra.mrb[0].mxu0 %v7112
        %v7777 = vpop.f32.mrb[0].mxu0
        %v7778 = vadd.f32 %v7553, %v7777
        %v7779 = vpop.f32.mrb[0].mxu0
        %7780 = vmatprep.mubr.f32.mxu0 0.0
        %7781 = vmatmul.mubr.f32.gmra.mrb[0].mxu0 %v7115
        %v7782 = vpop.f32.mrb[0].mxu0
        %v7783 = vadd.f32 %v7558, %v7782
        %v7784 = vpop.f32.mrb[0].mxu0
        %7785 = vmatprep.mubr.f32.mxu0 0.0
        %7786 = vmatmul.mubr.f32.gmra.mrb[0].mxu0 %v7118
        %v7787 = vpop.f32.mrb[0].mxu0
        %v7788 = vadd.f32 %v7563, %v7787
        %v7789 = vpop.f32.mrb[0].mxu0
        %7790 = vmatprep.mubr.f32.mxu0 0.0
        %7791 = vmatmul.mubr.f32.gmra.mrb[0].mxu0 %v7121
        %v7792 = vpop.f32.mrb[0].mxu0
        %v7793 = vadd.f32 %v7568, %v7792
        %v7794 = vpop.f32.mrb[0].mxu0
        %7795 = vmatprep.mubr.f32.mxu0 0.0
        %7796 = vmatmul.mubr.f32.gmra.mrb[0].mxu0 %v7124
        %v7797 = vpop.f32.mrb[0].mxu0
        %v7798 = vadd.f32 %v7573, %v7797
        %v7799 = vpop.f32.mrb[0].mxu0
        %7800 = vdwg.mxu0
        %v7801 = vxor.u32 %v7643, 2147483648
        %v7802 = vxor.u32 %v7648, 2147483648
        %v7803 = vxor.u32 %v7653, 2147483648
        %v7804 = vxor.u32 %v7658, 2147483648
        %v7805 = vxor.u32 %v7663, 2147483648
        %v7806 = vxor.u32 %v7668, 2147483648
        %v7807 = vxor.u32 %v7673, 2147483648
        %v7808 = vxor.u32 %v7678, 2147483648
        %v7809 = vxor.u32 %v7683, 2147483648
        %v7810 = vxor.u32 %v7688, 2147483648
        %v7811 = vxor.u32 %v7693, 2147483648
        %v7812 = vxor.u32 %v7698, 2147483648
        %v7813 = vxor.u32 %v7703, 2147483648
        %v7814 = vxor.u32 %v7708, 2147483648
        %v7815 = vxor.u32 %v7713, 2147483648
        %v7816 = vxor.u32 %v7718, 2147483648
        %v7817 = vxor.u32 %v7723, 2147483648
        %v7818 = vxor.u32 %v7728, 2147483648
        %v7819 = vxor.u32 %v7733, 2147483648
        %v7820 = vxor.u32 %v7738, 2147483648
        %v7821 = vxor.u32 %v7743, 2147483648
        %v7822 = vxor.u32 %v7748, 2147483648
        %v7823 = vxor.u32 %v7753, 2147483648
        %v7824 = vxor.u32 %v7758, 2147483648
        %v7825 = vxor.u32 %v7763, 2147483648
        %v7826 = vxor.u32 %v7768, 2147483648
        %v7827 = vxor.u32 %v7773, 2147483648
        %v7828 = vxor.u32 %v7778, 2147483648
        %v7829 = vxor.u32 %v7783, 2147483648
        %v7830 = vxor.u32 %v7788, 2147483648
        %v7831 = vxor.u32 %v7793, 2147483648
        %v7832 = vxor.u32 %v7798, 2147483648
        %v7833 = vmul.f32 %v7801, 1.442695
        %v7834 = vpow.pop %v7833
        %v7835 = vmul.f32 %v7802, 1.442695
        %v7836 = vpow.pop %v7835
        %v7837 = vmul.f32 %v7803, 1.442695
        %v7838 = vpow.pop %v7837
        %v7839 = vmul.f32 %v7804, 1.442695
        %v7840 = vpow.pop %v7839
        %v7841 = vmul.f32 %v7805, 1.442695
        %v7842 = vpow.pop %v7841
        %v7843 = vmul.f32 %v7806, 1.442695
        %v7844 = vpow.pop %v7843
        %v7845 = vmul.f32 %v7807, 1.442695
        %v7846 = vpow.pop %v7845
        %v7847 = vmul.f32 %v7808, 1.442695
        %v7848 = vpow.pop %v7847
        %v7849 = vmul.f32 %v7809, 1.442695
        %v7850 = vpow.pop %v7849
        %v7851 = vmul.f32 %v7810, 1.442695
        %v7852 = vpow.pop %v7851
        %v7853 = vmul.f32 %v7811, 1.442695
        %v7854 = vpow.pop %v7853
        %v7855 = vmul.f32 %v7812, 1.442695
        %v7856 = vpow.pop %v7855
        %v7857 = vmul.f32 %v7813, 1.442695
        %v7858 = vpow.pop %v7857
        %v7859 = vmul.f32 %v7814, 1.442695
        %v7860 = vpow.pop %v7859
        %v7861 = vmul.f32 %v7815, 1.442695
        %v7862 = vpow.pop %v7861
        %v7863 = vmul.f32 %v7816, 1.442695
        %v7864 = vpow.pop %v7863
        %v7865 = vmul.f32 %v7817, 1.442695
        %v7866 = vpow.pop %v7865
        %v7867 = vmul.f32 %v7818, 1.442695
        %v7868 = vpow.pop %v7867
        %v7869 = vmul.f32 %v7819, 1.442695
        %v7870 = vpow.pop %v7869
        %v7871 = vmul.f32 %v7820, 1.442695
        %v7872 = vpow.pop %v7871
        %v7873 = vmul.f32 %v7821, 1.442695
        %v7874 = vpow.pop %v7873
        %v7875 = vmul.f32 %v7822, 1.442695
        %v7876 = vpow.pop %v7875
        %v7877 = vmul.f32 %v7823, 1.442695
        %v7878 = vpow.pop %v7877
        %v7879 = vmul.f32 %v7824, 1.442695
        %v7880 = vpow.pop %v7879
        %v7881 = vmul.f32 %v7825, 1.442695
        %v7882 = vpow.pop %v7881
        %v7883 = vmul.f32 %v7826, 1.442695
        %v7884 = vpow.pop %v7883
        %v7885 = vmul.f32 %v7827, 1.442695
        %v7886 = vpow.pop %v7885
        %v7887 = vmul.f32 %v7828, 1.442695
        %v7888 = vpow.pop %v7887
        %v7889 = vmul.f32 %v7829, 1.442695
        %v7890 = vpow.pop %v7889
        %v7891 = vmul.f32 %v7830, 1.442695
        %v7892 = vpow.pop %v7891
        %v7893 = vmul.f32 %v7831, 1.442695
        %v7894 = vpow.pop %v7893
        %v7895 = vmul.f32 %v7832, 1.442695
        %v7896 = vpow.pop %v7895
        %v7897 = vadd.f32 %v7834, 1.0
        %v7898 = vadd.f32 %v7836, 1.0
        %v7899 = vadd.f32 %v7838, 1.0
        %v7900 = vadd.f32 %v7840, 1.0
        %v7901 = vadd.f32 %v7842, 1.0
        %v7902 = vadd.f32 %v7844, 1.0
        %v7903 = vadd.f32 %v7846, 1.0
        %v7904 = vadd.f32 %v7848, 1.0
        %v7905 = vadd.f32 %v7850, 1.0
        %v7906 = vadd.f32 %v7852, 1.0
        %v7907 = vadd.f32 %v7854, 1.0
        %v7908 = vadd.f32 %v7856, 1.0
        %v7909 = vadd.f32 %v7858, 1.0
        %v7910 = vadd.f32 %v7860, 1.0
        %v7911 = vadd.f32 %v7862, 1.0
        %v7912 = vadd.f32 %v7864, 1.0
        %v7913 = vadd.f32 %v7866, 1.0
        %v7914 = vadd.f32 %v7868, 1.0
        %v7915 = vadd.f32 %v7870, 1.0
        %v7916 = vadd.f32 %v7872, 1.0
        %v7917 = vadd.f32 %v7874, 1.0
        %v7918 = vadd.f32 %v7876, 1.0
        %v7919 = vadd.f32 %v7878, 1.0
        %v7920 = vadd.f32 %v7880, 1.0
        %v7921 = vadd.f32 %v7882, 1.0
        %v7922 = vadd.f32 %v7884, 1.0
        %v7923 = vadd.f32 %v7886, 1.0
        %v7924 = vadd.f32 %v7888, 1.0
        %v7925 = vadd.f32 %v7890, 1.0
        %v7926 = vadd.f32 %v7892, 1.0
        %v7927 = vadd.f32 %v7894, 1.0
        %v7928 = vadd.f32 %v7896, 1.0
        %v7929 = vrcp.pop %v7897
        %v7930 = vmul.f32 1.0, %v7929
        %v7931 = vrcp.pop %v7898
        %v7932 = vmul.f32 1.0, %v7931
        %v7933 = vrcp.pop %v7899
        %v7934 = vmul.f32 1.0, %v7933
        %v7935 = vrcp.pop %v7900
        %v7936 = vmul.f32 1.0, %v7935
        %v7937 = vrcp.pop %v7901
        %v7938 = vmul.f32 1.0, %v7937
        %v7939 = vrcp.pop %v7902
        %v7940 = vmul.f32 1.0, %v7939
        %v7941 = vrcp.pop %v7903
        %v7942 = vmul.f32 1.0, %v7941
        %v7943 = vrcp.pop %v7904
        %v7944 = vmul.f32 1.0, %v7943
        %v7945 = vrcp.pop %v7905
        %v7946 = vmul.f32 1.0, %v7945
        %v7947 = vrcp.pop %v7906
        %v7948 = vmul.f32 1.0, %v7947
        %v7949 = vrcp.pop %v7907
        %v7950 = vmul.f32 1.0, %v7949
        %v7951 = vrcp.pop %v7908
        %v7952 = vmul.f32 1.0, %v7951
        %v7953 = vrcp.pop %v7909
        %v7954 = vmul.f32 1.0, %v7953
        %v7955 = vrcp.pop %v7910
        %v7956 = vmul.f32 1.0, %v7955
        %v7957 = vrcp.pop %v7911
        %v7958 = vmul.f32 1.0, %v7957
        %v7959 = vrcp.pop %v7912
        %v7960 = vmul.f32 1.0, %v7959
        %v7961 = vrcp.pop %v7913
        %v7962 = vmul.f32 1.0, %v7961
        %v7963 = vrcp.pop %v7914
        %v7964 = vmul.f32 1.0, %v7963
        %v7965 = vrcp.pop %v7915
        %v7966 = vmul.f32 1.0, %v7965
        %v7967 = vrcp.pop %v7916
        %v7968 = vmul.f32 1.0, %v7967
        %v7969 = vrcp.pop %v7917
        %v7970 = vmul.f32 1.0, %v7969
        %v7971 = vrcp.pop %v7918
        %v7972 = vmul.f32 1.0, %v7971
        %v7973 = vrcp.pop %v7919
        %v7974 = vmul.f32 1.0, %v7973
        %v7975 = vrcp.pop %v7920
        %v7976 = vmul.f32 1.0, %v7975
        %v7977 = vrcp.pop %v7921
        %v7978 = vmul.f32 1.0, %v7977
        %v7979 = vrcp.pop %v7922
        %v7980 = vmul.f32 1.0, %v7979
        %v7981 = vrcp.pop %v7923
        %v7982 = vmul.f32 1.0, %v7981
        %v7983 = vrcp.pop %v7924
        %v7984 = vmul.f32 1.0, %v7983
        %v7985 = vrcp.pop %v7925
        %v7986 = vmul.f32 1.0, %v7985
        %v7987 = vrcp.pop %v7926
        %v7988 = vmul.f32 1.0, %v7987
        %v7989 = vrcp.pop %v7927
        %v7990 = vmul.f32 1.0, %v7989
        %v7991 = vrcp.pop %v7928
        %v7992 = vmul.f32 1.0, %v7991
        %v7993 = vtanh.pop %v7643
        %v7994 = vtanh.pop %v7648
        %v7995 = vtanh.pop %v7653
        %v7996 = vtanh.pop %v7658
        %v7997 = vtanh.pop %v7663
        %v7998 = vtanh.pop %v7668
        %v7999 = vtanh.pop %v7673
        %v8000 = vtanh.pop %v7678
        %v8001 = vtanh.pop %v7683
        %v8002 = vtanh.pop %v7688
        %v8003 = vtanh.pop %v7693
        %v8004 = vtanh.pop %v7698
        %v8005 = vtanh.pop %v7703
        %v8006 = vtanh.pop %v7708
        %v8007 = vtanh.pop %v7713
        %v8008 = vtanh.pop %v7718
        %v8009 = vtanh.pop %v7723
        %v8010 = vtanh.pop %v7728
        %v8011 = vtanh.pop %v7733
        %v8012 = vtanh.pop %v7738
        %v8013 = vtanh.pop %v7743
        %v8014 = vtanh.pop %v7748
        %v8015 = vtanh.pop %v7753
        %v8016 = vtanh.pop %v7758
        %v8017 = vtanh.pop %v7763
        %v8018 = vtanh.pop %v7768
        %v8019 = vtanh.pop %v7773
        %v8020 = vtanh.pop %v7778
        %v8021 = vtanh.pop %v7783
        %v8022 = vtanh.pop %v7788
        %v8023 = vtanh.pop %v7793
        %v8024 = vtanh.pop %v7798
        %8057 = vrot.lane.b32.xlu0 %v7993, 96
        %v8058 = vpop.permute.xlu0 %8057
        %8059 = vrot.lane.b32.xlu0 %v7994, 96
        %v8060 = vpop.permute.xlu0 %8059
        %8061 = vrot.lane.b32.xlu0 %v7995, 96
        %v8062 = vpop.permute.xlu0 %8061
        %8063 = vrot.lane.b32.xlu0 %v7996, 96
        %v8064 = vpop.permute.xlu0 %8063
        %8065 = vrot.lane.b32.xlu0 %v7997, 96
        %v8066 = vpop.permute.xlu0 %8065
        %8067 = vrot.lane.b32.xlu0 %v7998, 96
        %v8068 = vpop.permute.xlu0 %8067
        %8069 = vrot.lane.b32.xlu0 %v7999, 96
        %v8070 = vpop.permute.xlu0 %8069
        %8071 = vrot.lane.b32.xlu0 %v8000, 96
        %v8072 = vpop.permute.xlu0 %8071
        %8073 = vrot.lane.b32.xlu0 %v8001, 96
        %v8074 = vpop.permute.xlu0 %8073
        %8075 = vrot.lane.b32.xlu0 %v8002, 96
        %v8076 = vpop.permute.xlu0 %8075
        %8077 = vrot.lane.b32.xlu0 %v8003, 96
        %v8078 = vpop.permute.xlu0 %8077
        %8079 = vrot.lane.b32.xlu0 %v8004, 96
        %v8080 = vpop.permute.xlu0 %8079
        %8081 = vrot.lane.b32.xlu0 %v8005, 96
        %v8082 = vpop.permute.xlu0 %8081
        %8083 = vrot.lane.b32.xlu0 %v8006, 96
        %v8084 = vpop.permute.xlu0 %8083
        %8085 = vrot.lane.b32.xlu0 %v8007, 96
        %v8086 = vpop.permute.xlu0 %8085
        %8087 = vrot.lane.b32.xlu0 %v8008, 96
        %v8088 = vpop.permute.xlu0 %8087
        %8089 = vrot.lane.b32.xlu0 %v8009, 96
        %v8090 = vpop.permute.xlu0 %8089
        %8091 = vrot.lane.b32.xlu0 %v8010, 96
        %v8092 = vpop.permute.xlu0 %8091
        %8093 = vrot.lane.b32.xlu0 %v8011, 96
        %v8094 = vpop.permute.xlu0 %8093
        %8095 = vrot.lane.b32.xlu0 %v8012, 96
        %v8096 = vpop.permute.xlu0 %8095
        %8097 = vrot.lane.b32.xlu0 %v8013, 96
        %v8098 = vpop.permute.xlu0 %8097
        %8099 = vrot.lane.b32.xlu0 %v8014, 96
        %v8100 = vpop.permute.xlu0 %8099
        %8101 = vrot.lane.b32.xlu0 %v8015, 96
        %v8102 = vpop.permute.xlu0 %8101
        %8103 = vrot.lane.b32.xlu0 %v8016, 96
        %v8104 = vpop.permute.xlu0 %8103
        %8105 = vrot.lane.b32.xlu0 %v8017, 96
        %v8106 = vpop.permute.xlu0 %8105
        %8107 = vrot.lane.b32.xlu0 %v8018, 96
        %v8108 = vpop.permute.xlu0 %8107
        %8109 = vrot.lane.b32.xlu0 %v8019, 96
        %v8110 = vpop.permute.xlu0 %8109
        %8111 = vrot.lane.b32.xlu0 %v8020, 96
        %v8112 = vpop.permute.xlu0 %8111
        %8113 = vrot.lane.b32.xlu0 %v8021, 96
        %v8114 = vpop.permute.xlu0 %8113
        %8115 = vrot.lane.b32.xlu0 %v8022, 96
        %v8116 = vpop.permute.xlu0 %8115
        %8117 = vrot.lane.b32.xlu0 %v8023, 96
        %v8118 = vpop.permute.xlu0 %8117
        %8119 = vrot.lane.b32.xlu0 %v8024, 96
        %v8120 = vpop.permute.xlu0 %8119
        %v8153 = vmul.f32 %v7930, %v8058
        %v8154 = vmul.f32 %v7932, %v8060
        %v8155 = vmul.f32 %v7934, %v8062
        %v8156 = vmul.f32 %v7936, %v8064
        %v8157 = vmul.f32 %v7938, %v8066
        %v8158 = vmul.f32 %v7940, %v8068
        %v8159 = vmul.f32 %v7942, %v8070
        %v8160 = vmul.f32 %v7944, %v8072
        %v8161 = vmul.f32 %v7946, %v8074
        %v8162 = vmul.f32 %v7948, %v8076
        %v8163 = vmul.f32 %v7950, %v8078
        %v8164 = vmul.f32 %v7952, %v8080
        %v8165 = vmul.f32 %v7954, %v8082
        %v8166 = vmul.f32 %v7956, %v8084
        %v8167 = vmul.f32 %v7958, %v8086
        %v8168 = vmul.f32 %v7960, %v8088
        %v8169 = vmul.f32 %v7962, %v8090
        %v8170 = vmul.f32 %v7964, %v8092
        %v8171 = vmul.f32 %v7966, %v8094
        %v8172 = vmul.f32 %v7968, %v8096
        %v8173 = vmul.f32 %v7970, %v8098
        %v8174 = vmul.f32 %v7972, %v8100
        %v8175 = vmul.f32 %v7974, %v8102
        %v8176 = vmul.f32 %v7976, %v8104
        %v8177 = vmul.f32 %v7978, %v8106
        %v8178 = vmul.f32 %v7980, %v8108
        %v8179 = vmul.f32 %v7982, %v8110
        %v8180 = vmul.f32 %v7984, %v8112
        %v8181 = vmul.f32 %v7986, %v8114
        %v8182 = vmul.f32 %v7988, %v8116
        %v8183 = vmul.f32 %v7990, %v8118
        %v8184 = vmul.f32 %v7992, %v8120
        %v8185 = vsub.f32 1.0, %v7930
        %v8186 = vsub.f32 1.0, %v7932
        %v8187 = vsub.f32 1.0, %v7934
        %v8188 = vsub.f32 1.0, %v7936
        %v8189 = vsub.f32 1.0, %v7938
        %v8190 = vsub.f32 1.0, %v7940
        %v8191 = vsub.f32 1.0, %v7942
        %v8192 = vsub.f32 1.0, %v7944
        %v8193 = vsub.f32 1.0, %v7946
        %v8194 = vsub.f32 1.0, %v7948
        %v8195 = vsub.f32 1.0, %v7950
        %v8196 = vsub.f32 1.0, %v7952
        %v8197 = vsub.f32 1.0, %v7954
        %v8198 = vsub.f32 1.0, %v7956
        %v8199 = vsub.f32 1.0, %v7958
        %v8200 = vsub.f32 1.0, %v7960
        %v8201 = vsub.f32 1.0, %v7962
        %v8202 = vsub.f32 1.0, %v7964
        %v8203 = vsub.f32 1.0, %v7966
        %v8204 = vsub.f32 1.0, %v7968
        %v8205 = vsub.f32 1.0, %v7970
        %v8206 = vsub.f32 1.0, %v7972
        %v8207 = vsub.f32 1.0, %v7974
        %v8208 = vsub.f32 1.0, %v7976
        %v8209 = vsub.f32 1.0, %v7978
        %v8210 = vsub.f32 1.0, %v7980
        %v8211 = vsub.f32 1.0, %v7982
        %v8212 = vsub.f32 1.0, %v7984
        %v8213 = vsub.f32 1.0, %v7986
        %v8214 = vsub.f32 1.0, %v7988
        %v8215 = vsub.f32 1.0, %v7990
        %v8216 = vsub.f32 1.0, %v7992
        %v8217 = vld [vmem:[%s582] sm:$0xff]
        %v8218 = vld [vmem:[%s582 + $0x8] sm:$0xff]
        %v8219 = vld [vmem:[%s582 + $0x10] sm:$0xff]
        %v8220 = vld [vmem:[%s582 + $0x18] sm:$0xff]
        %v8221 = vld [vmem:[%s582 + $0x20] sm:$0xff]
        %v8222 = vld [vmem:[%s582 + $0x28] sm:$0xff]
        %v8223 = vld [vmem:[%s582 + $0x30] sm:$0xff]
        %v8224 = vld [vmem:[%s582 + $0x38] sm:$0xff]
        %v8225 = vld [vmem:[%s582 + $0x40] sm:$0xff]
        %v8226 = vld [vmem:[%s582 + $0x48] sm:$0xff]
        %v8227 = vld [vmem:[%s582 + $0x50] sm:$0xff]
        %v8228 = vld [vmem:[%s582 + $0x58] sm:$0xff]
        %v8229 = vld [vmem:[%s582 + $0x60] sm:$0xff]
        %v8230 = vld [vmem:[%s582 + $0x68] sm:$0xff]
        %v8231 = vld [vmem:[%s582 + $0x70] sm:$0xff]
        %v8232 = vld [vmem:[%s582 + $0x78] sm:$0xff]
        %v8233 = vld [vmem:[%s582 + $0x80] sm:$0xff]
        %v8234 = vld [vmem:[%s582 + $0x88] sm:$0xff]
        %v8235 = vld [vmem:[%s582 + $0x90] sm:$0xff]
        %v8236 = vld [vmem:[%s582 + $0x98] sm:$0xff]
        %v8237 = vld [vmem:[%s582 + $0xa0] sm:$0xff]
        %v8238 = vld [vmem:[%s582 + $0xa8] sm:$0xff]
        %v8239 = vld [vmem:[%s582 + $0xb0] sm:$0xff]
        %v8240 = vld [vmem:[%s582 + $0xb8] sm:$0xff]
        %v8241 = vld [vmem:[%s582 + $0xc0] sm:$0xff]
        %v8242 = vld [vmem:[%s582 + $0xc8] sm:$0xff]
        %v8243 = vld [vmem:[%s582 + $0xd0] sm:$0xff]
        %v8244 = vld [vmem:[%s582 + $0xd8] sm:$0xff]
        %v8245 = vld [vmem:[%s582 + $0xe0] sm:$0xff]
        %v8246 = vld [vmem:[%s582 + $0xe8] sm:$0xff]
        %v8247 = vld [vmem:[%s582 + $0xf0] sm:$0xff]
        %v8248 = vld [vmem:[%s582 + $0xf8] sm:$0xff]
        %v8249 = vmul.f32 %v8185, %v8217
        %v8250 = vmul.f32 %v8186, %v8218
        %v8251 = vmul.f32 %v8187, %v8219
        %v8252 = vmul.f32 %v8188, %v8220
        %v8253 = vmul.f32 %v8189, %v8221
        %v8254 = vmul.f32 %v8190, %v8222
        %v8255 = vmul.f32 %v8191, %v8223
        %v8256 = vmul.f32 %v8192, %v8224
        %v8257 = vmul.f32 %v8193, %v8225
        %v8258 = vmul.f32 %v8194, %v8226
        %v8259 = vmul.f32 %v8195, %v8227
        %v8260 = vmul.f32 %v8196, %v8228
        %v8261 = vmul.f32 %v8197, %v8229
        %v8262 = vmul.f32 %v8198, %v8230
        %v8263 = vmul.f32 %v8199, %v8231
        %v8264 = vmul.f32 %v8200, %v8232
        %v8265 = vmul.f32 %v8201, %v8233
        %v8266 = vmul.f32 %v8202, %v8234
        %v8267 = vmul.f32 %v8203, %v8235
        %v8268 = vmul.f32 %v8204, %v8236
        %v8269 = vmul.f32 %v8205, %v8237
        %v8270 = vmul.f32 %v8206, %v8238
        %v8271 = vmul.f32 %v8207, %v8239
        %v8272 = vmul.f32 %v8208, %v8240
        %v8273 = vmul.f32 %v8209, %v8241
        %v8274 = vmul.f32 %v8210, %v8242
        %v8275 = vmul.f32 %v8211, %v8243
        %v8276 = vmul.f32 %v8212, %v8244
        %v8277 = vmul.f32 %v8213, %v8245
        %v8278 = vmul.f32 %v8214, %v8246
        %v8279 = vmul.f32 %v8215, %v8247
        %v8280 = vmul.f32 %v8216, %v8248
        %v8281 = vadd.f32 %v8153, %v8249
        %v8282 = vadd.f32 %v8154, %v8250
        %v8283 = vadd.f32 %v8155, %v8251
        %v8284 = vadd.f32 %v8156, %v8252
        %v8285 = vadd.f32 %v8157, %v8253
        %v8286 = vadd.f32 %v8158, %v8254
        %v8287 = vadd.f32 %v8159, %v8255
        %v8288 = vadd.f32 %v8160, %v8256
        %v8289 = vadd.f32 %v8161, %v8257
        %v8290 = vadd.f32 %v8162, %v8258
        %v8291 = vadd.f32 %v8163, %v8259
        %v8292 = vadd.f32 %v8164, %v8260
        %v8293 = vadd.f32 %v8165, %v8261
        %v8294 = vadd.f32 %v8166, %v8262
        %v8295 = vadd.f32 %v8167, %v8263
        %v8296 = vadd.f32 %v8168, %v8264
        %v8297 = vadd.f32 %v8169, %v8265
        %v8298 = vadd.f32 %v8170, %v8266
        %v8299 = vadd.f32 %v8171, %v8267
        %v8300 = vadd.f32 %v8172, %v8268
        %v8301 = vadd.f32 %v8173, %v8269
        %v8302 = vadd.f32 %v8174, %v8270
        %v8303 = vadd.f32 %v8175, %v8271
        %v8304 = vadd.f32 %v8176, %v8272
        %v8305 = vadd.f32 %v8177, %v8273
        %v8306 = vadd.f32 %v8178, %v8274
        %v8307 = vadd.f32 %v8179, %v8275
        %v8308 = vadd.f32 %v8180, %v8276
        %v8309 = vadd.f32 %v8181, %v8277
        %v8310 = vadd.f32 %v8182, %v8278
        %v8311 = vadd.f32 %v8183, %v8279
        %v8312 = vadd.f32 %v8184, %v8280
        %8345 = vrot.lane.b32.xlu0 %v8281, 64
        %v8346 = vpop.permute.xlu0 %8345
        %8347 = vrot.lane.b32.xlu0 %v8282, 64
        %v8348 = vpop.permute.xlu0 %8347
        %8349 = vrot.lane.b32.xlu0 %v8283, 64
        %v8350 = vpop.permute.xlu0 %8349
        %8351 = vrot.lane.b32.xlu0 %v8284, 64
        %v8352 = vpop.permute.xlu0 %8351
        %8353 = vrot.lane.b32.xlu0 %v8285, 64
        %v8354 = vpop.permute.xlu0 %8353
        %8355 = vrot.lane.b32.xlu0 %v8286, 64
        %v8356 = vpop.permute.xlu0 %8355
        %8357 = vrot.lane.b32.xlu0 %v8287, 64
        %v8358 = vpop.permute.xlu0 %8357
        %8359 = vrot.lane.b32.xlu0 %v8288, 64
        %v8360 = vpop.permute.xlu0 %8359
        %8361 = vrot.lane.b32.xlu0 %v8289, 64
        %v8362 = vpop.permute.xlu0 %8361
        %8363 = vrot.lane.b32.xlu0 %v8290, 64
        %v8364 = vpop.permute.xlu0 %8363
        %8365 = vrot.lane.b32.xlu0 %v8291, 64
        %v8366 = vpop.permute.xlu0 %8365
        %8367 = vrot.lane.b32.xlu0 %v8292, 64
        %v8368 = vpop.permute.xlu0 %8367
        %8369 = vrot.lane.b32.xlu0 %v8293, 64
        %v8370 = vpop.permute.xlu0 %8369
        %8371 = vrot.lane.b32.xlu0 %v8294, 64
        %v8372 = vpop.permute.xlu0 %8371
        %8373 = vrot.lane.b32.xlu0 %v8295, 64
        %v8374 = vpop.permute.xlu0 %8373
        %8375 = vrot.lane.b32.xlu0 %v8296, 64
        %v8376 = vpop.permute.xlu0 %8375
        %8377 = vrot.lane.b32.xlu0 %v8297, 64
        %v8378 = vpop.permute.xlu0 %8377
        %8379 = vrot.lane.b32.xlu0 %v8298, 64
        %v8380 = vpop.permute.xlu0 %8379
        %8381 = vrot.lane.b32.xlu0 %v8299, 64
        %v8382 = vpop.permute.xlu0 %8381
        %8383 = vrot.lane.b32.xlu0 %v8300, 64
        %v8384 = vpop.permute.xlu0 %8383
        %8385 = vrot.lane.b32.xlu0 %v8301, 64
        %v8386 = vpop.permute.xlu0 %8385
        %8387 = vrot.lane.b32.xlu0 %v8302, 64
        %v8388 = vpop.permute.xlu0 %8387
        %8389 = vrot.lane.b32.xlu0 %v8303, 64
        %v8390 = vpop.permute.xlu0 %8389
        %8391 = vrot.lane.b32.xlu0 %v8304, 64
        %v8392 = vpop.permute.xlu0 %8391
        %8393 = vrot.lane.b32.xlu0 %v8305, 64
        %v8394 = vpop.permute.xlu0 %8393
        %8395 = vrot.lane.b32.xlu0 %v8306, 64
        %v8396 = vpop.permute.xlu0 %8395
        %8397 = vrot.lane.b32.xlu0 %v8307, 64
        %v8398 = vpop.permute.xlu0 %8397
        %8399 = vrot.lane.b32.xlu0 %v8308, 64
        %v8400 = vpop.permute.xlu0 %8399
        %8401 = vrot.lane.b32.xlu0 %v8309, 64
        %v8402 = vpop.permute.xlu0 %8401
        %8403 = vrot.lane.b32.xlu0 %v8310, 64
        %v8404 = vpop.permute.xlu0 %8403
        %8405 = vrot.lane.b32.xlu0 %v8311, 64
        %v8406 = vpop.permute.xlu0 %8405
        %8407 = vrot.lane.b32.xlu0 %v8312, 64
        %v8408 = vpop.permute.xlu0 %8407
        %v8441 = vmul.f32 %v7930, %v8346
        %v8442 = vmul.f32 %v7932, %v8348
        %v8443 = vmul.f32 %v7934, %v8350
        %v8444 = vmul.f32 %v7936, %v8352
        %v8445 = vmul.f32 %v7938, %v8354
        %v8446 = vmul.f32 %v7940, %v8356
        %v8447 = vmul.f32 %v7942, %v8358
        %v8448 = vmul.f32 %v7944, %v8360
        %v8449 = vmul.f32 %v7946, %v8362
        %v8450 = vmul.f32 %v7948, %v8364
        %v8451 = vmul.f32 %v7950, %v8366
        %v8452 = vmul.f32 %v7952, %v8368
        %v8453 = vmul.f32 %v7954, %v8370
        %v8454 = vmul.f32 %v7956, %v8372
        %v8455 = vmul.f32 %v7958, %v8374
        %v8456 = vmul.f32 %v7960, %v8376
        %v8457 = vmul.f32 %v7962, %v8378
        %v8458 = vmul.f32 %v7964, %v8380
        %v8459 = vmul.f32 %v7966, %v8382
        %v8460 = vmul.f32 %v7968, %v8384
        %v8461 = vmul.f32 %v7970, %v8386
        %v8462 = vmul.f32 %v7972, %v8388
        %v8463 = vmul.f32 %v7974, %v8390
        %v8464 = vmul.f32 %v7976, %v8392
        %v8465 = vmul.f32 %v7978, %v8394
        %v8466 = vmul.f32 %v7980, %v8396
        %v8467 = vmul.f32 %v7982, %v8398
        %v8468 = vmul.f32 %v7984, %v8400
        %v8469 = vmul.f32 %v7986, %v8402
        %v8470 = vmul.f32 %v7988, %v8404
        %v8471 = vmul.f32 %v7990, %v8406
        %v8472 = vmul.f32 %v7992, %v8408
        %8505 = vrot.lane.b32.xlu0 %v8441, 64
        %v8506 = vpop.permute.xlu0 %8505
        %8507 = vrot.lane.b32.xlu0 %v8442, 64
        %v8508 = vpop.permute.xlu0 %8507
        %8509 = vrot.lane.b32.xlu0 %v8443, 64
        %v8510 = vpop.permute.xlu0 %8509
        %8511 = vrot.lane.b32.xlu0 %v8444, 64
        %v8512 = vpop.permute.xlu0 %8511
        %8513 = vrot.lane.b32.xlu0 %v8445, 64
        %v8514 = vpop.permute.xlu0 %8513
        %8515 = vrot.lane.b32.xlu0 %v8446, 64
        %v8516 = vpop.permute.xlu0 %8515
        %8517 = vrot.lane.b32.xlu0 %v8447, 64
        %v8518 = vpop.permute.xlu0 %8517
        %8519 = vrot.lane.b32.xlu0 %v8448, 64
        %v8520 = vpop.permute.xlu0 %8519
        %8521 = vrot.lane.b32.xlu0 %v8449, 64
        %v8522 = vpop.permute.xlu0 %8521
        %8523 = vrot.lane.b32.xlu0 %v8450, 64
        %v8524 = vpop.permute.xlu0 %8523
        %8525 = vrot.lane.b32.xlu0 %v8451, 64
        %v8526 = vpop.permute.xlu0 %8525
        %8527 = vrot.lane.b32.xlu0 %v8452, 64
        %v8528 = vpop.permute.xlu0 %8527
        %8529 = vrot.lane.b32.xlu0 %v8453, 64
        %v8530 = vpop.permute.xlu0 %8529
        %8531 = vrot.lane.b32.xlu0 %v8454, 64
        %v8532 = vpop.permute.xlu0 %8531
        %8533 = vrot.lane.b32.xlu0 %v8455, 64
        %v8534 = vpop.permute.xlu0 %8533
        %8535 = vrot.lane.b32.xlu0 %v8456, 64
        %v8536 = vpop.permute.xlu0 %8535
        %8537 = vrot.lane.b32.xlu0 %v8457, 64
        %v8538 = vpop.permute.xlu0 %8537
        %8539 = vrot.lane.b32.xlu0 %v8458, 64
        %v8540 = vpop.permute.xlu0 %8539
        %8541 = vrot.lane.b32.xlu0 %v8459, 64
        %v8542 = vpop.permute.xlu0 %8541
        %8543 = vrot.lane.b32.xlu0 %v8460, 64
        %v8544 = vpop.permute.xlu0 %8543
        %8545 = vrot.lane.b32.xlu0 %v8461, 64
        %v8546 = vpop.permute.xlu0 %8545
        %8547 = vrot.lane.b32.xlu0 %v8462, 64
        %v8548 = vpop.permute.xlu0 %8547
        %8549 = vrot.lane.b32.xlu0 %v8463, 64
        %v8550 = vpop.permute.xlu0 %8549
        %8551 = vrot.lane.b32.xlu0 %v8464, 64
        %v8552 = vpop.permute.xlu0 %8551
        %8553 = vrot.lane.b32.xlu0 %v8465, 64
        %v8554 = vpop.permute.xlu0 %8553
        %8555 = vrot.lane.b32.xlu0 %v8466, 64
        %v8556 = vpop.permute.xlu0 %8555
        %8557 = vrot.lane.b32.xlu0 %v8467, 64
        %v8558 = vpop.permute.xlu0 %8557
        %8559 = vrot.lane.b32.xlu0 %v8468, 64
        %v8560 = vpop.permute.xlu0 %8559
        %8561 = vrot.lane.b32.xlu0 %v8469, 64
        %v8562 = vpop.permute.xlu0 %8561
        %8563 = vrot.lane.b32.xlu0 %v8470, 64
        %v8564 = vpop.permute.xlu0 %8563
        %8565 = vrot.lane.b32.xlu0 %v8471, 64
        %v8566 = vpop.permute.xlu0 %8565
        %8567 = vrot.lane.b32.xlu0 %v8472, 64
        %v8568 = vpop.permute.xlu0 %8567
        %8601 = vst.msk [vmem:[%s548] sm:$0xff] %vm2331, %v8506
        %8602 = vst.msk [vmem:[%s548 + $0x8] sm:$0xff] %vm2331, %v8508
        %8603 = vst.msk [vmem:[%s548 + $0x10] sm:$0xff] %vm2331, %v8510
        %8604 = vst.msk [vmem:[%s548 + $0x18] sm:$0xff] %vm2331, %v8512
        %8605 = vst.msk [vmem:[%s548 + $0x20] sm:$0xff] %vm2331, %v8514
        %8606 = vst.msk [vmem:[%s548 + $0x28] sm:$0xff] %vm2331, %v8516
        %8607 = vst.msk [vmem:[%s548 + $0x30] sm:$0xff] %vm2331, %v8518
        %8608 = vst.msk [vmem:[%s548 + $0x38] sm:$0xff] %vm2331, %v8520
        %8609 = vst.msk [vmem:[%s548 + $0x40] sm:$0xff] %vm2331, %v8522
        %8610 = vst.msk [vmem:[%s548 + $0x48] sm:$0xff] %vm2331, %v8524
        %8611 = vst.msk [vmem:[%s548 + $0x50] sm:$0xff] %vm2331, %v8526
        %8612 = vst.msk [vmem:[%s548 + $0x58] sm:$0xff] %vm2331, %v8528
        %8613 = vst.msk [vmem:[%s548 + $0x60] sm:$0xff] %vm2331, %v8530
        %8614 = vst.msk [vmem:[%s548 + $0x68] sm:$0xff] %vm2331, %v8532
        %8615 = vst.msk [vmem:[%s548 + $0x70] sm:$0xff] %vm2331, %v8534
        %8616 = vst.msk [vmem:[%s548 + $0x78] sm:$0xff] %vm2331, %v8536
        %8617 = vst.msk [vmem:[%s548 + $0x80] sm:$0xff] %vm2331, %v8538
        %8618 = vst.msk [vmem:[%s548 + $0x88] sm:$0xff] %vm2331, %v8540
        %8619 = vst.msk [vmem:[%s548 + $0x90] sm:$0xff] %vm2331, %v8542
        %8620 = vst.msk [vmem:[%s548 + $0x98] sm:$0xff] %vm2331, %v8544
        %8621 = vst.msk [vmem:[%s548 + $0xa0] sm:$0xff] %vm2331, %v8546
        %8622 = vst.msk [vmem:[%s548 + $0xa8] sm:$0xff] %vm2331, %v8548
        %8623 = vst.msk [vmem:[%s548 + $0xb0] sm:$0xff] %vm2331, %v8550
        %8624 = vst.msk [vmem:[%s548 + $0xb8] sm:$0xff] %vm2331, %v8552
        %8625 = vst.msk [vmem:[%s548 + $0xc0] sm:$0xff] %vm2331, %v8554
        %8626 = vst.msk [vmem:[%s548 + $0xc8] sm:$0xff] %vm2331, %v8556
        %8627 = vst.msk [vmem:[%s548 + $0xd0] sm:$0xff] %vm2331, %v8558
        %8628 = vst.msk [vmem:[%s548 + $0xd8] sm:$0xff] %vm2331, %v8560
        %8629 = vst.msk [vmem:[%s548 + $0xe0] sm:$0xff] %vm2331, %v8562
        %8630 = vst.msk [vmem:[%s548 + $0xe8] sm:$0xff] %vm2331, %v8564
        %8631 = vst.msk [vmem:[%s548 + $0xf0] sm:$0xff] %vm2331, %v8566
        %8632 = vst.msk [vmem:[%s548 + $0xf8] sm:$0xff] %vm2331, %v8568
        %8665 = vrot.lane.b32.xlu0 %v3987, 96
        %v8666 = vpop.permute.xlu0 %8665
        %8667 = vrot.lane.b32.xlu0 %v3988, 96
        %v8668 = vpop.permute.xlu0 %8667
        %8669 = vrot.lane.b32.xlu0 %v3989, 96
        %v8670 = vpop.permute.xlu0 %8669
        %8671 = vrot.lane.b32.xlu0 %v3990, 96
        %v8672 = vpop.permute.xlu0 %8671
        %8673 = vrot.lane.b32.xlu0 %v3991, 96
        %v8674 = vpop.permute.xlu0 %8673
        %8675 = vrot.lane.b32.xlu0 %v3992, 96
        %v8676 = vpop.permute.xlu0 %8675
        %8677 = vrot.lane.b32.xlu0 %v3993, 96
        %v8678 = vpop.permute.xlu0 %8677
        %8679 = vrot.lane.b32.xlu0 %v3994, 96
        %v8680 = vpop.permute.xlu0 %8679
        %8681 = vrot.lane.b32.xlu0 %v3995, 96
        %v8682 = vpop.permute.xlu0 %8681
        %8683 = vrot.lane.b32.xlu0 %v3996, 96
        %v8684 = vpop.permute.xlu0 %8683
        %8685 = vrot.lane.b32.xlu0 %v3997, 96
        %v8686 = vpop.permute.xlu0 %8685
        %8687 = vrot.lane.b32.xlu0 %v3998, 96
        %v8688 = vpop.permute.xlu0 %8687
        %8689 = vrot.lane.b32.xlu0 %v3999, 96
        %v8690 = vpop.permute.xlu0 %8689
        %8691 = vrot.lane.b32.xlu0 %v4000, 96
        %v8692 = vpop.permute.xlu0 %8691
        %8693 = vrot.lane.b32.xlu0 %v4001, 96
        %v8694 = vpop.permute.xlu0 %8693
        %8695 = vrot.lane.b32.xlu0 %v4002, 96
        %v8696 = vpop.permute.xlu0 %8695
        %8697 = vrot.lane.b32.xlu0 %v4003, 96
        %v8698 = vpop.permute.xlu0 %8697
        %8699 = vrot.lane.b32.xlu0 %v4004, 96
        %v8700 = vpop.permute.xlu0 %8699
        %8701 = vrot.lane.b32.xlu0 %v4005, 96
        %v8702 = vpop.permute.xlu0 %8701
        %8703 = vrot.lane.b32.xlu0 %v4006, 96
        %v8704 = vpop.permute.xlu0 %8703
        %8705 = vrot.lane.b32.xlu0 %v4007, 96
        %v8706 = vpop.permute.xlu0 %8705
        %8707 = vrot.lane.b32.xlu0 %v4008, 96
        %v8708 = vpop.permute.xlu0 %8707
        %8709 = vrot.lane.b32.xlu0 %v4009, 96
        %v8710 = vpop.permute.xlu0 %8709
        %8711 = vrot.lane.b32.xlu0 %v4010, 96
        %v8712 = vpop.permute.xlu0 %8711
        %8713 = vrot.lane.b32.xlu0 %v4011, 96
        %v8714 = vpop.permute.xlu0 %8713
        %8715 = vrot.lane.b32.xlu0 %v4012, 96
        %v8716 = vpop.permute.xlu0 %8715
        %8717 = vrot.lane.b32.xlu0 %v4013, 96
        %v8718 = vpop.permute.xlu0 %8717
        %8719 = vrot.lane.b32.xlu0 %v4014, 96
        %v8720 = vpop.permute.xlu0 %8719
        %8721 = vrot.lane.b32.xlu0 %v4015, 96
        %v8722 = vpop.permute.xlu0 %8721
        %8723 = vrot.lane.b32.xlu0 %v4016, 96
        %v8724 = vpop.permute.xlu0 %8723
        %8725 = vrot.lane.b32.xlu0 %v4017, 96
        %v8726 = vpop.permute.xlu0 %8725
        %8727 = vrot.lane.b32.xlu0 %v4018, 96
        %v8728 = vpop.permute.xlu0 %8727
        %8761 = vst.msk [vmem:[%s592] sm:$0xff] %vm2331, %v8666
        %8762 = vst.msk [vmem:[%s592 + $0x8] sm:$0xff] %vm2331, %v8668
        %8763 = vst.msk [vmem:[%s592 + $0x10] sm:$0xff] %vm2331, %v8670
        %8764 = vst.msk [vmem:[%s592 + $0x18] sm:$0xff] %vm2331, %v8672
        %8765 = vst.msk [vmem:[%s592 + $0x20] sm:$0xff] %vm2331, %v8674
        %8766 = vst.msk [vmem:[%s592 + $0x28] sm:$0xff] %vm2331, %v8676
        %8767 = vst.msk [vmem:[%s592 + $0x30] sm:$0xff] %vm2331, %v8678
        %8768 = vst.msk [vmem:[%s592 + $0x38] sm:$0xff] %vm2331, %v8680
        %8769 = vst.msk [vmem:[%s592 + $0x40] sm:$0xff] %vm2331, %v8682
        %8770 = vst.msk [vmem:[%s592 + $0x48] sm:$0xff] %vm2331, %v8684
        %8771 = vst.msk [vmem:[%s592 + $0x50] sm:$0xff] %vm2331, %v8686
        %8772 = vst.msk [vmem:[%s592 + $0x58] sm:$0xff] %vm2331, %v8688
        %8773 = vst.msk [vmem:[%s592 + $0x60] sm:$0xff] %vm2331, %v8690
        %8774 = vst.msk [vmem:[%s592 + $0x68] sm:$0xff] %vm2331, %v8692
        %8775 = vst.msk [vmem:[%s592 + $0x70] sm:$0xff] %vm2331, %v8694
        %8776 = vst.msk [vmem:[%s592 + $0x78] sm:$0xff] %vm2331, %v8696
        %8777 = vst.msk [vmem:[%s592 + $0x80] sm:$0xff] %vm2331, %v8698
        %8778 = vst.msk [vmem:[%s592 + $0x88] sm:$0xff] %vm2331, %v8700
        %8779 = vst.msk [vmem:[%s592 + $0x90] sm:$0xff] %vm2331, %v8702
        %8780 = vst.msk [vmem:[%s592 + $0x98] sm:$0xff] %vm2331, %v8704
        %8781 = vst.msk [vmem:[%s592 + $0xa0] sm:$0xff] %vm2331, %v8706
        %8782 = vst.msk [vmem:[%s592 + $0xa8] sm:$0xff] %vm2331, %v8708
        %8783 = vst.msk [vmem:[%s592 + $0xb0] sm:$0xff] %vm2331, %v8710
        %8784 = vst.msk [vmem:[%s592 + $0xb8] sm:$0xff] %vm2331, %v8712
        %8785 = vst.msk [vmem:[%s592 + $0xc0] sm:$0xff] %vm2331, %v8714
        %8786 = vst.msk [vmem:[%s592 + $0xc8] sm:$0xff] %vm2331, %v8716
        %8787 = vst.msk [vmem:[%s592 + $0xd0] sm:$0xff] %vm2331, %v8718
        %8788 = vst.msk [vmem:[%s592 + $0xd8] sm:$0xff] %vm2331, %v8720
        %8789 = vst.msk [vmem:[%s592 + $0xe0] sm:$0xff] %vm2331, %v8722
        %8790 = vst.msk [vmem:[%s592 + $0xe8] sm:$0xff] %vm2331, %v8724
        %8791 = vst.msk [vmem:[%s592 + $0xf0] sm:$0xff] %vm2331, %v8726
        %8792 = vst.msk [vmem:[%s592 + $0xf8] sm:$0xff] %vm2331, %v8728
        %8793 = vst.msk [vmem:[%s597] sm:$0xff] %vm2331, %v8281
        %8794 = vst.msk [vmem:[%s597 + $0x8] sm:$0xff] %vm2331, %v8282
        %8795 = vst.msk [vmem:[%s597 + $0x10] sm:$0xff] %vm2331, %v8283
        %8796 = vst.msk [vmem:[%s597 + $0x18] sm:$0xff] %vm2331, %v8284
        %8797 = vst.msk [vmem:[%s597 + $0x20] sm:$0xff] %vm2331, %v8285
        %8798 = vst.msk [vmem:[%s597 + $0x28] sm:$0xff] %vm2331, %v8286
        %8799 = vst.msk [vmem:[%s597 + $0x30] sm:$0xff] %vm2331, %v8287
        %8800 = vst.msk [vmem:[%s597 + $0x38] sm:$0xff] %vm2331, %v8288
        %8801 = vst.msk [vmem:[%s597 + $0x40] sm:$0xff] %vm2331, %v8289
        %8802 = vst.msk [vmem:[%s597 + $0x48] sm:$0xff] %vm2331, %v8290
        %8803 = vst.msk [vmem:[%s597 + $0x50] sm:$0xff] %vm2331, %v8291
        %8804 = vst.msk [vmem:[%s597 + $0x58] sm:$0xff] %vm2331, %v8292
        %8805 = vst.msk [vmem:[%s597 + $0x60] sm:$0xff] %vm2331, %v8293
        %8806 = vst.msk [vmem:[%s597 + $0x68] sm:$0xff] %vm2331, %v8294
        %8807 = vst.msk [vmem:[%s597 + $0x70] sm:$0xff] %vm2331, %v8295
        %8808 = vst.msk [vmem:[%s597 + $0x78] sm:$0xff] %vm2331, %v8296
        %8809 = vst.msk [vmem:[%s597 + $0x80] sm:$0xff] %vm2331, %v8297
        %8810 = vst.msk [vmem:[%s597 + $0x88] sm:$0xff] %vm2331, %v8298
        %8811 = vst.msk [vmem:[%s597 + $0x90] sm:$0xff] %vm2331, %v8299
        %8812 = vst.msk [vmem:[%s597 + $0x98] sm:$0xff] %vm2331, %v8300
        %8813 = vst.msk [vmem:[%s597 + $0xa0] sm:$0xff] %vm2331, %v8301
        %8814 = vst.msk [vmem:[%s597 + $0xa8] sm:$0xff] %vm2331, %v8302
        %8815 = vst.msk [vmem:[%s597 + $0xb0] sm:$0xff] %vm2331, %v8303
        %8816 = vst.msk [vmem:[%s597 + $0xb8] sm:$0xff] %vm2331, %v8304
        %8817 = vst.msk [vmem:[%s597 + $0xc0] sm:$0xff] %vm2331, %v8305
        %8818 = vst.msk [vmem:[%s597 + $0xc8] sm:$0xff] %vm2331, %v8306
        %8819 = vst.msk [vmem:[%s597 + $0xd0] sm:$0xff] %vm2331, %v8307
        %8820 = vst.msk [vmem:[%s597 + $0xd8] sm:$0xff] %vm2331, %v8308
        %8821 = vst.msk [vmem:[%s597 + $0xe0] sm:$0xff] %vm2331, %v8309
        %8822 = vst.msk [vmem:[%s597 + $0xe8] sm:$0xff] %vm2331, %v8310
        %8823 = vst.msk [vmem:[%s597 + $0xf0] sm:$0xff] %vm2331, %v8311
        %8824 = vst.msk [vmem:[%s597 + $0xf8] sm:$0xff] %vm2331, %v8312
        %s8825 = sand.u32 %s336, 1
        %s8826 = scalar_lea.sflag [#allocation7], %s8825
        %s8827 = sand.u32 %s336, 1
        %s8828 = smul.addr %s8827, 256
        %s8829 = scalar_lea.vmem [#allocation6], %s8828
        %p8830 = scmp.lt.s32.totalorder %s30, 1
        %s8831 = scalar_select %p8830, %s30, 1
        %s8832 = smul.addr %s8831, 32
        %s8833 = smul.addr %s8832, 8
        %s8834 = scalar_lea.vmem %s14, %s8833
        %p8835 = scmp.lt.s32.totalorder %s30, 1
        %s8836 = scalar_select %p8835, %s30, 1
        %s8837 = smul.addr %s8836, 32
        %s8838 = smul.addr %s8837, 8
        %s8839 = scalar_lea.vmem %s15, %s8838
        // Predicated region
        $region73: #{lfa_convlstm_cell_out.1} parent=71 // pred_check
          %p8840 = pneg %p346
        $region74: #{lfa_convlstm_cell_out.1} parent=71 // pred_check_branch
          %8842 = sbr.rel (%p8840) target = $region76
        $region75: #{lfa_convlstm_cell_out.1} parent=71 // pred_region
          %s8844 = ssub.s32 4096, 4096
          %8845 = vsyncadd %s8826, %s8844
          %s8846 = smul.addr %s30, 32
          %s8847 = smul.addr %s8846, 128
          %s8848 = scalar_lea.hbm %s13, %s8847
          %s8849 = sshll.u32 %s8829, 4
          %s8850 = int_to_ptr.vmem [resolvable:$true] %s8849
          %8855 = dma.vmem_to_hbm [thread:$0]  %s8850, 4096, %s8848, %s8826, 128, 128, 8
        $region76: #{lfa_convlstm_cell_out.1} parent=71 // pred_fallthru
          _
        // Predicated region
        $region77: #{lfa_convlstm_cell_out.1} parent=71 // pred_check
          %p8856 = pneg %p372
        $region78: #{lfa_convlstm_cell_out.1} parent=71 // pred_check_branch
          %8858 = sbr.rel (%p8856) target = $region80
        $region79: #{lfa_convlstm_cell_out.1} parent=71 // pred_region
          _
        $region80: #{lfa_convlstm_cell_out.1} parent=71 // pred_fallthru
          _
        // Predicated region
        $region81: #{lfa_convlstm_cell_out.1} parent=71 // pred_check
          %p8859 = pneg %p398
        $region82: #{lfa_convlstm_cell_out.1} parent=71 // pred_check_branch
          %8861 = sbr.rel (%p8859) target = $region84
        $region83: #{lfa_convlstm_cell_out.1} parent=71 // pred_region
          _
        $region84: #{lfa_convlstm_cell_out.1} parent=71 // pred_fallthru
          _
      $region72: #{lfa_convlstm_cell_out.1} parent=5 // pred_fallthru
        _
      %p8862 = scmp.le.s32.totalorder 2, %s25
      // Predicated region
      $region85: #{lfa_convlstm_cell_out.1} parent=5 // pred_check
        %p8863 = pneg %p8862
      $region86: #{lfa_convlstm_cell_out.1} parent=5 // pred_check_branch
        %8865 = sbr.rel (%p8863) target = $region88
      $region87: #{lfa_convlstm_cell_out.1} parent=5 // pred_region
        %s8866 = ssub.s32 %s25, 2
        // Predicated region
        $region89: #{lfa_convlstm_cell_out.1} parent=87 // pred_check
          %p8867 = pneg %p352
        $region90: #{lfa_convlstm_cell_out.1} parent=87 // pred_check_branch
          %8869 = sbr.rel (%p8867) target = $region92
        $region91: #{lfa_convlstm_cell_out.1} parent=87 // pred_region
          %s8870 = sand.u32 %s337, 1
          %s8871 = scalar_lea.sflag [#allocation7], %s8870
          %s8872 = sand.u32 %s337, 1
          %s8873 = smul.addr %s8872, 256
          %s8874 = scalar_lea.vmem [#allocation6], %s8873
          %8875 = dma.done %s8871, 4096
        $region92: #{lfa_convlstm_cell_out.1} parent=87 // pred_fallthru
          _
        // Predicated region
        $region93: #{lfa_convlstm_cell_out.1} parent=87 // pred_check
          %p8876 = pneg %p378
        $region94: #{lfa_convlstm_cell_out.1} parent=87 // pred_check_branch
          %8878 = sbr.rel (%p8876) target = $region96
        $region95: #{lfa_convlstm_cell_out.1} parent=87 // pred_region
          %p8879 = scmp.lt.s32.totalorder %s31, 1
          %s8880 = scalar_select %p8879, %s31, 1
          %s8881 = smul.addr %s8880, 32
          %s8882 = smul.addr %s8881, 8
          %s8883 = scalar_lea.vmem %s14, %s8882
        $region96: #{lfa_convlstm_cell_out.1} parent=87 // pred_fallthru
          _
        // Predicated region
        $region97: #{lfa_convlstm_cell_out.1} parent=87 // pred_check
          %p8884 = pneg %p404
        $region98: #{lfa_convlstm_cell_out.1} parent=87 // pred_check_branch
          %8886 = sbr.rel (%p8884) target = $region100
        $region99: #{lfa_convlstm_cell_out.1} parent=87 // pred_region
          %p8887 = scmp.lt.s32.totalorder %s31, 1
          %s8888 = scalar_select %p8887, %s31, 1
          %s8889 = smul.addr %s8888, 32
          %s8890 = smul.addr %s8889, 8
          %s8891 = scalar_lea.vmem %s15, %s8890
        $region100: #{lfa_convlstm_cell_out.1} parent=87 // pred_fallthru
          _
      $region88: #{lfa_convlstm_cell_out.1} parent=5 // pred_fallthru
        _
    $region6: #{lfa_convlstm_cell_out.1} parent=1 // loop_footer
      %s29 = sadd.s32 1, %s25
    $region7: #{lfa_convlstm_cell_out.1} parent=1 // loop_footer_branch
      %24 = sbr.rel target = $region3
    $region8: #{lfa_convlstm_cell_out.1} parent=1 // loop_exit
      _
    %8892 = vsyncpa [#allocation7], 1
    %s8893 = scalar_lea.sflag [#allocation7], 1
    %8894 = vsyncpa %s8893, 1

</llo_original>
